<compile_context>
chip_gen: v5e
topology: v5e:2x2
jax: 0.10.0
libtpu: 0.0.40
codegen_flags: <defaults>
</compile_context>

<pallas_src>
import functools

import jax
import jax.numpy as jnp
from jax.experimental import pallas as pl
from jax.experimental.pallas import tpu as pltpu

IMG_SIZE = 28 * 28  # 784
CL = 2
EL1, EL2, EL3 = 288, 96, 32
DL1, DL2, DL3 = 32, 96, 288

ENC_DIMS = [(IMG_SIZE, EL1), (EL1, EL2), (EL2, EL3), (EL3, CL)]
DEC_DIMS = [(CL, DL1), (DL1, DL2), (DL2, DL3), (DL3, IMG_SIZE)]

# MACs per batch row of the fused network (for the XLA cost estimate).
_MACS_PER_ROW = (IMG_SIZE * EL1 + EL1 * EL2 + EL2 * EL3 + EL3 * CL       # encoder
                 + EL3 * DL1 + DL1 * DL2 + DL2 * DL3 + DL3 * IMG_SIZE)   # decoder (fused)


def _round_up(x, m):
    return ((x + m - 1) // m) * m


def _autoencoder_kernel(x_ref,
                        we1, be1, we2, be2, we3, be3, we4, be4,
                        wd1, bd1, wd2, bd2, wd3, bd3, wd4, bd4,
                        y_ref, code_ref):
    """One batch tile: 8 layers fused. Weights are bf16 and VMEM-resident
    (constant index maps); matmuls accumulate in f32 on the MXU; bias-add /
    ReLU happen in f32 on the accumulator. `wd1`/`bd1` are the pre-fused
    (we4 @ wd1) / (be4 @ wd1 + bd1) decoder-entry parameters."""

    def layer(h_bf16, w_ref, b_ref, relu):
        acc = jnp.dot(h_bf16, w_ref[...], preferred_element_type=jnp.float32)
        acc = acc + b_ref[...]                    # f32 bias broadcast
        if relu:
            acc = jnp.maximum(acc, 0.0)
        return acc

    h = x_ref[...]                                # (tile_b, 784) bf16

    # ---- encoder ----
    h = layer(h, we1, be1, True).astype(jnp.bfloat16)
    h = layer(h, we2, be2, True).astype(jnp.bfloat16)
    h3 = layer(h, we3, be3, True).astype(jnp.bfloat16)       # (tile_b, 32)

    # latent code (no ReLU)
    code_ref[...] = layer(h3, we4, be4, False).astype(code_ref.dtype)

    # ---- decoder (first layer fused with the code projection) ----
    h = layer(h3, wd1, bd1, True).astype(jnp.bfloat16)        # 32 -> 32 (fused)
    h = layer(h, wd2, bd2, True).astype(jnp.bfloat16)
    h = layer(h, wd3, bd3, True).astype(jnp.bfloat16)
    y_ref[...] = layer(h, wd4, bd4, False).astype(y_ref.dtype)


@functools.partial(jax.jit, static_argnames=("tile_b",))
def autoencoder_forward(x, kernel_params, tile_b=256):
    """x: (B, 784) f32.  kernel_params: output of prepare_kernel_params().
    Returns (y, code) in f32, matching the PyTorch module semantics."""
    batch = x.shape[0]
    # Large batch tiles for MXU fill; shrink to the (8-padded) batch if smaller.
    tile_b = int(min(tile_b, _round_up(max(batch, 8), 8)))
    b_pad = _round_up(batch, tile_b)

    x_p = x.astype(jnp.bfloat16)
    if b_pad != batch:
        x_p = jnp.pad(x_p, ((0, b_pad - batch), (0, 0)))

    grid = (b_pad // tile_b,)

    # x / outputs stream per grid step; weights & biases use constant block
    # index maps so they are fetched once and stay VMEM-resident.
    in_specs = [pl.BlockSpec((tile_b, IMG_SIZE), lambda i: (i, 0))]
    for p in kernel_params:
        in_specs.append(pl.BlockSpec(p.shape, lambda i: (0, 0)))
    out_specs = (
        pl.BlockSpec((tile_b, IMG_SIZE), lambda i: (i, 0)),   # y (full 784 block)
        pl.BlockSpec((tile_b, CL), lambda i: (i, 0)),         # code
    )
    # NOTE: on v5e, if xprof shows exposed x-tile DMA, set
    # pipeline_mode=pl.Buffered(3) on the x BlockSpec above.

    param_bytes = sum(int(p.size) * p.dtype.itemsize for p in kernel_params)
    bytes_accessed = param_bytes + b_pad * (IMG_SIZE * 2 + IMG_SIZE * 4 + CL * 4)
    cost = pl.CostEstimate(flops=2 * _MACS_PER_ROW * b_pad,
                           transcendentals=0,
                           bytes_accessed=int(bytes_accessed))

    y, code = pl.pallas_call(
        _autoencoder_kernel,
        out_shape=(
            jax.ShapeDtypeStruct((b_pad, IMG_SIZE), jnp.float32),  # reconstruction
            jax.ShapeDtypeStruct((b_pad, CL), jnp.float32),        # latent code
        ),
        grid=grid,
        in_specs=in_specs,
        out_specs=out_specs,
        compiler_params=pltpu.CompilerParams(
            dimension_semantics=("parallel",)),                    # v7x: 2 TCs
        cost_estimate=cost,
    )(x_p, *kernel_params)

    if b_pad != batch:
        y = y[:batch]
        code = code[:batch]
    return y, code


def init_params(key):
    """Deterministic init mirroring nn.Linear's default U(-1/sqrt(fan_in), +1/sqrt(fan_in)).

    Weights are produced directly in (in_features, out_features) layout
    (i.e. PyTorch weight.T); biases as (1, out_features). All f32.
    """
    params = []
    dims = ENC_DIMS + DEC_DIMS
    keys = jax.random.split(key, 2 * len(dims))
    for i, (fan_in, fan_out) in enumerate(dims):
        bound = 1.0 / jnp.sqrt(jnp.float32(fan_in))
        w = jax.random.uniform(keys[2 * i], (fan_in, fan_out),
                               minval=-bound, maxval=bound, dtype=jnp.float32)
        b = jax.random.uniform(keys[2 * i + 1], (1, fan_out),
                               minval=-bound, maxval=bound, dtype=jnp.float32)
        params += [w, b]
    return params


def prepare_kernel_params(params):
    """f32 module params -> kernel params: bf16 weights, f32 biases, with the
    K=2 decoder entry fused into a 32x32 layer (exact composition in f32)."""
    we1, be1, we2, be2, we3, be3, we4, be4 = params[0:8]
    wd1, bd1, wd2, bd2, wd3, bd3, wd4, bd4 = params[8:16]

    wd1_eff = we4 @ wd1                  # (32, 32)
    bd1_eff = be4 @ wd1 + bd1            # (1, 32)

    ws = [we1, we2, we3, we4, wd1_eff, wd2, wd3, wd4]
    bs = [be1, be2, be3, be4, bd1_eff, bd2, bd3, bd4]

    kernel_params = []
    for w, b in zip(ws, bs):
        kernel_params.append(w.astype(jnp.bfloat16))
        kernel_params.append(b.astype(jnp.float32))
    return kernel_params


def reference_forward(x, params):
    """Pure-JAX f32 reference (unfused, matches the PyTorch module exactly)."""
    h = x
    for i in range(4):
        h = h @ params[2 * i] + params[2 * i + 1]
        if i < 3:
            h = jnp.maximum(h, 0.0)
    code = h
    h = code
    for i in range(4, 8):
        h = h @ params[2 * i] + params[2 * i + 1]
        if i < 7:
            h = jnp.maximum(h, 0.0)
    return h, code


if __name__ == "__main__":
    key = jax.random.PRNGKey(0)
    k_param, k_x = jax.random.split(key)

    params = init_params(k_param)                 # f32, module-equivalent layout
    kernel_params = prepare_kernel_params(params)

    batch = 300                                    # exercises grid > 1 + padding
    x = jax.random.normal(k_x, (batch, IMG_SIZE), dtype=jnp.float32)

    y, code = autoencoder_forward(x, kernel_params)
    y = jax.block_until_ready(y)
    code = jax.block_until_ready(code)

    assert y.shape == (batch, IMG_SIZE) and y.dtype == jnp.float32
    assert code.shape == (batch, CL) and code.dtype == jnp.float32

    # f32 reference; kernel uses bf16 matmul inputs so compare with a tolerance
    # scaled to the reference magnitude.
    y_ref, code_ref = reference_forward(x, params)

    def max_rel_err(a, b):
        scale = jnp.maximum(jnp.max(jnp.abs(b)), 1e-6)
        return float(jnp.max(jnp.abs(a - b)) / scale)

    assert max_rel_err(y, y_ref) < 5e-2, f"y err {max_rel_err(y, y_ref)}"
    assert max_rel_err(code, code_ref) < 5e-2, f"code err {max_rel_err(code, code_ref)}"

    print("KERNEL_OK")
</pallas_src>

<mosaic_0001>
module attributes {stable_mosaic.version = 11 : i64} {
  func.func @_autoencoder_kernel(%arg0: i32, %arg1: memref<256x784xbf16, #tpu.memory_space<vmem>>, %arg2: memref<784x288xbf16, #tpu.memory_space<vmem>>, %arg3: memref<1x288xf32, #tpu.memory_space<vmem>>, %arg4: memref<288x96xbf16, #tpu.memory_space<vmem>>, %arg5: memref<1x96xf32, #tpu.memory_space<vmem>>, %arg6: memref<96x32xbf16, #tpu.memory_space<vmem>>, %arg7: memref<1x32xf32, #tpu.memory_space<vmem>>, %arg8: memref<32x2xbf16, #tpu.memory_space<vmem>>, %arg9: memref<1x2xf32, #tpu.memory_space<vmem>>, %arg10: memref<32x32xbf16, #tpu.memory_space<vmem>>, %arg11: memref<1x32xf32, #tpu.memory_space<vmem>>, %arg12: memref<32x96xbf16, #tpu.memory_space<vmem>>, %arg13: memref<1x96xf32, #tpu.memory_space<vmem>>, %arg14: memref<96x288xbf16, #tpu.memory_space<vmem>>, %arg15: memref<1x288xf32, #tpu.memory_space<vmem>>, %arg16: memref<288x784xbf16, #tpu.memory_space<vmem>>, %arg17: memref<1x784xf32, #tpu.memory_space<vmem>>, %arg18: memref<256x784xf32, #tpu.memory_space<vmem>>, %arg19: memref<256x2xf32, #tpu.memory_space<vmem>>) attributes {dimension_semantics = [#tpu.dimension_semantics<parallel>], iteration_bounds = array<i64: 2>, scalar_prefetch = 0 : i64, scratch_operands = 0 : i64, tpu.core_type = #tpu.core_type<tc>, window_params = [{transform_indices = @transform_0, window_bounds = array<i64: 256, 784>}, {pipeline_mode = #tpu.pipeline_mode<synchronous>, transform_indices = @transform_1, window_bounds = array<i64: 784, 288>}, {pipeline_mode = #tpu.pipeline_mode<synchronous>, transform_indices = @transform_2, window_bounds = array<i64: 1, 288>}, {pipeline_mode = #tpu.pipeline_mode<synchronous>, transform_indices = @transform_3, window_bounds = array<i64: 288, 96>}, {pipeline_mode = #tpu.pipeline_mode<synchronous>, transform_indices = @transform_4, window_bounds = array<i64: 1, 96>}, {pipeline_mode = #tpu.pipeline_mode<synchronous>, transform_indices = @transform_5, window_bounds = array<i64: 96, 32>}, {pipeline_mode = #tpu.pipeline_mode<synchronous>, transform_indices = @transform_6, window_bounds = array<i64: 1, 32>}, {pipeline_mode = #tpu.pipeline_mode<synchronous>, transform_indices = @transform_7, window_bounds = array<i64: 32, 2>}, {pipeline_mode = #tpu.pipeline_mode<synchronous>, transform_indices = @transform_8, window_bounds = array<i64: 1, 2>}, {pipeline_mode = #tpu.pipeline_mode<synchronous>, transform_indices = @transform_9, window_bounds = array<i64: 32, 32>}, {pipeline_mode = #tpu.pipeline_mode<synchronous>, transform_indices = @transform_10, window_bounds = array<i64: 1, 32>}, {pipeline_mode = #tpu.pipeline_mode<synchronous>, transform_indices = @transform_11, window_bounds = array<i64: 32, 96>}, {pipeline_mode = #tpu.pipeline_mode<synchronous>, transform_indices = @transform_12, window_bounds = array<i64: 1, 96>}, {pipeline_mode = #tpu.pipeline_mode<synchronous>, transform_indices = @transform_13, window_bounds = array<i64: 96, 288>}, {pipeline_mode = #tpu.pipeline_mode<synchronous>, transform_indices = @transform_14, window_bounds = array<i64: 1, 288>}, {pipeline_mode = #tpu.pipeline_mode<synchronous>, transform_indices = @transform_15, window_bounds = array<i64: 288, 784>}, {pipeline_mode = #tpu.pipeline_mode<synchronous>, transform_indices = @transform_16, window_bounds = array<i64: 1, 784>}, {transform_indices = @transform_17, window_bounds = array<i64: 256, 784>}, {transform_indices = @transform_18, window_bounds = array<i64: 256, 2>}]} {
    %c0 = arith.constant 0 : index
    %c0_0 = arith.constant 0 : index
    %0 = vector.load %arg1[%c0, %c0_0] : memref<256x784xbf16, #tpu.memory_space<vmem>>, vector<256x784xbf16>
    %c0_1 = arith.constant 0 : index
    %c0_2 = arith.constant 0 : index
    %1 = vector.load %arg2[%c0_1, %c0_2] : memref<784x288xbf16, #tpu.memory_space<vmem>>, vector<784x288xbf16>
    %cst = arith.constant dense<0.000000e+00> : vector<256x288xf32>
    %2 = tpu.matmul %0, %1, %cst {dimension_numbers = #tpu.dot_dimension_numbers<[1], [0], [0], [1], [0, 0, 1, 1], [], []>} : vector<256x784xbf16>, vector<784x288xbf16>, vector<256x288xf32> -> vector<256x288xf32>
    %c0_3 = arith.constant 0 : index
    %c0_4 = arith.constant 0 : index
    %3 = vector.load %arg3[%c0_3, %c0_4] : memref<1x288xf32, #tpu.memory_space<vmem>>, vector<1x288xf32>
    %4 = vector.broadcast %3 : vector<1x288xf32> to vector<256x288xf32>
    %5 = arith.addf %2, %4 : vector<256x288xf32>
    %cst_5 = arith.constant 0.000000e+00 : f32
    %6 = vector.broadcast %cst_5 : f32 to vector<256x288xf32>
    %7 = arith.maximumf %5, %6 : vector<256x288xf32>
    %8 = arith.truncf %7 : vector<256x288xf32> to vector<256x288xbf16>
    %c0_6 = arith.constant 0 : index
    %c0_7 = arith.constant 0 : index
    %9 = vector.load %arg4[%c0_6, %c0_7] : memref<288x96xbf16, #tpu.memory_space<vmem>>, vector<288x96xbf16>
    %cst_8 = arith.constant dense<0.000000e+00> : vector<256x96xf32>
    %10 = tpu.matmul %8, %9, %cst_8 {dimension_numbers = #tpu.dot_dimension_numbers<[1], [0], [0], [1], [0, 0, 1, 1], [], []>} : vector<256x288xbf16>, vector<288x96xbf16>, vector<256x96xf32> -> vector<256x96xf32>
    %c0_9 = arith.constant 0 : index
    %c0_10 = arith.constant 0 : index
    %11 = vector.load %arg5[%c0_9, %c0_10] : memref<1x96xf32, #tpu.memory_space<vmem>>, vector<1x96xf32>
    %12 = vector.broadcast %11 : vector<1x96xf32> to vector<256x96xf32>
    %13 = arith.addf %10, %12 : vector<256x96xf32>
    %cst_11 = arith.constant 0.000000e+00 : f32
    %14 = vector.broadcast %cst_11 : f32 to vector<256x96xf32>
    %15 = arith.maximumf %13, %14 : vector<256x96xf32>
    %16 = arith.truncf %15 : vector<256x96xf32> to vector<256x96xbf16>
    %c0_12 = arith.constant 0 : index
    %c0_13 = arith.constant 0 : index
    %17 = vector.load %arg6[%c0_12, %c0_13] : memref<96x32xbf16, #tpu.memory_space<vmem>>, vector<96x32xbf16>
    %cst_14 = arith.constant dense<0.000000e+00> : vector<256x32xf32>
    %18 = tpu.matmul %16, %17, %cst_14 {dimension_numbers = #tpu.dot_dimension_numbers<[1], [0], [0], [1], [0, 0, 1, 1], [], []>} : vector<256x96xbf16>, vector<96x32xbf16>, vector<256x32xf32> -> vector<256x32xf32>
    %c0_15 = arith.constant 0 : index
    %c0_16 = arith.constant 0 : index
    %19 = vector.load %arg7[%c0_15, %c0_16] : memref<1x32xf32, #tpu.memory_space<vmem>>, vector<1x32xf32>
    %20 = vector.broadcast %19 : vector<1x32xf32> to vector<256x32xf32>
    %21 = arith.addf %18, %20 : vector<256x32xf32>
    %cst_17 = arith.constant 0.000000e+00 : f32
    %22 = vector.broadcast %cst_17 : f32 to vector<256x32xf32>
    %23 = arith.maximumf %21, %22 : vector<256x32xf32>
    %24 = arith.truncf %23 : vector<256x32xf32> to vector<256x32xbf16>
    %c0_18 = arith.constant 0 : index
    %c0_19 = arith.constant 0 : index
    %25 = vector.load %arg8[%c0_18, %c0_19] : memref<32x2xbf16, #tpu.memory_space<vmem>>, vector<32x2xbf16>
    %cst_20 = arith.constant dense<0.000000e+00> : vector<256x2xf32>
    %26 = tpu.matmul %24, %25, %cst_20 {dimension_numbers = #tpu.dot_dimension_numbers<[1], [0], [0], [1], [0, 0, 1, 1], [], []>} : vector<256x32xbf16>, vector<32x2xbf16>, vector<256x2xf32> -> vector<256x2xf32>
    %c0_21 = arith.constant 0 : index
    %c0_22 = arith.constant 0 : index
    %27 = vector.load %arg9[%c0_21, %c0_22] : memref<1x2xf32, #tpu.memory_space<vmem>>, vector<1x2xf32>
    %28 = vector.broadcast %27 : vector<1x2xf32> to vector<256x2xf32>
    %29 = arith.addf %26, %28 : vector<256x2xf32>
    %c0_23 = arith.constant 0 : index
    %c0_24 = arith.constant 0 : index
    %30 = vector.load %arg19[%c0_23, %c0_24] : memref<256x2xf32, #tpu.memory_space<vmem>>, vector<256x2xf32>
    tpu.vector_store %arg19[%c0_23, %c0_24], %29 {strides = array<i32>} : memref<256x2xf32, #tpu.memory_space<vmem>>, vector<256x2xf32>,
    %c0_25 = arith.constant 0 : index
    %c0_26 = arith.constant 0 : index
    %31 = vector.load %arg10[%c0_25, %c0_26] : memref<32x32xbf16, #tpu.memory_space<vmem>>, vector<32x32xbf16>
    %cst_27 = arith.constant dense<0.000000e+00> : vector<256x32xf32>
    %32 = tpu.matmul %24, %31, %cst_27 {dimension_numbers = #tpu.dot_dimension_numbers<[1], [0], [0], [1], [0, 0, 1, 1], [], []>} : vector<256x32xbf16>, vector<32x32xbf16>, vector<256x32xf32> -> vector<256x32xf32>
    %c0_28 = arith.constant 0 : index
    %c0_29 = arith.constant 0 : index
    %33 = vector.load %arg11[%c0_28, %c0_29] : memref<1x32xf32, #tpu.memory_space<vmem>>, vector<1x32xf32>
    %34 = vector.broadcast %33 : vector<1x32xf32> to vector<256x32xf32>
    %35 = arith.addf %32, %34 : vector<256x32xf32>
    %cst_30 = arith.constant 0.000000e+00 : f32
    %36 = vector.broadcast %cst_30 : f32 to vector<256x32xf32>
    %37 = arith.maximumf %35, %36 : vector<256x32xf32>
    %38 = arith.truncf %37 : vector<256x32xf32> to vector<256x32xbf16>
    %c0_31 = arith.constant 0 : index
    %c0_32 = arith.constant 0 : index
    %39 = vector.load %arg12[%c0_31, %c0_32] : memref<32x96xbf16, #tpu.memory_space<vmem>>, vector<32x96xbf16>
    %cst_33 = arith.constant dense<0.000000e+00> : vector<256x96xf32>
    %40 = tpu.matmul %38, %39, %cst_33 {dimension_numbers = #tpu.dot_dimension_numbers<[1], [0], [0], [1], [0, 0, 1, 1], [], []>} : vector<256x32xbf16>, vector<32x96xbf16>, vector<256x96xf32> -> vector<256x96xf32>
    %c0_34 = arith.constant 0 : index
    %c0_35 = arith.constant 0 : index
    %41 = vector.load %arg13[%c0_34, %c0_35] : memref<1x96xf32, #tpu.memory_space<vmem>>, vector<1x96xf32>
    %42 = vector.broadcast %41 : vector<1x96xf32> to vector<256x96xf32>
    %43 = arith.addf %40, %42 : vector<256x96xf32>
    %cst_36 = arith.constant 0.000000e+00 : f32
    %44 = vector.broadcast %cst_36 : f32 to vector<256x96xf32>
    %45 = arith.maximumf %43, %44 : vector<256x96xf32>
    %46 = arith.truncf %45 : vector<256x96xf32> to vector<256x96xbf16>
    %c0_37 = arith.constant 0 : index
    %c0_38 = arith.constant 0 : index
    %47 = vector.load %arg14[%c0_37, %c0_38] : memref<96x288xbf16, #tpu.memory_space<vmem>>, vector<96x288xbf16>
    %cst_39 = arith.constant dense<0.000000e+00> : vector<256x288xf32>
    %48 = tpu.matmul %46, %47, %cst_39 {dimension_numbers = #tpu.dot_dimension_numbers<[1], [0], [0], [1], [0, 0, 1, 1], [], []>} : vector<256x96xbf16>, vector<96x288xbf16>, vector<256x288xf32> -> vector<256x288xf32>
    %c0_40 = arith.constant 0 : index
    %c0_41 = arith.constant 0 : index
    %49 = vector.load %arg15[%c0_40, %c0_41] : memref<1x288xf32, #tpu.memory_space<vmem>>, vector<1x288xf32>
    %50 = vector.broadcast %49 : vector<1x288xf32> to vector<256x288xf32>
    %51 = arith.addf %48, %50 : vector<256x288xf32>
    %cst_42 = arith.constant 0.000000e+00 : f32
    %52 = vector.broadcast %cst_42 : f32 to vector<256x288xf32>
    %53 = arith.maximumf %51, %52 : vector<256x288xf32>
    %54 = arith.truncf %53 : vector<256x288xf32> to vector<256x288xbf16>
    %c0_43 = arith.constant 0 : index
    %c0_44 = arith.constant 0 : index
    %55 = vector.load %arg16[%c0_43, %c0_44] : memref<288x784xbf16, #tpu.memory_space<vmem>>, vector<288x784xbf16>
    %cst_45 = arith.constant dense<0.000000e+00> : vector<256x784xf32>
    %56 = tpu.matmul %54, %55, %cst_45 {dimension_numbers = #tpu.dot_dimension_numbers<[1], [0], [0], [1], [0, 0, 1, 1], [], []>} : vector<256x288xbf16>, vector<288x784xbf16>, vector<256x784xf32> -> vector<256x784xf32>
    %c0_46 = arith.constant 0 : index
    %c0_47 = arith.constant 0 : index
    %57 = vector.load %arg17[%c0_46, %c0_47] : memref<1x784xf32, #tpu.memory_space<vmem>>, vector<1x784xf32>
    %58 = vector.broadcast %57 : vector<1x784xf32> to vector<256x784xf32>
    %59 = arith.addf %56, %58 : vector<256x784xf32>
    %c0_48 = arith.constant 0 : index
    %c0_49 = arith.constant 0 : index
    %60 = vector.load %arg18[%c0_48, %c0_49] : memref<256x784xf32, #tpu.memory_space<vmem>>, vector<256x784xf32>
    tpu.vector_store %arg18[%c0_48, %c0_49], %59 {strides = array<i32>} : memref<256x784xf32, #tpu.memory_space<vmem>>, vector<256x784xf32>,
    return
  }
  func.func @transform_0(%arg0: i32) -> (i32, i32) {
    %c0_i32 = arith.constant 0 : i32
    %c0_i32_0 = arith.constant 0 : i32
    return %arg0, %c0_i32 : i32, i32
  }
  func.func @transform_1(%arg0: i32) -> (i32, i32) {
    %c0_i32 = arith.constant 0 : i32
    %c0_i32_0 = arith.constant 0 : i32
    %c0_i32_1 = arith.constant 0 : i32
    return %c0_i32, %c0_i32_0 : i32, i32
  }
  func.func @transform_2(%arg0: i32) -> (i32, i32) {
    %c0_i32 = arith.constant 0 : i32
    %c0_i32_0 = arith.constant 0 : i32
    %c0_i32_1 = arith.constant 0 : i32
    return %c0_i32, %c0_i32_0 : i32, i32
  }
  func.func @transform_3(%arg0: i32) -> (i32, i32) {
    %c0_i32 = arith.constant 0 : i32
    %c0_i32_0 = arith.constant 0 : i32
    %c0_i32_1 = arith.constant 0 : i32
    return %c0_i32, %c0_i32_0 : i32, i32
  }
  func.func @transform_4(%arg0: i32) -> (i32, i32) {
    %c0_i32 = arith.constant 0 : i32
    %c0_i32_0 = arith.constant 0 : i32
    %c0_i32_1 = arith.constant 0 : i32
    return %c0_i32, %c0_i32_0 : i32, i32
  }
  func.func @transform_5(%arg0: i32) -> (i32, i32) {
    %c0_i32 = arith.constant 0 : i32
    %c0_i32_0 = arith.constant 0 : i32
    %c0_i32_1 = arith.constant 0 : i32
    return %c0_i32, %c0_i32_0 : i32, i32
  }
  func.func @transform_6(%arg0: i32) -> (i32, i32) {
    %c0_i32 = arith.constant 0 : i32
    %c0_i32_0 = arith.constant 0 : i32
    %c0_i32_1 = arith.constant 0 : i32
    return %c0_i32, %c0_i32_0 : i32, i32
  }
  func.func @transform_7(%arg0: i32) -> (i32, i32) {
    %c0_i32 = arith.constant 0 : i32
    %c0_i32_0 = arith.constant 0 : i32
    %c0_i32_1 = arith.constant 0 : i32
    return %c0_i32, %c0_i32_0 : i32, i32
  }
  func.func @transform_8(%arg0: i32) -> (i32, i32) {
    %c0_i32 = arith.constant 0 : i32
    %c0_i32_0 = arith.constant 0 : i32
    %c0_i32_1 = arith.constant 0 : i32
    return %c0_i32, %c0_i32_0 : i32, i32
  }
  func.func @transform_9(%arg0: i32) -> (i32, i32) {
    %c0_i32 = arith.constant 0 : i32
    %c0_i32_0 = arith.constant 0 : i32
    %c0_i32_1 = arith.constant 0 : i32
    return %c0_i32, %c0_i32_0 : i32, i32
  }
  func.func @transform_10(%arg0: i32) -> (i32, i32) {
    %c0_i32 = arith.constant 0 : i32
    %c0_i32_0 = arith.constant 0 : i32
    %c0_i32_1 = arith.constant 0 : i32
    return %c0_i32, %c0_i32_0 : i32, i32
  }
  func.func @transform_11(%arg0: i32) -> (i32, i32) {
    %c0_i32 = arith.constant 0 : i32
    %c0_i32_0 = arith.constant 0 : i32
    %c0_i32_1 = arith.constant 0 : i32
    return %c0_i32, %c0_i32_0 : i32, i32
  }
  func.func @transform_12(%arg0: i32) -> (i32, i32) {
    %c0_i32 = arith.constant 0 : i32
    %c0_i32_0 = arith.constant 0 : i32
    %c0_i32_1 = arith.constant 0 : i32
    return %c0_i32, %c0_i32_0 : i32, i32
  }
  func.func @transform_13(%arg0: i32) -> (i32, i32) {
    %c0_i32 = arith.constant 0 : i32
    %c0_i32_0 = arith.constant 0 : i32
    %c0_i32_1 = arith.constant 0 : i32
    return %c0_i32, %c0_i32_0 : i32, i32
  }
  func.func @transform_14(%arg0: i32) -> (i32, i32) {
    %c0_i32 = arith.constant 0 : i32
    %c0_i32_0 = arith.constant 0 : i32
    %c0_i32_1 = arith.constant 0 : i32
    return %c0_i32, %c0_i32_0 : i32, i32
  }
  func.func @transform_15(%arg0: i32) -> (i32, i32) {
    %c0_i32 = arith.constant 0 : i32
    %c0_i32_0 = arith.constant 0 : i32
    %c0_i32_1 = arith.constant 0 : i32
    return %c0_i32, %c0_i32_0 : i32, i32
  }
  func.func @transform_16(%arg0: i32) -> (i32, i32) {
    %c0_i32 = arith.constant 0 : i32
    %c0_i32_0 = arith.constant 0 : i32
    %c0_i32_1 = arith.constant 0 : i32
    return %c0_i32, %c0_i32_0 : i32, i32
  }
  func.func @transform_17(%arg0: i32) -> (i32, i32) {
    %c0_i32 = arith.constant 0 : i32
    %c0_i32_0 = arith.constant 0 : i32
    return %arg0, %c0_i32 : i32, i32
  }
  func.func @transform_18(%arg0: i32) -> (i32, i32) {
    %c0_i32 = arith.constant 0 : i32
    %c0_i32_0 = arith.constant 0 : i32
    return %arg0, %c0_i32 : i32, i32
  }
}

</mosaic_0001>

<llo_original>
// kernel: autoencoder_forward.1
$region0: #{autoencoder_forward.1}
  #allocation0 [shape = 'u32[]', space=smem, size = 0x4, offset = 0x4, fixed_abs, tag = 'smem constant byte address 0x4 - core index']
  #allocation1 [shape = 'u32[72,128]{1,0:T(1,128)}', space=vmem, size = 0x9000, scoped, tag = 'internal scratch']
  %s0 = inlined_call_operand.vmem [shape: bf16[512,784], index: 0, kind: input, shape index: {}]
  %s1 = inlined_call_operand.vmem [shape: bf16[784,288], index: 1, kind: input, shape index: {}]
  %s2 = inlined_call_operand.vmem [shape: f32[1,288], index: 2, kind: input, shape index: {}]
  %s3 = inlined_call_operand.vmem [shape: bf16[288,96], index: 3, kind: input, shape index: {}]
  %s4 = inlined_call_operand.vmem [shape: f32[1,96], index: 4, kind: input, shape index: {}]
  %s5 = inlined_call_operand.vmem [shape: bf16[96,32], index: 5, kind: input, shape index: {}]
  %s6 = inlined_call_operand.vmem [shape: f32[1,32], index: 6, kind: input, shape index: {}]
  %s7 = inlined_call_operand.vmem [shape: bf16[32,2], index: 7, kind: input, shape index: {}]
  %s8 = inlined_call_operand.vmem [shape: f32[1,2], index: 8, kind: input, shape index: {}]
  %s9 = inlined_call_operand.vmem [shape: bf16[32,32], index: 9, kind: input, shape index: {}]
  %s10 = inlined_call_operand.vmem [shape: f32[1,32], index: 10, kind: input, shape index: {}]
  %s11 = inlined_call_operand.vmem [shape: bf16[32,96], index: 11, kind: input, shape index: {}]
  %s12 = inlined_call_operand.vmem [shape: f32[1,96], index: 12, kind: input, shape index: {}]
  %s13 = inlined_call_operand.vmem [shape: bf16[96,288], index: 13, kind: input, shape index: {}]
  %s14 = inlined_call_operand.vmem [shape: f32[1,288], index: 14, kind: input, shape index: {}]
  %s15 = inlined_call_operand.vmem [shape: bf16[288,784], index: 15, kind: input, shape index: {}]
  %s16 = inlined_call_operand.vmem [shape: f32[1,784], index: 16, kind: input, shape index: {}]
  %s17 = inlined_call_operand.vmem [shape: f32[512,784], index: 17, kind: output, shape index: {0}]
  %s18 = inlined_call_operand.vmem [shape: f32[512,2], index: 18, kind: output, shape index: {1}]
  %19 = xla_tuple %s17, %s18
  %s20 = sld [smem:[#allocation0]]
  $region109: #{autoencoder_forward.1} parent=0
    _
  %s22 = ssub.s32 1, %s20
  %s23 = scalar_select 0, %s22, %s20
  loop: start=0, step=1, limit=4
  $region2: #{autoencoder_forward.1} parent=0 // loop_pre_header
    _
  $region3: #{autoencoder_forward.1} parent=0 // loop_header
    %s25 = sphi 0, %s29
    %p26 = scmp.ge.s32.totalorder %s25, 4
    %s35 = sphi 0, %s37
    %s38 = sphi 0, %s35
    %s39 = sphi 0, %s38
    %s55 = sphi 0, %s39
    %s59 = sphi 0, %s59
    %s61 = sphi 0, %s59
    %s62 = sphi 0, %s61
    %s76 = sphi 0, %s62
    %s80 = sphi 0, %s80
    %s82 = sphi 0, %s80
    %s83 = sphi 0, %s82
    %s97 = sphi 0, %s83
    %s101 = sphi 0, %s101
    %s103 = sphi 0, %s101
    %s104 = sphi 0, %s103
    %s118 = sphi 0, %s104
    %s122 = sphi 0, %s122
    %s124 = sphi 0, %s122
    %s125 = sphi 0, %s124
    %s139 = sphi 0, %s125
    %s143 = sphi 0, %s143
    %s145 = sphi 0, %s143
    %s146 = sphi 0, %s145
    %s160 = sphi 0, %s146
    %s164 = sphi 0, %s164
    %s166 = sphi 0, %s164
    %s167 = sphi 0, %s166
    %s181 = sphi 0, %s167
    %s185 = sphi 0, %s185
    %s187 = sphi 0, %s185
    %s188 = sphi 0, %s187
    %s202 = sphi 0, %s188
    %s206 = sphi 0, %s206
    %s208 = sphi 0, %s206
    %s209 = sphi 0, %s208
    %s223 = sphi 0, %s209
    %s227 = sphi 0, %s227
    %s229 = sphi 0, %s227
    %s230 = sphi 0, %s229
    %s244 = sphi 0, %s230
    %s248 = sphi 0, %s248
    %s250 = sphi 0, %s248
    %s251 = sphi 0, %s250
    %s265 = sphi 0, %s251
    %s269 = sphi 0, %s269
    %s271 = sphi 0, %s269
    %s272 = sphi 0, %s271
    %s286 = sphi 0, %s272
    %s290 = sphi 0, %s290
    %s292 = sphi 0, %s290
    %s293 = sphi 0, %s292
    %s307 = sphi 0, %s293
    %s311 = sphi 0, %s311
    %s313 = sphi 0, %s311
    %s314 = sphi 0, %s313
    %s328 = sphi 0, %s314
    %s332 = sphi 0, %s332
    %s334 = sphi 0, %s332
    %s335 = sphi 0, %s334
    %s349 = sphi 0, %s335
    %s353 = sphi 0, %s353
    %s355 = sphi 0, %s353
    %s356 = sphi 0, %s355
    %s370 = sphi 0, %s356
    %s374 = sphi 0, %s374
    %s376 = sphi 0, %s374
    %s377 = sphi 0, %s376
    %s391 = sphi 0, %s377
    %s397 = sphi 0, %s399
    %s400 = sphi 0, %s397
    %s401 = sphi 0, %s400
    %s417 = sphi 0, %s401
    %s423 = sphi 0, %s425
    %s426 = sphi 0, %s423
    %s427 = sphi 0, %s426
    %s443 = sphi 0, %s427
  $region4: #{autoencoder_forward.1} parent=0 // loop_header_branch
    %28 = sbr.rel (%p26) target = $region8
  $region5: #{autoencoder_forward.1} parent=0 // loop_body
    %s30 = ssub.s32 %s25, 1
    %s31 = ssub.s32 %s25, 2
    %s32 = sadd.s32 %s25, 1
    %s33 = ssub.s32 %s25, %s32
    %p34 = scmp.eq.s32.totalorder %s33, 0
    %s36 = sadd.s32 %s35, 1
    %s37 = scalar_select %p34, %s35, %s36
    %p40 = pneg %p34
    %p41 = scmp.eq.s32.totalorder %s25, 1
    %p42 = por %p40, %p41
    %p43 = scmp.ne.s32.totalorder %s35, %s38
    %p44 = scmp.eq.s32.totalorder %s25, 0
    %p45 = por %p43, %p44
    %p46 = scmp.ne.s32.totalorder %s35, %s38
    %p47 = scmp.eq.s32.totalorder %s30, 1
    %p48 = por %p46, %p47
    %p49 = scmp.ne.s32.totalorder %s38, %s39
    %p50 = scmp.eq.s32.totalorder %s30, 0
    %p51 = por %p49, %p50
    %p52 = scmp.ne.s32.totalorder %s38, %s39
    %p53 = scmp.eq.s32.totalorder %s31, 1
    %p54 = por %p52, %p53
    %p56 = scmp.ne.s32.totalorder %s39, %s55
    %p57 = scmp.eq.s32.totalorder %s31, 0
    %p58 = por %p56, %p57
    %s60 = sadd.s32 %s59, 1
    %p63 = scmp.eq.s32.totalorder %s25, 1
    %p64 = scmp.ne.s32.totalorder %s59, %s61
    %p65 = scmp.eq.s32.totalorder %s25, 0
    %p66 = por %p64, %p65
    %p67 = scmp.ne.s32.totalorder %s59, %s61
    %p68 = scmp.eq.s32.totalorder %s30, 1
    %p69 = por %p67, %p68
    %p70 = scmp.ne.s32.totalorder %s61, %s62
    %p71 = scmp.eq.s32.totalorder %s30, 0
    %p72 = por %p70, %p71
    %p73 = scmp.ne.s32.totalorder %s61, %s62
    %p74 = scmp.eq.s32.totalorder %s31, 1
    %p75 = por %p73, %p74
    %p77 = scmp.ne.s32.totalorder %s62, %s76
    %p78 = scmp.eq.s32.totalorder %s31, 0
    %p79 = por %p77, %p78
    %s81 = sadd.s32 %s80, 1
    %p84 = scmp.eq.s32.totalorder %s25, 1
    %p85 = scmp.ne.s32.totalorder %s80, %s82
    %p86 = scmp.eq.s32.totalorder %s25, 0
    %p87 = por %p85, %p86
    %p88 = scmp.ne.s32.totalorder %s80, %s82
    %p89 = scmp.eq.s32.totalorder %s30, 1
    %p90 = por %p88, %p89
    %p91 = scmp.ne.s32.totalorder %s82, %s83
    %p92 = scmp.eq.s32.totalorder %s30, 0
    %p93 = por %p91, %p92
    %p94 = scmp.ne.s32.totalorder %s82, %s83
    %p95 = scmp.eq.s32.totalorder %s31, 1
    %p96 = por %p94, %p95
    %p98 = scmp.ne.s32.totalorder %s83, %s97
    %p99 = scmp.eq.s32.totalorder %s31, 0
    %p100 = por %p98, %p99
    %s102 = sadd.s32 %s101, 1
    %p105 = scmp.eq.s32.totalorder %s25, 1
    %p106 = scmp.ne.s32.totalorder %s101, %s103
    %p107 = scmp.eq.s32.totalorder %s25, 0
    %p108 = por %p106, %p107
    %p109 = scmp.ne.s32.totalorder %s101, %s103
    %p110 = scmp.eq.s32.totalorder %s30, 1
    %p111 = por %p109, %p110
    %p112 = scmp.ne.s32.totalorder %s103, %s104
    %p113 = scmp.eq.s32.totalorder %s30, 0
    %p114 = por %p112, %p113
    %p115 = scmp.ne.s32.totalorder %s103, %s104
    %p116 = scmp.eq.s32.totalorder %s31, 1
    %p117 = por %p115, %p116
    %p119 = scmp.ne.s32.totalorder %s104, %s118
    %p120 = scmp.eq.s32.totalorder %s31, 0
    %p121 = por %p119, %p120
    %s123 = sadd.s32 %s122, 1
    %p126 = scmp.eq.s32.totalorder %s25, 1
    %p127 = scmp.ne.s32.totalorder %s122, %s124
    %p128 = scmp.eq.s32.totalorder %s25, 0
    %p129 = por %p127, %p128
    %p130 = scmp.ne.s32.totalorder %s122, %s124
    %p131 = scmp.eq.s32.totalorder %s30, 1
    %p132 = por %p130, %p131
    %p133 = scmp.ne.s32.totalorder %s124, %s125
    %p134 = scmp.eq.s32.totalorder %s30, 0
    %p135 = por %p133, %p134
    %p136 = scmp.ne.s32.totalorder %s124, %s125
    %p137 = scmp.eq.s32.totalorder %s31, 1
    %p138 = por %p136, %p137
    %p140 = scmp.ne.s32.totalorder %s125, %s139
    %p141 = scmp.eq.s32.totalorder %s31, 0
    %p142 = por %p140, %p141
    %s144 = sadd.s32 %s143, 1
    %p147 = scmp.eq.s32.totalorder %s25, 1
    %p148 = scmp.ne.s32.totalorder %s143, %s145
    %p149 = scmp.eq.s32.totalorder %s25, 0
    %p150 = por %p148, %p149
    %p151 = scmp.ne.s32.totalorder %s143, %s145
    %p152 = scmp.eq.s32.totalorder %s30, 1
    %p153 = por %p151, %p152
    %p154 = scmp.ne.s32.totalorder %s145, %s146
    %p155 = scmp.eq.s32.totalorder %s30, 0
    %p156 = por %p154, %p155
    %p157 = scmp.ne.s32.totalorder %s145, %s146
    %p158 = scmp.eq.s32.totalorder %s31, 1
    %p159 = por %p157, %p158
    %p161 = scmp.ne.s32.totalorder %s146, %s160
    %p162 = scmp.eq.s32.totalorder %s31, 0
    %p163 = por %p161, %p162
    %s165 = sadd.s32 %s164, 1
    %p168 = scmp.eq.s32.totalorder %s25, 1
    %p169 = scmp.ne.s32.totalorder %s164, %s166
    %p170 = scmp.eq.s32.totalorder %s25, 0
    %p171 = por %p169, %p170
    %p172 = scmp.ne.s32.totalorder %s164, %s166
    %p173 = scmp.eq.s32.totalorder %s30, 1
    %p174 = por %p172, %p173
    %p175 = scmp.ne.s32.totalorder %s166, %s167
    %p176 = scmp.eq.s32.totalorder %s30, 0
    %p177 = por %p175, %p176
    %p178 = scmp.ne.s32.totalorder %s166, %s167
    %p179 = scmp.eq.s32.totalorder %s31, 1
    %p180 = por %p178, %p179
    %p182 = scmp.ne.s32.totalorder %s167, %s181
    %p183 = scmp.eq.s32.totalorder %s31, 0
    %p184 = por %p182, %p183
    %s186 = sadd.s32 %s185, 1
    %p189 = scmp.eq.s32.totalorder %s25, 1
    %p190 = scmp.ne.s32.totalorder %s185, %s187
    %p191 = scmp.eq.s32.totalorder %s25, 0
    %p192 = por %p190, %p191
    %p193 = scmp.ne.s32.totalorder %s185, %s187
    %p194 = scmp.eq.s32.totalorder %s30, 1
    %p195 = por %p193, %p194
    %p196 = scmp.ne.s32.totalorder %s187, %s188
    %p197 = scmp.eq.s32.totalorder %s30, 0
    %p198 = por %p196, %p197
    %p199 = scmp.ne.s32.totalorder %s187, %s188
    %p200 = scmp.eq.s32.totalorder %s31, 1
    %p201 = por %p199, %p200
    %p203 = scmp.ne.s32.totalorder %s188, %s202
    %p204 = scmp.eq.s32.totalorder %s31, 0
    %p205 = por %p203, %p204
    %s207 = sadd.s32 %s206, 1
    %p210 = scmp.eq.s32.totalorder %s25, 1
    %p211 = scmp.ne.s32.totalorder %s206, %s208
    %p212 = scmp.eq.s32.totalorder %s25, 0
    %p213 = por %p211, %p212
    %p214 = scmp.ne.s32.totalorder %s206, %s208
    %p215 = scmp.eq.s32.totalorder %s30, 1
    %p216 = por %p214, %p215
    %p217 = scmp.ne.s32.totalorder %s208, %s209
    %p218 = scmp.eq.s32.totalorder %s30, 0
    %p219 = por %p217, %p218
    %p220 = scmp.ne.s32.totalorder %s208, %s209
    %p221 = scmp.eq.s32.totalorder %s31, 1
    %p222 = por %p220, %p221
    %p224 = scmp.ne.s32.totalorder %s209, %s223
    %p225 = scmp.eq.s32.totalorder %s31, 0
    %p226 = por %p224, %p225
    %s228 = sadd.s32 %s227, 1
    %p231 = scmp.eq.s32.totalorder %s25, 1
    %p232 = scmp.ne.s32.totalorder %s227, %s229
    %p233 = scmp.eq.s32.totalorder %s25, 0
    %p234 = por %p232, %p233
    %p235 = scmp.ne.s32.totalorder %s227, %s229
    %p236 = scmp.eq.s32.totalorder %s30, 1
    %p237 = por %p235, %p236
    %p238 = scmp.ne.s32.totalorder %s229, %s230
    %p239 = scmp.eq.s32.totalorder %s30, 0
    %p240 = por %p238, %p239
    %p241 = scmp.ne.s32.totalorder %s229, %s230
    %p242 = scmp.eq.s32.totalorder %s31, 1
    %p243 = por %p241, %p242
    %p245 = scmp.ne.s32.totalorder %s230, %s244
    %p246 = scmp.eq.s32.totalorder %s31, 0
    %p247 = por %p245, %p246
    %s249 = sadd.s32 %s248, 1
    %p252 = scmp.eq.s32.totalorder %s25, 1
    %p253 = scmp.ne.s32.totalorder %s248, %s250
    %p254 = scmp.eq.s32.totalorder %s25, 0
    %p255 = por %p253, %p254
    %p256 = scmp.ne.s32.totalorder %s248, %s250
    %p257 = scmp.eq.s32.totalorder %s30, 1
    %p258 = por %p256, %p257
    %p259 = scmp.ne.s32.totalorder %s250, %s251
    %p260 = scmp.eq.s32.totalorder %s30, 0
    %p261 = por %p259, %p260
    %p262 = scmp.ne.s32.totalorder %s250, %s251
    %p263 = scmp.eq.s32.totalorder %s31, 1
    %p264 = por %p262, %p263
    %p266 = scmp.ne.s32.totalorder %s251, %s265
    %p267 = scmp.eq.s32.totalorder %s31, 0
    %p268 = por %p266, %p267
    %s270 = sadd.s32 %s269, 1
    %p273 = scmp.eq.s32.totalorder %s25, 1
    %p274 = scmp.ne.s32.totalorder %s269, %s271
    %p275 = scmp.eq.s32.totalorder %s25, 0
    %p276 = por %p274, %p275
    %p277 = scmp.ne.s32.totalorder %s269, %s271
    %p278 = scmp.eq.s32.totalorder %s30, 1
    %p279 = por %p277, %p278
    %p280 = scmp.ne.s32.totalorder %s271, %s272
    %p281 = scmp.eq.s32.totalorder %s30, 0
    %p282 = por %p280, %p281
    %p283 = scmp.ne.s32.totalorder %s271, %s272
    %p284 = scmp.eq.s32.totalorder %s31, 1
    %p285 = por %p283, %p284
    %p287 = scmp.ne.s32.totalorder %s272, %s286
    %p288 = scmp.eq.s32.totalorder %s31, 0
    %p289 = por %p287, %p288
    %s291 = sadd.s32 %s290, 1
    %p294 = scmp.eq.s32.totalorder %s25, 1
    %p295 = scmp.ne.s32.totalorder %s290, %s292
    %p296 = scmp.eq.s32.totalorder %s25, 0
    %p297 = por %p295, %p296
    %p298 = scmp.ne.s32.totalorder %s290, %s292
    %p299 = scmp.eq.s32.totalorder %s30, 1
    %p300 = por %p298, %p299
    %p301 = scmp.ne.s32.totalorder %s292, %s293
    %p302 = scmp.eq.s32.totalorder %s30, 0
    %p303 = por %p301, %p302
    %p304 = scmp.ne.s32.totalorder %s292, %s293
    %p305 = scmp.eq.s32.totalorder %s31, 1
    %p306 = por %p304, %p305
    %p308 = scmp.ne.s32.totalorder %s293, %s307
    %p309 = scmp.eq.s32.totalorder %s31, 0
    %p310 = por %p308, %p309
    %s312 = sadd.s32 %s311, 1
    %p315 = scmp.eq.s32.totalorder %s25, 1
    %p316 = scmp.ne.s32.totalorder %s311, %s313
    %p317 = scmp.eq.s32.totalorder %s25, 0
    %p318 = por %p316, %p317
    %p319 = scmp.ne.s32.totalorder %s311, %s313
    %p320 = scmp.eq.s32.totalorder %s30, 1
    %p321 = por %p319, %p320
    %p322 = scmp.ne.s32.totalorder %s313, %s314
    %p323 = scmp.eq.s32.totalorder %s30, 0
    %p324 = por %p322, %p323
    %p325 = scmp.ne.s32.totalorder %s313, %s314
    %p326 = scmp.eq.s32.totalorder %s31, 1
    %p327 = por %p325, %p326
    %p329 = scmp.ne.s32.totalorder %s314, %s328
    %p330 = scmp.eq.s32.totalorder %s31, 0
    %p331 = por %p329, %p330
    %s333 = sadd.s32 %s332, 1
    %p336 = scmp.eq.s32.totalorder %s25, 1
    %p337 = scmp.ne.s32.totalorder %s332, %s334
    %p338 = scmp.eq.s32.totalorder %s25, 0
    %p339 = por %p337, %p338
    %p340 = scmp.ne.s32.totalorder %s332, %s334
    %p341 = scmp.eq.s32.totalorder %s30, 1
    %p342 = por %p340, %p341
    %p343 = scmp.ne.s32.totalorder %s334, %s335
    %p344 = scmp.eq.s32.totalorder %s30, 0
    %p345 = por %p343, %p344
    %p346 = scmp.ne.s32.totalorder %s334, %s335
    %p347 = scmp.eq.s32.totalorder %s31, 1
    %p348 = por %p346, %p347
    %p350 = scmp.ne.s32.totalorder %s335, %s349
    %p351 = scmp.eq.s32.totalorder %s31, 0
    %p352 = por %p350, %p351
    %s354 = sadd.s32 %s353, 1
    %p357 = scmp.eq.s32.totalorder %s25, 1
    %p358 = scmp.ne.s32.totalorder %s353, %s355
    %p359 = scmp.eq.s32.totalorder %s25, 0
    %p360 = por %p358, %p359
    %p361 = scmp.ne.s32.totalorder %s353, %s355
    %p362 = scmp.eq.s32.totalorder %s30, 1
    %p363 = por %p361, %p362
    %p364 = scmp.ne.s32.totalorder %s355, %s356
    %p365 = scmp.eq.s32.totalorder %s30, 0
    %p366 = por %p364, %p365
    %p367 = scmp.ne.s32.totalorder %s355, %s356
    %p368 = scmp.eq.s32.totalorder %s31, 1
    %p369 = por %p367, %p368
    %p371 = scmp.ne.s32.totalorder %s356, %s370
    %p372 = scmp.eq.s32.totalorder %s31, 0
    %p373 = por %p371, %p372
    %s375 = sadd.s32 %s374, 1
    %p378 = scmp.eq.s32.totalorder %s25, 1
    %p379 = scmp.ne.s32.totalorder %s374, %s376
    %p380 = scmp.eq.s32.totalorder %s25, 0
    %p381 = por %p379, %p380
    %p382 = scmp.ne.s32.totalorder %s374, %s376
    %p383 = scmp.eq.s32.totalorder %s30, 1
    %p384 = por %p382, %p383
    %p385 = scmp.ne.s32.totalorder %s376, %s377
    %p386 = scmp.eq.s32.totalorder %s30, 0
    %p387 = por %p385, %p386
    %p388 = scmp.ne.s32.totalorder %s376, %s377
    %p389 = scmp.eq.s32.totalorder %s31, 1
    %p390 = por %p388, %p389
    %p392 = scmp.ne.s32.totalorder %s377, %s391
    %p393 = scmp.eq.s32.totalorder %s31, 0
    %p394 = por %p392, %p393
    %s395 = ssub.s32 %s25, %s32
    %p396 = scmp.eq.s32.totalorder %s395, 0
    %s398 = sadd.s32 %s397, 1
    %s399 = scalar_select %p396, %s397, %s398
    %p402 = pneg %p396
    %p403 = scmp.eq.s32.totalorder %s25, 1
    %p404 = por %p402, %p403
    %p405 = scmp.ne.s32.totalorder %s397, %s400
    %p406 = scmp.eq.s32.totalorder %s25, 0
    %p407 = por %p405, %p406
    %p408 = scmp.ne.s32.totalorder %s397, %s400
    %p409 = scmp.eq.s32.totalorder %s30, 1
    %p410 = por %p408, %p409
    %p411 = scmp.ne.s32.totalorder %s400, %s401
    %p412 = scmp.eq.s32.totalorder %s30, 0
    %p413 = por %p411, %p412
    %p414 = scmp.ne.s32.totalorder %s400, %s401
    %p415 = scmp.eq.s32.totalorder %s31, 1
    %p416 = por %p414, %p415
    %p418 = scmp.ne.s32.totalorder %s401, %s417
    %p419 = scmp.eq.s32.totalorder %s31, 0
    %p420 = por %p418, %p419
    %s421 = ssub.s32 %s25, %s32
    %p422 = scmp.eq.s32.totalorder %s421, 0
    %s424 = sadd.s32 %s423, 1
    %s425 = scalar_select %p422, %s423, %s424
    %p428 = pneg %p422
    %p429 = scmp.eq.s32.totalorder %s25, 1
    %p430 = por %p428, %p429
    %p431 = scmp.ne.s32.totalorder %s423, %s426
    %p432 = scmp.eq.s32.totalorder %s25, 0
    %p433 = por %p431, %p432
    %p434 = scmp.ne.s32.totalorder %s423, %s426
    %p435 = scmp.eq.s32.totalorder %s30, 1
    %p436 = por %p434, %p435
    %p437 = scmp.ne.s32.totalorder %s426, %s427
    %p438 = scmp.eq.s32.totalorder %s30, 0
    %p439 = por %p437, %p438
    %p440 = scmp.ne.s32.totalorder %s426, %s427
    %p441 = scmp.eq.s32.totalorder %s31, 1
    %p442 = por %p440, %p441
    %p444 = scmp.ne.s32.totalorder %s427, %s443
    %p445 = scmp.eq.s32.totalorder %s31, 0
    %p446 = por %p444, %p445
    %p447 = scmp.le.s32.totalorder 1, %s25
    %p448 = scmp.lt.s32.totalorder %s25, 3
    %p449 = pnand %p447, %p448
    %p450 = pneg %p449
    // Predicated region
    $region9: #{autoencoder_forward.1} parent=5 // pred_check
      _
    $region10: #{autoencoder_forward.1} parent=5 // pred_check_branch
      %452 = sbr.rel (%p449) target = $region12
    $region11: #{autoencoder_forward.1} parent=5 // pred_region
      %s453 = ssub.s32 %s25, 1
      // Predicated region
      $region13: #{autoencoder_forward.1} parent=11 // pred_check
        %p454 = pneg %p72
      $region14: #{autoencoder_forward.1} parent=11 // pred_check_branch
        %456 = sbr.rel (%p454) target = $region16
      $region15: #{autoencoder_forward.1} parent=11 // pred_region
        _
      $region16: #{autoencoder_forward.1} parent=11 // pred_fallthru
        _
      // Predicated region
      $region17: #{autoencoder_forward.1} parent=11 // pred_check
        %p457 = pneg %p93
      $region18: #{autoencoder_forward.1} parent=11 // pred_check_branch
        %459 = sbr.rel (%p457) target = $region20
      $region19: #{autoencoder_forward.1} parent=11 // pred_region
        _
      $region20: #{autoencoder_forward.1} parent=11 // pred_fallthru
        _
      // Predicated region
      $region21: #{autoencoder_forward.1} parent=11 // pred_check
        %p460 = pneg %p114
      $region22: #{autoencoder_forward.1} parent=11 // pred_check_branch
        %462 = sbr.rel (%p460) target = $region24
      $region23: #{autoencoder_forward.1} parent=11 // pred_region
        _
      $region24: #{autoencoder_forward.1} parent=11 // pred_fallthru
        _
      // Predicated region
      $region25: #{autoencoder_forward.1} parent=11 // pred_check
        %p463 = pneg %p135
      $region26: #{autoencoder_forward.1} parent=11 // pred_check_branch
        %465 = sbr.rel (%p463) target = $region28
      $region27: #{autoencoder_forward.1} parent=11 // pred_region
        _
      $region28: #{autoencoder_forward.1} parent=11 // pred_fallthru
        _
      // Predicated region
      $region29: #{autoencoder_forward.1} parent=11 // pred_check
        %p466 = pneg %p156
      $region30: #{autoencoder_forward.1} parent=11 // pred_check_branch
        %468 = sbr.rel (%p466) target = $region32
      $region31: #{autoencoder_forward.1} parent=11 // pred_region
        _
      $region32: #{autoencoder_forward.1} parent=11 // pred_fallthru
        _
      // Predicated region
      $region33: #{autoencoder_forward.1} parent=11 // pred_check
        %p469 = pneg %p177
      $region34: #{autoencoder_forward.1} parent=11 // pred_check_branch
        %471 = sbr.rel (%p469) target = $region36
      $region35: #{autoencoder_forward.1} parent=11 // pred_region
        _
      $region36: #{autoencoder_forward.1} parent=11 // pred_fallthru
        _
      // Predicated region
      $region37: #{autoencoder_forward.1} parent=11 // pred_check
        %p472 = pneg %p198
      $region38: #{autoencoder_forward.1} parent=11 // pred_check_branch
        %474 = sbr.rel (%p472) target = $region40
      $region39: #{autoencoder_forward.1} parent=11 // pred_region
        _
      $region40: #{autoencoder_forward.1} parent=11 // pred_fallthru
        _
      // Predicated region
      $region41: #{autoencoder_forward.1} parent=11 // pred_check
        %p475 = pneg %p219
      $region42: #{autoencoder_forward.1} parent=11 // pred_check_branch
        %477 = sbr.rel (%p475) target = $region44
      $region43: #{autoencoder_forward.1} parent=11 // pred_region
        _
      $region44: #{autoencoder_forward.1} parent=11 // pred_fallthru
        _
      // Predicated region
      $region45: #{autoencoder_forward.1} parent=11 // pred_check
        %p478 = pneg %p240
      $region46: #{autoencoder_forward.1} parent=11 // pred_check_branch
        %480 = sbr.rel (%p478) target = $region48
      $region47: #{autoencoder_forward.1} parent=11 // pred_region
        _
      $region48: #{autoencoder_forward.1} parent=11 // pred_fallthru
        _
      // Predicated region
      $region49: #{autoencoder_forward.1} parent=11 // pred_check
        %p481 = pneg %p261
      $region50: #{autoencoder_forward.1} parent=11 // pred_check_branch
        %483 = sbr.rel (%p481) target = $region52
      $region51: #{autoencoder_forward.1} parent=11 // pred_region
        _
      $region52: #{autoencoder_forward.1} parent=11 // pred_fallthru
        _
      // Predicated region
      $region53: #{autoencoder_forward.1} parent=11 // pred_check
        %p484 = pneg %p282
      $region54: #{autoencoder_forward.1} parent=11 // pred_check_branch
        %486 = sbr.rel (%p484) target = $region56
      $region55: #{autoencoder_forward.1} parent=11 // pred_region
        _
      $region56: #{autoencoder_forward.1} parent=11 // pred_fallthru
        _
      // Predicated region
      $region57: #{autoencoder_forward.1} parent=11 // pred_check
        %p487 = pneg %p303
      $region58: #{autoencoder_forward.1} parent=11 // pred_check_branch
        %489 = sbr.rel (%p487) target = $region60
      $region59: #{autoencoder_forward.1} parent=11 // pred_region
        _
      $region60: #{autoencoder_forward.1} parent=11 // pred_fallthru
        _
      // Predicated region
      $region61: #{autoencoder_forward.1} parent=11 // pred_check
        %p490 = pneg %p324
      $region62: #{autoencoder_forward.1} parent=11 // pred_check_branch
        %492 = sbr.rel (%p490) target = $region64
      $region63: #{autoencoder_forward.1} parent=11 // pred_region
        _
      $region64: #{autoencoder_forward.1} parent=11 // pred_fallthru
        _
      // Predicated region
      $region65: #{autoencoder_forward.1} parent=11 // pred_check
        %p493 = pneg %p345
      $region66: #{autoencoder_forward.1} parent=11 // pred_check_branch
        %495 = sbr.rel (%p493) target = $region68
      $region67: #{autoencoder_forward.1} parent=11 // pred_region
        _
      $region68: #{autoencoder_forward.1} parent=11 // pred_fallthru
        _
      // Predicated region
      $region69: #{autoencoder_forward.1} parent=11 // pred_check
        %p496 = pneg %p366
      $region70: #{autoencoder_forward.1} parent=11 // pred_check_branch
        %498 = sbr.rel (%p496) target = $region72
      $region71: #{autoencoder_forward.1} parent=11 // pred_region
        _
      $region72: #{autoencoder_forward.1} parent=11 // pred_fallthru
        _
      // Predicated region
      $region73: #{autoencoder_forward.1} parent=11 // pred_check
        %p499 = pneg %p387
      $region74: #{autoencoder_forward.1} parent=11 // pred_check_branch
        %501 = sbr.rel (%p499) target = $region76
      $region75: #{autoencoder_forward.1} parent=11 // pred_region
        _
      $region76: #{autoencoder_forward.1} parent=11 // pred_fallthru
        _
    $region12: #{autoencoder_forward.1} parent=5 // pred_fallthru
      _
    %p502 = scmp.lt.s32.totalorder %s25, 2
    // Predicated region
    $region77: #{autoencoder_forward.1} parent=5 // pred_check
      %p503 = pneg %p502
    $region78: #{autoencoder_forward.1} parent=5 // pred_check_branch
      %505 = sbr.rel (%p503) target = $region80
    $region79: #{autoencoder_forward.1} parent=5 // pred_region
      // Predicated region
      $region81: #{autoencoder_forward.1} parent=79 // pred_check
        %p506 = pneg %p45
      $region82: #{autoencoder_forward.1} parent=79 // pred_check_branch
        %508 = sbr.rel (%p506) target = $region84
      $region83: #{autoencoder_forward.1} parent=79 // pred_region
        %s509 = smul.u32 32, %s25
        %p510 = scmp.lt.s32.totalorder %s509, 63
        %s511 = scalar_select %p510, %s509, 63
        %s512 = smul.addr %s511, 7
        %s513 = smul.addr %s512, 4
        %s514 = scalar_lea.vmem %s0, %s513
        %s515 = smul.u32 32, %s25
      $region84: #{autoencoder_forward.1} parent=79 // pred_fallthru
        _
    $region80: #{autoencoder_forward.1} parent=5 // pred_fallthru
      _
    %p516 = scmp.le.s32.totalorder 1, %s25
    %p517 = scmp.lt.s32.totalorder %s25, 3
    %p518 = pnand %p516, %p517
    %p519 = pneg %p518
    // Predicated region
    $region85: #{autoencoder_forward.1} parent=5 // pred_check
      _
    $region86: #{autoencoder_forward.1} parent=5 // pred_check_branch
      %521 = sbr.rel (%p518) target = $region88
    $region87: #{autoencoder_forward.1} parent=5 // pred_region
      %s522 = ssub.s32 %s25, 1
      %s523 = smul.u32 32, %s30
      %p524 = scmp.lt.s32.totalorder %s523, 63
      %s525 = scalar_select %p524, %s523, 63
      %s526 = smul.addr %s525, 7
      %s527 = smul.addr %s526, 4
      %s528 = scalar_lea.vmem %s0, %s527
      %p529 = pneg %p51
      %p530 = pneg %p48
      %p531 = pneg %p72
      %p532 = pneg %p69
      %p533 = pneg %p93
      %p534 = pneg %p90
      %p535 = pneg %p114
      %p536 = pneg %p111
      %p537 = pneg %p135
      %p538 = pneg %p132
      %p539 = pneg %p156
      %p540 = pneg %p153
      %p541 = pneg %p177
      %p542 = pneg %p174
      %p543 = pneg %p198
      %p544 = pneg %p195
      %p545 = pneg %p219
      %p546 = pneg %p216
      %p547 = pneg %p240
      %p548 = pneg %p237
      %p549 = pneg %p261
      %p550 = pneg %p258
      %p551 = pneg %p282
      %p552 = pneg %p279
      %p553 = pneg %p303
      %p554 = pneg %p300
      %p555 = pneg %p324
      %p556 = pneg %p321
      %p557 = pneg %p345
      %p558 = pneg %p342
      %p559 = pneg %p366
      %p560 = pneg %p363
      %p561 = pneg %p387
      %p562 = pneg %p384
      %p563 = pneg %p413
      %p564 = pneg %p410
      %s565 = smul.u32 32, %s30
      %p566 = scmp.lt.s32.totalorder %s565, 63
      %s567 = scalar_select %p566, %s565, 63
      %s568 = smul.addr %s567, 7
      %s569 = smul.addr %s568, 8
      %s570 = scalar_lea.vmem %s17, %s569
      %p571 = pneg %p439
      %p572 = pneg %p436
      %s573 = smul.u32 32, %s30
      %p574 = scmp.lt.s32.totalorder %s573, 63
      %s575 = scalar_select %p574, %s573, 63
      %s576 = smul.addr %s575, 8
      %s577 = scalar_lea.vmem %s18, %s576
      %s578 = smul.u32 32, %s30
      %p579 = scmp.lt.s32.totalorder %s578, 63
      %s580 = scalar_select %p579, %s578, 63
      %s581 = smul.addr %s580, 7
      %s582 = smul.addr %s581, 4
      %s583 = scalar_lea.vmem %s0, %s582
      %s584 = smul.u32 32, %s30
      %s585 = smul.u32 32, %s30
      %p586 = scmp.lt.s32.totalorder %s585, 63
      %s587 = scalar_select %p586, %s585, 63
      %s588 = smul.addr %s587, 7
      %s589 = smul.addr %s588, 8
      %s590 = scalar_lea.vmem %s17, %s589
      %s591 = smul.u32 32, %s30
      %s592 = smul.u32 32, %s30
      %p593 = scmp.lt.s32.totalorder %s592, 63
      %s594 = scalar_select %p593, %s592, 63
      %s595 = smul.addr %s594, 8
      %s596 = scalar_lea.vmem %s18, %s595
      %s597 = smul.u32 32, %s30
      %v599 = vld [vmem:[%s583] sm:$0xff]
      %v600 = vld [vmem:[%s583 + $0x8] sm:$0xff]
      %v601 = vld [vmem:[%s583 + $0x10] sm:$0xff]
      %v602 = vld [vmem:[%s583 + $0x18] sm:$0xf]
      %v603 = vld [vmem:[%s583 + $0x1c] sm:$0xff]
      %v604 = vld [vmem:[%s583 + $0x24] sm:$0xff]
      %v605 = vld [vmem:[%s583 + $0x2c] sm:$0xff]
      %v606 = vld [vmem:[%s583 + $0x34] sm:$0xf]
      %v607 = vld [vmem:[%s583 + $0x38] sm:$0xff]
      %v608 = vld [vmem:[%s583 + $0x40] sm:$0xff]
      %v609 = vld [vmem:[%s583 + $0x48] sm:$0xff]
      %v610 = vld [vmem:[%s583 + $0x50] sm:$0xf]
      %v611 = vld [vmem:[%s583 + $0x54] sm:$0xff]
      %v612 = vld [vmem:[%s583 + $0x5c] sm:$0xff]
      %v613 = vld [vmem:[%s583 + $0x64] sm:$0xff]
      %v614 = vld [vmem:[%s583 + $0x6c] sm:$0xf]
      %v615 = vld [vmem:[%s583 + $0x70] sm:$0xff]
      %v616 = vld [vmem:[%s583 + $0x78] sm:$0xff]
      %v617 = vld [vmem:[%s583 + $0x80] sm:$0xff]
      %v618 = vld [vmem:[%s583 + $0x88] sm:$0xf]
      %v619 = vld [vmem:[%s583 + $0x8c] sm:$0xff]
      %v620 = vld [vmem:[%s583 + $0x94] sm:$0xff]
      %v621 = vld [vmem:[%s583 + $0x9c] sm:$0xff]
      %v622 = vld [vmem:[%s583 + $0xa4] sm:$0xf]
      %v623 = vld [vmem:[%s583 + $0xa8] sm:$0xff]
      %v624 = vld [vmem:[%s583 + $0xb0] sm:$0xff]
      %v625 = vld [vmem:[%s583 + $0xb8] sm:$0xff]
      %v626 = vld [vmem:[%s583 + $0xc0] sm:$0xf]
      %v627 = vld [vmem:[%s583 + $0xc4] sm:$0xff]
      %v628 = vld [vmem:[%s583 + $0xcc] sm:$0xff]
      %v629 = vld [vmem:[%s583 + $0xd4] sm:$0xff]
      %v630 = vld [vmem:[%s583 + $0xdc] sm:$0xf]
      %v631 = vld [vmem:[%s583 + $0xe0] sm:$0xff]
      %v632 = vld [vmem:[%s583 + $0xe8] sm:$0xff]
      %v633 = vld [vmem:[%s583 + $0xf0] sm:$0xff]
      %v634 = vld [vmem:[%s583 + $0xf8] sm:$0xf]
      %v635 = vld [vmem:[%s583 + $0xfc] sm:$0xff]
      %v636 = vld [vmem:[%s583 + $0x104] sm:$0xff]
      %v637 = vld [vmem:[%s583 + $0x10c] sm:$0xff]
      %v638 = vld [vmem:[%s583 + $0x114] sm:$0xf]
      %v639 = vld [vmem:[%s583 + $0x118] sm:$0xff]
      %v640 = vld [vmem:[%s583 + $0x120] sm:$0xff]
      %v641 = vld [vmem:[%s583 + $0x128] sm:$0xff]
      %v642 = vld [vmem:[%s583 + $0x130] sm:$0xf]
      %v643 = vld [vmem:[%s583 + $0x134] sm:$0xff]
      %v644 = vld [vmem:[%s583 + $0x13c] sm:$0xff]
      %v645 = vld [vmem:[%s583 + $0x144] sm:$0xff]
      %v646 = vld [vmem:[%s583 + $0x14c] sm:$0xf]
      %v647 = vld [vmem:[%s583 + $0x150] sm:$0xff]
      %v648 = vld [vmem:[%s583 + $0x158] sm:$0xff]
      %v649 = vld [vmem:[%s583 + $0x160] sm:$0xff]
      %v650 = vld [vmem:[%s583 + $0x168] sm:$0xf]
      %v651 = vld [vmem:[%s583 + $0x16c] sm:$0xff]
      %v652 = vld [vmem:[%s583 + $0x174] sm:$0xff]
      %v653 = vld [vmem:[%s583 + $0x17c] sm:$0xff]
      %v654 = vld [vmem:[%s583 + $0x184] sm:$0xf]
      %v655 = vld [vmem:[%s583 + $0x188] sm:$0xff]
      %v656 = vld [vmem:[%s583 + $0x190] sm:$0xff]
      %v657 = vld [vmem:[%s583 + $0x198] sm:$0xff]
      %v658 = vld [vmem:[%s583 + $0x1a0] sm:$0xf]
      %v659 = vld [vmem:[%s583 + $0x1a4] sm:$0xff]
      %v660 = vld [vmem:[%s583 + $0x1ac] sm:$0xff]
      %v661 = vld [vmem:[%s583 + $0x1b4] sm:$0xff]
      %v662 = vld [vmem:[%s583 + $0x1bc] sm:$0xf]
      %v663 = vld [vmem:[%s583 + $0x1c0] sm:$0xff]
      %v664 = vld [vmem:[%s583 + $0x1c8] sm:$0xff]
      %v665 = vld [vmem:[%s583 + $0x1d0] sm:$0xff]
      %v666 = vld [vmem:[%s583 + $0x1d8] sm:$0xf]
      %v667 = vld [vmem:[%s583 + $0x1dc] sm:$0xff]
      %v668 = vld [vmem:[%s583 + $0x1e4] sm:$0xff]
      %v669 = vld [vmem:[%s583 + $0x1ec] sm:$0xff]
      %v670 = vld [vmem:[%s583 + $0x1f4] sm:$0xf]
      %v671 = vld [vmem:[%s583 + $0x1f8] sm:$0xff]
      %v672 = vld [vmem:[%s583 + $0x200] sm:$0xff]
      %v673 = vld [vmem:[%s583 + $0x208] sm:$0xff]
      %v674 = vld [vmem:[%s583 + $0x210] sm:$0xf]
      %v675 = vld [vmem:[%s583 + $0x214] sm:$0xff]
      %v676 = vld [vmem:[%s583 + $0x21c] sm:$0xff]
      %v677 = vld [vmem:[%s583 + $0x224] sm:$0xff]
      %v678 = vld [vmem:[%s583 + $0x22c] sm:$0xf]
      %v679 = vld [vmem:[%s583 + $0x230] sm:$0xff]
      %v680 = vld [vmem:[%s583 + $0x238] sm:$0xff]
      %v681 = vld [vmem:[%s583 + $0x240] sm:$0xff]
      %v682 = vld [vmem:[%s583 + $0x248] sm:$0xf]
      %v683 = vld [vmem:[%s583 + $0x24c] sm:$0xff]
      %v684 = vld [vmem:[%s583 + $0x254] sm:$0xff]
      %v685 = vld [vmem:[%s583 + $0x25c] sm:$0xff]
      %v686 = vld [vmem:[%s583 + $0x264] sm:$0xf]
      %v687 = vld [vmem:[%s583 + $0x268] sm:$0xff]
      %v688 = vld [vmem:[%s583 + $0x270] sm:$0xff]
      %v689 = vld [vmem:[%s583 + $0x278] sm:$0xff]
      %v690 = vld [vmem:[%s583 + $0x280] sm:$0xf]
      %v691 = vld [vmem:[%s583 + $0x284] sm:$0xff]
      %v692 = vld [vmem:[%s583 + $0x28c] sm:$0xff]
      %v693 = vld [vmem:[%s583 + $0x294] sm:$0xff]
      %v694 = vld [vmem:[%s583 + $0x29c] sm:$0xf]
      %v695 = vld [vmem:[%s583 + $0x2a0] sm:$0xff]
      %v696 = vld [vmem:[%s583 + $0x2a8] sm:$0xff]
      %v697 = vld [vmem:[%s583 + $0x2b0] sm:$0xff]
      %v698 = vld [vmem:[%s583 + $0x2b8] sm:$0xf]
      %v699 = vld [vmem:[%s583 + $0x2bc] sm:$0xff]
      %v700 = vld [vmem:[%s583 + $0x2c4] sm:$0xff]
      %v701 = vld [vmem:[%s583 + $0x2cc] sm:$0xff]
      %v702 = vld [vmem:[%s583 + $0x2d4] sm:$0xf]
      %v703 = vld [vmem:[%s583 + $0x2d8] sm:$0xff]
      %v704 = vld [vmem:[%s583 + $0x2e0] sm:$0xff]
      %v705 = vld [vmem:[%s583 + $0x2e8] sm:$0xff]
      %v706 = vld [vmem:[%s583 + $0x2f0] sm:$0xf]
      %v707 = vld [vmem:[%s583 + $0x2f4] sm:$0xff]
      %v708 = vld [vmem:[%s583 + $0x2fc] sm:$0xff]
      %v709 = vld [vmem:[%s583 + $0x304] sm:$0xff]
      %v710 = vld [vmem:[%s583 + $0x30c] sm:$0xf]
      %v711 = vld [vmem:[%s583 + $0x310] sm:$0xff]
      %v712 = vld [vmem:[%s583 + $0x318] sm:$0xff]
      %v713 = vld [vmem:[%s583 + $0x320] sm:$0xff]
      %v714 = vld [vmem:[%s583 + $0x328] sm:$0xf]
      %v715 = vld [vmem:[%s583 + $0x32c] sm:$0xff]
      %v716 = vld [vmem:[%s583 + $0x334] sm:$0xff]
      %v717 = vld [vmem:[%s583 + $0x33c] sm:$0xff]
      %v718 = vld [vmem:[%s583 + $0x344] sm:$0xf]
      %v719 = vld [vmem:[%s583 + $0x348] sm:$0xff]
      %v720 = vld [vmem:[%s583 + $0x350] sm:$0xff]
      %v721 = vld [vmem:[%s583 + $0x358] sm:$0xff]
      %v722 = vld [vmem:[%s583 + $0x360] sm:$0xf]
      %v723 = vld [vmem:[%s583 + $0x364] sm:$0xff]
      %v724 = vld [vmem:[%s583 + $0x36c] sm:$0xff]
      %v725 = vld [vmem:[%s583 + $0x374] sm:$0xff]
      %v726 = vld [vmem:[%s583 + $0x37c] sm:$0xf]
      %v727 = vld [vmem:[%s1] sm:$0xff]
      %v728 = vld [vmem:[%s1 + $0x8] sm:$0xf]
      %v729 = vld [vmem:[%s1 + $0xc] sm:$0xff]
      %v730 = vld [vmem:[%s1 + $0x14] sm:$0xf]
      %v731 = vld [vmem:[%s1 + $0x18] sm:$0xff]
      %v732 = vld [vmem:[%s1 + $0x20] sm:$0xf]
      %v733 = vld [vmem:[%s1 + $0x24] sm:$0xff]
      %v734 = vld [vmem:[%s1 + $0x2c] sm:$0xf]
      %v735 = vld [vmem:[%s1 + $0x30] sm:$0xff]
      %v736 = vld [vmem:[%s1 + $0x38] sm:$0xf]
      %v737 = vld [vmem:[%s1 + $0x3c] sm:$0xff]
      %v738 = vld [vmem:[%s1 + $0x44] sm:$0xf]
      %v739 = vld [vmem:[%s1 + $0x48] sm:$0xff]
      %v740 = vld [vmem:[%s1 + $0x50] sm:$0xf]
      %v741 = vld [vmem:[%s1 + $0x54] sm:$0xff]
      %v742 = vld [vmem:[%s1 + $0x5c] sm:$0xf]
      %v743 = vld [vmem:[%s1 + $0x60] sm:$0xff]
      %v744 = vld [vmem:[%s1 + $0x68] sm:$0xf]
      %v745 = vld [vmem:[%s1 + $0x6c] sm:$0xff]
      %v746 = vld [vmem:[%s1 + $0x74] sm:$0xf]
      %v747 = vld [vmem:[%s1 + $0x78] sm:$0xff]
      %v748 = vld [vmem:[%s1 + $0x80] sm:$0xf]
      %v749 = vld [vmem:[%s1 + $0x84] sm:$0xff]
      %v750 = vld [vmem:[%s1 + $0x8c] sm:$0xf]
      %v751 = vld [vmem:[%s1 + $0x90] sm:$0xff]
      %v752 = vld [vmem:[%s1 + $0x98] sm:$0xf]
      %v753 = vld [vmem:[%s1 + $0x9c] sm:$0xff]
      %v754 = vld [vmem:[%s1 + $0xa4] sm:$0xf]
      %v755 = vld [vmem:[%s1 + $0xa8] sm:$0xff]
      %v756 = vld [vmem:[%s1 + $0xb0] sm:$0xf]
      %v757 = vld [vmem:[%s1 + $0xb4] sm:$0xff]
      %v758 = vld [vmem:[%s1 + $0xbc] sm:$0xf]
      %v759 = vld [vmem:[%s1 + $0xc0] sm:$0xff]
      %v760 = vld [vmem:[%s1 + $0xc8] sm:$0xf]
      %v761 = vld [vmem:[%s1 + $0xcc] sm:$0xff]
      %v762 = vld [vmem:[%s1 + $0xd4] sm:$0xf]
      %v763 = vld [vmem:[%s1 + $0xd8] sm:$0xff]
      %v764 = vld [vmem:[%s1 + $0xe0] sm:$0xf]
      %v765 = vld [vmem:[%s1 + $0xe4] sm:$0xff]
      %v766 = vld [vmem:[%s1 + $0xec] sm:$0xf]
      %v767 = vld [vmem:[%s1 + $0xf0] sm:$0xff]
      %v768 = vld [vmem:[%s1 + $0xf8] sm:$0xf]
      %v769 = vld [vmem:[%s1 + $0xfc] sm:$0xff]
      %v770 = vld [vmem:[%s1 + $0x104] sm:$0xf]
      %v771 = vld [vmem:[%s1 + $0x108] sm:$0xff]
      %v772 = vld [vmem:[%s1 + $0x110] sm:$0xf]
      %v773 = vld [vmem:[%s1 + $0x114] sm:$0xff]
      %v774 = vld [vmem:[%s1 + $0x11c] sm:$0xf]
      %v775 = vld [vmem:[%s1 + $0x120] sm:$0xff]
      %v776 = vld [vmem:[%s1 + $0x128] sm:$0xf]
      %v777 = vld [vmem:[%s1 + $0x12c] sm:$0xff]
      %v778 = vld [vmem:[%s1 + $0x134] sm:$0xf]
      %v779 = vld [vmem:[%s1 + $0x138] sm:$0xff]
      %v780 = vld [vmem:[%s1 + $0x140] sm:$0xf]
      %v781 = vld [vmem:[%s1 + $0x144] sm:$0xff]
      %v782 = vld [vmem:[%s1 + $0x14c] sm:$0xf]
      %v783 = vld [vmem:[%s1 + $0x150] sm:$0xff]
      %v784 = vld [vmem:[%s1 + $0x158] sm:$0xf]
      %v785 = vld [vmem:[%s1 + $0x15c] sm:$0xff]
      %v786 = vld [vmem:[%s1 + $0x164] sm:$0xf]
      %v787 = vld [vmem:[%s1 + $0x168] sm:$0xff]
      %v788 = vld [vmem:[%s1 + $0x170] sm:$0xf]
      %v789 = vld [vmem:[%s1 + $0x174] sm:$0xff]
      %v790 = vld [vmem:[%s1 + $0x17c] sm:$0xf]
      %v791 = vld [vmem:[%s1 + $0x180] sm:$0xff]
      %v792 = vld [vmem:[%s1 + $0x188] sm:$0xf]
      %v793 = vld [vmem:[%s1 + $0x18c] sm:$0xff]
      %v794 = vld [vmem:[%s1 + $0x194] sm:$0xf]
      %v795 = vld [vmem:[%s1 + $0x198] sm:$0xff]
      %v796 = vld [vmem:[%s1 + $0x1a0] sm:$0xf]
      %v797 = vld [vmem:[%s1 + $0x1a4] sm:$0xff]
      %v798 = vld [vmem:[%s1 + $0x1ac] sm:$0xf]
      %v799 = vld [vmem:[%s1 + $0x1b0] sm:$0xff]
      %v800 = vld [vmem:[%s1 + $0x1b8] sm:$0xf]
      %v801 = vld [vmem:[%s1 + $0x1bc] sm:$0xff]
      %v802 = vld [vmem:[%s1 + $0x1c4] sm:$0xf]
      %v803 = vld [vmem:[%s1 + $0x1c8] sm:$0xff]
      %v804 = vld [vmem:[%s1 + $0x1d0] sm:$0xf]
      %v805 = vld [vmem:[%s1 + $0x1d4] sm:$0xff]
      %v806 = vld [vmem:[%s1 + $0x1dc] sm:$0xf]
      %v807 = vld [vmem:[%s1 + $0x1e0] sm:$0xff]
      %v808 = vld [vmem:[%s1 + $0x1e8] sm:$0xf]
      %v809 = vld [vmem:[%s1 + $0x1ec] sm:$0xff]
      %v810 = vld [vmem:[%s1 + $0x1f4] sm:$0xf]
      %v811 = vld [vmem:[%s1 + $0x1f8] sm:$0xff]
      %v812 = vld [vmem:[%s1 + $0x200] sm:$0xf]
      %v813 = vld [vmem:[%s1 + $0x204] sm:$0xff]
      %v814 = vld [vmem:[%s1 + $0x20c] sm:$0xf]
      %v815 = vld [vmem:[%s1 + $0x210] sm:$0xff]
      %v816 = vld [vmem:[%s1 + $0x218] sm:$0xf]
      %v817 = vld [vmem:[%s1 + $0x21c] sm:$0xff]
      %v818 = vld [vmem:[%s1 + $0x224] sm:$0xf]
      %v819 = vld [vmem:[%s1 + $0x228] sm:$0xff]
      %v820 = vld [vmem:[%s1 + $0x230] sm:$0xf]
      %v821 = vld [vmem:[%s1 + $0x234] sm:$0xff]
      %v822 = vld [vmem:[%s1 + $0x23c] sm:$0xf]
      %v823 = vld [vmem:[%s1 + $0x240] sm:$0xff]
      %v824 = vld [vmem:[%s1 + $0x248] sm:$0xf]
      %v825 = vld [vmem:[%s1 + $0x24c] sm:$0xff]
      %v826 = vld [vmem:[%s1 + $0x254] sm:$0xf]
      %v827 = vld [vmem:[%s1 + $0x258] sm:$0xff]
      %v828 = vld [vmem:[%s1 + $0x260] sm:$0xf]
      %v829 = vld [vmem:[%s1 + $0x264] sm:$0xff]
      %v830 = vld [vmem:[%s1 + $0x26c] sm:$0xf]
      %v831 = vld [vmem:[%s1 + $0x270] sm:$0xff]
      %v832 = vld [vmem:[%s1 + $0x278] sm:$0xf]
      %v833 = vld [vmem:[%s1 + $0x27c] sm:$0xff]
      %v834 = vld [vmem:[%s1 + $0x284] sm:$0xf]
      %v835 = vld [vmem:[%s1 + $0x288] sm:$0xff]
      %v836 = vld [vmem:[%s1 + $0x290] sm:$0xf]
      %v837 = vld [vmem:[%s1 + $0x294] sm:$0xff]
      %v838 = vld [vmem:[%s1 + $0x29c] sm:$0xf]
      %v839 = vld [vmem:[%s1 + $0x2a0] sm:$0xff]
      %v840 = vld [vmem:[%s1 + $0x2a8] sm:$0xf]
      %v841 = vld [vmem:[%s1 + $0x2ac] sm:$0xff]
      %v842 = vld [vmem:[%s1 + $0x2b4] sm:$0xf]
      %v843 = vld [vmem:[%s1 + $0x2b8] sm:$0xff]
      %v844 = vld [vmem:[%s1 + $0x2c0] sm:$0xf]
      %v845 = vld [vmem:[%s1 + $0x2c4] sm:$0xff]
      %v846 = vld [vmem:[%s1 + $0x2cc] sm:$0xf]
      %v847 = vld [vmem:[%s1 + $0x2d0] sm:$0xff]
      %v848 = vld [vmem:[%s1 + $0x2d8] sm:$0xf]
      %v849 = vld [vmem:[%s1 + $0x2dc] sm:$0xff]
      %v850 = vld [vmem:[%s1 + $0x2e4] sm:$0xf]
      %v851 = vld [vmem:[%s1 + $0x2e8] sm:$0xff]
      %v852 = vld [vmem:[%s1 + $0x2f0] sm:$0xf]
      %v853 = vld [vmem:[%s1 + $0x2f4] sm:$0xff]
      %v854 = vld [vmem:[%s1 + $0x2fc] sm:$0xf]
      %v855 = vld [vmem:[%s1 + $0x300] sm:$0xff]
      %v856 = vld [vmem:[%s1 + $0x308] sm:$0xf]
      %v857 = vld [vmem:[%s1 + $0x30c] sm:$0xff]
      %v858 = vld [vmem:[%s1 + $0x314] sm:$0xf]
      %v859 = vld [vmem:[%s1 + $0x318] sm:$0xff]
      %v860 = vld [vmem:[%s1 + $0x320] sm:$0xf]
      %v861 = vld [vmem:[%s1 + $0x324] sm:$0xff]
      %v862 = vld [vmem:[%s1 + $0x32c] sm:$0xf]
      %v863 = vld [vmem:[%s1 + $0x330] sm:$0xff]
      %v864 = vld [vmem:[%s1 + $0x338] sm:$0xf]
      %v865 = vld [vmem:[%s1 + $0x33c] sm:$0xff]
      %v866 = vld [vmem:[%s1 + $0x344] sm:$0xf]
      %v867 = vld [vmem:[%s1 + $0x348] sm:$0xff]
      %v868 = vld [vmem:[%s1 + $0x350] sm:$0xf]
      %v869 = vld [vmem:[%s1 + $0x354] sm:$0xff]
      %v870 = vld [vmem:[%s1 + $0x35c] sm:$0xf]
      %v871 = vld [vmem:[%s1 + $0x360] sm:$0xff]
      %v872 = vld [vmem:[%s1 + $0x368] sm:$0xf]
      %v873 = vld [vmem:[%s1 + $0x36c] sm:$0xff]
      %v874 = vld [vmem:[%s1 + $0x374] sm:$0xf]
      %v875 = vld [vmem:[%s1 + $0x378] sm:$0xff]
      %v876 = vld [vmem:[%s1 + $0x380] sm:$0xf]
      %v877 = vld [vmem:[%s1 + $0x384] sm:$0xff]
      %v878 = vld [vmem:[%s1 + $0x38c] sm:$0xf]
      %v879 = vld [vmem:[%s1 + $0x390] sm:$0xff]
      %v880 = vld [vmem:[%s1 + $0x398] sm:$0xf]
      %v881 = vld [vmem:[%s1 + $0x39c] sm:$0xff]
      %v882 = vld [vmem:[%s1 + $0x3a4] sm:$0xf]
      %v883 = vld [vmem:[%s1 + $0x3a8] sm:$0xff]
      %v884 = vld [vmem:[%s1 + $0x3b0] sm:$0xf]
      %v885 = vld [vmem:[%s1 + $0x3b4] sm:$0xff]
      %v886 = vld [vmem:[%s1 + $0x3bc] sm:$0xf]
      %v887 = vld [vmem:[%s1 + $0x3c0] sm:$0xff]
      %v888 = vld [vmem:[%s1 + $0x3c8] sm:$0xf]
      %v889 = vld [vmem:[%s1 + $0x3cc] sm:$0xff]
      %v890 = vld [vmem:[%s1 + $0x3d4] sm:$0xf]
      %v891 = vld [vmem:[%s1 + $0x3d8] sm:$0xff]
      %v892 = vld [vmem:[%s1 + $0x3e0] sm:$0xf]
      %v893 = vld [vmem:[%s1 + $0x3e4] sm:$0xff]
      %v894 = vld [vmem:[%s1 + $0x3ec] sm:$0xf]
      %v895 = vld [vmem:[%s1 + $0x3f0] sm:$0xff]
      %v896 = vld [vmem:[%s1 + $0x3f8] sm:$0xf]
      %v897 = vld [vmem:[%s1 + $0x3fc] sm:$0xff]
      %v898 = vld [vmem:[%s1 + $0x404] sm:$0xf]
      %v899 = vld [vmem:[%s1 + $0x408] sm:$0xff]
      %v900 = vld [vmem:[%s1 + $0x410] sm:$0xf]
      %v901 = vld [vmem:[%s1 + $0x414] sm:$0xff]
      %v902 = vld [vmem:[%s1 + $0x41c] sm:$0xf]
      %v903 = vld [vmem:[%s1 + $0x420] sm:$0xff]
      %v904 = vld [vmem:[%s1 + $0x428] sm:$0xf]
      %v905 = vld [vmem:[%s1 + $0x42c] sm:$0xff]
      %v906 = vld [vmem:[%s1 + $0x434] sm:$0xf]
      %v907 = vld [vmem:[%s1 + $0x438] sm:$0xff]
      %v908 = vld [vmem:[%s1 + $0x440] sm:$0xf]
      %v909 = vld [vmem:[%s1 + $0x444] sm:$0xff]
      %v910 = vld [vmem:[%s1 + $0x44c] sm:$0xf]
      %v911 = vld [vmem:[%s1 + $0x450] sm:$0xff]
      %v912 = vld [vmem:[%s1 + $0x458] sm:$0xf]
      %v913 = vld [vmem:[%s1 + $0x45c] sm:$0xff]
      %v914 = vld [vmem:[%s1 + $0x464] sm:$0xf]
      %v915 = vld [vmem:[%s1 + $0x468] sm:$0xff]
      %v916 = vld [vmem:[%s1 + $0x470] sm:$0xf]
      %v917 = vld [vmem:[%s1 + $0x474] sm:$0xff]
      %v918 = vld [vmem:[%s1 + $0x47c] sm:$0xf]
      %v919 = vld [vmem:[%s1 + $0x480] sm:$0xff]
      %v920 = vld [vmem:[%s1 + $0x488] sm:$0xf]
      %v921 = vld [vmem:[%s1 + $0x48c] sm:$0xff]
      %v922 = vld [vmem:[%s1 + $0x494] sm:$0xf]
      %v923 = vld [vmem:[%s2] sm:$0x7]
      %v925 = vperm.slane %v923, 0
      %v926 = vperm.slane %v923, 1
      %v927 = vperm.slane %v923, 2
      %v1059 = vunpack.c.l.b16 %v599
      %v1060 = vunpack.c.h.b16 %v599
      %v1061 = vunpack.c.l.b16 %v600
      %v1062 = vunpack.c.h.b16 %v600
      %v1063 = vunpack.c.l.b16 %v601
      %v1064 = vunpack.c.h.b16 %v601
      %v1065 = vunpack.c.l.b16 %v602
      %v1066 = vunpack.c.l.b16 %v603
      %v1067 = vunpack.c.h.b16 %v603
      %v1068 = vunpack.c.l.b16 %v604
      %v1069 = vunpack.c.h.b16 %v604
      %v1070 = vunpack.c.l.b16 %v605
      %v1071 = vunpack.c.h.b16 %v605
      %v1072 = vunpack.c.l.b16 %v606
      %v1073 = vunpack.c.l.b16 %v607
      %v1074 = vunpack.c.h.b16 %v607
      %v1075 = vunpack.c.l.b16 %v608
      %v1076 = vunpack.c.h.b16 %v608
      %v1077 = vunpack.c.l.b16 %v609
      %v1078 = vunpack.c.h.b16 %v609
      %v1079 = vunpack.c.l.b16 %v610
      %v1080 = vunpack.c.l.b16 %v611
      %v1081 = vunpack.c.h.b16 %v611
      %v1082 = vunpack.c.l.b16 %v612
      %v1083 = vunpack.c.h.b16 %v612
      %v1084 = vunpack.c.l.b16 %v613
      %v1085 = vunpack.c.h.b16 %v613
      %v1086 = vunpack.c.l.b16 %v614
      %v1087 = vunpack.c.l.b16 %v615
      %v1088 = vunpack.c.h.b16 %v615
      %v1089 = vunpack.c.l.b16 %v616
      %v1090 = vunpack.c.h.b16 %v616
      %v1091 = vunpack.c.l.b16 %v617
      %v1092 = vunpack.c.h.b16 %v617
      %v1093 = vunpack.c.l.b16 %v618
      %v1094 = vunpack.c.l.b16 %v619
      %v1095 = vunpack.c.h.b16 %v619
      %v1096 = vunpack.c.l.b16 %v620
      %v1097 = vunpack.c.h.b16 %v620
      %v1098 = vunpack.c.l.b16 %v621
      %v1099 = vunpack.c.h.b16 %v621
      %v1100 = vunpack.c.l.b16 %v622
      %v1101 = vunpack.c.l.b16 %v623
      %v1102 = vunpack.c.h.b16 %v623
      %v1103 = vunpack.c.l.b16 %v624
      %v1104 = vunpack.c.h.b16 %v624
      %v1105 = vunpack.c.l.b16 %v625
      %v1106 = vunpack.c.h.b16 %v625
      %v1107 = vunpack.c.l.b16 %v626
      %v1108 = vunpack.c.l.b16 %v627
      %v1109 = vunpack.c.h.b16 %v627
      %v1110 = vunpack.c.l.b16 %v628
      %v1111 = vunpack.c.h.b16 %v628
      %v1112 = vunpack.c.l.b16 %v629
      %v1113 = vunpack.c.h.b16 %v629
      %v1114 = vunpack.c.l.b16 %v630
      %v1115 = vunpack.c.l.b16 %v631
      %v1116 = vunpack.c.h.b16 %v631
      %v1117 = vunpack.c.l.b16 %v632
      %v1118 = vunpack.c.h.b16 %v632
      %v1119 = vunpack.c.l.b16 %v633
      %v1120 = vunpack.c.h.b16 %v633
      %v1121 = vunpack.c.l.b16 %v634
      %v1122 = vunpack.c.l.b16 %v635
      %v1123 = vunpack.c.h.b16 %v635
      %v1124 = vunpack.c.l.b16 %v636
      %v1125 = vunpack.c.h.b16 %v636
      %v1126 = vunpack.c.l.b16 %v637
      %v1127 = vunpack.c.h.b16 %v637
      %v1128 = vunpack.c.l.b16 %v638
      %v1129 = vunpack.c.l.b16 %v639
      %v1130 = vunpack.c.h.b16 %v639
      %v1131 = vunpack.c.l.b16 %v640
      %v1132 = vunpack.c.h.b16 %v640
      %v1133 = vunpack.c.l.b16 %v641
      %v1134 = vunpack.c.h.b16 %v641
      %v1135 = vunpack.c.l.b16 %v642
      %v1136 = vunpack.c.l.b16 %v643
      %v1137 = vunpack.c.h.b16 %v643
      %v1138 = vunpack.c.l.b16 %v644
      %v1139 = vunpack.c.h.b16 %v644
      %v1140 = vunpack.c.l.b16 %v645
      %v1141 = vunpack.c.h.b16 %v645
      %v1142 = vunpack.c.l.b16 %v646
      %v1143 = vunpack.c.l.b16 %v647
      %v1144 = vunpack.c.h.b16 %v647
      %v1145 = vunpack.c.l.b16 %v648
      %v1146 = vunpack.c.h.b16 %v648
      %v1147 = vunpack.c.l.b16 %v649
      %v1148 = vunpack.c.h.b16 %v649
      %v1149 = vunpack.c.l.b16 %v650
      %v1150 = vunpack.c.l.b16 %v651
      %v1151 = vunpack.c.h.b16 %v651
      %v1152 = vunpack.c.l.b16 %v652
      %v1153 = vunpack.c.h.b16 %v652
      %v1154 = vunpack.c.l.b16 %v653
      %v1155 = vunpack.c.h.b16 %v653
      %v1156 = vunpack.c.l.b16 %v654
      %v1157 = vunpack.c.l.b16 %v655
      %v1158 = vunpack.c.h.b16 %v655
      %v1159 = vunpack.c.l.b16 %v656
      %v1160 = vunpack.c.h.b16 %v656
      %v1161 = vunpack.c.l.b16 %v657
      %v1162 = vunpack.c.h.b16 %v657
      %v1163 = vunpack.c.l.b16 %v658
      %v1164 = vunpack.c.l.b16 %v659
      %v1165 = vunpack.c.h.b16 %v659
      %v1166 = vunpack.c.l.b16 %v660
      %v1167 = vunpack.c.h.b16 %v660
      %v1168 = vunpack.c.l.b16 %v661
      %v1169 = vunpack.c.h.b16 %v661
      %v1170 = vunpack.c.l.b16 %v662
      %v1171 = vunpack.c.l.b16 %v663
      %v1172 = vunpack.c.h.b16 %v663
      %v1173 = vunpack.c.l.b16 %v664
      %v1174 = vunpack.c.h.b16 %v664
      %v1175 = vunpack.c.l.b16 %v665
      %v1176 = vunpack.c.h.b16 %v665
      %v1177 = vunpack.c.l.b16 %v666
      %v1178 = vunpack.c.l.b16 %v667
      %v1179 = vunpack.c.h.b16 %v667
      %v1180 = vunpack.c.l.b16 %v668
      %v1181 = vunpack.c.h.b16 %v668
      %v1182 = vunpack.c.l.b16 %v669
      %v1183 = vunpack.c.h.b16 %v669
      %v1184 = vunpack.c.l.b16 %v670
      %v1185 = vunpack.c.l.b16 %v671
      %v1186 = vunpack.c.h.b16 %v671
      %v1187 = vunpack.c.l.b16 %v672
      %v1188 = vunpack.c.h.b16 %v672
      %v1189 = vunpack.c.l.b16 %v673
      %v1190 = vunpack.c.h.b16 %v673
      %v1191 = vunpack.c.l.b16 %v674
      %v1192 = vunpack.c.l.b16 %v675
      %v1193 = vunpack.c.h.b16 %v675
      %v1194 = vunpack.c.l.b16 %v676
      %v1195 = vunpack.c.h.b16 %v676
      %v1196 = vunpack.c.l.b16 %v677
      %v1197 = vunpack.c.h.b16 %v677
      %v1198 = vunpack.c.l.b16 %v678
      %v1199 = vunpack.c.l.b16 %v679
      %v1200 = vunpack.c.h.b16 %v679
      %v1201 = vunpack.c.l.b16 %v680
      %v1202 = vunpack.c.h.b16 %v680
      %v1203 = vunpack.c.l.b16 %v681
      %v1204 = vunpack.c.h.b16 %v681
      %v1205 = vunpack.c.l.b16 %v682
      %v1206 = vunpack.c.l.b16 %v683
      %v1207 = vunpack.c.h.b16 %v683
      %v1208 = vunpack.c.l.b16 %v684
      %v1209 = vunpack.c.h.b16 %v684
      %v1210 = vunpack.c.l.b16 %v685
      %v1211 = vunpack.c.h.b16 %v685
      %v1212 = vunpack.c.l.b16 %v686
      %v1213 = vunpack.c.l.b16 %v687
      %v1214 = vunpack.c.h.b16 %v687
      %v1215 = vunpack.c.l.b16 %v688
      %v1216 = vunpack.c.h.b16 %v688
      %v1217 = vunpack.c.l.b16 %v689
      %v1218 = vunpack.c.h.b16 %v689
      %v1219 = vunpack.c.l.b16 %v690
      %v1220 = vunpack.c.l.b16 %v691
      %v1221 = vunpack.c.h.b16 %v691
      %v1222 = vunpack.c.l.b16 %v692
      %v1223 = vunpack.c.h.b16 %v692
      %v1224 = vunpack.c.l.b16 %v693
      %v1225 = vunpack.c.h.b16 %v693
      %v1226 = vunpack.c.l.b16 %v694
      %v1227 = vunpack.c.l.b16 %v695
      %v1228 = vunpack.c.h.b16 %v695
      %v1229 = vunpack.c.l.b16 %v696
      %v1230 = vunpack.c.h.b16 %v696
      %v1231 = vunpack.c.l.b16 %v697
      %v1232 = vunpack.c.h.b16 %v697
      %v1233 = vunpack.c.l.b16 %v698
      %v1234 = vunpack.c.l.b16 %v699
      %v1235 = vunpack.c.h.b16 %v699
      %v1236 = vunpack.c.l.b16 %v700
      %v1237 = vunpack.c.h.b16 %v700
      %v1238 = vunpack.c.l.b16 %v701
      %v1239 = vunpack.c.h.b16 %v701
      %v1240 = vunpack.c.l.b16 %v702
      %v1241 = vunpack.c.l.b16 %v703
      %v1242 = vunpack.c.h.b16 %v703
      %v1243 = vunpack.c.l.b16 %v704
      %v1244 = vunpack.c.h.b16 %v704
      %v1245 = vunpack.c.l.b16 %v705
      %v1246 = vunpack.c.h.b16 %v705
      %v1247 = vunpack.c.l.b16 %v706
      %v1248 = vunpack.c.l.b16 %v707
      %v1249 = vunpack.c.h.b16 %v707
      %v1250 = vunpack.c.l.b16 %v708
      %v1251 = vunpack.c.h.b16 %v708
      %v1252 = vunpack.c.l.b16 %v709
      %v1253 = vunpack.c.h.b16 %v709
      %v1254 = vunpack.c.l.b16 %v710
      %v1255 = vunpack.c.l.b16 %v711
      %v1256 = vunpack.c.h.b16 %v711
      %v1257 = vunpack.c.l.b16 %v712
      %v1258 = vunpack.c.h.b16 %v712
      %v1259 = vunpack.c.l.b16 %v713
      %v1260 = vunpack.c.h.b16 %v713
      %v1261 = vunpack.c.l.b16 %v714
      %v1262 = vunpack.c.l.b16 %v715
      %v1263 = vunpack.c.h.b16 %v715
      %v1264 = vunpack.c.l.b16 %v716
      %v1265 = vunpack.c.h.b16 %v716
      %v1266 = vunpack.c.l.b16 %v717
      %v1267 = vunpack.c.h.b16 %v717
      %v1268 = vunpack.c.l.b16 %v718
      %v1269 = vunpack.c.l.b16 %v719
      %v1270 = vunpack.c.h.b16 %v719
      %v1271 = vunpack.c.l.b16 %v720
      %v1272 = vunpack.c.h.b16 %v720
      %v1273 = vunpack.c.l.b16 %v721
      %v1274 = vunpack.c.h.b16 %v721
      %v1275 = vunpack.c.l.b16 %v722
      %v1276 = vunpack.c.l.b16 %v723
      %v1277 = vunpack.c.h.b16 %v723
      %v1278 = vunpack.c.l.b16 %v724
      %v1279 = vunpack.c.h.b16 %v724
      %v1280 = vunpack.c.l.b16 %v725
      %v1281 = vunpack.c.h.b16 %v725
      %v1282 = vunpack.c.l.b16 %v726
      %v1283 = vpack.c.b16 %v1066, %v1059
      %v1284 = vpack.c.b16 %v1067, %v1060
      %v1285 = vpack.c.b16 %v1068, %v1061
      %v1286 = vpack.c.b16 %v1069, %v1062
      %v1287 = vpack.c.b16 %v1070, %v1063
      %v1288 = vpack.c.b16 %v1071, %v1064
      %v1289 = vpack.c.b16 %v1072, %v1065
      %v1290 = vpack.c.b16 %v1080, %v1073
      %v1291 = vpack.c.b16 %v1081, %v1074
      %v1292 = vpack.c.b16 %v1082, %v1075
      %v1293 = vpack.c.b16 %v1083, %v1076
      %v1294 = vpack.c.b16 %v1084, %v1077
      %v1295 = vpack.c.b16 %v1085, %v1078
      %v1296 = vpack.c.b16 %v1086, %v1079
      %v1297 = vpack.c.b16 %v1094, %v1087
      %v1298 = vpack.c.b16 %v1095, %v1088
      %v1299 = vpack.c.b16 %v1096, %v1089
      %v1300 = vpack.c.b16 %v1097, %v1090
      %v1301 = vpack.c.b16 %v1098, %v1091
      %v1302 = vpack.c.b16 %v1099, %v1092
      %v1303 = vpack.c.b16 %v1100, %v1093
      %v1304 = vpack.c.b16 %v1108, %v1101
      %v1305 = vpack.c.b16 %v1109, %v1102
      %v1306 = vpack.c.b16 %v1110, %v1103
      %v1307 = vpack.c.b16 %v1111, %v1104
      %v1308 = vpack.c.b16 %v1112, %v1105
      %v1309 = vpack.c.b16 %v1113, %v1106
      %v1310 = vpack.c.b16 %v1114, %v1107
      %v1311 = vpack.c.b16 %v1122, %v1115
      %v1312 = vpack.c.b16 %v1123, %v1116
      %v1313 = vpack.c.b16 %v1124, %v1117
      %v1314 = vpack.c.b16 %v1125, %v1118
      %v1315 = vpack.c.b16 %v1126, %v1119
      %v1316 = vpack.c.b16 %v1127, %v1120
      %v1317 = vpack.c.b16 %v1128, %v1121
      %v1318 = vpack.c.b16 %v1136, %v1129
      %v1319 = vpack.c.b16 %v1137, %v1130
      %v1320 = vpack.c.b16 %v1138, %v1131
      %v1321 = vpack.c.b16 %v1139, %v1132
      %v1322 = vpack.c.b16 %v1140, %v1133
      %v1323 = vpack.c.b16 %v1141, %v1134
      %v1324 = vpack.c.b16 %v1142, %v1135
      %v1325 = vpack.c.b16 %v1150, %v1143
      %v1326 = vpack.c.b16 %v1151, %v1144
      %v1327 = vpack.c.b16 %v1152, %v1145
      %v1328 = vpack.c.b16 %v1153, %v1146
      %v1329 = vpack.c.b16 %v1154, %v1147
      %v1330 = vpack.c.b16 %v1155, %v1148
      %v1331 = vpack.c.b16 %v1156, %v1149
      %v1332 = vpack.c.b16 %v1164, %v1157
      %v1333 = vpack.c.b16 %v1165, %v1158
      %v1334 = vpack.c.b16 %v1166, %v1159
      %v1335 = vpack.c.b16 %v1167, %v1160
      %v1336 = vpack.c.b16 %v1168, %v1161
      %v1337 = vpack.c.b16 %v1169, %v1162
      %v1338 = vpack.c.b16 %v1170, %v1163
      %v1339 = vpack.c.b16 %v1178, %v1171
      %v1340 = vpack.c.b16 %v1179, %v1172
      %v1341 = vpack.c.b16 %v1180, %v1173
      %v1342 = vpack.c.b16 %v1181, %v1174
      %v1343 = vpack.c.b16 %v1182, %v1175
      %v1344 = vpack.c.b16 %v1183, %v1176
      %v1345 = vpack.c.b16 %v1184, %v1177
      %v1346 = vpack.c.b16 %v1192, %v1185
      %v1347 = vpack.c.b16 %v1193, %v1186
      %v1348 = vpack.c.b16 %v1194, %v1187
      %v1349 = vpack.c.b16 %v1195, %v1188
      %v1350 = vpack.c.b16 %v1196, %v1189
      %v1351 = vpack.c.b16 %v1197, %v1190
      %v1352 = vpack.c.b16 %v1198, %v1191
      %v1353 = vpack.c.b16 %v1206, %v1199
      %v1354 = vpack.c.b16 %v1207, %v1200
      %v1355 = vpack.c.b16 %v1208, %v1201
      %v1356 = vpack.c.b16 %v1209, %v1202
      %v1357 = vpack.c.b16 %v1210, %v1203
      %v1358 = vpack.c.b16 %v1211, %v1204
      %v1359 = vpack.c.b16 %v1212, %v1205
      %v1360 = vpack.c.b16 %v1220, %v1213
      %v1361 = vpack.c.b16 %v1221, %v1214
      %v1362 = vpack.c.b16 %v1222, %v1215
      %v1363 = vpack.c.b16 %v1223, %v1216
      %v1364 = vpack.c.b16 %v1224, %v1217
      %v1365 = vpack.c.b16 %v1225, %v1218
      %v1366 = vpack.c.b16 %v1226, %v1219
      %v1367 = vpack.c.b16 %v1234, %v1227
      %v1368 = vpack.c.b16 %v1235, %v1228
      %v1369 = vpack.c.b16 %v1236, %v1229
      %v1370 = vpack.c.b16 %v1237, %v1230
      %v1371 = vpack.c.b16 %v1238, %v1231
      %v1372 = vpack.c.b16 %v1239, %v1232
      %v1373 = vpack.c.b16 %v1240, %v1233
      %v1374 = vpack.c.b16 %v1248, %v1241
      %v1375 = vpack.c.b16 %v1249, %v1242
      %v1376 = vpack.c.b16 %v1250, %v1243
      %v1377 = vpack.c.b16 %v1251, %v1244
      %v1378 = vpack.c.b16 %v1252, %v1245
      %v1379 = vpack.c.b16 %v1253, %v1246
      %v1380 = vpack.c.b16 %v1254, %v1247
      %v1381 = vpack.c.b16 %v1262, %v1255
      %v1382 = vpack.c.b16 %v1263, %v1256
      %v1383 = vpack.c.b16 %v1264, %v1257
      %v1384 = vpack.c.b16 %v1265, %v1258
      %v1385 = vpack.c.b16 %v1266, %v1259
      %v1386 = vpack.c.b16 %v1267, %v1260
      %v1387 = vpack.c.b16 %v1268, %v1261
      %v1388 = vpack.c.b16 %v1276, %v1269
      %v1389 = vpack.c.b16 %v1277, %v1270
      %v1390 = vpack.c.b16 %v1278, %v1271
      %v1391 = vpack.c.b16 %v1279, %v1272
      %v1392 = vpack.c.b16 %v1280, %v1273
      %v1393 = vpack.c.b16 %v1281, %v1274
      %v1394 = vpack.c.b16 %v1282, %v1275
      %v1687 = vunpack.c.l.b16 %v727
      %v1688 = vunpack.c.h.b16 %v727
      %v1689 = vunpack.c.l.b16 %v728
      %v1690 = vunpack.c.l.b16 %v729
      %v1691 = vunpack.c.h.b16 %v729
      %v1692 = vunpack.c.l.b16 %v730
      %v1693 = vunpack.c.l.b16 %v731
      %v1694 = vunpack.c.h.b16 %v731
      %v1695 = vunpack.c.l.b16 %v732
      %v1696 = vunpack.c.l.b16 %v733
      %v1697 = vunpack.c.h.b16 %v733
      %v1698 = vunpack.c.l.b16 %v734
      %v1699 = vunpack.c.l.b16 %v735
      %v1700 = vunpack.c.h.b16 %v735
      %v1701 = vunpack.c.l.b16 %v736
      %v1702 = vunpack.c.l.b16 %v737
      %v1703 = vunpack.c.h.b16 %v737
      %v1704 = vunpack.c.l.b16 %v738
      %v1705 = vunpack.c.l.b16 %v739
      %v1706 = vunpack.c.h.b16 %v739
      %v1707 = vunpack.c.l.b16 %v740
      %v1708 = vunpack.c.l.b16 %v741
      %v1709 = vunpack.c.h.b16 %v741
      %v1710 = vunpack.c.l.b16 %v742
      %v1711 = vunpack.c.l.b16 %v743
      %v1712 = vunpack.c.h.b16 %v743
      %v1713 = vunpack.c.l.b16 %v744
      %v1714 = vunpack.c.l.b16 %v745
      %v1715 = vunpack.c.h.b16 %v745
      %v1716 = vunpack.c.l.b16 %v746
      %v1717 = vunpack.c.l.b16 %v747
      %v1718 = vunpack.c.h.b16 %v747
      %v1719 = vunpack.c.l.b16 %v748
      %v1720 = vunpack.c.l.b16 %v749
      %v1721 = vunpack.c.h.b16 %v749
      %v1722 = vunpack.c.l.b16 %v750
      %v1723 = vunpack.c.l.b16 %v751
      %v1724 = vunpack.c.h.b16 %v751
      %v1725 = vunpack.c.l.b16 %v752
      %v1726 = vunpack.c.l.b16 %v753
      %v1727 = vunpack.c.h.b16 %v753
      %v1728 = vunpack.c.l.b16 %v754
      %v1729 = vunpack.c.l.b16 %v755
      %v1730 = vunpack.c.h.b16 %v755
      %v1731 = vunpack.c.l.b16 %v756
      %v1732 = vunpack.c.l.b16 %v757
      %v1733 = vunpack.c.h.b16 %v757
      %v1734 = vunpack.c.l.b16 %v758
      %v1735 = vunpack.c.l.b16 %v759
      %v1736 = vunpack.c.h.b16 %v759
      %v1737 = vunpack.c.l.b16 %v760
      %v1738 = vunpack.c.l.b16 %v761
      %v1739 = vunpack.c.h.b16 %v761
      %v1740 = vunpack.c.l.b16 %v762
      %v1741 = vunpack.c.l.b16 %v763
      %v1742 = vunpack.c.h.b16 %v763
      %v1743 = vunpack.c.l.b16 %v764
      %v1744 = vunpack.c.l.b16 %v765
      %v1745 = vunpack.c.h.b16 %v765
      %v1746 = vunpack.c.l.b16 %v766
      %v1747 = vunpack.c.l.b16 %v767
      %v1748 = vunpack.c.h.b16 %v767
      %v1749 = vunpack.c.l.b16 %v768
      %v1750 = vunpack.c.l.b16 %v769
      %v1751 = vunpack.c.h.b16 %v769
      %v1752 = vunpack.c.l.b16 %v770
      %v1753 = vunpack.c.l.b16 %v771
      %v1754 = vunpack.c.h.b16 %v771
      %v1755 = vunpack.c.l.b16 %v772
      %v1756 = vunpack.c.l.b16 %v773
      %v1757 = vunpack.c.h.b16 %v773
      %v1758 = vunpack.c.l.b16 %v774
      %v1759 = vunpack.c.l.b16 %v775
      %v1760 = vunpack.c.h.b16 %v775
      %v1761 = vunpack.c.l.b16 %v776
      %v1762 = vunpack.c.l.b16 %v777
      %v1763 = vunpack.c.h.b16 %v777
      %v1764 = vunpack.c.l.b16 %v778
      %v1765 = vunpack.c.l.b16 %v779
      %v1766 = vunpack.c.h.b16 %v779
      %v1767 = vunpack.c.l.b16 %v780
      %v1768 = vunpack.c.l.b16 %v781
      %v1769 = vunpack.c.h.b16 %v781
      %v1770 = vunpack.c.l.b16 %v782
      %v1771 = vunpack.c.l.b16 %v783
      %v1772 = vunpack.c.h.b16 %v783
      %v1773 = vunpack.c.l.b16 %v784
      %v1774 = vunpack.c.l.b16 %v785
      %v1775 = vunpack.c.h.b16 %v785
      %v1776 = vunpack.c.l.b16 %v786
      %v1777 = vunpack.c.l.b16 %v787
      %v1778 = vunpack.c.h.b16 %v787
      %v1779 = vunpack.c.l.b16 %v788
      %v1780 = vunpack.c.l.b16 %v789
      %v1781 = vunpack.c.h.b16 %v789
      %v1782 = vunpack.c.l.b16 %v790
      %v1783 = vunpack.c.l.b16 %v791
      %v1784 = vunpack.c.h.b16 %v791
      %v1785 = vunpack.c.l.b16 %v792
      %v1786 = vunpack.c.l.b16 %v793
      %v1787 = vunpack.c.h.b16 %v793
      %v1788 = vunpack.c.l.b16 %v794
      %v1789 = vunpack.c.l.b16 %v795
      %v1790 = vunpack.c.h.b16 %v795
      %v1791 = vunpack.c.l.b16 %v796
      %v1792 = vunpack.c.l.b16 %v797
      %v1793 = vunpack.c.h.b16 %v797
      %v1794 = vunpack.c.l.b16 %v798
      %v1795 = vunpack.c.l.b16 %v799
      %v1796 = vunpack.c.h.b16 %v799
      %v1797 = vunpack.c.l.b16 %v800
      %v1798 = vunpack.c.l.b16 %v801
      %v1799 = vunpack.c.h.b16 %v801
      %v1800 = vunpack.c.l.b16 %v802
      %v1801 = vunpack.c.l.b16 %v803
      %v1802 = vunpack.c.h.b16 %v803
      %v1803 = vunpack.c.l.b16 %v804
      %v1804 = vunpack.c.l.b16 %v805
      %v1805 = vunpack.c.h.b16 %v805
      %v1806 = vunpack.c.l.b16 %v806
      %v1807 = vunpack.c.l.b16 %v807
      %v1808 = vunpack.c.h.b16 %v807
      %v1809 = vunpack.c.l.b16 %v808
      %v1810 = vunpack.c.l.b16 %v809
      %v1811 = vunpack.c.h.b16 %v809
      %v1812 = vunpack.c.l.b16 %v810
      %v1813 = vunpack.c.l.b16 %v811
      %v1814 = vunpack.c.h.b16 %v811
      %v1815 = vunpack.c.l.b16 %v812
      %v1816 = vunpack.c.l.b16 %v813
      %v1817 = vunpack.c.h.b16 %v813
      %v1818 = vunpack.c.l.b16 %v814
      %v1819 = vunpack.c.l.b16 %v815
      %v1820 = vunpack.c.h.b16 %v815
      %v1821 = vunpack.c.l.b16 %v816
      %v1822 = vunpack.c.l.b16 %v817
      %v1823 = vunpack.c.h.b16 %v817
      %v1824 = vunpack.c.l.b16 %v818
      %v1825 = vunpack.c.l.b16 %v819
      %v1826 = vunpack.c.h.b16 %v819
      %v1827 = vunpack.c.l.b16 %v820
      %v1828 = vunpack.c.l.b16 %v821
      %v1829 = vunpack.c.h.b16 %v821
      %v1830 = vunpack.c.l.b16 %v822
      %v1831 = vunpack.c.l.b16 %v823
      %v1832 = vunpack.c.h.b16 %v823
      %v1833 = vunpack.c.l.b16 %v824
      %v1834 = vunpack.c.l.b16 %v825
      %v1835 = vunpack.c.h.b16 %v825
      %v1836 = vunpack.c.l.b16 %v826
      %v1837 = vunpack.c.l.b16 %v827
      %v1838 = vunpack.c.h.b16 %v827
      %v1839 = vunpack.c.l.b16 %v828
      %v1840 = vunpack.c.l.b16 %v829
      %v1841 = vunpack.c.h.b16 %v829
      %v1842 = vunpack.c.l.b16 %v830
      %v1843 = vunpack.c.l.b16 %v831
      %v1844 = vunpack.c.h.b16 %v831
      %v1845 = vunpack.c.l.b16 %v832
      %v1846 = vunpack.c.l.b16 %v833
      %v1847 = vunpack.c.h.b16 %v833
      %v1848 = vunpack.c.l.b16 %v834
      %v1849 = vunpack.c.l.b16 %v835
      %v1850 = vunpack.c.h.b16 %v835
      %v1851 = vunpack.c.l.b16 %v836
      %v1852 = vunpack.c.l.b16 %v837
      %v1853 = vunpack.c.h.b16 %v837
      %v1854 = vunpack.c.l.b16 %v838
      %v1855 = vunpack.c.l.b16 %v839
      %v1856 = vunpack.c.h.b16 %v839
      %v1857 = vunpack.c.l.b16 %v840
      %v1858 = vunpack.c.l.b16 %v841
      %v1859 = vunpack.c.h.b16 %v841
      %v1860 = vunpack.c.l.b16 %v842
      %v1861 = vunpack.c.l.b16 %v843
      %v1862 = vunpack.c.h.b16 %v843
      %v1863 = vunpack.c.l.b16 %v844
      %v1864 = vunpack.c.l.b16 %v845
      %v1865 = vunpack.c.h.b16 %v845
      %v1866 = vunpack.c.l.b16 %v846
      %v1867 = vunpack.c.l.b16 %v847
      %v1868 = vunpack.c.h.b16 %v847
      %v1869 = vunpack.c.l.b16 %v848
      %v1870 = vunpack.c.l.b16 %v849
      %v1871 = vunpack.c.h.b16 %v849
      %v1872 = vunpack.c.l.b16 %v850
      %v1873 = vunpack.c.l.b16 %v851
      %v1874 = vunpack.c.h.b16 %v851
      %v1875 = vunpack.c.l.b16 %v852
      %v1876 = vunpack.c.l.b16 %v853
      %v1877 = vunpack.c.h.b16 %v853
      %v1878 = vunpack.c.l.b16 %v854
      %v1879 = vunpack.c.l.b16 %v855
      %v1880 = vunpack.c.h.b16 %v855
      %v1881 = vunpack.c.l.b16 %v856
      %v1882 = vunpack.c.l.b16 %v857
      %v1883 = vunpack.c.h.b16 %v857
      %v1884 = vunpack.c.l.b16 %v858
      %v1885 = vunpack.c.l.b16 %v859
      %v1886 = vunpack.c.h.b16 %v859
      %v1887 = vunpack.c.l.b16 %v860
      %v1888 = vunpack.c.l.b16 %v861
      %v1889 = vunpack.c.h.b16 %v861
      %v1890 = vunpack.c.l.b16 %v862
      %v1891 = vunpack.c.l.b16 %v863
      %v1892 = vunpack.c.h.b16 %v863
      %v1893 = vunpack.c.l.b16 %v864
      %v1894 = vunpack.c.l.b16 %v865
      %v1895 = vunpack.c.h.b16 %v865
      %v1896 = vunpack.c.l.b16 %v866
      %v1897 = vunpack.c.l.b16 %v867
      %v1898 = vunpack.c.h.b16 %v867
      %v1899 = vunpack.c.l.b16 %v868
      %v1900 = vunpack.c.l.b16 %v869
      %v1901 = vunpack.c.h.b16 %v869
      %v1902 = vunpack.c.l.b16 %v870
      %v1903 = vunpack.c.l.b16 %v871
      %v1904 = vunpack.c.h.b16 %v871
      %v1905 = vunpack.c.l.b16 %v872
      %v1906 = vunpack.c.l.b16 %v873
      %v1907 = vunpack.c.h.b16 %v873
      %v1908 = vunpack.c.l.b16 %v874
      %v1909 = vunpack.c.l.b16 %v875
      %v1910 = vunpack.c.h.b16 %v875
      %v1911 = vunpack.c.l.b16 %v876
      %v1912 = vunpack.c.l.b16 %v877
      %v1913 = vunpack.c.h.b16 %v877
      %v1914 = vunpack.c.l.b16 %v878
      %v1915 = vunpack.c.l.b16 %v879
      %v1916 = vunpack.c.h.b16 %v879
      %v1917 = vunpack.c.l.b16 %v880
      %v1918 = vunpack.c.l.b16 %v881
      %v1919 = vunpack.c.h.b16 %v881
      %v1920 = vunpack.c.l.b16 %v882
      %v1921 = vunpack.c.l.b16 %v883
      %v1922 = vunpack.c.h.b16 %v883
      %v1923 = vunpack.c.l.b16 %v884
      %v1924 = vunpack.c.l.b16 %v885
      %v1925 = vunpack.c.h.b16 %v885
      %v1926 = vunpack.c.l.b16 %v886
      %v1927 = vunpack.c.l.b16 %v887
      %v1928 = vunpack.c.h.b16 %v887
      %v1929 = vunpack.c.l.b16 %v888
      %v1930 = vunpack.c.l.b16 %v889
      %v1931 = vunpack.c.h.b16 %v889
      %v1932 = vunpack.c.l.b16 %v890
      %v1933 = vunpack.c.l.b16 %v891
      %v1934 = vunpack.c.h.b16 %v891
      %v1935 = vunpack.c.l.b16 %v892
      %v1936 = vunpack.c.l.b16 %v893
      %v1937 = vunpack.c.h.b16 %v893
      %v1938 = vunpack.c.l.b16 %v894
      %v1939 = vunpack.c.l.b16 %v895
      %v1940 = vunpack.c.h.b16 %v895
      %v1941 = vunpack.c.l.b16 %v896
      %v1942 = vunpack.c.l.b16 %v897
      %v1943 = vunpack.c.h.b16 %v897
      %v1944 = vunpack.c.l.b16 %v898
      %v1945 = vunpack.c.l.b16 %v899
      %v1946 = vunpack.c.h.b16 %v899
      %v1947 = vunpack.c.l.b16 %v900
      %v1948 = vunpack.c.l.b16 %v901
      %v1949 = vunpack.c.h.b16 %v901
      %v1950 = vunpack.c.l.b16 %v902
      %v1951 = vunpack.c.l.b16 %v903
      %v1952 = vunpack.c.h.b16 %v903
      %v1953 = vunpack.c.l.b16 %v904
      %v1954 = vunpack.c.l.b16 %v905
      %v1955 = vunpack.c.h.b16 %v905
      %v1956 = vunpack.c.l.b16 %v906
      %v1957 = vunpack.c.l.b16 %v907
      %v1958 = vunpack.c.h.b16 %v907
      %v1959 = vunpack.c.l.b16 %v908
      %v1960 = vunpack.c.l.b16 %v909
      %v1961 = vunpack.c.h.b16 %v909
      %v1962 = vunpack.c.l.b16 %v910
      %v1963 = vunpack.c.l.b16 %v911
      %v1964 = vunpack.c.h.b16 %v911
      %v1965 = vunpack.c.l.b16 %v912
      %v1966 = vunpack.c.l.b16 %v913
      %v1967 = vunpack.c.h.b16 %v913
      %v1968 = vunpack.c.l.b16 %v914
      %v1969 = vunpack.c.l.b16 %v915
      %v1970 = vunpack.c.h.b16 %v915
      %v1971 = vunpack.c.l.b16 %v916
      %v1972 = vunpack.c.l.b16 %v917
      %v1973 = vunpack.c.h.b16 %v917
      %v1974 = vunpack.c.l.b16 %v918
      %v1975 = vunpack.c.l.b16 %v919
      %v1976 = vunpack.c.h.b16 %v919
      %v1977 = vunpack.c.l.b16 %v920
      %v1978 = vunpack.c.l.b16 %v921
      %v1979 = vunpack.c.h.b16 %v921
      %v1980 = vunpack.c.l.b16 %v922
      %v1981 = vpack.c.b16 %v1690, %v1687
      %v1982 = vpack.c.b16 %v1691, %v1688
      %v1983 = vpack.c.b16 %v1692, %v1689
      %v1984 = vpack.c.b16 %v1696, %v1693
      %v1985 = vpack.c.b16 %v1697, %v1694
      %v1986 = vpack.c.b16 %v1698, %v1695
      %v1987 = vpack.c.b16 %v1702, %v1699
      %v1988 = vpack.c.b16 %v1703, %v1700
      %v1989 = vpack.c.b16 %v1704, %v1701
      %v1990 = vpack.c.b16 %v1708, %v1705
      %v1991 = vpack.c.b16 %v1709, %v1706
      %v1992 = vpack.c.b16 %v1710, %v1707
      %v1993 = vpack.c.b16 %v1714, %v1711
      %v1994 = vpack.c.b16 %v1715, %v1712
      %v1995 = vpack.c.b16 %v1716, %v1713
      %v1996 = vpack.c.b16 %v1720, %v1717
      %v1997 = vpack.c.b16 %v1721, %v1718
      %v1998 = vpack.c.b16 %v1722, %v1719
      %v1999 = vpack.c.b16 %v1726, %v1723
      %v2000 = vpack.c.b16 %v1727, %v1724
      %v2001 = vpack.c.b16 %v1728, %v1725
      %v2002 = vpack.c.b16 %v1732, %v1729
      %v2003 = vpack.c.b16 %v1733, %v1730
      %v2004 = vpack.c.b16 %v1734, %v1731
      %v2005 = vpack.c.b16 %v1738, %v1735
      %v2006 = vpack.c.b16 %v1739, %v1736
      %v2007 = vpack.c.b16 %v1740, %v1737
      %v2008 = vpack.c.b16 %v1744, %v1741
      %v2009 = vpack.c.b16 %v1745, %v1742
      %v2010 = vpack.c.b16 %v1746, %v1743
      %v2011 = vpack.c.b16 %v1750, %v1747
      %v2012 = vpack.c.b16 %v1751, %v1748
      %v2013 = vpack.c.b16 %v1752, %v1749
      %v2014 = vpack.c.b16 %v1756, %v1753
      %v2015 = vpack.c.b16 %v1757, %v1754
      %v2016 = vpack.c.b16 %v1758, %v1755
      %v2017 = vpack.c.b16 %v1762, %v1759
      %v2018 = vpack.c.b16 %v1763, %v1760
      %v2019 = vpack.c.b16 %v1764, %v1761
      %v2020 = vpack.c.b16 %v1768, %v1765
      %v2021 = vpack.c.b16 %v1769, %v1766
      %v2022 = vpack.c.b16 %v1770, %v1767
      %v2023 = vpack.c.b16 %v1774, %v1771
      %v2024 = vpack.c.b16 %v1775, %v1772
      %v2025 = vpack.c.b16 %v1776, %v1773
      %v2026 = vpack.c.b16 %v1780, %v1777
      %v2027 = vpack.c.b16 %v1781, %v1778
      %v2028 = vpack.c.b16 %v1782, %v1779
      %v2029 = vpack.c.b16 %v1786, %v1783
      %v2030 = vpack.c.b16 %v1787, %v1784
      %v2031 = vpack.c.b16 %v1788, %v1785
      %v2032 = vpack.c.b16 %v1792, %v1789
      %v2033 = vpack.c.b16 %v1793, %v1790
      %v2034 = vpack.c.b16 %v1794, %v1791
      %v2035 = vpack.c.b16 %v1798, %v1795
      %v2036 = vpack.c.b16 %v1799, %v1796
      %v2037 = vpack.c.b16 %v1800, %v1797
      %v2038 = vpack.c.b16 %v1804, %v1801
      %v2039 = vpack.c.b16 %v1805, %v1802
      %v2040 = vpack.c.b16 %v1806, %v1803
      %v2041 = vpack.c.b16 %v1810, %v1807
      %v2042 = vpack.c.b16 %v1811, %v1808
      %v2043 = vpack.c.b16 %v1812, %v1809
      %v2044 = vpack.c.b16 %v1816, %v1813
      %v2045 = vpack.c.b16 %v1817, %v1814
      %v2046 = vpack.c.b16 %v1818, %v1815
      %v2047 = vpack.c.b16 %v1822, %v1819
      %v2048 = vpack.c.b16 %v1823, %v1820
      %v2049 = vpack.c.b16 %v1824, %v1821
      %v2050 = vpack.c.b16 %v1828, %v1825
      %v2051 = vpack.c.b16 %v1829, %v1826
      %v2052 = vpack.c.b16 %v1830, %v1827
      %v2053 = vpack.c.b16 %v1834, %v1831
      %v2054 = vpack.c.b16 %v1835, %v1832
      %v2055 = vpack.c.b16 %v1836, %v1833
      %v2056 = vpack.c.b16 %v1840, %v1837
      %v2057 = vpack.c.b16 %v1841, %v1838
      %v2058 = vpack.c.b16 %v1842, %v1839
      %v2059 = vpack.c.b16 %v1846, %v1843
      %v2060 = vpack.c.b16 %v1847, %v1844
      %v2061 = vpack.c.b16 %v1848, %v1845
      %v2062 = vpack.c.b16 %v1852, %v1849
      %v2063 = vpack.c.b16 %v1853, %v1850
      %v2064 = vpack.c.b16 %v1854, %v1851
      %v2065 = vpack.c.b16 %v1858, %v1855
      %v2066 = vpack.c.b16 %v1859, %v1856
      %v2067 = vpack.c.b16 %v1860, %v1857
      %v2068 = vpack.c.b16 %v1864, %v1861
      %v2069 = vpack.c.b16 %v1865, %v1862
      %v2070 = vpack.c.b16 %v1866, %v1863
      %v2071 = vpack.c.b16 %v1870, %v1867
      %v2072 = vpack.c.b16 %v1871, %v1868
      %v2073 = vpack.c.b16 %v1872, %v1869
      %v2074 = vpack.c.b16 %v1876, %v1873
      %v2075 = vpack.c.b16 %v1877, %v1874
      %v2076 = vpack.c.b16 %v1878, %v1875
      %v2077 = vpack.c.b16 %v1882, %v1879
      %v2078 = vpack.c.b16 %v1883, %v1880
      %v2079 = vpack.c.b16 %v1884, %v1881
      %v2080 = vpack.c.b16 %v1888, %v1885
      %v2081 = vpack.c.b16 %v1889, %v1886
      %v2082 = vpack.c.b16 %v1890, %v1887
      %v2083 = vpack.c.b16 %v1894, %v1891
      %v2084 = vpack.c.b16 %v1895, %v1892
      %v2085 = vpack.c.b16 %v1896, %v1893
      %v2086 = vpack.c.b16 %v1900, %v1897
      %v2087 = vpack.c.b16 %v1901, %v1898
      %v2088 = vpack.c.b16 %v1902, %v1899
      %v2089 = vpack.c.b16 %v1906, %v1903
      %v2090 = vpack.c.b16 %v1907, %v1904
      %v2091 = vpack.c.b16 %v1908, %v1905
      %v2092 = vpack.c.b16 %v1912, %v1909
      %v2093 = vpack.c.b16 %v1913, %v1910
      %v2094 = vpack.c.b16 %v1914, %v1911
      %v2095 = vpack.c.b16 %v1918, %v1915
      %v2096 = vpack.c.b16 %v1919, %v1916
      %v2097 = vpack.c.b16 %v1920, %v1917
      %v2098 = vpack.c.b16 %v1924, %v1921
      %v2099 = vpack.c.b16 %v1925, %v1922
      %v2100 = vpack.c.b16 %v1926, %v1923
      %v2101 = vpack.c.b16 %v1930, %v1927
      %v2102 = vpack.c.b16 %v1931, %v1928
      %v2103 = vpack.c.b16 %v1932, %v1929
      %v2104 = vpack.c.b16 %v1936, %v1933
      %v2105 = vpack.c.b16 %v1937, %v1934
      %v2106 = vpack.c.b16 %v1938, %v1935
      %v2107 = vpack.c.b16 %v1942, %v1939
      %v2108 = vpack.c.b16 %v1943, %v1940
      %v2109 = vpack.c.b16 %v1944, %v1941
      %v2110 = vpack.c.b16 %v1948, %v1945
      %v2111 = vpack.c.b16 %v1949, %v1946
      %v2112 = vpack.c.b16 %v1950, %v1947
      %v2113 = vpack.c.b16 %v1954, %v1951
      %v2114 = vpack.c.b16 %v1955, %v1952
      %v2115 = vpack.c.b16 %v1956, %v1953
      %v2116 = vpack.c.b16 %v1960, %v1957
      %v2117 = vpack.c.b16 %v1961, %v1958
      %v2118 = vpack.c.b16 %v1962, %v1959
      %v2119 = vpack.c.b16 %v1966, %v1963
      %v2120 = vpack.c.b16 %v1967, %v1964
      %v2121 = vpack.c.b16 %v1968, %v1965
      %v2122 = vpack.c.b16 %v1972, %v1969
      %v2123 = vpack.c.b16 %v1973, %v1970
      %v2124 = vpack.c.b16 %v1974, %v1971
      %v2125 = vpack.c.b16 %v1978, %v1975
      %v2126 = vpack.c.b16 %v1979, %v1976
      %v2127 = vpack.c.b16 %v1980, %v1977
      %vm2275 = vcmask 130048
      %v2277 = vsel %vm2275, %v1289, 0
      %v2280 = vsel %vm2275, %v1296, 0
      %v2283 = vsel %vm2275, %v1303, 0
      %v2286 = vsel %vm2275, %v1310, 0
      %v2289 = vsel %vm2275, %v1317, 0
      %v2292 = vsel %vm2275, %v1324, 0
      %v2295 = vsel %vm2275, %v1331, 0
      %v2298 = vsel %vm2275, %v1338, 0
      %v2301 = vsel %vm2275, %v1345, 0
      %v2304 = vsel %vm2275, %v1352, 0
      %v2307 = vsel %vm2275, %v1359, 0
      %v2310 = vsel %vm2275, %v1366, 0
      %v2313 = vsel %vm2275, %v1373, 0
      %v2316 = vsel %vm2275, %v1380, 0
      %v2319 = vsel %vm2275, %v1387, 0
      %v2322 = vsel %vm2275, %v1394, 0
      %2324 = vmatpush.bf16.msra.mxu0 %v2002
      %2325 = vmatpush.bf16.msra.mxu0 %v1999
      %2326 = vmatpush.bf16.msra.mxu0 %v1996
      %2327 = vmatpush.bf16.msra.mxu0 %v1993
      %2328 = vmatpush.bf16.msra.mxu0 %v1990
      %2329 = vmatpush.bf16.msra.mxu0 %v1987
      %2330 = vmatpush.bf16.msra.mxu0 %v1984
      %2331 = vmatpush.bf16.msra.mxu0 %v1981
      %2332 = vmatmul.bf16.gmra.mxu0 %v1283
      %v2333 = vpop.f32.mrf.mxu0
      %v2334 = vadd.f32 %v925, %v2333
      %v2335 = vpop.f32.mrf.mxu0
      %v2336 = vadd.f32 %v925, %v2335
      %2337 = vmatmul.bf16.gmra.mxu0 %v1290
      %v2338 = vpop.f32.mrf.mxu0
      %v2339 = vadd.f32 %v925, %v2338
      %v2340 = vpop.f32.mrf.mxu0
      %v2341 = vadd.f32 %v925, %v2340
      %2342 = vmatmul.bf16.gmra.mxu0 %v1297
      %v2343 = vpop.f32.mrf.mxu0
      %v2344 = vadd.f32 %v925, %v2343
      %v2345 = vpop.f32.mrf.mxu0
      %v2346 = vadd.f32 %v925, %v2345
      %2347 = vmatmul.bf16.gmra.mxu0 %v1304
      %v2348 = vpop.f32.mrf.mxu0
      %v2349 = vadd.f32 %v925, %v2348
      %v2350 = vpop.f32.mrf.mxu0
      %v2351 = vadd.f32 %v925, %v2350
      %2352 = vmatmul.bf16.gmra.mxu0 %v1311
      %v2353 = vpop.f32.mrf.mxu0
      %v2354 = vadd.f32 %v925, %v2353
      %v2355 = vpop.f32.mrf.mxu0
      %v2356 = vadd.f32 %v925, %v2355
      %2357 = vmatmul.bf16.gmra.mxu0 %v1318
      %v2358 = vpop.f32.mrf.mxu0
      %v2359 = vadd.f32 %v925, %v2358
      %v2360 = vpop.f32.mrf.mxu0
      %v2361 = vadd.f32 %v925, %v2360
      %2362 = vmatmul.bf16.gmra.mxu0 %v1325
      %v2363 = vpop.f32.mrf.mxu0
      %v2364 = vadd.f32 %v925, %v2363
      %v2365 = vpop.f32.mrf.mxu0
      %v2366 = vadd.f32 %v925, %v2365
      %2367 = vmatmul.bf16.gmra.mxu0 %v1332
      %v2368 = vpop.f32.mrf.mxu0
      %v2369 = vadd.f32 %v925, %v2368
      %v2370 = vpop.f32.mrf.mxu0
      %v2371 = vadd.f32 %v925, %v2370
      %2372 = vmatmul.bf16.gmra.mxu0 %v1339
      %v2373 = vpop.f32.mrf.mxu0
      %v2374 = vadd.f32 %v925, %v2373
      %v2375 = vpop.f32.mrf.mxu0
      %v2376 = vadd.f32 %v925, %v2375
      %2377 = vmatmul.bf16.gmra.mxu0 %v1346
      %v2378 = vpop.f32.mrf.mxu0
      %v2379 = vadd.f32 %v925, %v2378
      %v2380 = vpop.f32.mrf.mxu0
      %v2381 = vadd.f32 %v925, %v2380
      %2382 = vmatmul.bf16.gmra.mxu0 %v1353
      %v2383 = vpop.f32.mrf.mxu0
      %v2384 = vadd.f32 %v925, %v2383
      %v2385 = vpop.f32.mrf.mxu0
      %v2386 = vadd.f32 %v925, %v2385
      %2387 = vmatmul.bf16.gmra.mxu0 %v1360
      %v2388 = vpop.f32.mrf.mxu0
      %v2389 = vadd.f32 %v925, %v2388
      %v2390 = vpop.f32.mrf.mxu0
      %v2391 = vadd.f32 %v925, %v2390
      %2392 = vmatmul.bf16.gmra.mxu0 %v1367
      %v2393 = vpop.f32.mrf.mxu0
      %v2394 = vadd.f32 %v925, %v2393
      %v2395 = vpop.f32.mrf.mxu0
      %v2396 = vadd.f32 %v925, %v2395
      %2397 = vmatmul.bf16.gmra.mxu0 %v1374
      %v2398 = vpop.f32.mrf.mxu0
      %v2399 = vadd.f32 %v925, %v2398
      %v2400 = vpop.f32.mrf.mxu0
      %v2401 = vadd.f32 %v925, %v2400
      %2402 = vmatmul.bf16.gmra.mxu0 %v1381
      %v2403 = vpop.f32.mrf.mxu0
      %v2404 = vadd.f32 %v925, %v2403
      %v2405 = vpop.f32.mrf.mxu0
      %v2406 = vadd.f32 %v925, %v2405
      %2407 = vmatmul.bf16.gmra.mxu0 %v1388
      %v2408 = vpop.f32.mrf.mxu0
      %v2409 = vadd.f32 %v925, %v2408
      %v2410 = vpop.f32.mrf.mxu0
      %v2411 = vadd.f32 %v925, %v2410
      %2412 = vdwg.mxu0
      %2413 = vmatpush.bf16.msra.mxu0 %v2026
      %2414 = vmatpush.bf16.msra.mxu0 %v2023
      %2415 = vmatpush.bf16.msra.mxu0 %v2020
      %2416 = vmatpush.bf16.msra.mxu0 %v2017
      %2417 = vmatpush.bf16.msra.mxu0 %v2014
      %2418 = vmatpush.bf16.msra.mxu0 %v2011
      %2419 = vmatpush.bf16.msra.mxu0 %v2008
      %2420 = vmatpush.bf16.msra.mxu0 %v2005
      %2421 = vmatmul.bf16.gmra.mxu0 %v1284
      %v2422 = vpop.f32.mrf.mxu0
      %v2423 = vadd.f32 %v2334, %v2422
      %v2424 = vpop.f32.mrf.mxu0
      %v2425 = vadd.f32 %v2336, %v2424
      %2426 = vmatmul.bf16.gmra.mxu0 %v1291
      %v2427 = vpop.f32.mrf.mxu0
      %v2428 = vadd.f32 %v2339, %v2427
      %v2429 = vpop.f32.mrf.mxu0
      %v2430 = vadd.f32 %v2341, %v2429
      %2431 = vmatmul.bf16.gmra.mxu0 %v1298
      %v2432 = vpop.f32.mrf.mxu0
      %v2433 = vadd.f32 %v2344, %v2432
      %v2434 = vpop.f32.mrf.mxu0
      %v2435 = vadd.f32 %v2346, %v2434
      %2436 = vmatmul.bf16.gmra.mxu0 %v1305
      %v2437 = vpop.f32.mrf.mxu0
      %v2438 = vadd.f32 %v2349, %v2437
      %v2439 = vpop.f32.mrf.mxu0
      %v2440 = vadd.f32 %v2351, %v2439
      %2441 = vmatmul.bf16.gmra.mxu0 %v1312
      %v2442 = vpop.f32.mrf.mxu0
      %v2443 = vadd.f32 %v2354, %v2442
      %v2444 = vpop.f32.mrf.mxu0
      %v2445 = vadd.f32 %v2356, %v2444
      %2446 = vmatmul.bf16.gmra.mxu0 %v1319
      %v2447 = vpop.f32.mrf.mxu0
      %v2448 = vadd.f32 %v2359, %v2447
      %v2449 = vpop.f32.mrf.mxu0
      %v2450 = vadd.f32 %v2361, %v2449
      %2451 = vmatmul.bf16.gmra.mxu0 %v1326
      %v2452 = vpop.f32.mrf.mxu0
      %v2453 = vadd.f32 %v2364, %v2452
      %v2454 = vpop.f32.mrf.mxu0
      %v2455 = vadd.f32 %v2366, %v2454
      %2456 = vmatmul.bf16.gmra.mxu0 %v1333
      %v2457 = vpop.f32.mrf.mxu0
      %v2458 = vadd.f32 %v2369, %v2457
      %v2459 = vpop.f32.mrf.mxu0
      %v2460 = vadd.f32 %v2371, %v2459
      %2461 = vmatmul.bf16.gmra.mxu0 %v1340
      %v2462 = vpop.f32.mrf.mxu0
      %v2463 = vadd.f32 %v2374, %v2462
      %v2464 = vpop.f32.mrf.mxu0
      %v2465 = vadd.f32 %v2376, %v2464
      %2466 = vmatmul.bf16.gmra.mxu0 %v1347
      %v2467 = vpop.f32.mrf.mxu0
      %v2468 = vadd.f32 %v2379, %v2467
      %v2469 = vpop.f32.mrf.mxu0
      %v2470 = vadd.f32 %v2381, %v2469
      %2471 = vmatmul.bf16.gmra.mxu0 %v1354
      %v2472 = vpop.f32.mrf.mxu0
      %v2473 = vadd.f32 %v2384, %v2472
      %v2474 = vpop.f32.mrf.mxu0
      %v2475 = vadd.f32 %v2386, %v2474
      %2476 = vmatmul.bf16.gmra.mxu0 %v1361
      %v2477 = vpop.f32.mrf.mxu0
      %v2478 = vadd.f32 %v2389, %v2477
      %v2479 = vpop.f32.mrf.mxu0
      %v2480 = vadd.f32 %v2391, %v2479
      %2481 = vmatmul.bf16.gmra.mxu0 %v1368
      %v2482 = vpop.f32.mrf.mxu0
      %v2483 = vadd.f32 %v2394, %v2482
      %v2484 = vpop.f32.mrf.mxu0
      %v2485 = vadd.f32 %v2396, %v2484
      %2486 = vmatmul.bf16.gmra.mxu0 %v1375
      %v2487 = vpop.f32.mrf.mxu0
      %v2488 = vadd.f32 %v2399, %v2487
      %v2489 = vpop.f32.mrf.mxu0
      %v2490 = vadd.f32 %v2401, %v2489
      %2491 = vmatmul.bf16.gmra.mxu0 %v1382
      %v2492 = vpop.f32.mrf.mxu0
      %v2493 = vadd.f32 %v2404, %v2492
      %v2494 = vpop.f32.mrf.mxu0
      %v2495 = vadd.f32 %v2406, %v2494
      %2496 = vmatmul.bf16.gmra.mxu0 %v1389
      %v2497 = vpop.f32.mrf.mxu0
      %v2498 = vadd.f32 %v2409, %v2497
      %v2499 = vpop.f32.mrf.mxu0
      %v2500 = vadd.f32 %v2411, %v2499
      %2501 = vdwg.mxu0
      %2502 = vmatpush.bf16.msra.mxu0 %v2050
      %2503 = vmatpush.bf16.msra.mxu0 %v2047
      %2504 = vmatpush.bf16.msra.mxu0 %v2044
      %2505 = vmatpush.bf16.msra.mxu0 %v2041
      %2506 = vmatpush.bf16.msra.mxu0 %v2038
      %2507 = vmatpush.bf16.msra.mxu0 %v2035
      %2508 = vmatpush.bf16.msra.mxu0 %v2032
      %2509 = vmatpush.bf16.msra.mxu0 %v2029
      %2510 = vmatmul.bf16.gmra.mxu0 %v1285
      %v2511 = vpop.f32.mrf.mxu0
      %v2512 = vadd.f32 %v2423, %v2511
      %v2513 = vpop.f32.mrf.mxu0
      %v2514 = vadd.f32 %v2425, %v2513
      %2515 = vmatmul.bf16.gmra.mxu0 %v1292
      %v2516 = vpop.f32.mrf.mxu0
      %v2517 = vadd.f32 %v2428, %v2516
      %v2518 = vpop.f32.mrf.mxu0
      %v2519 = vadd.f32 %v2430, %v2518
      %2520 = vmatmul.bf16.gmra.mxu0 %v1299
      %v2521 = vpop.f32.mrf.mxu0
      %v2522 = vadd.f32 %v2433, %v2521
      %v2523 = vpop.f32.mrf.mxu0
      %v2524 = vadd.f32 %v2435, %v2523
      %2525 = vmatmul.bf16.gmra.mxu0 %v1306
      %v2526 = vpop.f32.mrf.mxu0
      %v2527 = vadd.f32 %v2438, %v2526
      %v2528 = vpop.f32.mrf.mxu0
      %v2529 = vadd.f32 %v2440, %v2528
      %2530 = vmatmul.bf16.gmra.mxu0 %v1313
      %v2531 = vpop.f32.mrf.mxu0
      %v2532 = vadd.f32 %v2443, %v2531
      %v2533 = vpop.f32.mrf.mxu0
      %v2534 = vadd.f32 %v2445, %v2533
      %2535 = vmatmul.bf16.gmra.mxu0 %v1320
      %v2536 = vpop.f32.mrf.mxu0
      %v2537 = vadd.f32 %v2448, %v2536
      %v2538 = vpop.f32.mrf.mxu0
      %v2539 = vadd.f32 %v2450, %v2538
      %2540 = vmatmul.bf16.gmra.mxu0 %v1327
      %v2541 = vpop.f32.mrf.mxu0
      %v2542 = vadd.f32 %v2453, %v2541
      %v2543 = vpop.f32.mrf.mxu0
      %v2544 = vadd.f32 %v2455, %v2543
      %2545 = vmatmul.bf16.gmra.mxu0 %v1334
      %v2546 = vpop.f32.mrf.mxu0
      %v2547 = vadd.f32 %v2458, %v2546
      %v2548 = vpop.f32.mrf.mxu0
      %v2549 = vadd.f32 %v2460, %v2548
      %2550 = vmatmul.bf16.gmra.mxu0 %v1341
      %v2551 = vpop.f32.mrf.mxu0
      %v2552 = vadd.f32 %v2463, %v2551
      %v2553 = vpop.f32.mrf.mxu0
      %v2554 = vadd.f32 %v2465, %v2553
      %2555 = vmatmul.bf16.gmra.mxu0 %v1348
      %v2556 = vpop.f32.mrf.mxu0
      %v2557 = vadd.f32 %v2468, %v2556
      %v2558 = vpop.f32.mrf.mxu0
      %v2559 = vadd.f32 %v2470, %v2558
      %2560 = vmatmul.bf16.gmra.mxu0 %v1355
      %v2561 = vpop.f32.mrf.mxu0
      %v2562 = vadd.f32 %v2473, %v2561
      %v2563 = vpop.f32.mrf.mxu0
      %v2564 = vadd.f32 %v2475, %v2563
      %2565 = vmatmul.bf16.gmra.mxu0 %v1362
      %v2566 = vpop.f32.mrf.mxu0
      %v2567 = vadd.f32 %v2478, %v2566
      %v2568 = vpop.f32.mrf.mxu0
      %v2569 = vadd.f32 %v2480, %v2568
      %2570 = vmatmul.bf16.gmra.mxu0 %v1369
      %v2571 = vpop.f32.mrf.mxu0
      %v2572 = vadd.f32 %v2483, %v2571
      %v2573 = vpop.f32.mrf.mxu0
      %v2574 = vadd.f32 %v2485, %v2573
      %2575 = vmatmul.bf16.gmra.mxu0 %v1376
      %v2576 = vpop.f32.mrf.mxu0
      %v2577 = vadd.f32 %v2488, %v2576
      %v2578 = vpop.f32.mrf.mxu0
      %v2579 = vadd.f32 %v2490, %v2578
      %2580 = vmatmul.bf16.gmra.mxu0 %v1383
      %v2581 = vpop.f32.mrf.mxu0
      %v2582 = vadd.f32 %v2493, %v2581
      %v2583 = vpop.f32.mrf.mxu0
      %v2584 = vadd.f32 %v2495, %v2583
      %2585 = vmatmul.bf16.gmra.mxu0 %v1390
      %v2586 = vpop.f32.mrf.mxu0
      %v2587 = vadd.f32 %v2498, %v2586
      %v2588 = vpop.f32.mrf.mxu0
      %v2589 = vadd.f32 %v2500, %v2588
      %2590 = vdwg.mxu0
      %2591 = vmatpush.bf16.msra.mxu0 %v2074
      %2592 = vmatpush.bf16.msra.mxu0 %v2071
      %2593 = vmatpush.bf16.msra.mxu0 %v2068
      %2594 = vmatpush.bf16.msra.mxu0 %v2065
      %2595 = vmatpush.bf16.msra.mxu0 %v2062
      %2596 = vmatpush.bf16.msra.mxu0 %v2059
      %2597 = vmatpush.bf16.msra.mxu0 %v2056
      %2598 = vmatpush.bf16.msra.mxu0 %v2053
      %2599 = vmatmul.bf16.gmra.mxu0 %v1286
      %v2600 = vpop.f32.mrf.mxu0
      %v2601 = vadd.f32 %v2512, %v2600
      %v2602 = vpop.f32.mrf.mxu0
      %v2603 = vadd.f32 %v2514, %v2602
      %2604 = vmatmul.bf16.gmra.mxu0 %v1293
      %v2605 = vpop.f32.mrf.mxu0
      %v2606 = vadd.f32 %v2517, %v2605
      %v2607 = vpop.f32.mrf.mxu0
      %v2608 = vadd.f32 %v2519, %v2607
      %2609 = vmatmul.bf16.gmra.mxu0 %v1300
      %v2610 = vpop.f32.mrf.mxu0
      %v2611 = vadd.f32 %v2522, %v2610
      %v2612 = vpop.f32.mrf.mxu0
      %v2613 = vadd.f32 %v2524, %v2612
      %2614 = vmatmul.bf16.gmra.mxu0 %v1307
      %v2615 = vpop.f32.mrf.mxu0
      %v2616 = vadd.f32 %v2527, %v2615
      %v2617 = vpop.f32.mrf.mxu0
      %v2618 = vadd.f32 %v2529, %v2617
      %2619 = vmatmul.bf16.gmra.mxu0 %v1314
      %v2620 = vpop.f32.mrf.mxu0
      %v2621 = vadd.f32 %v2532, %v2620
      %v2622 = vpop.f32.mrf.mxu0
      %v2623 = vadd.f32 %v2534, %v2622
      %2624 = vmatmul.bf16.gmra.mxu0 %v1321
      %v2625 = vpop.f32.mrf.mxu0
      %v2626 = vadd.f32 %v2537, %v2625
      %v2627 = vpop.f32.mrf.mxu0
      %v2628 = vadd.f32 %v2539, %v2627
      %2629 = vmatmul.bf16.gmra.mxu0 %v1328
      %v2630 = vpop.f32.mrf.mxu0
      %v2631 = vadd.f32 %v2542, %v2630
      %v2632 = vpop.f32.mrf.mxu0
      %v2633 = vadd.f32 %v2544, %v2632
      %2634 = vmatmul.bf16.gmra.mxu0 %v1335
      %v2635 = vpop.f32.mrf.mxu0
      %v2636 = vadd.f32 %v2547, %v2635
      %v2637 = vpop.f32.mrf.mxu0
      %v2638 = vadd.f32 %v2549, %v2637
      %2639 = vmatmul.bf16.gmra.mxu0 %v1342
      %v2640 = vpop.f32.mrf.mxu0
      %v2641 = vadd.f32 %v2552, %v2640
      %v2642 = vpop.f32.mrf.mxu0
      %v2643 = vadd.f32 %v2554, %v2642
      %2644 = vmatmul.bf16.gmra.mxu0 %v1349
      %v2645 = vpop.f32.mrf.mxu0
      %v2646 = vadd.f32 %v2557, %v2645
      %v2647 = vpop.f32.mrf.mxu0
      %v2648 = vadd.f32 %v2559, %v2647
      %2649 = vmatmul.bf16.gmra.mxu0 %v1356
      %v2650 = vpop.f32.mrf.mxu0
      %v2651 = vadd.f32 %v2562, %v2650
      %v2652 = vpop.f32.mrf.mxu0
      %v2653 = vadd.f32 %v2564, %v2652
      %2654 = vmatmul.bf16.gmra.mxu0 %v1363
      %v2655 = vpop.f32.mrf.mxu0
      %v2656 = vadd.f32 %v2567, %v2655
      %v2657 = vpop.f32.mrf.mxu0
      %v2658 = vadd.f32 %v2569, %v2657
      %2659 = vmatmul.bf16.gmra.mxu0 %v1370
      %v2660 = vpop.f32.mrf.mxu0
      %v2661 = vadd.f32 %v2572, %v2660
      %v2662 = vpop.f32.mrf.mxu0
      %v2663 = vadd.f32 %v2574, %v2662
      %2664 = vmatmul.bf16.gmra.mxu0 %v1377
      %v2665 = vpop.f32.mrf.mxu0
      %v2666 = vadd.f32 %v2577, %v2665
      %v2667 = vpop.f32.mrf.mxu0
      %v2668 = vadd.f32 %v2579, %v2667
      %2669 = vmatmul.bf16.gmra.mxu0 %v1384
      %v2670 = vpop.f32.mrf.mxu0
      %v2671 = vadd.f32 %v2582, %v2670
      %v2672 = vpop.f32.mrf.mxu0
      %v2673 = vadd.f32 %v2584, %v2672
      %2674 = vmatmul.bf16.gmra.mxu0 %v1391
      %v2675 = vpop.f32.mrf.mxu0
      %v2676 = vadd.f32 %v2587, %v2675
      %v2677 = vpop.f32.mrf.mxu0
      %v2678 = vadd.f32 %v2589, %v2677
      %2679 = vdwg.mxu0
      %2680 = vmatpush.bf16.msra.mxu0 %v2098
      %2681 = vmatpush.bf16.msra.mxu0 %v2095
      %2682 = vmatpush.bf16.msra.mxu0 %v2092
      %2683 = vmatpush.bf16.msra.mxu0 %v2089
      %2684 = vmatpush.bf16.msra.mxu0 %v2086
      %2685 = vmatpush.bf16.msra.mxu0 %v2083
      %2686 = vmatpush.bf16.msra.mxu0 %v2080
      %2687 = vmatpush.bf16.msra.mxu0 %v2077
      %2688 = vmatmul.bf16.gmra.mxu0 %v1287
      %v2689 = vpop.f32.mrf.mxu0
      %v2690 = vadd.f32 %v2601, %v2689
      %v2691 = vpop.f32.mrf.mxu0
      %v2692 = vadd.f32 %v2603, %v2691
      %2693 = vmatmul.bf16.gmra.mxu0 %v1294
      %v2694 = vpop.f32.mrf.mxu0
      %v2695 = vadd.f32 %v2606, %v2694
      %v2696 = vpop.f32.mrf.mxu0
      %v2697 = vadd.f32 %v2608, %v2696
      %2698 = vmatmul.bf16.gmra.mxu0 %v1301
      %v2699 = vpop.f32.mrf.mxu0
      %v2700 = vadd.f32 %v2611, %v2699
      %v2701 = vpop.f32.mrf.mxu0
      %v2702 = vadd.f32 %v2613, %v2701
      %2703 = vmatmul.bf16.gmra.mxu0 %v1308
      %v2704 = vpop.f32.mrf.mxu0
      %v2705 = vadd.f32 %v2616, %v2704
      %v2706 = vpop.f32.mrf.mxu0
      %v2707 = vadd.f32 %v2618, %v2706
      %2708 = vmatmul.bf16.gmra.mxu0 %v1315
      %v2709 = vpop.f32.mrf.mxu0
      %v2710 = vadd.f32 %v2621, %v2709
      %v2711 = vpop.f32.mrf.mxu0
      %v2712 = vadd.f32 %v2623, %v2711
      %2713 = vmatmul.bf16.gmra.mxu0 %v1322
      %v2714 = vpop.f32.mrf.mxu0
      %v2715 = vadd.f32 %v2626, %v2714
      %v2716 = vpop.f32.mrf.mxu0
      %v2717 = vadd.f32 %v2628, %v2716
      %2718 = vmatmul.bf16.gmra.mxu0 %v1329
      %v2719 = vpop.f32.mrf.mxu0
      %v2720 = vadd.f32 %v2631, %v2719
      %v2721 = vpop.f32.mrf.mxu0
      %v2722 = vadd.f32 %v2633, %v2721
      %2723 = vmatmul.bf16.gmra.mxu0 %v1336
      %v2724 = vpop.f32.mrf.mxu0
      %v2725 = vadd.f32 %v2636, %v2724
      %v2726 = vpop.f32.mrf.mxu0
      %v2727 = vadd.f32 %v2638, %v2726
      %2728 = vmatmul.bf16.gmra.mxu0 %v1343
      %v2729 = vpop.f32.mrf.mxu0
      %v2730 = vadd.f32 %v2641, %v2729
      %v2731 = vpop.f32.mrf.mxu0
      %v2732 = vadd.f32 %v2643, %v2731
      %2733 = vmatmul.bf16.gmra.mxu0 %v1350
      %v2734 = vpop.f32.mrf.mxu0
      %v2735 = vadd.f32 %v2646, %v2734
      %v2736 = vpop.f32.mrf.mxu0
      %v2737 = vadd.f32 %v2648, %v2736
      %2738 = vmatmul.bf16.gmra.mxu0 %v1357
      %v2739 = vpop.f32.mrf.mxu0
      %v2740 = vadd.f32 %v2651, %v2739
      %v2741 = vpop.f32.mrf.mxu0
      %v2742 = vadd.f32 %v2653, %v2741
      %2743 = vmatmul.bf16.gmra.mxu0 %v1364
      %v2744 = vpop.f32.mrf.mxu0
      %v2745 = vadd.f32 %v2656, %v2744
      %v2746 = vpop.f32.mrf.mxu0
      %v2747 = vadd.f32 %v2658, %v2746
      %2748 = vmatmul.bf16.gmra.mxu0 %v1371
      %v2749 = vpop.f32.mrf.mxu0
      %v2750 = vadd.f32 %v2661, %v2749
      %v2751 = vpop.f32.mrf.mxu0
      %v2752 = vadd.f32 %v2663, %v2751
      %2753 = vmatmul.bf16.gmra.mxu0 %v1378
      %v2754 = vpop.f32.mrf.mxu0
      %v2755 = vadd.f32 %v2666, %v2754
      %v2756 = vpop.f32.mrf.mxu0
      %v2757 = vadd.f32 %v2668, %v2756
      %2758 = vmatmul.bf16.gmra.mxu0 %v1385
      %v2759 = vpop.f32.mrf.mxu0
      %v2760 = vadd.f32 %v2671, %v2759
      %v2761 = vpop.f32.mrf.mxu0
      %v2762 = vadd.f32 %v2673, %v2761
      %2763 = vmatmul.bf16.gmra.mxu0 %v1392
      %v2764 = vpop.f32.mrf.mxu0
      %v2765 = vadd.f32 %v2676, %v2764
      %v2766 = vpop.f32.mrf.mxu0
      %v2767 = vadd.f32 %v2678, %v2766
      %2768 = vdwg.mxu0
      %2769 = vmatpush.bf16.msra.mxu0 %v2122
      %2770 = vmatpush.bf16.msra.mxu0 %v2119
      %2771 = vmatpush.bf16.msra.mxu0 %v2116
      %2772 = vmatpush.bf16.msra.mxu0 %v2113
      %2773 = vmatpush.bf16.msra.mxu0 %v2110
      %2774 = vmatpush.bf16.msra.mxu0 %v2107
      %2775 = vmatpush.bf16.msra.mxu0 %v2104
      %2776 = vmatpush.bf16.msra.mxu0 %v2101
      %2777 = vmatmul.bf16.gmra.mxu0 %v1288
      %v2778 = vpop.f32.mrf.mxu0
      %v2779 = vadd.f32 %v2690, %v2778
      %v2780 = vpop.f32.mrf.mxu0
      %v2781 = vadd.f32 %v2692, %v2780
      %2782 = vmatmul.bf16.gmra.mxu0 %v1295
      %v2783 = vpop.f32.mrf.mxu0
      %v2784 = vadd.f32 %v2695, %v2783
      %v2785 = vpop.f32.mrf.mxu0
      %v2786 = vadd.f32 %v2697, %v2785
      %2787 = vmatmul.bf16.gmra.mxu0 %v1302
      %v2788 = vpop.f32.mrf.mxu0
      %v2789 = vadd.f32 %v2700, %v2788
      %v2790 = vpop.f32.mrf.mxu0
      %v2791 = vadd.f32 %v2702, %v2790
      %2792 = vmatmul.bf16.gmra.mxu0 %v1309
      %v2793 = vpop.f32.mrf.mxu0
      %v2794 = vadd.f32 %v2705, %v2793
      %v2795 = vpop.f32.mrf.mxu0
      %v2796 = vadd.f32 %v2707, %v2795
      %2797 = vmatmul.bf16.gmra.mxu0 %v1316
      %v2798 = vpop.f32.mrf.mxu0
      %v2799 = vadd.f32 %v2710, %v2798
      %v2800 = vpop.f32.mrf.mxu0
      %v2801 = vadd.f32 %v2712, %v2800
      %2802 = vmatmul.bf16.gmra.mxu0 %v1323
      %v2803 = vpop.f32.mrf.mxu0
      %v2804 = vadd.f32 %v2715, %v2803
      %v2805 = vpop.f32.mrf.mxu0
      %v2806 = vadd.f32 %v2717, %v2805
      %2807 = vmatmul.bf16.gmra.mxu0 %v1330
      %v2808 = vpop.f32.mrf.mxu0
      %v2809 = vadd.f32 %v2720, %v2808
      %v2810 = vpop.f32.mrf.mxu0
      %v2811 = vadd.f32 %v2722, %v2810
      %2812 = vmatmul.bf16.gmra.mxu0 %v1337
      %v2813 = vpop.f32.mrf.mxu0
      %v2814 = vadd.f32 %v2725, %v2813
      %v2815 = vpop.f32.mrf.mxu0
      %v2816 = vadd.f32 %v2727, %v2815
      %2817 = vmatmul.bf16.gmra.mxu0 %v1344
      %v2818 = vpop.f32.mrf.mxu0
      %v2819 = vadd.f32 %v2730, %v2818
      %v2820 = vpop.f32.mrf.mxu0
      %v2821 = vadd.f32 %v2732, %v2820
      %2822 = vmatmul.bf16.gmra.mxu0 %v1351
      %v2823 = vpop.f32.mrf.mxu0
      %v2824 = vadd.f32 %v2735, %v2823
      %v2825 = vpop.f32.mrf.mxu0
      %v2826 = vadd.f32 %v2737, %v2825
      %2827 = vmatmul.bf16.gmra.mxu0 %v1358
      %v2828 = vpop.f32.mrf.mxu0
      %v2829 = vadd.f32 %v2740, %v2828
      %v2830 = vpop.f32.mrf.mxu0
      %v2831 = vadd.f32 %v2742, %v2830
      %2832 = vmatmul.bf16.gmra.mxu0 %v1365
      %v2833 = vpop.f32.mrf.mxu0
      %v2834 = vadd.f32 %v2745, %v2833
      %v2835 = vpop.f32.mrf.mxu0
      %v2836 = vadd.f32 %v2747, %v2835
      %2837 = vmatmul.bf16.gmra.mxu0 %v1372
      %v2838 = vpop.f32.mrf.mxu0
      %v2839 = vadd.f32 %v2750, %v2838
      %v2840 = vpop.f32.mrf.mxu0
      %v2841 = vadd.f32 %v2752, %v2840
      %2842 = vmatmul.bf16.gmra.mxu0 %v1379
      %v2843 = vpop.f32.mrf.mxu0
      %v2844 = vadd.f32 %v2755, %v2843
      %v2845 = vpop.f32.mrf.mxu0
      %v2846 = vadd.f32 %v2757, %v2845
      %2847 = vmatmul.bf16.gmra.mxu0 %v1386
      %v2848 = vpop.f32.mrf.mxu0
      %v2849 = vadd.f32 %v2760, %v2848
      %v2850 = vpop.f32.mrf.mxu0
      %v2851 = vadd.f32 %v2762, %v2850
      %2852 = vmatmul.bf16.gmra.mxu0 %v1393
      %v2853 = vpop.f32.mrf.mxu0
      %v2854 = vadd.f32 %v2765, %v2853
      %v2855 = vpop.f32.mrf.mxu0
      %v2856 = vadd.f32 %v2767, %v2855
      %2857 = vdwg.mxu0
      %2858 = vmatpush.bf16.msra.mxu0 0
      %2859 = vmatpush.bf16.msra.mxu0 0
      %2860 = vmatpush.bf16.msra.mxu0 0
      %2861 = vmatpush.bf16.msra.mxu0 0
      %2862 = vmatpush.bf16.msra.mxu0 0
      %2863 = vmatpush.bf16.msra.mxu0 0
      %2864 = vmatpush.bf16.msra.mxu0 0
      %2865 = vmatpush.bf16.msra.mxu0 %v2125
      %2866 = vmatmul.bf16.gmra.mxu0 %v2277
      %v2867 = vpop.f32.mrf.mxu0
      %v2868 = vadd.f32 %v2779, %v2867
      %v2869 = vpop.f32.mrf.mxu0
      %v2870 = vadd.f32 %v2781, %v2869
      %2871 = vmatmul.bf16.gmra.mxu0 %v2280
      %v2872 = vpop.f32.mrf.mxu0
      %v2873 = vadd.f32 %v2784, %v2872
      %v2874 = vpop.f32.mrf.mxu0
      %v2875 = vadd.f32 %v2786, %v2874
      %2876 = vmatmul.bf16.gmra.mxu0 %v2283
      %v2877 = vpop.f32.mrf.mxu0
      %v2878 = vadd.f32 %v2789, %v2877
      %v2879 = vpop.f32.mrf.mxu0
      %v2880 = vadd.f32 %v2791, %v2879
      %2881 = vmatmul.bf16.gmra.mxu0 %v2286
      %v2882 = vpop.f32.mrf.mxu0
      %v2883 = vadd.f32 %v2794, %v2882
      %v2884 = vpop.f32.mrf.mxu0
      %v2885 = vadd.f32 %v2796, %v2884
      %2886 = vmatmul.bf16.gmra.mxu0 %v2289
      %v2887 = vpop.f32.mrf.mxu0
      %v2888 = vadd.f32 %v2799, %v2887
      %v2889 = vpop.f32.mrf.mxu0
      %v2890 = vadd.f32 %v2801, %v2889
      %2891 = vmatmul.bf16.gmra.mxu0 %v2292
      %v2892 = vpop.f32.mrf.mxu0
      %v2893 = vadd.f32 %v2804, %v2892
      %v2894 = vpop.f32.mrf.mxu0
      %v2895 = vadd.f32 %v2806, %v2894
      %2896 = vmatmul.bf16.gmra.mxu0 %v2295
      %v2897 = vpop.f32.mrf.mxu0
      %v2898 = vadd.f32 %v2809, %v2897
      %v2899 = vpop.f32.mrf.mxu0
      %v2900 = vadd.f32 %v2811, %v2899
      %2901 = vmatmul.bf16.gmra.mxu0 %v2298
      %v2902 = vpop.f32.mrf.mxu0
      %v2903 = vadd.f32 %v2814, %v2902
      %v2904 = vpop.f32.mrf.mxu0
      %v2905 = vadd.f32 %v2816, %v2904
      %2906 = vmatmul.bf16.gmra.mxu0 %v2301
      %v2907 = vpop.f32.mrf.mxu0
      %v2908 = vadd.f32 %v2819, %v2907
      %v2909 = vpop.f32.mrf.mxu0
      %v2910 = vadd.f32 %v2821, %v2909
      %2911 = vmatmul.bf16.gmra.mxu0 %v2304
      %v2912 = vpop.f32.mrf.mxu0
      %v2913 = vadd.f32 %v2824, %v2912
      %v2914 = vpop.f32.mrf.mxu0
      %v2915 = vadd.f32 %v2826, %v2914
      %2916 = vmatmul.bf16.gmra.mxu0 %v2307
      %v2917 = vpop.f32.mrf.mxu0
      %v2918 = vadd.f32 %v2829, %v2917
      %v2919 = vpop.f32.mrf.mxu0
      %v2920 = vadd.f32 %v2831, %v2919
      %2921 = vmatmul.bf16.gmra.mxu0 %v2310
      %v2922 = vpop.f32.mrf.mxu0
      %v2923 = vadd.f32 %v2834, %v2922
      %v2924 = vpop.f32.mrf.mxu0
      %v2925 = vadd.f32 %v2836, %v2924
      %2926 = vmatmul.bf16.gmra.mxu0 %v2313
      %v2927 = vpop.f32.mrf.mxu0
      %v2928 = vadd.f32 %v2839, %v2927
      %v2929 = vpop.f32.mrf.mxu0
      %v2930 = vadd.f32 %v2841, %v2929
      %2931 = vmatmul.bf16.gmra.mxu0 %v2316
      %v2932 = vpop.f32.mrf.mxu0
      %v2933 = vadd.f32 %v2844, %v2932
      %v2934 = vpop.f32.mrf.mxu0
      %v2935 = vadd.f32 %v2846, %v2934
      %2936 = vmatmul.bf16.gmra.mxu0 %v2319
      %v2937 = vpop.f32.mrf.mxu0
      %v2938 = vadd.f32 %v2849, %v2937
      %v2939 = vpop.f32.mrf.mxu0
      %v2940 = vadd.f32 %v2851, %v2939
      %2941 = vmatmul.bf16.gmra.mxu0 %v2322
      %v2942 = vpop.f32.mrf.mxu0
      %v2943 = vadd.f32 %v2854, %v2942
      %v2944 = vpop.f32.mrf.mxu0
      %v2945 = vadd.f32 %v2856, %v2944
      %2946 = vdwg.mxu0
      %2947 = vmatpush.bf16.msra.mxu0 %v2003
      %2948 = vmatpush.bf16.msra.mxu0 %v2000
      %2949 = vmatpush.bf16.msra.mxu0 %v1997
      %2950 = vmatpush.bf16.msra.mxu0 %v1994
      %2951 = vmatpush.bf16.msra.mxu0 %v1991
      %2952 = vmatpush.bf16.msra.mxu0 %v1988
      %2953 = vmatpush.bf16.msra.mxu0 %v1985
      %2954 = vmatpush.bf16.msra.mxu0 %v1982
      %2955 = vmatmul.bf16.gmra.mxu0 %v1283
      %v2956 = vpop.f32.mrf.mxu0
      %v2957 = vadd.f32 %v926, %v2956
      %v2958 = vpop.f32.mrf.mxu0
      %v2959 = vadd.f32 %v926, %v2958
      %2960 = vmatmul.bf16.gmra.mxu0 %v1290
      %v2961 = vpop.f32.mrf.mxu0
      %v2962 = vadd.f32 %v926, %v2961
      %v2963 = vpop.f32.mrf.mxu0
      %v2964 = vadd.f32 %v926, %v2963
      %2965 = vmatmul.bf16.gmra.mxu0 %v1297
      %v2966 = vpop.f32.mrf.mxu0
      %v2967 = vadd.f32 %v926, %v2966
      %v2968 = vpop.f32.mrf.mxu0
      %v2969 = vadd.f32 %v926, %v2968
      %2970 = vmatmul.bf16.gmra.mxu0 %v1304
      %v2971 = vpop.f32.mrf.mxu0
      %v2972 = vadd.f32 %v926, %v2971
      %v2973 = vpop.f32.mrf.mxu0
      %v2974 = vadd.f32 %v926, %v2973
      %2975 = vmatmul.bf16.gmra.mxu0 %v1311
      %v2976 = vpop.f32.mrf.mxu0
      %v2977 = vadd.f32 %v926, %v2976
      %v2978 = vpop.f32.mrf.mxu0
      %v2979 = vadd.f32 %v926, %v2978
      %2980 = vmatmul.bf16.gmra.mxu0 %v1318
      %v2981 = vpop.f32.mrf.mxu0
      %v2982 = vadd.f32 %v926, %v2981
      %v2983 = vpop.f32.mrf.mxu0
      %v2984 = vadd.f32 %v926, %v2983
      %2985 = vmatmul.bf16.gmra.mxu0 %v1325
      %v2986 = vpop.f32.mrf.mxu0
      %v2987 = vadd.f32 %v926, %v2986
      %v2988 = vpop.f32.mrf.mxu0
      %v2989 = vadd.f32 %v926, %v2988
      %2990 = vmatmul.bf16.gmra.mxu0 %v1332
      %v2991 = vpop.f32.mrf.mxu0
      %v2992 = vadd.f32 %v926, %v2991
      %v2993 = vpop.f32.mrf.mxu0
      %v2994 = vadd.f32 %v926, %v2993
      %2995 = vmatmul.bf16.gmra.mxu0 %v1339
      %v2996 = vpop.f32.mrf.mxu0
      %v2997 = vadd.f32 %v926, %v2996
      %v2998 = vpop.f32.mrf.mxu0
      %v2999 = vadd.f32 %v926, %v2998
      %3000 = vmatmul.bf16.gmra.mxu0 %v1346
      %v3001 = vpop.f32.mrf.mxu0
      %v3002 = vadd.f32 %v926, %v3001
      %v3003 = vpop.f32.mrf.mxu0
      %v3004 = vadd.f32 %v926, %v3003
      %3005 = vmatmul.bf16.gmra.mxu0 %v1353
      %v3006 = vpop.f32.mrf.mxu0
      %v3007 = vadd.f32 %v926, %v3006
      %v3008 = vpop.f32.mrf.mxu0
      %v3009 = vadd.f32 %v926, %v3008
      %3010 = vmatmul.bf16.gmra.mxu0 %v1360
      %v3011 = vpop.f32.mrf.mxu0
      %v3012 = vadd.f32 %v926, %v3011
      %v3013 = vpop.f32.mrf.mxu0
      %v3014 = vadd.f32 %v926, %v3013
      %3015 = vmatmul.bf16.gmra.mxu0 %v1367
      %v3016 = vpop.f32.mrf.mxu0
      %v3017 = vadd.f32 %v926, %v3016
      %v3018 = vpop.f32.mrf.mxu0
      %v3019 = vadd.f32 %v926, %v3018
      %3020 = vmatmul.bf16.gmra.mxu0 %v1374
      %v3021 = vpop.f32.mrf.mxu0
      %v3022 = vadd.f32 %v926, %v3021
      %v3023 = vpop.f32.mrf.mxu0
      %v3024 = vadd.f32 %v926, %v3023
      %3025 = vmatmul.bf16.gmra.mxu0 %v1381
      %v3026 = vpop.f32.mrf.mxu0
      %v3027 = vadd.f32 %v926, %v3026
      %v3028 = vpop.f32.mrf.mxu0
      %v3029 = vadd.f32 %v926, %v3028
      %3030 = vmatmul.bf16.gmra.mxu0 %v1388
      %v3031 = vpop.f32.mrf.mxu0
      %v3032 = vadd.f32 %v926, %v3031
      %v3033 = vpop.f32.mrf.mxu0
      %v3034 = vadd.f32 %v926, %v3033
      %3035 = vdwg.mxu0
      %3036 = vmatpush.bf16.msra.mxu0 %v2027
      %3037 = vmatpush.bf16.msra.mxu0 %v2024
      %3038 = vmatpush.bf16.msra.mxu0 %v2021
      %3039 = vmatpush.bf16.msra.mxu0 %v2018
      %3040 = vmatpush.bf16.msra.mxu0 %v2015
      %3041 = vmatpush.bf16.msra.mxu0 %v2012
      %3042 = vmatpush.bf16.msra.mxu0 %v2009
      %3043 = vmatpush.bf16.msra.mxu0 %v2006
      %3044 = vmatmul.bf16.gmra.mxu0 %v1284
      %v3045 = vpop.f32.mrf.mxu0
      %v3046 = vadd.f32 %v2957, %v3045
      %v3047 = vpop.f32.mrf.mxu0
      %v3048 = vadd.f32 %v2959, %v3047
      %3049 = vmatmul.bf16.gmra.mxu0 %v1291
      %v3050 = vpop.f32.mrf.mxu0
      %v3051 = vadd.f32 %v2962, %v3050
      %v3052 = vpop.f32.mrf.mxu0
      %v3053 = vadd.f32 %v2964, %v3052
      %3054 = vmatmul.bf16.gmra.mxu0 %v1298
      %v3055 = vpop.f32.mrf.mxu0
      %v3056 = vadd.f32 %v2967, %v3055
      %v3057 = vpop.f32.mrf.mxu0
      %v3058 = vadd.f32 %v2969, %v3057
      %3059 = vmatmul.bf16.gmra.mxu0 %v1305
      %v3060 = vpop.f32.mrf.mxu0
      %v3061 = vadd.f32 %v2972, %v3060
      %v3062 = vpop.f32.mrf.mxu0
      %v3063 = vadd.f32 %v2974, %v3062
      %3064 = vmatmul.bf16.gmra.mxu0 %v1312
      %v3065 = vpop.f32.mrf.mxu0
      %v3066 = vadd.f32 %v2977, %v3065
      %v3067 = vpop.f32.mrf.mxu0
      %v3068 = vadd.f32 %v2979, %v3067
      %3069 = vmatmul.bf16.gmra.mxu0 %v1319
      %v3070 = vpop.f32.mrf.mxu0
      %v3071 = vadd.f32 %v2982, %v3070
      %v3072 = vpop.f32.mrf.mxu0
      %v3073 = vadd.f32 %v2984, %v3072
      %3074 = vmatmul.bf16.gmra.mxu0 %v1326
      %v3075 = vpop.f32.mrf.mxu0
      %v3076 = vadd.f32 %v2987, %v3075
      %v3077 = vpop.f32.mrf.mxu0
      %v3078 = vadd.f32 %v2989, %v3077
      %3079 = vmatmul.bf16.gmra.mxu0 %v1333
      %v3080 = vpop.f32.mrf.mxu0
      %v3081 = vadd.f32 %v2992, %v3080
      %v3082 = vpop.f32.mrf.mxu0
      %v3083 = vadd.f32 %v2994, %v3082
      %3084 = vmatmul.bf16.gmra.mxu0 %v1340
      %v3085 = vpop.f32.mrf.mxu0
      %v3086 = vadd.f32 %v2997, %v3085
      %v3087 = vpop.f32.mrf.mxu0
      %v3088 = vadd.f32 %v2999, %v3087
      %3089 = vmatmul.bf16.gmra.mxu0 %v1347
      %v3090 = vpop.f32.mrf.mxu0
      %v3091 = vadd.f32 %v3002, %v3090
      %v3092 = vpop.f32.mrf.mxu0
      %v3093 = vadd.f32 %v3004, %v3092
      %3094 = vmatmul.bf16.gmra.mxu0 %v1354
      %v3095 = vpop.f32.mrf.mxu0
      %v3096 = vadd.f32 %v3007, %v3095
      %v3097 = vpop.f32.mrf.mxu0
      %v3098 = vadd.f32 %v3009, %v3097
      %3099 = vmatmul.bf16.gmra.mxu0 %v1361
      %v3100 = vpop.f32.mrf.mxu0
      %v3101 = vadd.f32 %v3012, %v3100
      %v3102 = vpop.f32.mrf.mxu0
      %v3103 = vadd.f32 %v3014, %v3102
      %3104 = vmatmul.bf16.gmra.mxu0 %v1368
      %v3105 = vpop.f32.mrf.mxu0
      %v3106 = vadd.f32 %v3017, %v3105
      %v3107 = vpop.f32.mrf.mxu0
      %v3108 = vadd.f32 %v3019, %v3107
      %3109 = vmatmul.bf16.gmra.mxu0 %v1375
      %v3110 = vpop.f32.mrf.mxu0
      %v3111 = vadd.f32 %v3022, %v3110
      %v3112 = vpop.f32.mrf.mxu0
      %v3113 = vadd.f32 %v3024, %v3112
      %3114 = vmatmul.bf16.gmra.mxu0 %v1382
      %v3115 = vpop.f32.mrf.mxu0
      %v3116 = vadd.f32 %v3027, %v3115
      %v3117 = vpop.f32.mrf.mxu0
      %v3118 = vadd.f32 %v3029, %v3117
      %3119 = vmatmul.bf16.gmra.mxu0 %v1389
      %v3120 = vpop.f32.mrf.mxu0
      %v3121 = vadd.f32 %v3032, %v3120
      %v3122 = vpop.f32.mrf.mxu0
      %v3123 = vadd.f32 %v3034, %v3122
      %3124 = vdwg.mxu0
      %3125 = vmatpush.bf16.msra.mxu0 %v2051
      %3126 = vmatpush.bf16.msra.mxu0 %v2048
      %3127 = vmatpush.bf16.msra.mxu0 %v2045
      %3128 = vmatpush.bf16.msra.mxu0 %v2042
      %3129 = vmatpush.bf16.msra.mxu0 %v2039
      %3130 = vmatpush.bf16.msra.mxu0 %v2036
      %3131 = vmatpush.bf16.msra.mxu0 %v2033
      %3132 = vmatpush.bf16.msra.mxu0 %v2030
      %3133 = vmatmul.bf16.gmra.mxu0 %v1285
      %v3134 = vpop.f32.mrf.mxu0
      %v3135 = vadd.f32 %v3046, %v3134
      %v3136 = vpop.f32.mrf.mxu0
      %v3137 = vadd.f32 %v3048, %v3136
      %3138 = vmatmul.bf16.gmra.mxu0 %v1292
      %v3139 = vpop.f32.mrf.mxu0
      %v3140 = vadd.f32 %v3051, %v3139
      %v3141 = vpop.f32.mrf.mxu0
      %v3142 = vadd.f32 %v3053, %v3141
      %3143 = vmatmul.bf16.gmra.mxu0 %v1299
      %v3144 = vpop.f32.mrf.mxu0
      %v3145 = vadd.f32 %v3056, %v3144
      %v3146 = vpop.f32.mrf.mxu0
      %v3147 = vadd.f32 %v3058, %v3146
      %3148 = vmatmul.bf16.gmra.mxu0 %v1306
      %v3149 = vpop.f32.mrf.mxu0
      %v3150 = vadd.f32 %v3061, %v3149
      %v3151 = vpop.f32.mrf.mxu0
      %v3152 = vadd.f32 %v3063, %v3151
      %3153 = vmatmul.bf16.gmra.mxu0 %v1313
      %v3154 = vpop.f32.mrf.mxu0
      %v3155 = vadd.f32 %v3066, %v3154
      %v3156 = vpop.f32.mrf.mxu0
      %v3157 = vadd.f32 %v3068, %v3156
      %3158 = vmatmul.bf16.gmra.mxu0 %v1320
      %v3159 = vpop.f32.mrf.mxu0
      %v3160 = vadd.f32 %v3071, %v3159
      %v3161 = vpop.f32.mrf.mxu0
      %v3162 = vadd.f32 %v3073, %v3161
      %3163 = vmatmul.bf16.gmra.mxu0 %v1327
      %v3164 = vpop.f32.mrf.mxu0
      %v3165 = vadd.f32 %v3076, %v3164
      %v3166 = vpop.f32.mrf.mxu0
      %v3167 = vadd.f32 %v3078, %v3166
      %3168 = vmatmul.bf16.gmra.mxu0 %v1334
      %v3169 = vpop.f32.mrf.mxu0
      %v3170 = vadd.f32 %v3081, %v3169
      %v3171 = vpop.f32.mrf.mxu0
      %v3172 = vadd.f32 %v3083, %v3171
      %3173 = vmatmul.bf16.gmra.mxu0 %v1341
      %v3174 = vpop.f32.mrf.mxu0
      %v3175 = vadd.f32 %v3086, %v3174
      %v3176 = vpop.f32.mrf.mxu0
      %v3177 = vadd.f32 %v3088, %v3176
      %3178 = vmatmul.bf16.gmra.mxu0 %v1348
      %v3179 = vpop.f32.mrf.mxu0
      %v3180 = vadd.f32 %v3091, %v3179
      %v3181 = vpop.f32.mrf.mxu0
      %v3182 = vadd.f32 %v3093, %v3181
      %3183 = vmatmul.bf16.gmra.mxu0 %v1355
      %v3184 = vpop.f32.mrf.mxu0
      %v3185 = vadd.f32 %v3096, %v3184
      %v3186 = vpop.f32.mrf.mxu0
      %v3187 = vadd.f32 %v3098, %v3186
      %3188 = vmatmul.bf16.gmra.mxu0 %v1362
      %v3189 = vpop.f32.mrf.mxu0
      %v3190 = vadd.f32 %v3101, %v3189
      %v3191 = vpop.f32.mrf.mxu0
      %v3192 = vadd.f32 %v3103, %v3191
      %3193 = vmatmul.bf16.gmra.mxu0 %v1369
      %v3194 = vpop.f32.mrf.mxu0
      %v3195 = vadd.f32 %v3106, %v3194
      %v3196 = vpop.f32.mrf.mxu0
      %v3197 = vadd.f32 %v3108, %v3196
      %3198 = vmatmul.bf16.gmra.mxu0 %v1376
      %v3199 = vpop.f32.mrf.mxu0
      %v3200 = vadd.f32 %v3111, %v3199
      %v3201 = vpop.f32.mrf.mxu0
      %v3202 = vadd.f32 %v3113, %v3201
      %3203 = vmatmul.bf16.gmra.mxu0 %v1383
      %v3204 = vpop.f32.mrf.mxu0
      %v3205 = vadd.f32 %v3116, %v3204
      %v3206 = vpop.f32.mrf.mxu0
      %v3207 = vadd.f32 %v3118, %v3206
      %3208 = vmatmul.bf16.gmra.mxu0 %v1390
      %v3209 = vpop.f32.mrf.mxu0
      %v3210 = vadd.f32 %v3121, %v3209
      %v3211 = vpop.f32.mrf.mxu0
      %v3212 = vadd.f32 %v3123, %v3211
      %3213 = vdwg.mxu0
      %3214 = vmatpush.bf16.msra.mxu0 %v2075
      %3215 = vmatpush.bf16.msra.mxu0 %v2072
      %3216 = vmatpush.bf16.msra.mxu0 %v2069
      %3217 = vmatpush.bf16.msra.mxu0 %v2066
      %3218 = vmatpush.bf16.msra.mxu0 %v2063
      %3219 = vmatpush.bf16.msra.mxu0 %v2060
      %3220 = vmatpush.bf16.msra.mxu0 %v2057
      %3221 = vmatpush.bf16.msra.mxu0 %v2054
      %3222 = vmatmul.bf16.gmra.mxu0 %v1286
      %v3223 = vpop.f32.mrf.mxu0
      %v3224 = vadd.f32 %v3135, %v3223
      %v3225 = vpop.f32.mrf.mxu0
      %v3226 = vadd.f32 %v3137, %v3225
      %3227 = vmatmul.bf16.gmra.mxu0 %v1293
      %v3228 = vpop.f32.mrf.mxu0
      %v3229 = vadd.f32 %v3140, %v3228
      %v3230 = vpop.f32.mrf.mxu0
      %v3231 = vadd.f32 %v3142, %v3230
      %3232 = vmatmul.bf16.gmra.mxu0 %v1300
      %v3233 = vpop.f32.mrf.mxu0
      %v3234 = vadd.f32 %v3145, %v3233
      %v3235 = vpop.f32.mrf.mxu0
      %v3236 = vadd.f32 %v3147, %v3235
      %3237 = vmatmul.bf16.gmra.mxu0 %v1307
      %v3238 = vpop.f32.mrf.mxu0
      %v3239 = vadd.f32 %v3150, %v3238
      %v3240 = vpop.f32.mrf.mxu0
      %v3241 = vadd.f32 %v3152, %v3240
      %3242 = vmatmul.bf16.gmra.mxu0 %v1314
      %v3243 = vpop.f32.mrf.mxu0
      %v3244 = vadd.f32 %v3155, %v3243
      %v3245 = vpop.f32.mrf.mxu0
      %v3246 = vadd.f32 %v3157, %v3245
      %3247 = vmatmul.bf16.gmra.mxu0 %v1321
      %v3248 = vpop.f32.mrf.mxu0
      %v3249 = vadd.f32 %v3160, %v3248
      %v3250 = vpop.f32.mrf.mxu0
      %v3251 = vadd.f32 %v3162, %v3250
      %3252 = vmatmul.bf16.gmra.mxu0 %v1328
      %v3253 = vpop.f32.mrf.mxu0
      %v3254 = vadd.f32 %v3165, %v3253
      %v3255 = vpop.f32.mrf.mxu0
      %v3256 = vadd.f32 %v3167, %v3255
      %3257 = vmatmul.bf16.gmra.mxu0 %v1335
      %v3258 = vpop.f32.mrf.mxu0
      %v3259 = vadd.f32 %v3170, %v3258
      %v3260 = vpop.f32.mrf.mxu0
      %v3261 = vadd.f32 %v3172, %v3260
      %3262 = vmatmul.bf16.gmra.mxu0 %v1342
      %v3263 = vpop.f32.mrf.mxu0
      %v3264 = vadd.f32 %v3175, %v3263
      %v3265 = vpop.f32.mrf.mxu0
      %v3266 = vadd.f32 %v3177, %v3265
      %3267 = vmatmul.bf16.gmra.mxu0 %v1349
      %v3268 = vpop.f32.mrf.mxu0
      %v3269 = vadd.f32 %v3180, %v3268
      %v3270 = vpop.f32.mrf.mxu0
      %v3271 = vadd.f32 %v3182, %v3270
      %3272 = vmatmul.bf16.gmra.mxu0 %v1356
      %v3273 = vpop.f32.mrf.mxu0
      %v3274 = vadd.f32 %v3185, %v3273
      %v3275 = vpop.f32.mrf.mxu0
      %v3276 = vadd.f32 %v3187, %v3275
      %3277 = vmatmul.bf16.gmra.mxu0 %v1363
      %v3278 = vpop.f32.mrf.mxu0
      %v3279 = vadd.f32 %v3190, %v3278
      %v3280 = vpop.f32.mrf.mxu0
      %v3281 = vadd.f32 %v3192, %v3280
      %3282 = vmatmul.bf16.gmra.mxu0 %v1370
      %v3283 = vpop.f32.mrf.mxu0
      %v3284 = vadd.f32 %v3195, %v3283
      %v3285 = vpop.f32.mrf.mxu0
      %v3286 = vadd.f32 %v3197, %v3285
      %3287 = vmatmul.bf16.gmra.mxu0 %v1377
      %v3288 = vpop.f32.mrf.mxu0
      %v3289 = vadd.f32 %v3200, %v3288
      %v3290 = vpop.f32.mrf.mxu0
      %v3291 = vadd.f32 %v3202, %v3290
      %3292 = vmatmul.bf16.gmra.mxu0 %v1384
      %v3293 = vpop.f32.mrf.mxu0
      %v3294 = vadd.f32 %v3205, %v3293
      %v3295 = vpop.f32.mrf.mxu0
      %v3296 = vadd.f32 %v3207, %v3295
      %3297 = vmatmul.bf16.gmra.mxu0 %v1391
      %v3298 = vpop.f32.mrf.mxu0
      %v3299 = vadd.f32 %v3210, %v3298
      %v3300 = vpop.f32.mrf.mxu0
      %v3301 = vadd.f32 %v3212, %v3300
      %3302 = vdwg.mxu0
      %3303 = vmatpush.bf16.msra.mxu0 %v2099
      %3304 = vmatpush.bf16.msra.mxu0 %v2096
      %3305 = vmatpush.bf16.msra.mxu0 %v2093
      %3306 = vmatpush.bf16.msra.mxu0 %v2090
      %3307 = vmatpush.bf16.msra.mxu0 %v2087
      %3308 = vmatpush.bf16.msra.mxu0 %v2084
      %3309 = vmatpush.bf16.msra.mxu0 %v2081
      %3310 = vmatpush.bf16.msra.mxu0 %v2078
      %3311 = vmatmul.bf16.gmra.mxu0 %v1287
      %v3312 = vpop.f32.mrf.mxu0
      %v3313 = vadd.f32 %v3224, %v3312
      %v3314 = vpop.f32.mrf.mxu0
      %v3315 = vadd.f32 %v3226, %v3314
      %3316 = vmatmul.bf16.gmra.mxu0 %v1294
      %v3317 = vpop.f32.mrf.mxu0
      %v3318 = vadd.f32 %v3229, %v3317
      %v3319 = vpop.f32.mrf.mxu0
      %v3320 = vadd.f32 %v3231, %v3319
      %3321 = vmatmul.bf16.gmra.mxu0 %v1301
      %v3322 = vpop.f32.mrf.mxu0
      %v3323 = vadd.f32 %v3234, %v3322
      %v3324 = vpop.f32.mrf.mxu0
      %v3325 = vadd.f32 %v3236, %v3324
      %3326 = vmatmul.bf16.gmra.mxu0 %v1308
      %v3327 = vpop.f32.mrf.mxu0
      %v3328 = vadd.f32 %v3239, %v3327
      %v3329 = vpop.f32.mrf.mxu0
      %v3330 = vadd.f32 %v3241, %v3329
      %3331 = vmatmul.bf16.gmra.mxu0 %v1315
      %v3332 = vpop.f32.mrf.mxu0
      %v3333 = vadd.f32 %v3244, %v3332
      %v3334 = vpop.f32.mrf.mxu0
      %v3335 = vadd.f32 %v3246, %v3334
      %3336 = vmatmul.bf16.gmra.mxu0 %v1322
      %v3337 = vpop.f32.mrf.mxu0
      %v3338 = vadd.f32 %v3249, %v3337
      %v3339 = vpop.f32.mrf.mxu0
      %v3340 = vadd.f32 %v3251, %v3339
      %3341 = vmatmul.bf16.gmra.mxu0 %v1329
      %v3342 = vpop.f32.mrf.mxu0
      %v3343 = vadd.f32 %v3254, %v3342
      %v3344 = vpop.f32.mrf.mxu0
      %v3345 = vadd.f32 %v3256, %v3344
      %3346 = vmatmul.bf16.gmra.mxu0 %v1336
      %v3347 = vpop.f32.mrf.mxu0
      %v3348 = vadd.f32 %v3259, %v3347
      %v3349 = vpop.f32.mrf.mxu0
      %v3350 = vadd.f32 %v3261, %v3349
      %3351 = vmatmul.bf16.gmra.mxu0 %v1343
      %v3352 = vpop.f32.mrf.mxu0
      %v3353 = vadd.f32 %v3264, %v3352
      %v3354 = vpop.f32.mrf.mxu0
      %v3355 = vadd.f32 %v3266, %v3354
      %3356 = vmatmul.bf16.gmra.mxu0 %v1350
      %v3357 = vpop.f32.mrf.mxu0
      %v3358 = vadd.f32 %v3269, %v3357
      %v3359 = vpop.f32.mrf.mxu0
      %v3360 = vadd.f32 %v3271, %v3359
      %3361 = vmatmul.bf16.gmra.mxu0 %v1357
      %v3362 = vpop.f32.mrf.mxu0
      %v3363 = vadd.f32 %v3274, %v3362
      %v3364 = vpop.f32.mrf.mxu0
      %v3365 = vadd.f32 %v3276, %v3364
      %3366 = vmatmul.bf16.gmra.mxu0 %v1364
      %v3367 = vpop.f32.mrf.mxu0
      %v3368 = vadd.f32 %v3279, %v3367
      %v3369 = vpop.f32.mrf.mxu0
      %v3370 = vadd.f32 %v3281, %v3369
      %3371 = vmatmul.bf16.gmra.mxu0 %v1371
      %v3372 = vpop.f32.mrf.mxu0
      %v3373 = vadd.f32 %v3284, %v3372
      %v3374 = vpop.f32.mrf.mxu0
      %v3375 = vadd.f32 %v3286, %v3374
      %3376 = vmatmul.bf16.gmra.mxu0 %v1378
      %v3377 = vpop.f32.mrf.mxu0
      %v3378 = vadd.f32 %v3289, %v3377
      %v3379 = vpop.f32.mrf.mxu0
      %v3380 = vadd.f32 %v3291, %v3379
      %3381 = vmatmul.bf16.gmra.mxu0 %v1385
      %v3382 = vpop.f32.mrf.mxu0
      %v3383 = vadd.f32 %v3294, %v3382
      %v3384 = vpop.f32.mrf.mxu0
      %v3385 = vadd.f32 %v3296, %v3384
      %3386 = vmatmul.bf16.gmra.mxu0 %v1392
      %v3387 = vpop.f32.mrf.mxu0
      %v3388 = vadd.f32 %v3299, %v3387
      %v3389 = vpop.f32.mrf.mxu0
      %v3390 = vadd.f32 %v3301, %v3389
      %3391 = vdwg.mxu0
      %3392 = vmatpush.bf16.msra.mxu0 %v2123
      %3393 = vmatpush.bf16.msra.mxu0 %v2120
      %3394 = vmatpush.bf16.msra.mxu0 %v2117
      %3395 = vmatpush.bf16.msra.mxu0 %v2114
      %3396 = vmatpush.bf16.msra.mxu0 %v2111
      %3397 = vmatpush.bf16.msra.mxu0 %v2108
      %3398 = vmatpush.bf16.msra.mxu0 %v2105
      %3399 = vmatpush.bf16.msra.mxu0 %v2102
      %3400 = vmatmul.bf16.gmra.mxu0 %v1288
      %v3401 = vpop.f32.mrf.mxu0
      %v3402 = vadd.f32 %v3313, %v3401
      %v3403 = vpop.f32.mrf.mxu0
      %v3404 = vadd.f32 %v3315, %v3403
      %3405 = vmatmul.bf16.gmra.mxu0 %v1295
      %v3406 = vpop.f32.mrf.mxu0
      %v3407 = vadd.f32 %v3318, %v3406
      %v3408 = vpop.f32.mrf.mxu0
      %v3409 = vadd.f32 %v3320, %v3408
      %3410 = vmatmul.bf16.gmra.mxu0 %v1302
      %v3411 = vpop.f32.mrf.mxu0
      %v3412 = vadd.f32 %v3323, %v3411
      %v3413 = vpop.f32.mrf.mxu0
      %v3414 = vadd.f32 %v3325, %v3413
      %3415 = vmatmul.bf16.gmra.mxu0 %v1309
      %v3416 = vpop.f32.mrf.mxu0
      %v3417 = vadd.f32 %v3328, %v3416
      %v3418 = vpop.f32.mrf.mxu0
      %v3419 = vadd.f32 %v3330, %v3418
      %3420 = vmatmul.bf16.gmra.mxu0 %v1316
      %v3421 = vpop.f32.mrf.mxu0
      %v3422 = vadd.f32 %v3333, %v3421
      %v3423 = vpop.f32.mrf.mxu0
      %v3424 = vadd.f32 %v3335, %v3423
      %3425 = vmatmul.bf16.gmra.mxu0 %v1323
      %v3426 = vpop.f32.mrf.mxu0
      %v3427 = vadd.f32 %v3338, %v3426
      %v3428 = vpop.f32.mrf.mxu0
      %v3429 = vadd.f32 %v3340, %v3428
      %3430 = vmatmul.bf16.gmra.mxu0 %v1330
      %v3431 = vpop.f32.mrf.mxu0
      %v3432 = vadd.f32 %v3343, %v3431
      %v3433 = vpop.f32.mrf.mxu0
      %v3434 = vadd.f32 %v3345, %v3433
      %3435 = vmatmul.bf16.gmra.mxu0 %v1337
      %v3436 = vpop.f32.mrf.mxu0
      %v3437 = vadd.f32 %v3348, %v3436
      %v3438 = vpop.f32.mrf.mxu0
      %v3439 = vadd.f32 %v3350, %v3438
      %3440 = vmatmul.bf16.gmra.mxu0 %v1344
      %v3441 = vpop.f32.mrf.mxu0
      %v3442 = vadd.f32 %v3353, %v3441
      %v3443 = vpop.f32.mrf.mxu0
      %v3444 = vadd.f32 %v3355, %v3443
      %3445 = vmatmul.bf16.gmra.mxu0 %v1351
      %v3446 = vpop.f32.mrf.mxu0
      %v3447 = vadd.f32 %v3358, %v3446
      %v3448 = vpop.f32.mrf.mxu0
      %v3449 = vadd.f32 %v3360, %v3448
      %3450 = vmatmul.bf16.gmra.mxu0 %v1358
      %v3451 = vpop.f32.mrf.mxu0
      %v3452 = vadd.f32 %v3363, %v3451
      %v3453 = vpop.f32.mrf.mxu0
      %v3454 = vadd.f32 %v3365, %v3453
      %3455 = vmatmul.bf16.gmra.mxu0 %v1365
      %v3456 = vpop.f32.mrf.mxu0
      %v3457 = vadd.f32 %v3368, %v3456
      %v3458 = vpop.f32.mrf.mxu0
      %v3459 = vadd.f32 %v3370, %v3458
      %3460 = vmatmul.bf16.gmra.mxu0 %v1372
      %v3461 = vpop.f32.mrf.mxu0
      %v3462 = vadd.f32 %v3373, %v3461
      %v3463 = vpop.f32.mrf.mxu0
      %v3464 = vadd.f32 %v3375, %v3463
      %3465 = vmatmul.bf16.gmra.mxu0 %v1379
      %v3466 = vpop.f32.mrf.mxu0
      %v3467 = vadd.f32 %v3378, %v3466
      %v3468 = vpop.f32.mrf.mxu0
      %v3469 = vadd.f32 %v3380, %v3468
      %3470 = vmatmul.bf16.gmra.mxu0 %v1386
      %v3471 = vpop.f32.mrf.mxu0
      %v3472 = vadd.f32 %v3383, %v3471
      %v3473 = vpop.f32.mrf.mxu0
      %v3474 = vadd.f32 %v3385, %v3473
      %3475 = vmatmul.bf16.gmra.mxu0 %v1393
      %v3476 = vpop.f32.mrf.mxu0
      %v3477 = vadd.f32 %v3388, %v3476
      %v3478 = vpop.f32.mrf.mxu0
      %v3479 = vadd.f32 %v3390, %v3478
      %3480 = vdwg.mxu0
      %3481 = vmatpush.bf16.msra.mxu0 0
      %3482 = vmatpush.bf16.msra.mxu0 0
      %3483 = vmatpush.bf16.msra.mxu0 0
      %3484 = vmatpush.bf16.msra.mxu0 0
      %3485 = vmatpush.bf16.msra.mxu0 0
      %3486 = vmatpush.bf16.msra.mxu0 0
      %3487 = vmatpush.bf16.msra.mxu0 0
      %3488 = vmatpush.bf16.msra.mxu0 %v2126
      %3489 = vmatmul.bf16.gmra.mxu0 %v2277
      %v3490 = vpop.f32.mrf.mxu0
      %v3491 = vadd.f32 %v3402, %v3490
      %v3492 = vpop.f32.mrf.mxu0
      %v3493 = vadd.f32 %v3404, %v3492
      %3494 = vmatmul.bf16.gmra.mxu0 %v2280
      %v3495 = vpop.f32.mrf.mxu0
      %v3496 = vadd.f32 %v3407, %v3495
      %v3497 = vpop.f32.mrf.mxu0
      %v3498 = vadd.f32 %v3409, %v3497
      %3499 = vmatmul.bf16.gmra.mxu0 %v2283
      %v3500 = vpop.f32.mrf.mxu0
      %v3501 = vadd.f32 %v3412, %v3500
      %v3502 = vpop.f32.mrf.mxu0
      %v3503 = vadd.f32 %v3414, %v3502
      %3504 = vmatmul.bf16.gmra.mxu0 %v2286
      %v3505 = vpop.f32.mrf.mxu0
      %v3506 = vadd.f32 %v3417, %v3505
      %v3507 = vpop.f32.mrf.mxu0
      %v3508 = vadd.f32 %v3419, %v3507
      %3509 = vmatmul.bf16.gmra.mxu0 %v2289
      %v3510 = vpop.f32.mrf.mxu0
      %v3511 = vadd.f32 %v3422, %v3510
      %v3512 = vpop.f32.mrf.mxu0
      %v3513 = vadd.f32 %v3424, %v3512
      %3514 = vmatmul.bf16.gmra.mxu0 %v2292
      %v3515 = vpop.f32.mrf.mxu0
      %v3516 = vadd.f32 %v3427, %v3515
      %v3517 = vpop.f32.mrf.mxu0
      %v3518 = vadd.f32 %v3429, %v3517
      %3519 = vmatmul.bf16.gmra.mxu0 %v2295
      %v3520 = vpop.f32.mrf.mxu0
      %v3521 = vadd.f32 %v3432, %v3520
      %v3522 = vpop.f32.mrf.mxu0
      %v3523 = vadd.f32 %v3434, %v3522
      %3524 = vmatmul.bf16.gmra.mxu0 %v2298
      %v3525 = vpop.f32.mrf.mxu0
      %v3526 = vadd.f32 %v3437, %v3525
      %v3527 = vpop.f32.mrf.mxu0
      %v3528 = vadd.f32 %v3439, %v3527
      %3529 = vmatmul.bf16.gmra.mxu0 %v2301
      %v3530 = vpop.f32.mrf.mxu0
      %v3531 = vadd.f32 %v3442, %v3530
      %v3532 = vpop.f32.mrf.mxu0
      %v3533 = vadd.f32 %v3444, %v3532
      %3534 = vmatmul.bf16.gmra.mxu0 %v2304
      %v3535 = vpop.f32.mrf.mxu0
      %v3536 = vadd.f32 %v3447, %v3535
      %v3537 = vpop.f32.mrf.mxu0
      %v3538 = vadd.f32 %v3449, %v3537
      %3539 = vmatmul.bf16.gmra.mxu0 %v2307
      %v3540 = vpop.f32.mrf.mxu0
      %v3541 = vadd.f32 %v3452, %v3540
      %v3542 = vpop.f32.mrf.mxu0
      %v3543 = vadd.f32 %v3454, %v3542
      %3544 = vmatmul.bf16.gmra.mxu0 %v2310
      %v3545 = vpop.f32.mrf.mxu0
      %v3546 = vadd.f32 %v3457, %v3545
      %v3547 = vpop.f32.mrf.mxu0
      %v3548 = vadd.f32 %v3459, %v3547
      %3549 = vmatmul.bf16.gmra.mxu0 %v2313
      %v3550 = vpop.f32.mrf.mxu0
      %v3551 = vadd.f32 %v3462, %v3550
      %v3552 = vpop.f32.mrf.mxu0
      %v3553 = vadd.f32 %v3464, %v3552
      %3554 = vmatmul.bf16.gmra.mxu0 %v2316
      %v3555 = vpop.f32.mrf.mxu0
      %v3556 = vadd.f32 %v3467, %v3555
      %v3557 = vpop.f32.mrf.mxu0
      %v3558 = vadd.f32 %v3469, %v3557
      %3559 = vmatmul.bf16.gmra.mxu0 %v2319
      %v3560 = vpop.f32.mrf.mxu0
      %v3561 = vadd.f32 %v3472, %v3560
      %v3562 = vpop.f32.mrf.mxu0
      %v3563 = vadd.f32 %v3474, %v3562
      %3564 = vmatmul.bf16.gmra.mxu0 %v2322
      %v3565 = vpop.f32.mrf.mxu0
      %v3566 = vadd.f32 %v3477, %v3565
      %v3567 = vpop.f32.mrf.mxu0
      %v3568 = vadd.f32 %v3479, %v3567
      %3569 = vdwg.mxu0
      %3570 = vmatpush.bf16.msra.mxu0 %v2004
      %3571 = vmatpush.bf16.msra.mxu0 %v2001
      %3572 = vmatpush.bf16.msra.mxu0 %v1998
      %3573 = vmatpush.bf16.msra.mxu0 %v1995
      %3574 = vmatpush.bf16.msra.mxu0 %v1992
      %3575 = vmatpush.bf16.msra.mxu0 %v1989
      %3576 = vmatpush.bf16.msra.mxu0 %v1986
      %3577 = vmatpush.bf16.msra.mxu0 %v1983
      %3578 = vmatmul.bf16.gmra.mxu0 %v1283
      %v3579 = vpop.f32.mrf.mxu0
      %v3580 = vadd.f32 %v927, %v3579
      %v3581 = vpop.f32.mrf.mxu0
      %v3582 = vadd.f32 %v927, %v3581
      %3583 = vmatmul.bf16.gmra.mxu0 %v1290
      %v3584 = vpop.f32.mrf.mxu0
      %v3585 = vadd.f32 %v927, %v3584
      %v3586 = vpop.f32.mrf.mxu0
      %v3587 = vadd.f32 %v927, %v3586
      %3588 = vmatmul.bf16.gmra.mxu0 %v1297
      %v3589 = vpop.f32.mrf.mxu0
      %v3590 = vadd.f32 %v927, %v3589
      %v3591 = vpop.f32.mrf.mxu0
      %v3592 = vadd.f32 %v927, %v3591
      %3593 = vmatmul.bf16.gmra.mxu0 %v1304
      %v3594 = vpop.f32.mrf.mxu0
      %v3595 = vadd.f32 %v927, %v3594
      %v3596 = vpop.f32.mrf.mxu0
      %v3597 = vadd.f32 %v927, %v3596
      %3598 = vmatmul.bf16.gmra.mxu0 %v1311
      %v3599 = vpop.f32.mrf.mxu0
      %v3600 = vadd.f32 %v927, %v3599
      %v3601 = vpop.f32.mrf.mxu0
      %v3602 = vadd.f32 %v927, %v3601
      %3603 = vmatmul.bf16.gmra.mxu0 %v1318
      %v3604 = vpop.f32.mrf.mxu0
      %v3605 = vadd.f32 %v927, %v3604
      %v3606 = vpop.f32.mrf.mxu0
      %v3607 = vadd.f32 %v927, %v3606
      %3608 = vmatmul.bf16.gmra.mxu0 %v1325
      %v3609 = vpop.f32.mrf.mxu0
      %v3610 = vadd.f32 %v927, %v3609
      %v3611 = vpop.f32.mrf.mxu0
      %v3612 = vadd.f32 %v927, %v3611
      %3613 = vmatmul.bf16.gmra.mxu0 %v1332
      %v3614 = vpop.f32.mrf.mxu0
      %v3615 = vadd.f32 %v927, %v3614
      %v3616 = vpop.f32.mrf.mxu0
      %v3617 = vadd.f32 %v927, %v3616
      %3618 = vmatmul.bf16.gmra.mxu0 %v1339
      %v3619 = vpop.f32.mrf.mxu0
      %v3620 = vadd.f32 %v927, %v3619
      %v3621 = vpop.f32.mrf.mxu0
      %v3622 = vadd.f32 %v927, %v3621
      %3623 = vmatmul.bf16.gmra.mxu0 %v1346
      %v3624 = vpop.f32.mrf.mxu0
      %v3625 = vadd.f32 %v927, %v3624
      %v3626 = vpop.f32.mrf.mxu0
      %v3627 = vadd.f32 %v927, %v3626
      %3628 = vmatmul.bf16.gmra.mxu0 %v1353
      %v3629 = vpop.f32.mrf.mxu0
      %v3630 = vadd.f32 %v927, %v3629
      %v3631 = vpop.f32.mrf.mxu0
      %v3632 = vadd.f32 %v927, %v3631
      %3633 = vmatmul.bf16.gmra.mxu0 %v1360
      %v3634 = vpop.f32.mrf.mxu0
      %v3635 = vadd.f32 %v927, %v3634
      %v3636 = vpop.f32.mrf.mxu0
      %v3637 = vadd.f32 %v927, %v3636
      %3638 = vmatmul.bf16.gmra.mxu0 %v1367
      %v3639 = vpop.f32.mrf.mxu0
      %v3640 = vadd.f32 %v927, %v3639
      %v3641 = vpop.f32.mrf.mxu0
      %v3642 = vadd.f32 %v927, %v3641
      %3643 = vmatmul.bf16.gmra.mxu0 %v1374
      %v3644 = vpop.f32.mrf.mxu0
      %v3645 = vadd.f32 %v927, %v3644
      %v3646 = vpop.f32.mrf.mxu0
      %v3647 = vadd.f32 %v927, %v3646
      %3648 = vmatmul.bf16.gmra.mxu0 %v1381
      %v3649 = vpop.f32.mrf.mxu0
      %v3650 = vadd.f32 %v927, %v3649
      %v3651 = vpop.f32.mrf.mxu0
      %v3652 = vadd.f32 %v927, %v3651
      %3653 = vmatmul.bf16.gmra.mxu0 %v1388
      %v3654 = vpop.f32.mrf.mxu0
      %v3655 = vadd.f32 %v927, %v3654
      %v3656 = vpop.f32.mrf.mxu0
      %v3657 = vadd.f32 %v927, %v3656
      %3658 = vdwg.mxu0
      %3659 = vmatpush.bf16.msra.mxu0 %v2028
      %3660 = vmatpush.bf16.msra.mxu0 %v2025
      %3661 = vmatpush.bf16.msra.mxu0 %v2022
      %3662 = vmatpush.bf16.msra.mxu0 %v2019
      %3663 = vmatpush.bf16.msra.mxu0 %v2016
      %3664 = vmatpush.bf16.msra.mxu0 %v2013
      %3665 = vmatpush.bf16.msra.mxu0 %v2010
      %3666 = vmatpush.bf16.msra.mxu0 %v2007
      %3667 = vmatmul.bf16.gmra.mxu0 %v1284
      %v3668 = vpop.f32.mrf.mxu0
      %v3669 = vadd.f32 %v3580, %v3668
      %v3670 = vpop.f32.mrf.mxu0
      %v3671 = vadd.f32 %v3582, %v3670
      %3672 = vmatmul.bf16.gmra.mxu0 %v1291
      %v3673 = vpop.f32.mrf.mxu0
      %v3674 = vadd.f32 %v3585, %v3673
      %v3675 = vpop.f32.mrf.mxu0
      %v3676 = vadd.f32 %v3587, %v3675
      %3677 = vmatmul.bf16.gmra.mxu0 %v1298
      %v3678 = vpop.f32.mrf.mxu0
      %v3679 = vadd.f32 %v3590, %v3678
      %v3680 = vpop.f32.mrf.mxu0
      %v3681 = vadd.f32 %v3592, %v3680
      %3682 = vmatmul.bf16.gmra.mxu0 %v1305
      %v3683 = vpop.f32.mrf.mxu0
      %v3684 = vadd.f32 %v3595, %v3683
      %v3685 = vpop.f32.mrf.mxu0
      %v3686 = vadd.f32 %v3597, %v3685
      %3687 = vmatmul.bf16.gmra.mxu0 %v1312
      %v3688 = vpop.f32.mrf.mxu0
      %v3689 = vadd.f32 %v3600, %v3688
      %v3690 = vpop.f32.mrf.mxu0
      %v3691 = vadd.f32 %v3602, %v3690
      %3692 = vmatmul.bf16.gmra.mxu0 %v1319
      %v3693 = vpop.f32.mrf.mxu0
      %v3694 = vadd.f32 %v3605, %v3693
      %v3695 = vpop.f32.mrf.mxu0
      %v3696 = vadd.f32 %v3607, %v3695
      %3697 = vmatmul.bf16.gmra.mxu0 %v1326
      %v3698 = vpop.f32.mrf.mxu0
      %v3699 = vadd.f32 %v3610, %v3698
      %v3700 = vpop.f32.mrf.mxu0
      %v3701 = vadd.f32 %v3612, %v3700
      %3702 = vmatmul.bf16.gmra.mxu0 %v1333
      %v3703 = vpop.f32.mrf.mxu0
      %v3704 = vadd.f32 %v3615, %v3703
      %v3705 = vpop.f32.mrf.mxu0
      %v3706 = vadd.f32 %v3617, %v3705
      %3707 = vmatmul.bf16.gmra.mxu0 %v1340
      %v3708 = vpop.f32.mrf.mxu0
      %v3709 = vadd.f32 %v3620, %v3708
      %v3710 = vpop.f32.mrf.mxu0
      %v3711 = vadd.f32 %v3622, %v3710
      %3712 = vmatmul.bf16.gmra.mxu0 %v1347
      %v3713 = vpop.f32.mrf.mxu0
      %v3714 = vadd.f32 %v3625, %v3713
      %v3715 = vpop.f32.mrf.mxu0
      %v3716 = vadd.f32 %v3627, %v3715
      %3717 = vmatmul.bf16.gmra.mxu0 %v1354
      %v3718 = vpop.f32.mrf.mxu0
      %v3719 = vadd.f32 %v3630, %v3718
      %v3720 = vpop.f32.mrf.mxu0
      %v3721 = vadd.f32 %v3632, %v3720
      %3722 = vmatmul.bf16.gmra.mxu0 %v1361
      %v3723 = vpop.f32.mrf.mxu0
      %v3724 = vadd.f32 %v3635, %v3723
      %v3725 = vpop.f32.mrf.mxu0
      %v3726 = vadd.f32 %v3637, %v3725
      %3727 = vmatmul.bf16.gmra.mxu0 %v1368
      %v3728 = vpop.f32.mrf.mxu0
      %v3729 = vadd.f32 %v3640, %v3728
      %v3730 = vpop.f32.mrf.mxu0
      %v3731 = vadd.f32 %v3642, %v3730
      %3732 = vmatmul.bf16.gmra.mxu0 %v1375
      %v3733 = vpop.f32.mrf.mxu0
      %v3734 = vadd.f32 %v3645, %v3733
      %v3735 = vpop.f32.mrf.mxu0
      %v3736 = vadd.f32 %v3647, %v3735
      %3737 = vmatmul.bf16.gmra.mxu0 %v1382
      %v3738 = vpop.f32.mrf.mxu0
      %v3739 = vadd.f32 %v3650, %v3738
      %v3740 = vpop.f32.mrf.mxu0
      %v3741 = vadd.f32 %v3652, %v3740
      %3742 = vmatmul.bf16.gmra.mxu0 %v1389
      %v3743 = vpop.f32.mrf.mxu0
      %v3744 = vadd.f32 %v3655, %v3743
      %v3745 = vpop.f32.mrf.mxu0
      %v3746 = vadd.f32 %v3657, %v3745
      %3747 = vdwg.mxu0
      %3748 = vmatpush.bf16.msra.mxu0 %v2052
      %3749 = vmatpush.bf16.msra.mxu0 %v2049
      %3750 = vmatpush.bf16.msra.mxu0 %v2046
      %3751 = vmatpush.bf16.msra.mxu0 %v2043
      %3752 = vmatpush.bf16.msra.mxu0 %v2040
      %3753 = vmatpush.bf16.msra.mxu0 %v2037
      %3754 = vmatpush.bf16.msra.mxu0 %v2034
      %3755 = vmatpush.bf16.msra.mxu0 %v2031
      %3756 = vmatmul.bf16.gmra.mxu0 %v1285
      %v3757 = vpop.f32.mrf.mxu0
      %v3758 = vadd.f32 %v3669, %v3757
      %v3759 = vpop.f32.mrf.mxu0
      %v3760 = vadd.f32 %v3671, %v3759
      %3761 = vmatmul.bf16.gmra.mxu0 %v1292
      %v3762 = vpop.f32.mrf.mxu0
      %v3763 = vadd.f32 %v3674, %v3762
      %v3764 = vpop.f32.mrf.mxu0
      %v3765 = vadd.f32 %v3676, %v3764
      %3766 = vmatmul.bf16.gmra.mxu0 %v1299
      %v3767 = vpop.f32.mrf.mxu0
      %v3768 = vadd.f32 %v3679, %v3767
      %v3769 = vpop.f32.mrf.mxu0
      %v3770 = vadd.f32 %v3681, %v3769
      %3771 = vmatmul.bf16.gmra.mxu0 %v1306
      %v3772 = vpop.f32.mrf.mxu0
      %v3773 = vadd.f32 %v3684, %v3772
      %v3774 = vpop.f32.mrf.mxu0
      %v3775 = vadd.f32 %v3686, %v3774
      %3776 = vmatmul.bf16.gmra.mxu0 %v1313
      %v3777 = vpop.f32.mrf.mxu0
      %v3778 = vadd.f32 %v3689, %v3777
      %v3779 = vpop.f32.mrf.mxu0
      %v3780 = vadd.f32 %v3691, %v3779
      %3781 = vmatmul.bf16.gmra.mxu0 %v1320
      %v3782 = vpop.f32.mrf.mxu0
      %v3783 = vadd.f32 %v3694, %v3782
      %v3784 = vpop.f32.mrf.mxu0
      %v3785 = vadd.f32 %v3696, %v3784
      %3786 = vmatmul.bf16.gmra.mxu0 %v1327
      %v3787 = vpop.f32.mrf.mxu0
      %v3788 = vadd.f32 %v3699, %v3787
      %v3789 = vpop.f32.mrf.mxu0
      %v3790 = vadd.f32 %v3701, %v3789
      %3791 = vmatmul.bf16.gmra.mxu0 %v1334
      %v3792 = vpop.f32.mrf.mxu0
      %v3793 = vadd.f32 %v3704, %v3792
      %v3794 = vpop.f32.mrf.mxu0
      %v3795 = vadd.f32 %v3706, %v3794
      %3796 = vmatmul.bf16.gmra.mxu0 %v1341
      %v3797 = vpop.f32.mrf.mxu0
      %v3798 = vadd.f32 %v3709, %v3797
      %v3799 = vpop.f32.mrf.mxu0
      %v3800 = vadd.f32 %v3711, %v3799
      %3801 = vmatmul.bf16.gmra.mxu0 %v1348
      %v3802 = vpop.f32.mrf.mxu0
      %v3803 = vadd.f32 %v3714, %v3802
      %v3804 = vpop.f32.mrf.mxu0
      %v3805 = vadd.f32 %v3716, %v3804
      %3806 = vmatmul.bf16.gmra.mxu0 %v1355
      %v3807 = vpop.f32.mrf.mxu0
      %v3808 = vadd.f32 %v3719, %v3807
      %v3809 = vpop.f32.mrf.mxu0
      %v3810 = vadd.f32 %v3721, %v3809
      %3811 = vmatmul.bf16.gmra.mxu0 %v1362
      %v3812 = vpop.f32.mrf.mxu0
      %v3813 = vadd.f32 %v3724, %v3812
      %v3814 = vpop.f32.mrf.mxu0
      %v3815 = vadd.f32 %v3726, %v3814
      %3816 = vmatmul.bf16.gmra.mxu0 %v1369
      %v3817 = vpop.f32.mrf.mxu0
      %v3818 = vadd.f32 %v3729, %v3817
      %v3819 = vpop.f32.mrf.mxu0
      %v3820 = vadd.f32 %v3731, %v3819
      %3821 = vmatmul.bf16.gmra.mxu0 %v1376
      %v3822 = vpop.f32.mrf.mxu0
      %v3823 = vadd.f32 %v3734, %v3822
      %v3824 = vpop.f32.mrf.mxu0
      %v3825 = vadd.f32 %v3736, %v3824
      %3826 = vmatmul.bf16.gmra.mxu0 %v1383
      %v3827 = vpop.f32.mrf.mxu0
      %v3828 = vadd.f32 %v3739, %v3827
      %v3829 = vpop.f32.mrf.mxu0
      %v3830 = vadd.f32 %v3741, %v3829
      %3831 = vmatmul.bf16.gmra.mxu0 %v1390
      %v3832 = vpop.f32.mrf.mxu0
      %v3833 = vadd.f32 %v3744, %v3832
      %v3834 = vpop.f32.mrf.mxu0
      %v3835 = vadd.f32 %v3746, %v3834
      %3836 = vdwg.mxu0
      %3837 = vmatpush.bf16.msra.mxu0 %v2076
      %3838 = vmatpush.bf16.msra.mxu0 %v2073
      %3839 = vmatpush.bf16.msra.mxu0 %v2070
      %3840 = vmatpush.bf16.msra.mxu0 %v2067
      %3841 = vmatpush.bf16.msra.mxu0 %v2064
      %3842 = vmatpush.bf16.msra.mxu0 %v2061
      %3843 = vmatpush.bf16.msra.mxu0 %v2058
      %3844 = vmatpush.bf16.msra.mxu0 %v2055
      %3845 = vmatmul.bf16.gmra.mxu0 %v1286
      %v3846 = vpop.f32.mrf.mxu0
      %v3847 = vadd.f32 %v3758, %v3846
      %v3848 = vpop.f32.mrf.mxu0
      %v3849 = vadd.f32 %v3760, %v3848
      %3850 = vmatmul.bf16.gmra.mxu0 %v1293
      %v3851 = vpop.f32.mrf.mxu0
      %v3852 = vadd.f32 %v3763, %v3851
      %v3853 = vpop.f32.mrf.mxu0
      %v3854 = vadd.f32 %v3765, %v3853
      %3855 = vmatmul.bf16.gmra.mxu0 %v1300
      %v3856 = vpop.f32.mrf.mxu0
      %v3857 = vadd.f32 %v3768, %v3856
      %v3858 = vpop.f32.mrf.mxu0
      %v3859 = vadd.f32 %v3770, %v3858
      %3860 = vmatmul.bf16.gmra.mxu0 %v1307
      %v3861 = vpop.f32.mrf.mxu0
      %v3862 = vadd.f32 %v3773, %v3861
      %v3863 = vpop.f32.mrf.mxu0
      %v3864 = vadd.f32 %v3775, %v3863
      %3865 = vmatmul.bf16.gmra.mxu0 %v1314
      %v3866 = vpop.f32.mrf.mxu0
      %v3867 = vadd.f32 %v3778, %v3866
      %v3868 = vpop.f32.mrf.mxu0
      %v3869 = vadd.f32 %v3780, %v3868
      %3870 = vmatmul.bf16.gmra.mxu0 %v1321
      %v3871 = vpop.f32.mrf.mxu0
      %v3872 = vadd.f32 %v3783, %v3871
      %v3873 = vpop.f32.mrf.mxu0
      %v3874 = vadd.f32 %v3785, %v3873
      %3875 = vmatmul.bf16.gmra.mxu0 %v1328
      %v3876 = vpop.f32.mrf.mxu0
      %v3877 = vadd.f32 %v3788, %v3876
      %v3878 = vpop.f32.mrf.mxu0
      %v3879 = vadd.f32 %v3790, %v3878
      %3880 = vmatmul.bf16.gmra.mxu0 %v1335
      %v3881 = vpop.f32.mrf.mxu0
      %v3882 = vadd.f32 %v3793, %v3881
      %v3883 = vpop.f32.mrf.mxu0
      %v3884 = vadd.f32 %v3795, %v3883
      %3885 = vmatmul.bf16.gmra.mxu0 %v1342
      %v3886 = vpop.f32.mrf.mxu0
      %v3887 = vadd.f32 %v3798, %v3886
      %v3888 = vpop.f32.mrf.mxu0
      %v3889 = vadd.f32 %v3800, %v3888
      %3890 = vmatmul.bf16.gmra.mxu0 %v1349
      %v3891 = vpop.f32.mrf.mxu0
      %v3892 = vadd.f32 %v3803, %v3891
      %v3893 = vpop.f32.mrf.mxu0
      %v3894 = vadd.f32 %v3805, %v3893
      %3895 = vmatmul.bf16.gmra.mxu0 %v1356
      %v3896 = vpop.f32.mrf.mxu0
      %v3897 = vadd.f32 %v3808, %v3896
      %v3898 = vpop.f32.mrf.mxu0
      %v3899 = vadd.f32 %v3810, %v3898
      %3900 = vmatmul.bf16.gmra.mxu0 %v1363
      %v3901 = vpop.f32.mrf.mxu0
      %v3902 = vadd.f32 %v3813, %v3901
      %v3903 = vpop.f32.mrf.mxu0
      %v3904 = vadd.f32 %v3815, %v3903
      %3905 = vmatmul.bf16.gmra.mxu0 %v1370
      %v3906 = vpop.f32.mrf.mxu0
      %v3907 = vadd.f32 %v3818, %v3906
      %v3908 = vpop.f32.mrf.mxu0
      %v3909 = vadd.f32 %v3820, %v3908
      %3910 = vmatmul.bf16.gmra.mxu0 %v1377
      %v3911 = vpop.f32.mrf.mxu0
      %v3912 = vadd.f32 %v3823, %v3911
      %v3913 = vpop.f32.mrf.mxu0
      %v3914 = vadd.f32 %v3825, %v3913
      %3915 = vmatmul.bf16.gmra.mxu0 %v1384
      %v3916 = vpop.f32.mrf.mxu0
      %v3917 = vadd.f32 %v3828, %v3916
      %v3918 = vpop.f32.mrf.mxu0
      %v3919 = vadd.f32 %v3830, %v3918
      %3920 = vmatmul.bf16.gmra.mxu0 %v1391
      %v3921 = vpop.f32.mrf.mxu0
      %v3922 = vadd.f32 %v3833, %v3921
      %v3923 = vpop.f32.mrf.mxu0
      %v3924 = vadd.f32 %v3835, %v3923
      %3925 = vdwg.mxu0
      %3926 = vmatpush.bf16.msra.mxu0 %v2100
      %3927 = vmatpush.bf16.msra.mxu0 %v2097
      %3928 = vmatpush.bf16.msra.mxu0 %v2094
      %3929 = vmatpush.bf16.msra.mxu0 %v2091
      %3930 = vmatpush.bf16.msra.mxu0 %v2088
      %3931 = vmatpush.bf16.msra.mxu0 %v2085
      %3932 = vmatpush.bf16.msra.mxu0 %v2082
      %3933 = vmatpush.bf16.msra.mxu0 %v2079
      %3934 = vmatmul.bf16.gmra.mxu0 %v1287
      %v3935 = vpop.f32.mrf.mxu0
      %v3936 = vadd.f32 %v3847, %v3935
      %v3937 = vpop.f32.mrf.mxu0
      %v3938 = vadd.f32 %v3849, %v3937
      %3939 = vmatmul.bf16.gmra.mxu0 %v1294
      %v3940 = vpop.f32.mrf.mxu0
      %v3941 = vadd.f32 %v3852, %v3940
      %v3942 = vpop.f32.mrf.mxu0
      %v3943 = vadd.f32 %v3854, %v3942
      %3944 = vmatmul.bf16.gmra.mxu0 %v1301
      %v3945 = vpop.f32.mrf.mxu0
      %v3946 = vadd.f32 %v3857, %v3945
      %v3947 = vpop.f32.mrf.mxu0
      %v3948 = vadd.f32 %v3859, %v3947
      %3949 = vmatmul.bf16.gmra.mxu0 %v1308
      %v3950 = vpop.f32.mrf.mxu0
      %v3951 = vadd.f32 %v3862, %v3950
      %v3952 = vpop.f32.mrf.mxu0
      %v3953 = vadd.f32 %v3864, %v3952
      %3954 = vmatmul.bf16.gmra.mxu0 %v1315
      %v3955 = vpop.f32.mrf.mxu0
      %v3956 = vadd.f32 %v3867, %v3955
      %v3957 = vpop.f32.mrf.mxu0
      %v3958 = vadd.f32 %v3869, %v3957
      %3959 = vmatmul.bf16.gmra.mxu0 %v1322
      %v3960 = vpop.f32.mrf.mxu0
      %v3961 = vadd.f32 %v3872, %v3960
      %v3962 = vpop.f32.mrf.mxu0
      %v3963 = vadd.f32 %v3874, %v3962
      %3964 = vmatmul.bf16.gmra.mxu0 %v1329
      %v3965 = vpop.f32.mrf.mxu0
      %v3966 = vadd.f32 %v3877, %v3965
      %v3967 = vpop.f32.mrf.mxu0
      %v3968 = vadd.f32 %v3879, %v3967
      %3969 = vmatmul.bf16.gmra.mxu0 %v1336
      %v3970 = vpop.f32.mrf.mxu0
      %v3971 = vadd.f32 %v3882, %v3970
      %v3972 = vpop.f32.mrf.mxu0
      %v3973 = vadd.f32 %v3884, %v3972
      %3974 = vmatmul.bf16.gmra.mxu0 %v1343
      %v3975 = vpop.f32.mrf.mxu0
      %v3976 = vadd.f32 %v3887, %v3975
      %v3977 = vpop.f32.mrf.mxu0
      %v3978 = vadd.f32 %v3889, %v3977
      %3979 = vmatmul.bf16.gmra.mxu0 %v1350
      %v3980 = vpop.f32.mrf.mxu0
      %v3981 = vadd.f32 %v3892, %v3980
      %v3982 = vpop.f32.mrf.mxu0
      %v3983 = vadd.f32 %v3894, %v3982
      %3984 = vmatmul.bf16.gmra.mxu0 %v1357
      %v3985 = vpop.f32.mrf.mxu0
      %v3986 = vadd.f32 %v3897, %v3985
      %v3987 = vpop.f32.mrf.mxu0
      %v3988 = vadd.f32 %v3899, %v3987
      %3989 = vmatmul.bf16.gmra.mxu0 %v1364
      %v3990 = vpop.f32.mrf.mxu0
      %v3991 = vadd.f32 %v3902, %v3990
      %v3992 = vpop.f32.mrf.mxu0
      %v3993 = vadd.f32 %v3904, %v3992
      %3994 = vmatmul.bf16.gmra.mxu0 %v1371
      %v3995 = vpop.f32.mrf.mxu0
      %v3996 = vadd.f32 %v3907, %v3995
      %v3997 = vpop.f32.mrf.mxu0
      %v3998 = vadd.f32 %v3909, %v3997
      %3999 = vmatmul.bf16.gmra.mxu0 %v1378
      %v4000 = vpop.f32.mrf.mxu0
      %v4001 = vadd.f32 %v3912, %v4000
      %v4002 = vpop.f32.mrf.mxu0
      %v4003 = vadd.f32 %v3914, %v4002
      %4004 = vmatmul.bf16.gmra.mxu0 %v1385
      %v4005 = vpop.f32.mrf.mxu0
      %v4006 = vadd.f32 %v3917, %v4005
      %v4007 = vpop.f32.mrf.mxu0
      %v4008 = vadd.f32 %v3919, %v4007
      %4009 = vmatmul.bf16.gmra.mxu0 %v1392
      %v4010 = vpop.f32.mrf.mxu0
      %v4011 = vadd.f32 %v3922, %v4010
      %v4012 = vpop.f32.mrf.mxu0
      %v4013 = vadd.f32 %v3924, %v4012
      %4014 = vdwg.mxu0
      %4015 = vmatpush.bf16.msra.mxu0 %v2124
      %4016 = vmatpush.bf16.msra.mxu0 %v2121
      %4017 = vmatpush.bf16.msra.mxu0 %v2118
      %4018 = vmatpush.bf16.msra.mxu0 %v2115
      %4019 = vmatpush.bf16.msra.mxu0 %v2112
      %4020 = vmatpush.bf16.msra.mxu0 %v2109
      %4021 = vmatpush.bf16.msra.mxu0 %v2106
      %4022 = vmatpush.bf16.msra.mxu0 %v2103
      %4023 = vmatmul.bf16.gmra.mxu0 %v1288
      %v4024 = vpop.f32.mrf.mxu0
      %v4025 = vadd.f32 %v3936, %v4024
      %v4026 = vpop.f32.mrf.mxu0
      %v4027 = vadd.f32 %v3938, %v4026
      %4028 = vmatmul.bf16.gmra.mxu0 %v1295
      %v4029 = vpop.f32.mrf.mxu0
      %v4030 = vadd.f32 %v3941, %v4029
      %v4031 = vpop.f32.mrf.mxu0
      %v4032 = vadd.f32 %v3943, %v4031
      %4033 = vmatmul.bf16.gmra.mxu0 %v1302
      %v4034 = vpop.f32.mrf.mxu0
      %v4035 = vadd.f32 %v3946, %v4034
      %v4036 = vpop.f32.mrf.mxu0
      %v4037 = vadd.f32 %v3948, %v4036
      %4038 = vmatmul.bf16.gmra.mxu0 %v1309
      %v4039 = vpop.f32.mrf.mxu0
      %v4040 = vadd.f32 %v3951, %v4039
      %v4041 = vpop.f32.mrf.mxu0
      %v4042 = vadd.f32 %v3953, %v4041
      %4043 = vmatmul.bf16.gmra.mxu0 %v1316
      %v4044 = vpop.f32.mrf.mxu0
      %v4045 = vadd.f32 %v3956, %v4044
      %v4046 = vpop.f32.mrf.mxu0
      %v4047 = vadd.f32 %v3958, %v4046
      %4048 = vmatmul.bf16.gmra.mxu0 %v1323
      %v4049 = vpop.f32.mrf.mxu0
      %v4050 = vadd.f32 %v3961, %v4049
      %v4051 = vpop.f32.mrf.mxu0
      %v4052 = vadd.f32 %v3963, %v4051
      %4053 = vmatmul.bf16.gmra.mxu0 %v1330
      %v4054 = vpop.f32.mrf.mxu0
      %v4055 = vadd.f32 %v3966, %v4054
      %v4056 = vpop.f32.mrf.mxu0
      %v4057 = vadd.f32 %v3968, %v4056
      %4058 = vmatmul.bf16.gmra.mxu0 %v1337
      %v4059 = vpop.f32.mrf.mxu0
      %v4060 = vadd.f32 %v3971, %v4059
      %v4061 = vpop.f32.mrf.mxu0
      %v4062 = vadd.f32 %v3973, %v4061
      %4063 = vmatmul.bf16.gmra.mxu0 %v1344
      %v4064 = vpop.f32.mrf.mxu0
      %v4065 = vadd.f32 %v3976, %v4064
      %v4066 = vpop.f32.mrf.mxu0
      %v4067 = vadd.f32 %v3978, %v4066
      %4068 = vmatmul.bf16.gmra.mxu0 %v1351
      %v4069 = vpop.f32.mrf.mxu0
      %v4070 = vadd.f32 %v3981, %v4069
      %v4071 = vpop.f32.mrf.mxu0
      %v4072 = vadd.f32 %v3983, %v4071
      %4073 = vmatmul.bf16.gmra.mxu0 %v1358
      %v4074 = vpop.f32.mrf.mxu0
      %v4075 = vadd.f32 %v3986, %v4074
      %v4076 = vpop.f32.mrf.mxu0
      %v4077 = vadd.f32 %v3988, %v4076
      %4078 = vmatmul.bf16.gmra.mxu0 %v1365
      %v4079 = vpop.f32.mrf.mxu0
      %v4080 = vadd.f32 %v3991, %v4079
      %v4081 = vpop.f32.mrf.mxu0
      %v4082 = vadd.f32 %v3993, %v4081
      %4083 = vmatmul.bf16.gmra.mxu0 %v1372
      %v4084 = vpop.f32.mrf.mxu0
      %v4085 = vadd.f32 %v3996, %v4084
      %v4086 = vpop.f32.mrf.mxu0
      %v4087 = vadd.f32 %v3998, %v4086
      %4088 = vmatmul.bf16.gmra.mxu0 %v1379
      %v4089 = vpop.f32.mrf.mxu0
      %v4090 = vadd.f32 %v4001, %v4089
      %v4091 = vpop.f32.mrf.mxu0
      %v4092 = vadd.f32 %v4003, %v4091
      %4093 = vmatmul.bf16.gmra.mxu0 %v1386
      %v4094 = vpop.f32.mrf.mxu0
      %v4095 = vadd.f32 %v4006, %v4094
      %v4096 = vpop.f32.mrf.mxu0
      %v4097 = vadd.f32 %v4008, %v4096
      %4098 = vmatmul.bf16.gmra.mxu0 %v1393
      %v4099 = vpop.f32.mrf.mxu0
      %v4100 = vadd.f32 %v4011, %v4099
      %v4101 = vpop.f32.mrf.mxu0
      %v4102 = vadd.f32 %v4013, %v4101
      %4103 = vdwg.mxu0
      %4104 = vmatpush.bf16.msra.mxu0 0
      %4105 = vmatpush.bf16.msra.mxu0 0
      %4106 = vmatpush.bf16.msra.mxu0 0
      %4107 = vmatpush.bf16.msra.mxu0 0
      %4108 = vmatpush.bf16.msra.mxu0 0
      %4109 = vmatpush.bf16.msra.mxu0 0
      %4110 = vmatpush.bf16.msra.mxu0 0
      %4111 = vmatpush.bf16.msra.mxu0 %v2127
      %4112 = vmatmul.bf16.gmra.mxu0 %v2277
      %v4113 = vpop.f32.mrf.mxu0
      %v4114 = vadd.f32 %v4025, %v4113
      %v4115 = vpop.f32.mrf.mxu0
      %v4116 = vadd.f32 %v4027, %v4115
      %4117 = vmatmul.bf16.gmra.mxu0 %v2280
      %v4118 = vpop.f32.mrf.mxu0
      %v4119 = vadd.f32 %v4030, %v4118
      %v4120 = vpop.f32.mrf.mxu0
      %v4121 = vadd.f32 %v4032, %v4120
      %4122 = vmatmul.bf16.gmra.mxu0 %v2283
      %v4123 = vpop.f32.mrf.mxu0
      %v4124 = vadd.f32 %v4035, %v4123
      %v4125 = vpop.f32.mrf.mxu0
      %v4126 = vadd.f32 %v4037, %v4125
      %4127 = vmatmul.bf16.gmra.mxu0 %v2286
      %v4128 = vpop.f32.mrf.mxu0
      %v4129 = vadd.f32 %v4040, %v4128
      %v4130 = vpop.f32.mrf.mxu0
      %v4131 = vadd.f32 %v4042, %v4130
      %4132 = vmatmul.bf16.gmra.mxu0 %v2289
      %v4133 = vpop.f32.mrf.mxu0
      %v4134 = vadd.f32 %v4045, %v4133
      %v4135 = vpop.f32.mrf.mxu0
      %v4136 = vadd.f32 %v4047, %v4135
      %4137 = vmatmul.bf16.gmra.mxu0 %v2292
      %v4138 = vpop.f32.mrf.mxu0
      %v4139 = vadd.f32 %v4050, %v4138
      %v4140 = vpop.f32.mrf.mxu0
      %v4141 = vadd.f32 %v4052, %v4140
      %4142 = vmatmul.bf16.gmra.mxu0 %v2295
      %v4143 = vpop.f32.mrf.mxu0
      %v4144 = vadd.f32 %v4055, %v4143
      %v4145 = vpop.f32.mrf.mxu0
      %v4146 = vadd.f32 %v4057, %v4145
      %4147 = vmatmul.bf16.gmra.mxu0 %v2298
      %v4148 = vpop.f32.mrf.mxu0
      %v4149 = vadd.f32 %v4060, %v4148
      %v4150 = vpop.f32.mrf.mxu0
      %v4151 = vadd.f32 %v4062, %v4150
      %4152 = vmatmul.bf16.gmra.mxu0 %v2301
      %v4153 = vpop.f32.mrf.mxu0
      %v4154 = vadd.f32 %v4065, %v4153
      %v4155 = vpop.f32.mrf.mxu0
      %v4156 = vadd.f32 %v4067, %v4155
      %4157 = vmatmul.bf16.gmra.mxu0 %v2304
      %v4158 = vpop.f32.mrf.mxu0
      %v4159 = vadd.f32 %v4070, %v4158
      %v4160 = vpop.f32.mrf.mxu0
      %v4161 = vadd.f32 %v4072, %v4160
      %4162 = vmatmul.bf16.gmra.mxu0 %v2307
      %v4163 = vpop.f32.mrf.mxu0
      %v4164 = vadd.f32 %v4075, %v4163
      %v4165 = vpop.f32.mrf.mxu0
      %v4166 = vadd.f32 %v4077, %v4165
      %4167 = vmatmul.bf16.gmra.mxu0 %v2310
      %v4168 = vpop.f32.mrf.mxu0
      %v4169 = vadd.f32 %v4080, %v4168
      %v4170 = vpop.f32.mrf.mxu0
      %v4171 = vadd.f32 %v4082, %v4170
      %4172 = vmatmul.bf16.gmra.mxu0 %v2313
      %v4173 = vpop.f32.mrf.mxu0
      %v4174 = vadd.f32 %v4085, %v4173
      %v4175 = vpop.f32.mrf.mxu0
      %v4176 = vadd.f32 %v4087, %v4175
      %4177 = vmatmul.bf16.gmra.mxu0 %v2316
      %v4178 = vpop.f32.mrf.mxu0
      %v4179 = vadd.f32 %v4090, %v4178
      %v4180 = vpop.f32.mrf.mxu0
      %v4181 = vadd.f32 %v4092, %v4180
      %4182 = vmatmul.bf16.gmra.mxu0 %v2319
      %v4183 = vpop.f32.mrf.mxu0
      %v4184 = vadd.f32 %v4095, %v4183
      %v4185 = vpop.f32.mrf.mxu0
      %v4186 = vadd.f32 %v4097, %v4185
      %4187 = vmatmul.bf16.gmra.mxu0 %v2322
      %v4188 = vpop.f32.mrf.mxu0
      %v4189 = vadd.f32 %v4100, %v4188
      %v4190 = vpop.f32.mrf.mxu0
      %v4191 = vadd.f32 %v4102, %v4190
      %4192 = vdwg.mxu0
      %v4193 = vmax.f32 %v2868, 0.0
      %v4194 = vmax.f32 %v3491, 0.0
      %v4195 = vmax.f32 %v4114, 0.0
      %v4196 = vmax.f32 %v2870, 0.0
      %v4197 = vmax.f32 %v3493, 0.0
      %v4198 = vmax.f32 %v4116, 0.0
      %v4199 = vmax.f32 %v2873, 0.0
      %v4200 = vmax.f32 %v3496, 0.0
      %v4201 = vmax.f32 %v4119, 0.0
      %v4202 = vmax.f32 %v2875, 0.0
      %v4203 = vmax.f32 %v3498, 0.0
      %v4204 = vmax.f32 %v4121, 0.0
      %v4205 = vmax.f32 %v2878, 0.0
      %v4206 = vmax.f32 %v3501, 0.0
      %v4207 = vmax.f32 %v4124, 0.0
      %v4208 = vmax.f32 %v2880, 0.0
      %v4209 = vmax.f32 %v3503, 0.0
      %v4210 = vmax.f32 %v4126, 0.0
      %v4211 = vmax.f32 %v2883, 0.0
      %v4212 = vmax.f32 %v3506, 0.0
      %v4213 = vmax.f32 %v4129, 0.0
      %v4214 = vmax.f32 %v2885, 0.0
      %v4215 = vmax.f32 %v3508, 0.0
      %v4216 = vmax.f32 %v4131, 0.0
      %v4217 = vmax.f32 %v2888, 0.0
      %v4218 = vmax.f32 %v3511, 0.0
      %v4219 = vmax.f32 %v4134, 0.0
      %v4220 = vmax.f32 %v2890, 0.0
      %v4221 = vmax.f32 %v3513, 0.0
      %v4222 = vmax.f32 %v4136, 0.0
      %v4223 = vmax.f32 %v2893, 0.0
      %v4224 = vmax.f32 %v3516, 0.0
      %v4225 = vmax.f32 %v4139, 0.0
      %v4226 = vmax.f32 %v2895, 0.0
      %v4227 = vmax.f32 %v3518, 0.0
      %v4228 = vmax.f32 %v4141, 0.0
      %v4229 = vmax.f32 %v2898, 0.0
      %v4230 = vmax.f32 %v3521, 0.0
      %v4231 = vmax.f32 %v4144, 0.0
      %v4232 = vmax.f32 %v2900, 0.0
      %v4233 = vmax.f32 %v3523, 0.0
      %v4234 = vmax.f32 %v4146, 0.0
      %v4235 = vmax.f32 %v2903, 0.0
      %v4236 = vmax.f32 %v3526, 0.0
      %v4237 = vmax.f32 %v4149, 0.0
      %v4238 = vmax.f32 %v2905, 0.0
      %v4239 = vmax.f32 %v3528, 0.0
      %v4240 = vmax.f32 %v4151, 0.0
      %v4241 = vmax.f32 %v2908, 0.0
      %v4242 = vmax.f32 %v3531, 0.0
      %v4243 = vmax.f32 %v4154, 0.0
      %v4244 = vmax.f32 %v2910, 0.0
      %v4245 = vmax.f32 %v3533, 0.0
      %v4246 = vmax.f32 %v4156, 0.0
      %v4247 = vmax.f32 %v2913, 0.0
      %v4248 = vmax.f32 %v3536, 0.0
      %v4249 = vmax.f32 %v4159, 0.0
      %v4250 = vmax.f32 %v2915, 0.0
      %v4251 = vmax.f32 %v3538, 0.0
      %v4252 = vmax.f32 %v4161, 0.0
      %v4253 = vmax.f32 %v2918, 0.0
      %v4254 = vmax.f32 %v3541, 0.0
      %v4255 = vmax.f32 %v4164, 0.0
      %v4256 = vmax.f32 %v2920, 0.0
      %v4257 = vmax.f32 %v3543, 0.0
      %v4258 = vmax.f32 %v4166, 0.0
      %v4259 = vmax.f32 %v2923, 0.0
      %v4260 = vmax.f32 %v3546, 0.0
      %v4261 = vmax.f32 %v4169, 0.0
      %v4262 = vmax.f32 %v2925, 0.0
      %v4263 = vmax.f32 %v3548, 0.0
      %v4264 = vmax.f32 %v4171, 0.0
      %v4265 = vmax.f32 %v2928, 0.0
      %v4266 = vmax.f32 %v3551, 0.0
      %v4267 = vmax.f32 %v4174, 0.0
      %v4268 = vmax.f32 %v2930, 0.0
      %v4269 = vmax.f32 %v3553, 0.0
      %v4270 = vmax.f32 %v4176, 0.0
      %v4271 = vmax.f32 %v2933, 0.0
      %v4272 = vmax.f32 %v3556, 0.0
      %v4273 = vmax.f32 %v4179, 0.0
      %v4274 = vmax.f32 %v2935, 0.0
      %v4275 = vmax.f32 %v3558, 0.0
      %v4276 = vmax.f32 %v4181, 0.0
      %v4277 = vmax.f32 %v2938, 0.0
      %v4278 = vmax.f32 %v3561, 0.0
      %v4279 = vmax.f32 %v4184, 0.0
      %v4280 = vmax.f32 %v2940, 0.0
      %v4281 = vmax.f32 %v3563, 0.0
      %v4282 = vmax.f32 %v4186, 0.0
      %v4283 = vmax.f32 %v2943, 0.0
      %v4284 = vmax.f32 %v3566, 0.0
      %v4285 = vmax.f32 %v4189, 0.0
      %v4286 = vmax.f32 %v2945, 0.0
      %v4287 = vmax.f32 %v3568, 0.0
      %v4288 = vmax.f32 %v4191, 0.0
      %v4289 = vpack.c.bf16 %v4196, %v4193
      %v4290 = vpack.c.bf16 %v4197, %v4194
      %v4291 = vpack.c.bf16 %v4198, %v4195
      %v4292 = vpack.c.bf16 %v4202, %v4199
      %v4293 = vpack.c.bf16 %v4203, %v4200
      %v4294 = vpack.c.bf16 %v4204, %v4201
      %v4295 = vpack.c.bf16 %v4208, %v4205
      %v4296 = vpack.c.bf16 %v4209, %v4206
      %v4297 = vpack.c.bf16 %v4210, %v4207
      %v4298 = vpack.c.bf16 %v4214, %v4211
      %v4299 = vpack.c.bf16 %v4215, %v4212
      %v4300 = vpack.c.bf16 %v4216, %v4213
      %v4301 = vpack.c.bf16 %v4220, %v4217
      %v4302 = vpack.c.bf16 %v4221, %v4218
      %v4303 = vpack.c.bf16 %v4222, %v4219
      %v4304 = vpack.c.bf16 %v4226, %v4223
      %v4305 = vpack.c.bf16 %v4227, %v4224
      %v4306 = vpack.c.bf16 %v4228, %v4225
      %v4307 = vpack.c.bf16 %v4232, %v4229
      %v4308 = vpack.c.bf16 %v4233, %v4230
      %v4309 = vpack.c.bf16 %v4234, %v4231
      %v4310 = vpack.c.bf16 %v4238, %v4235
      %v4311 = vpack.c.bf16 %v4239, %v4236
      %v4312 = vpack.c.bf16 %v4240, %v4237
      %v4313 = vpack.c.bf16 %v4244, %v4241
      %v4314 = vpack.c.bf16 %v4245, %v4242
      %v4315 = vpack.c.bf16 %v4246, %v4243
      %v4316 = vpack.c.bf16 %v4250, %v4247
      %v4317 = vpack.c.bf16 %v4251, %v4248
      %v4318 = vpack.c.bf16 %v4252, %v4249
      %v4319 = vpack.c.bf16 %v4256, %v4253
      %v4320 = vpack.c.bf16 %v4257, %v4254
      %v4321 = vpack.c.bf16 %v4258, %v4255
      %v4322 = vpack.c.bf16 %v4262, %v4259
      %v4323 = vpack.c.bf16 %v4263, %v4260
      %v4324 = vpack.c.bf16 %v4264, %v4261
      %v4325 = vpack.c.bf16 %v4268, %v4265
      %v4326 = vpack.c.bf16 %v4269, %v4266
      %v4327 = vpack.c.bf16 %v4270, %v4267
      %v4328 = vpack.c.bf16 %v4274, %v4271
      %v4329 = vpack.c.bf16 %v4275, %v4272
      %v4330 = vpack.c.bf16 %v4276, %v4273
      %v4331 = vpack.c.bf16 %v4280, %v4277
      %v4332 = vpack.c.bf16 %v4281, %v4278
      %v4333 = vpack.c.bf16 %v4282, %v4279
      %v4334 = vpack.c.bf16 %v4286, %v4283
      %v4335 = vpack.c.bf16 %v4287, %v4284
      %v4336 = vpack.c.bf16 %v4288, %v4285
      %v4337 = vld [vmem:[%s3] sm:$0xf]
      %v4338 = vld [vmem:[%s3 + $0x4] sm:$0xf]
      %v4339 = vld [vmem:[%s3 + $0x8] sm:$0xf]
      %v4340 = vld [vmem:[%s3 + $0xc] sm:$0xf]
      %v4341 = vld [vmem:[%s3 + $0x10] sm:$0xf]
      %v4342 = vld [vmem:[%s3 + $0x14] sm:$0xf]
      %v4343 = vld [vmem:[%s3 + $0x18] sm:$0xf]
      %v4344 = vld [vmem:[%s3 + $0x1c] sm:$0xf]
      %v4345 = vld [vmem:[%s3 + $0x20] sm:$0xf]
      %v4346 = vld [vmem:[%s3 + $0x24] sm:$0xf]
      %v4347 = vld [vmem:[%s3 + $0x28] sm:$0xf]
      %v4348 = vld [vmem:[%s3 + $0x2c] sm:$0xf]
      %v4349 = vld [vmem:[%s3 + $0x30] sm:$0xf]
      %v4350 = vld [vmem:[%s3 + $0x34] sm:$0xf]
      %v4351 = vld [vmem:[%s3 + $0x38] sm:$0xf]
      %v4352 = vld [vmem:[%s3 + $0x3c] sm:$0xf]
      %v4353 = vld [vmem:[%s3 + $0x40] sm:$0xf]
      %v4354 = vld [vmem:[%s3 + $0x44] sm:$0xf]
      %v4355 = vld [vmem:[%s3 + $0x48] sm:$0xf]
      %v4356 = vld [vmem:[%s3 + $0x4c] sm:$0xf]
      %v4357 = vld [vmem:[%s3 + $0x50] sm:$0xf]
      %v4358 = vld [vmem:[%s3 + $0x54] sm:$0xf]
      %v4359 = vld [vmem:[%s3 + $0x58] sm:$0xf]
      %v4360 = vld [vmem:[%s3 + $0x5c] sm:$0xf]
      %v4361 = vld [vmem:[%s3 + $0x60] sm:$0xf]
      %v4362 = vld [vmem:[%s3 + $0x64] sm:$0xf]
      %v4363 = vld [vmem:[%s3 + $0x68] sm:$0xf]
      %v4364 = vld [vmem:[%s3 + $0x6c] sm:$0xf]
      %v4365 = vld [vmem:[%s3 + $0x70] sm:$0xf]
      %v4366 = vld [vmem:[%s3 + $0x74] sm:$0xf]
      %v4367 = vld [vmem:[%s3 + $0x78] sm:$0xf]
      %v4368 = vld [vmem:[%s3 + $0x7c] sm:$0xf]
      %v4369 = vld [vmem:[%s3 + $0x80] sm:$0xf]
      %v4370 = vld [vmem:[%s3 + $0x84] sm:$0xf]
      %v4371 = vld [vmem:[%s3 + $0x88] sm:$0xf]
      %v4372 = vld [vmem:[%s3 + $0x8c] sm:$0xf]
      %v4373 = vld [vmem:[%s4] sm:$0x1]
      %v4375 = vperm.slane %v4373, 0
      %v4413 = vunpack.c.l.b16 %v4337
      %v4414 = vunpack.c.l.b16 %v4338
      %v4415 = vunpack.c.l.b16 %v4339
      %v4416 = vunpack.c.l.b16 %v4340
      %v4417 = vunpack.c.l.b16 %v4341
      %v4418 = vunpack.c.l.b16 %v4342
      %v4419 = vunpack.c.l.b16 %v4343
      %v4420 = vunpack.c.l.b16 %v4344
      %v4421 = vunpack.c.l.b16 %v4345
      %v4422 = vunpack.c.l.b16 %v4346
      %v4423 = vunpack.c.l.b16 %v4347
      %v4424 = vunpack.c.l.b16 %v4348
      %v4425 = vunpack.c.l.b16 %v4349
      %v4426 = vunpack.c.l.b16 %v4350
      %v4427 = vunpack.c.l.b16 %v4351
      %v4428 = vunpack.c.l.b16 %v4352
      %v4429 = vunpack.c.l.b16 %v4353
      %v4430 = vunpack.c.l.b16 %v4354
      %v4431 = vunpack.c.l.b16 %v4355
      %v4432 = vunpack.c.l.b16 %v4356
      %v4433 = vunpack.c.l.b16 %v4357
      %v4434 = vunpack.c.l.b16 %v4358
      %v4435 = vunpack.c.l.b16 %v4359
      %v4436 = vunpack.c.l.b16 %v4360
      %v4437 = vunpack.c.l.b16 %v4361
      %v4438 = vunpack.c.l.b16 %v4362
      %v4439 = vunpack.c.l.b16 %v4363
      %v4440 = vunpack.c.l.b16 %v4364
      %v4441 = vunpack.c.l.b16 %v4365
      %v4442 = vunpack.c.l.b16 %v4366
      %v4443 = vunpack.c.l.b16 %v4367
      %v4444 = vunpack.c.l.b16 %v4368
      %v4445 = vunpack.c.l.b16 %v4369
      %v4446 = vunpack.c.l.b16 %v4370
      %v4447 = vunpack.c.l.b16 %v4371
      %v4448 = vunpack.c.l.b16 %v4372
      %v4449 = vpack.c.b16 %v4414, %v4413
      %v4450 = vpack.c.b16 %v4416, %v4415
      %v4451 = vpack.c.b16 %v4418, %v4417
      %v4452 = vpack.c.b16 %v4420, %v4419
      %v4453 = vpack.c.b16 %v4422, %v4421
      %v4454 = vpack.c.b16 %v4424, %v4423
      %v4455 = vpack.c.b16 %v4426, %v4425
      %v4456 = vpack.c.b16 %v4428, %v4427
      %v4457 = vpack.c.b16 %v4430, %v4429
      %v4458 = vpack.c.b16 %v4432, %v4431
      %v4459 = vpack.c.b16 %v4434, %v4433
      %v4460 = vpack.c.b16 %v4436, %v4435
      %v4461 = vpack.c.b16 %v4438, %v4437
      %v4462 = vpack.c.b16 %v4440, %v4439
      %v4463 = vpack.c.b16 %v4442, %v4441
      %v4464 = vpack.c.b16 %v4444, %v4443
      %v4465 = vpack.c.b16 %v4446, %v4445
      %v4466 = vpack.c.b16 %v4448, %v4447
      %vm4485 = vcmask 261120
      %v4487 = vsel %vm4485, %v4291, 0
      %v4490 = vsel %vm4485, %v4294, 0
      %v4493 = vsel %vm4485, %v4297, 0
      %v4496 = vsel %vm4485, %v4300, 0
      %v4499 = vsel %vm4485, %v4303, 0
      %v4502 = vsel %vm4485, %v4306, 0
      %v4505 = vsel %vm4485, %v4309, 0
      %v4508 = vsel %vm4485, %v4312, 0
      %v4511 = vsel %vm4485, %v4315, 0
      %v4514 = vsel %vm4485, %v4318, 0
      %v4517 = vsel %vm4485, %v4321, 0
      %v4520 = vsel %vm4485, %v4324, 0
      %v4523 = vsel %vm4485, %v4327, 0
      %v4526 = vsel %vm4485, %v4330, 0
      %v4529 = vsel %vm4485, %v4333, 0
      %v4532 = vsel %vm4485, %v4336, 0
      %4534 = vmatpush.bf16.msra.mxu0 %v4456
      %4535 = vmatpush.bf16.msra.mxu0 %v4455
      %4536 = vmatpush.bf16.msra.mxu0 %v4454
      %4537 = vmatpush.bf16.msra.mxu0 %v4453
      %4538 = vmatpush.bf16.msra.mxu0 %v4452
      %4539 = vmatpush.bf16.msra.mxu0 %v4451
      %4540 = vmatpush.bf16.msra.mxu0 %v4450
      %4541 = vmatpush.bf16.msra.mxu0 %v4449
      %4542 = vmatmul.bf16.gmra.mxu0 %v4289
      %v4543 = vpop.f32.mrf.mxu0
      %v4544 = vadd.f32 %v4375, %v4543
      %v4545 = vpop.f32.mrf.mxu0
      %v4546 = vadd.f32 %v4375, %v4545
      %4547 = vmatmul.bf16.gmra.mxu0 %v4292
      %v4548 = vpop.f32.mrf.mxu0
      %v4549 = vadd.f32 %v4375, %v4548
      %v4550 = vpop.f32.mrf.mxu0
      %v4551 = vadd.f32 %v4375, %v4550
      %4552 = vmatmul.bf16.gmra.mxu0 %v4295
      %v4553 = vpop.f32.mrf.mxu0
      %v4554 = vadd.f32 %v4375, %v4553
      %v4555 = vpop.f32.mrf.mxu0
      %v4556 = vadd.f32 %v4375, %v4555
      %4557 = vmatmul.bf16.gmra.mxu0 %v4298
      %v4558 = vpop.f32.mrf.mxu0
      %v4559 = vadd.f32 %v4375, %v4558
      %v4560 = vpop.f32.mrf.mxu0
      %v4561 = vadd.f32 %v4375, %v4560
      %4562 = vmatmul.bf16.gmra.mxu0 %v4301
      %v4563 = vpop.f32.mrf.mxu0
      %v4564 = vadd.f32 %v4375, %v4563
      %v4565 = vpop.f32.mrf.mxu0
      %v4566 = vadd.f32 %v4375, %v4565
      %4567 = vmatmul.bf16.gmra.mxu0 %v4304
      %v4568 = vpop.f32.mrf.mxu0
      %v4569 = vadd.f32 %v4375, %v4568
      %v4570 = vpop.f32.mrf.mxu0
      %v4571 = vadd.f32 %v4375, %v4570
      %4572 = vmatmul.bf16.gmra.mxu0 %v4307
      %v4573 = vpop.f32.mrf.mxu0
      %v4574 = vadd.f32 %v4375, %v4573
      %v4575 = vpop.f32.mrf.mxu0
      %v4576 = vadd.f32 %v4375, %v4575
      %4577 = vmatmul.bf16.gmra.mxu0 %v4310
      %v4578 = vpop.f32.mrf.mxu0
      %v4579 = vadd.f32 %v4375, %v4578
      %v4580 = vpop.f32.mrf.mxu0
      %v4581 = vadd.f32 %v4375, %v4580
      %4582 = vmatmul.bf16.gmra.mxu0 %v4313
      %v4583 = vpop.f32.mrf.mxu0
      %v4584 = vadd.f32 %v4375, %v4583
      %v4585 = vpop.f32.mrf.mxu0
      %v4586 = vadd.f32 %v4375, %v4585
      %4587 = vmatmul.bf16.gmra.mxu0 %v4316
      %v4588 = vpop.f32.mrf.mxu0
      %v4589 = vadd.f32 %v4375, %v4588
      %v4590 = vpop.f32.mrf.mxu0
      %v4591 = vadd.f32 %v4375, %v4590
      %4592 = vmatmul.bf16.gmra.mxu0 %v4319
      %v4593 = vpop.f32.mrf.mxu0
      %v4594 = vadd.f32 %v4375, %v4593
      %v4595 = vpop.f32.mrf.mxu0
      %v4596 = vadd.f32 %v4375, %v4595
      %4597 = vmatmul.bf16.gmra.mxu0 %v4322
      %v4598 = vpop.f32.mrf.mxu0
      %v4599 = vadd.f32 %v4375, %v4598
      %v4600 = vpop.f32.mrf.mxu0
      %v4601 = vadd.f32 %v4375, %v4600
      %4602 = vmatmul.bf16.gmra.mxu0 %v4325
      %v4603 = vpop.f32.mrf.mxu0
      %v4604 = vadd.f32 %v4375, %v4603
      %v4605 = vpop.f32.mrf.mxu0
      %v4606 = vadd.f32 %v4375, %v4605
      %4607 = vmatmul.bf16.gmra.mxu0 %v4328
      %v4608 = vpop.f32.mrf.mxu0
      %v4609 = vadd.f32 %v4375, %v4608
      %v4610 = vpop.f32.mrf.mxu0
      %v4611 = vadd.f32 %v4375, %v4610
      %4612 = vmatmul.bf16.gmra.mxu0 %v4331
      %v4613 = vpop.f32.mrf.mxu0
      %v4614 = vadd.f32 %v4375, %v4613
      %v4615 = vpop.f32.mrf.mxu0
      %v4616 = vadd.f32 %v4375, %v4615
      %4617 = vmatmul.bf16.gmra.mxu0 %v4334
      %v4618 = vpop.f32.mrf.mxu0
      %v4619 = vadd.f32 %v4375, %v4618
      %v4620 = vpop.f32.mrf.mxu0
      %v4621 = vadd.f32 %v4375, %v4620
      %4622 = vdwg.mxu0
      %4623 = vmatpush.bf16.msra.mxu0 %v4464
      %4624 = vmatpush.bf16.msra.mxu0 %v4463
      %4625 = vmatpush.bf16.msra.mxu0 %v4462
      %4626 = vmatpush.bf16.msra.mxu0 %v4461
      %4627 = vmatpush.bf16.msra.mxu0 %v4460
      %4628 = vmatpush.bf16.msra.mxu0 %v4459
      %4629 = vmatpush.bf16.msra.mxu0 %v4458
      %4630 = vmatpush.bf16.msra.mxu0 %v4457
      %4631 = vmatmul.bf16.gmra.mxu0 %v4290
      %v4632 = vpop.f32.mrf.mxu0
      %v4633 = vadd.f32 %v4544, %v4632
      %v4634 = vpop.f32.mrf.mxu0
      %v4635 = vadd.f32 %v4546, %v4634
      %4636 = vmatmul.bf16.gmra.mxu0 %v4293
      %v4637 = vpop.f32.mrf.mxu0
      %v4638 = vadd.f32 %v4549, %v4637
      %v4639 = vpop.f32.mrf.mxu0
      %v4640 = vadd.f32 %v4551, %v4639
      %4641 = vmatmul.bf16.gmra.mxu0 %v4296
      %v4642 = vpop.f32.mrf.mxu0
      %v4643 = vadd.f32 %v4554, %v4642
      %v4644 = vpop.f32.mrf.mxu0
      %v4645 = vadd.f32 %v4556, %v4644
      %4646 = vmatmul.bf16.gmra.mxu0 %v4299
      %v4647 = vpop.f32.mrf.mxu0
      %v4648 = vadd.f32 %v4559, %v4647
      %v4649 = vpop.f32.mrf.mxu0
      %v4650 = vadd.f32 %v4561, %v4649
      %4651 = vmatmul.bf16.gmra.mxu0 %v4302
      %v4652 = vpop.f32.mrf.mxu0
      %v4653 = vadd.f32 %v4564, %v4652
      %v4654 = vpop.f32.mrf.mxu0
      %v4655 = vadd.f32 %v4566, %v4654
      %4656 = vmatmul.bf16.gmra.mxu0 %v4305
      %v4657 = vpop.f32.mrf.mxu0
      %v4658 = vadd.f32 %v4569, %v4657
      %v4659 = vpop.f32.mrf.mxu0
      %v4660 = vadd.f32 %v4571, %v4659
      %4661 = vmatmul.bf16.gmra.mxu0 %v4308
      %v4662 = vpop.f32.mrf.mxu0
      %v4663 = vadd.f32 %v4574, %v4662
      %v4664 = vpop.f32.mrf.mxu0
      %v4665 = vadd.f32 %v4576, %v4664
      %4666 = vmatmul.bf16.gmra.mxu0 %v4311
      %v4667 = vpop.f32.mrf.mxu0
      %v4668 = vadd.f32 %v4579, %v4667
      %v4669 = vpop.f32.mrf.mxu0
      %v4670 = vadd.f32 %v4581, %v4669
      %4671 = vmatmul.bf16.gmra.mxu0 %v4314
      %v4672 = vpop.f32.mrf.mxu0
      %v4673 = vadd.f32 %v4584, %v4672
      %v4674 = vpop.f32.mrf.mxu0
      %v4675 = vadd.f32 %v4586, %v4674
      %4676 = vmatmul.bf16.gmra.mxu0 %v4317
      %v4677 = vpop.f32.mrf.mxu0
      %v4678 = vadd.f32 %v4589, %v4677
      %v4679 = vpop.f32.mrf.mxu0
      %v4680 = vadd.f32 %v4591, %v4679
      %4681 = vmatmul.bf16.gmra.mxu0 %v4320
      %v4682 = vpop.f32.mrf.mxu0
      %v4683 = vadd.f32 %v4594, %v4682
      %v4684 = vpop.f32.mrf.mxu0
      %v4685 = vadd.f32 %v4596, %v4684
      %4686 = vmatmul.bf16.gmra.mxu0 %v4323
      %v4687 = vpop.f32.mrf.mxu0
      %v4688 = vadd.f32 %v4599, %v4687
      %v4689 = vpop.f32.mrf.mxu0
      %v4690 = vadd.f32 %v4601, %v4689
      %4691 = vmatmul.bf16.gmra.mxu0 %v4326
      %v4692 = vpop.f32.mrf.mxu0
      %v4693 = vadd.f32 %v4604, %v4692
      %v4694 = vpop.f32.mrf.mxu0
      %v4695 = vadd.f32 %v4606, %v4694
      %4696 = vmatmul.bf16.gmra.mxu0 %v4329
      %v4697 = vpop.f32.mrf.mxu0
      %v4698 = vadd.f32 %v4609, %v4697
      %v4699 = vpop.f32.mrf.mxu0
      %v4700 = vadd.f32 %v4611, %v4699
      %4701 = vmatmul.bf16.gmra.mxu0 %v4332
      %v4702 = vpop.f32.mrf.mxu0
      %v4703 = vadd.f32 %v4614, %v4702
      %v4704 = vpop.f32.mrf.mxu0
      %v4705 = vadd.f32 %v4616, %v4704
      %4706 = vmatmul.bf16.gmra.mxu0 %v4335
      %v4707 = vpop.f32.mrf.mxu0
      %v4708 = vadd.f32 %v4619, %v4707
      %v4709 = vpop.f32.mrf.mxu0
      %v4710 = vadd.f32 %v4621, %v4709
      %4711 = vdwg.mxu0
      %4712 = vmatpush.bf16.msra.mxu0 0
      %4713 = vmatpush.bf16.msra.mxu0 0
      %4714 = vmatpush.bf16.msra.mxu0 0
      %4715 = vmatpush.bf16.msra.mxu0 0
      %4716 = vmatpush.bf16.msra.mxu0 0
      %4717 = vmatpush.bf16.msra.mxu0 0
      %4718 = vmatpush.bf16.msra.mxu0 %v4466
      %4719 = vmatpush.bf16.msra.mxu0 %v4465
      %4720 = vmatmul.bf16.gmra.mxu0 %v4487
      %v4721 = vpop.f32.mrf.mxu0
      %v4722 = vadd.f32 %v4633, %v4721
      %v4723 = vpop.f32.mrf.mxu0
      %v4724 = vadd.f32 %v4635, %v4723
      %4725 = vmatmul.bf16.gmra.mxu0 %v4490
      %v4726 = vpop.f32.mrf.mxu0
      %v4727 = vadd.f32 %v4638, %v4726
      %v4728 = vpop.f32.mrf.mxu0
      %v4729 = vadd.f32 %v4640, %v4728
      %4730 = vmatmul.bf16.gmra.mxu0 %v4493
      %v4731 = vpop.f32.mrf.mxu0
      %v4732 = vadd.f32 %v4643, %v4731
      %v4733 = vpop.f32.mrf.mxu0
      %v4734 = vadd.f32 %v4645, %v4733
      %4735 = vmatmul.bf16.gmra.mxu0 %v4496
      %v4736 = vpop.f32.mrf.mxu0
      %v4737 = vadd.f32 %v4648, %v4736
      %v4738 = vpop.f32.mrf.mxu0
      %v4739 = vadd.f32 %v4650, %v4738
      %4740 = vmatmul.bf16.gmra.mxu0 %v4499
      %v4741 = vpop.f32.mrf.mxu0
      %v4742 = vadd.f32 %v4653, %v4741
      %v4743 = vpop.f32.mrf.mxu0
      %v4744 = vadd.f32 %v4655, %v4743
      %4745 = vmatmul.bf16.gmra.mxu0 %v4502
      %v4746 = vpop.f32.mrf.mxu0
      %v4747 = vadd.f32 %v4658, %v4746
      %v4748 = vpop.f32.mrf.mxu0
      %v4749 = vadd.f32 %v4660, %v4748
      %4750 = vmatmul.bf16.gmra.mxu0 %v4505
      %v4751 = vpop.f32.mrf.mxu0
      %v4752 = vadd.f32 %v4663, %v4751
      %v4753 = vpop.f32.mrf.mxu0
      %v4754 = vadd.f32 %v4665, %v4753
      %4755 = vmatmul.bf16.gmra.mxu0 %v4508
      %v4756 = vpop.f32.mrf.mxu0
      %v4757 = vadd.f32 %v4668, %v4756
      %v4758 = vpop.f32.mrf.mxu0
      %v4759 = vadd.f32 %v4670, %v4758
      %4760 = vmatmul.bf16.gmra.mxu0 %v4511
      %v4761 = vpop.f32.mrf.mxu0
      %v4762 = vadd.f32 %v4673, %v4761
      %v4763 = vpop.f32.mrf.mxu0
      %v4764 = vadd.f32 %v4675, %v4763
      %4765 = vmatmul.bf16.gmra.mxu0 %v4514
      %v4766 = vpop.f32.mrf.mxu0
      %v4767 = vadd.f32 %v4678, %v4766
      %v4768 = vpop.f32.mrf.mxu0
      %v4769 = vadd.f32 %v4680, %v4768
      %4770 = vmatmul.bf16.gmra.mxu0 %v4517
      %v4771 = vpop.f32.mrf.mxu0
      %v4772 = vadd.f32 %v4683, %v4771
      %v4773 = vpop.f32.mrf.mxu0
      %v4774 = vadd.f32 %v4685, %v4773
      %4775 = vmatmul.bf16.gmra.mxu0 %v4520
      %v4776 = vpop.f32.mrf.mxu0
      %v4777 = vadd.f32 %v4688, %v4776
      %v4778 = vpop.f32.mrf.mxu0
      %v4779 = vadd.f32 %v4690, %v4778
      %4780 = vmatmul.bf16.gmra.mxu0 %v4523
      %v4781 = vpop.f32.mrf.mxu0
      %v4782 = vadd.f32 %v4693, %v4781
      %v4783 = vpop.f32.mrf.mxu0
      %v4784 = vadd.f32 %v4695, %v4783
      %4785 = vmatmul.bf16.gmra.mxu0 %v4526
      %v4786 = vpop.f32.mrf.mxu0
      %v4787 = vadd.f32 %v4698, %v4786
      %v4788 = vpop.f32.mrf.mxu0
      %v4789 = vadd.f32 %v4700, %v4788
      %4790 = vmatmul.bf16.gmra.mxu0 %v4529
      %v4791 = vpop.f32.mrf.mxu0
      %v4792 = vadd.f32 %v4703, %v4791
      %v4793 = vpop.f32.mrf.mxu0
      %v4794 = vadd.f32 %v4705, %v4793
      %4795 = vmatmul.bf16.gmra.mxu0 %v4532
      %v4796 = vpop.f32.mrf.mxu0
      %v4797 = vadd.f32 %v4708, %v4796
      %v4798 = vpop.f32.mrf.mxu0
      %v4799 = vadd.f32 %v4710, %v4798
      %4800 = vdwg.mxu0
      %v4801 = vmax.f32 %v4722, 0.0
      %v4802 = vmax.f32 %v4724, 0.0
      %v4803 = vmax.f32 %v4727, 0.0
      %v4804 = vmax.f32 %v4729, 0.0
      %v4805 = vmax.f32 %v4732, 0.0
      %v4806 = vmax.f32 %v4734, 0.0
      %v4807 = vmax.f32 %v4737, 0.0
      %v4808 = vmax.f32 %v4739, 0.0
      %v4809 = vmax.f32 %v4742, 0.0
      %v4810 = vmax.f32 %v4744, 0.0
      %v4811 = vmax.f32 %v4747, 0.0
      %v4812 = vmax.f32 %v4749, 0.0
      %v4813 = vmax.f32 %v4752, 0.0
      %v4814 = vmax.f32 %v4754, 0.0
      %v4815 = vmax.f32 %v4757, 0.0
      %v4816 = vmax.f32 %v4759, 0.0
      %v4817 = vmax.f32 %v4762, 0.0
      %v4818 = vmax.f32 %v4764, 0.0
      %v4819 = vmax.f32 %v4767, 0.0
      %v4820 = vmax.f32 %v4769, 0.0
      %v4821 = vmax.f32 %v4772, 0.0
      %v4822 = vmax.f32 %v4774, 0.0
      %v4823 = vmax.f32 %v4777, 0.0
      %v4824 = vmax.f32 %v4779, 0.0
      %v4825 = vmax.f32 %v4782, 0.0
      %v4826 = vmax.f32 %v4784, 0.0
      %v4827 = vmax.f32 %v4787, 0.0
      %v4828 = vmax.f32 %v4789, 0.0
      %v4829 = vmax.f32 %v4792, 0.0
      %v4830 = vmax.f32 %v4794, 0.0
      %v4831 = vmax.f32 %v4797, 0.0
      %v4832 = vmax.f32 %v4799, 0.0
      %v4833 = vpack.c.bf16 %v4802, %v4801
      %v4834 = vpack.c.bf16 %v4804, %v4803
      %v4835 = vpack.c.bf16 %v4806, %v4805
      %v4836 = vpack.c.bf16 %v4808, %v4807
      %v4837 = vpack.c.bf16 %v4810, %v4809
      %v4838 = vpack.c.bf16 %v4812, %v4811
      %v4839 = vpack.c.bf16 %v4814, %v4813
      %v4840 = vpack.c.bf16 %v4816, %v4815
      %v4841 = vpack.c.bf16 %v4818, %v4817
      %v4842 = vpack.c.bf16 %v4820, %v4819
      %v4843 = vpack.c.bf16 %v4822, %v4821
      %v4844 = vpack.c.bf16 %v4824, %v4823
      %v4845 = vpack.c.bf16 %v4826, %v4825
      %v4846 = vpack.c.bf16 %v4828, %v4827
      %v4847 = vpack.c.bf16 %v4830, %v4829
      %v4848 = vpack.c.bf16 %v4832, %v4831
      %v4849 = vld [vmem:[%s5] sm:$0xf]
      %v4850 = vld [vmem:[%s5 + $0x4] sm:$0xf]
      %v4851 = vld [vmem:[%s5 + $0x8] sm:$0xf]
      %v4852 = vld [vmem:[%s5 + $0xc] sm:$0xf]
      %v4853 = vld [vmem:[%s5 + $0x10] sm:$0xf]
      %v4854 = vld [vmem:[%s5 + $0x14] sm:$0xf]
      %v4855 = vld [vmem:[%s5 + $0x18] sm:$0xf]
      %v4856 = vld [vmem:[%s5 + $0x1c] sm:$0xf]
      %v4857 = vld [vmem:[%s5 + $0x20] sm:$0xf]
      %v4858 = vld [vmem:[%s5 + $0x24] sm:$0xf]
      %v4859 = vld [vmem:[%s5 + $0x28] sm:$0xf]
      %v4860 = vld [vmem:[%s5 + $0x2c] sm:$0xf]
      %v4861 = vld [vmem:[%s6] sm:$0x1]
      %v4863 = vperm.slane %v4861, 0
      %v4877 = vunpack.c.l.b16 %v4849
      %v4878 = vunpack.c.l.b16 %v4850
      %v4879 = vunpack.c.l.b16 %v4851
      %v4880 = vunpack.c.l.b16 %v4852
      %v4881 = vunpack.c.l.b16 %v4853
      %v4882 = vunpack.c.l.b16 %v4854
      %v4883 = vunpack.c.l.b16 %v4855
      %v4884 = vunpack.c.l.b16 %v4856
      %v4885 = vunpack.c.l.b16 %v4857
      %v4886 = vunpack.c.l.b16 %v4858
      %v4887 = vunpack.c.l.b16 %v4859
      %v4888 = vunpack.c.l.b16 %v4860
      %v4889 = vpack.c.b16 %v4878, %v4877
      %v4890 = vpack.c.b16 %v4880, %v4879
      %v4891 = vpack.c.b16 %v4882, %v4881
      %v4892 = vpack.c.b16 %v4884, %v4883
      %v4893 = vpack.c.b16 %v4886, %v4885
      %v4894 = vpack.c.b16 %v4888, %v4887
      %vm4901 = vcmask 785408
      %v4903 = vsel %vm4901, %v4833, 0
      %v4906 = vsel %vm4901, %v4834, 0
      %v4909 = vsel %vm4901, %v4835, 0
      %v4912 = vsel %vm4901, %v4836, 0
      %v4915 = vsel %vm4901, %v4837, 0
      %v4918 = vsel %vm4901, %v4838, 0
      %v4921 = vsel %vm4901, %v4839, 0
      %v4924 = vsel %vm4901, %v4840, 0
      %v4927 = vsel %vm4901, %v4841, 0
      %v4930 = vsel %vm4901, %v4842, 0
      %v4933 = vsel %vm4901, %v4843, 0
      %v4936 = vsel %vm4901, %v4844, 0
      %v4939 = vsel %vm4901, %v4845, 0
      %v4942 = vsel %vm4901, %v4846, 0
      %v4945 = vsel %vm4901, %v4847, 0
      %v4948 = vsel %vm4901, %v4848, 0
      %4950 = vmatpush.bf16.msra.mxu0 0
      %4951 = vmatpush.bf16.msra.mxu0 0
      %4952 = vmatpush.bf16.msra.mxu0 %v4894
      %4953 = vmatpush.bf16.msra.mxu0 %v4893
      %4954 = vmatpush.bf16.msra.mxu0 %v4892
      %4955 = vmatpush.bf16.msra.mxu0 %v4891
      %4956 = vmatpush.bf16.msra.mxu0 %v4890
      %4957 = vmatpush.bf16.msra.mxu0 %v4889
      %4958 = vmatmul.bf16.gmra.mxu0 %v4903
      %v4959 = vpop.f32.mrf.mxu0
      %v4960 = vadd.f32 %v4863, %v4959
      %v4961 = vpop.f32.mrf.mxu0
      %v4962 = vadd.f32 %v4863, %v4961
      %4963 = vmatmul.bf16.gmra.mxu0 %v4906
      %v4964 = vpop.f32.mrf.mxu0
      %v4965 = vadd.f32 %v4863, %v4964
      %v4966 = vpop.f32.mrf.mxu0
      %v4967 = vadd.f32 %v4863, %v4966
      %4968 = vmatmul.bf16.gmra.mxu0 %v4909
      %v4969 = vpop.f32.mrf.mxu0
      %v4970 = vadd.f32 %v4863, %v4969
      %v4971 = vpop.f32.mrf.mxu0
      %v4972 = vadd.f32 %v4863, %v4971
      %4973 = vmatmul.bf16.gmra.mxu0 %v4912
      %v4974 = vpop.f32.mrf.mxu0
      %v4975 = vadd.f32 %v4863, %v4974
      %v4976 = vpop.f32.mrf.mxu0
      %v4977 = vadd.f32 %v4863, %v4976
      %4978 = vmatmul.bf16.gmra.mxu0 %v4915
      %v4979 = vpop.f32.mrf.mxu0
      %v4980 = vadd.f32 %v4863, %v4979
      %v4981 = vpop.f32.mrf.mxu0
      %v4982 = vadd.f32 %v4863, %v4981
      %4983 = vmatmul.bf16.gmra.mxu0 %v4918
      %v4984 = vpop.f32.mrf.mxu0
      %v4985 = vadd.f32 %v4863, %v4984
      %v4986 = vpop.f32.mrf.mxu0
      %v4987 = vadd.f32 %v4863, %v4986
      %4988 = vmatmul.bf16.gmra.mxu0 %v4921
      %v4989 = vpop.f32.mrf.mxu0
      %v4990 = vadd.f32 %v4863, %v4989
      %v4991 = vpop.f32.mrf.mxu0
      %v4992 = vadd.f32 %v4863, %v4991
      %4993 = vmatmul.bf16.gmra.mxu0 %v4924
      %v4994 = vpop.f32.mrf.mxu0
      %v4995 = vadd.f32 %v4863, %v4994
      %v4996 = vpop.f32.mrf.mxu0
      %v4997 = vadd.f32 %v4863, %v4996
      %4998 = vmatmul.bf16.gmra.mxu0 %v4927
      %v4999 = vpop.f32.mrf.mxu0
      %v5000 = vadd.f32 %v4863, %v4999
      %v5001 = vpop.f32.mrf.mxu0
      %v5002 = vadd.f32 %v4863, %v5001
      %5003 = vmatmul.bf16.gmra.mxu0 %v4930
      %v5004 = vpop.f32.mrf.mxu0
      %v5005 = vadd.f32 %v4863, %v5004
      %v5006 = vpop.f32.mrf.mxu0
      %v5007 = vadd.f32 %v4863, %v5006
      %5008 = vmatmul.bf16.gmra.mxu0 %v4933
      %v5009 = vpop.f32.mrf.mxu0
      %v5010 = vadd.f32 %v4863, %v5009
      %v5011 = vpop.f32.mrf.mxu0
      %v5012 = vadd.f32 %v4863, %v5011
      %5013 = vmatmul.bf16.gmra.mxu0 %v4936
      %v5014 = vpop.f32.mrf.mxu0
      %v5015 = vadd.f32 %v4863, %v5014
      %v5016 = vpop.f32.mrf.mxu0
      %v5017 = vadd.f32 %v4863, %v5016
      %5018 = vmatmul.bf16.gmra.mxu0 %v4939
      %v5019 = vpop.f32.mrf.mxu0
      %v5020 = vadd.f32 %v4863, %v5019
      %v5021 = vpop.f32.mrf.mxu0
      %v5022 = vadd.f32 %v4863, %v5021
      %5023 = vmatmul.bf16.gmra.mxu0 %v4942
      %v5024 = vpop.f32.mrf.mxu0
      %v5025 = vadd.f32 %v4863, %v5024
      %v5026 = vpop.f32.mrf.mxu0
      %v5027 = vadd.f32 %v4863, %v5026
      %5028 = vmatmul.bf16.gmra.mxu0 %v4945
      %v5029 = vpop.f32.mrf.mxu0
      %v5030 = vadd.f32 %v4863, %v5029
      %v5031 = vpop.f32.mrf.mxu0
      %v5032 = vadd.f32 %v4863, %v5031
      %5033 = vmatmul.bf16.gmra.mxu0 %v4948
      %v5034 = vpop.f32.mrf.mxu0
      %v5035 = vadd.f32 %v4863, %v5034
      %v5036 = vpop.f32.mrf.mxu0
      %v5037 = vadd.f32 %v4863, %v5036
      %5038 = vdwg.mxu0
      %v5039 = vmax.f32 %v4960, 0.0
      %v5040 = vmax.f32 %v4962, 0.0
      %v5041 = vmax.f32 %v4965, 0.0
      %v5042 = vmax.f32 %v4967, 0.0
      %v5043 = vmax.f32 %v4970, 0.0
      %v5044 = vmax.f32 %v4972, 0.0
      %v5045 = vmax.f32 %v4975, 0.0
      %v5046 = vmax.f32 %v4977, 0.0
      %v5047 = vmax.f32 %v4980, 0.0
      %v5048 = vmax.f32 %v4982, 0.0
      %v5049 = vmax.f32 %v4985, 0.0
      %v5050 = vmax.f32 %v4987, 0.0
      %v5051 = vmax.f32 %v4990, 0.0
      %v5052 = vmax.f32 %v4992, 0.0
      %v5053 = vmax.f32 %v4995, 0.0
      %v5054 = vmax.f32 %v4997, 0.0
      %v5055 = vmax.f32 %v5000, 0.0
      %v5056 = vmax.f32 %v5002, 0.0
      %v5057 = vmax.f32 %v5005, 0.0
      %v5058 = vmax.f32 %v5007, 0.0
      %v5059 = vmax.f32 %v5010, 0.0
      %v5060 = vmax.f32 %v5012, 0.0
      %v5061 = vmax.f32 %v5015, 0.0
      %v5062 = vmax.f32 %v5017, 0.0
      %v5063 = vmax.f32 %v5020, 0.0
      %v5064 = vmax.f32 %v5022, 0.0
      %v5065 = vmax.f32 %v5025, 0.0
      %v5066 = vmax.f32 %v5027, 0.0
      %v5067 = vmax.f32 %v5030, 0.0
      %v5068 = vmax.f32 %v5032, 0.0
      %v5069 = vmax.f32 %v5035, 0.0
      %v5070 = vmax.f32 %v5037, 0.0
      %v5071 = vpack.c.bf16 %v5040, %v5039
      %v5072 = vpack.c.bf16 %v5042, %v5041
      %v5073 = vpack.c.bf16 %v5044, %v5043
      %v5074 = vpack.c.bf16 %v5046, %v5045
      %v5075 = vpack.c.bf16 %v5048, %v5047
      %v5076 = vpack.c.bf16 %v5050, %v5049
      %v5077 = vpack.c.bf16 %v5052, %v5051
      %v5078 = vpack.c.bf16 %v5054, %v5053
      %v5079 = vpack.c.bf16 %v5056, %v5055
      %v5080 = vpack.c.bf16 %v5058, %v5057
      %v5081 = vpack.c.bf16 %v5060, %v5059
      %v5082 = vpack.c.bf16 %v5062, %v5061
      %v5083 = vpack.c.bf16 %v5064, %v5063
      %v5084 = vpack.c.bf16 %v5066, %v5065
      %v5085 = vpack.c.bf16 %v5068, %v5067
      %v5086 = vpack.c.bf16 %v5070, %v5069
      %v5087 = vld [vmem:[%s7] sm:$0xf]
      %v5088 = vld [vmem:[%s7 + $0x4] sm:$0xf]
      %v5089 = vld [vmem:[%s7 + $0x8] sm:$0xf]
      %v5090 = vld [vmem:[%s7 + $0xc] sm:$0xf]
      %v5091 = vld [vmem:[%s8] sm:$0x1]
      %v5093 = vperm.slane %v5091, 0
      %v5099 = vunpack.c.l.b16 %v5087
      %v5100 = vunpack.c.l.b16 %v5088
      %v5101 = vunpack.c.l.b16 %v5089
      %v5102 = vunpack.c.l.b16 %v5090
      %v5103 = vpack.c.b16 %v5100, %v5099
      %v5104 = vpack.c.b16 %v5102, %v5101
      %v5108 = vsel %vm4485, %v5071, 0
      %v5111 = vsel %vm4485, %v5072, 0
      %v5114 = vsel %vm4485, %v5073, 0
      %v5117 = vsel %vm4485, %v5074, 0
      %v5120 = vsel %vm4485, %v5075, 0
      %v5123 = vsel %vm4485, %v5076, 0
      %v5126 = vsel %vm4485, %v5077, 0
      %v5129 = vsel %vm4485, %v5078, 0
      %v5132 = vsel %vm4485, %v5079, 0
      %v5135 = vsel %vm4485, %v5080, 0
      %v5138 = vsel %vm4485, %v5081, 0
      %v5141 = vsel %vm4485, %v5082, 0
      %v5144 = vsel %vm4485, %v5083, 0
      %v5147 = vsel %vm4485, %v5084, 0
      %v5150 = vsel %vm4485, %v5085, 0
      %v5153 = vsel %vm4485, %v5086, 0
      %5155 = vmatpush.bf16.msra.mxu0 0
      %5156 = vmatpush.bf16.msra.mxu0 0
      %5157 = vmatpush.bf16.msra.mxu0 0
      %5158 = vmatpush.bf16.msra.mxu0 0
      %5159 = vmatpush.bf16.msra.mxu0 0
      %5160 = vmatpush.bf16.msra.mxu0 0
      %5161 = vmatpush.bf16.msra.mxu0 %v5104
      %5162 = vmatpush.bf16.msra.mxu0 %v5103
      %5163 = vmatmul.bf16.gmra.mxu0 %v5108
      %v5164 = vpop.f32.mrf.mxu0
      %v5165 = vadd.f32 %v5093, %v5164
      %v5166 = vpop.f32.mrf.mxu0
      %v5167 = vadd.f32 %v5093, %v5166
      %5168 = vmatmul.bf16.gmra.mxu0 %v5111
      %v5169 = vpop.f32.mrf.mxu0
      %v5170 = vadd.f32 %v5093, %v5169
      %v5171 = vpop.f32.mrf.mxu0
      %v5172 = vadd.f32 %v5093, %v5171
      %5173 = vmatmul.bf16.gmra.mxu0 %v5114
      %v5174 = vpop.f32.mrf.mxu0
      %v5175 = vadd.f32 %v5093, %v5174
      %v5176 = vpop.f32.mrf.mxu0
      %v5177 = vadd.f32 %v5093, %v5176
      %5178 = vmatmul.bf16.gmra.mxu0 %v5117
      %v5179 = vpop.f32.mrf.mxu0
      %v5180 = vadd.f32 %v5093, %v5179
      %v5181 = vpop.f32.mrf.mxu0
      %v5182 = vadd.f32 %v5093, %v5181
      %5183 = vmatmul.bf16.gmra.mxu0 %v5120
      %v5184 = vpop.f32.mrf.mxu0
      %v5185 = vadd.f32 %v5093, %v5184
      %v5186 = vpop.f32.mrf.mxu0
      %v5187 = vadd.f32 %v5093, %v5186
      %5188 = vmatmul.bf16.gmra.mxu0 %v5123
      %v5189 = vpop.f32.mrf.mxu0
      %v5190 = vadd.f32 %v5093, %v5189
      %v5191 = vpop.f32.mrf.mxu0
      %v5192 = vadd.f32 %v5093, %v5191
      %5193 = vmatmul.bf16.gmra.mxu0 %v5126
      %v5194 = vpop.f32.mrf.mxu0
      %v5195 = vadd.f32 %v5093, %v5194
      %v5196 = vpop.f32.mrf.mxu0
      %v5197 = vadd.f32 %v5093, %v5196
      %5198 = vmatmul.bf16.gmra.mxu0 %v5129
      %v5199 = vpop.f32.mrf.mxu0
      %v5200 = vadd.f32 %v5093, %v5199
      %v5201 = vpop.f32.mrf.mxu0
      %v5202 = vadd.f32 %v5093, %v5201
      %5203 = vmatmul.bf16.gmra.mxu0 %v5132
      %v5204 = vpop.f32.mrf.mxu0
      %v5205 = vadd.f32 %v5093, %v5204
      %v5206 = vpop.f32.mrf.mxu0
      %v5207 = vadd.f32 %v5093, %v5206
      %5208 = vmatmul.bf16.gmra.mxu0 %v5135
      %v5209 = vpop.f32.mrf.mxu0
      %v5210 = vadd.f32 %v5093, %v5209
      %v5211 = vpop.f32.mrf.mxu0
      %v5212 = vadd.f32 %v5093, %v5211
      %5213 = vmatmul.bf16.gmra.mxu0 %v5138
      %v5214 = vpop.f32.mrf.mxu0
      %v5215 = vadd.f32 %v5093, %v5214
      %v5216 = vpop.f32.mrf.mxu0
      %v5217 = vadd.f32 %v5093, %v5216
      %5218 = vmatmul.bf16.gmra.mxu0 %v5141
      %v5219 = vpop.f32.mrf.mxu0
      %v5220 = vadd.f32 %v5093, %v5219
      %v5221 = vpop.f32.mrf.mxu0
      %v5222 = vadd.f32 %v5093, %v5221
      %5223 = vmatmul.bf16.gmra.mxu0 %v5144
      %v5224 = vpop.f32.mrf.mxu0
      %v5225 = vadd.f32 %v5093, %v5224
      %v5226 = vpop.f32.mrf.mxu0
      %v5227 = vadd.f32 %v5093, %v5226
      %5228 = vmatmul.bf16.gmra.mxu0 %v5147
      %v5229 = vpop.f32.mrf.mxu0
      %v5230 = vadd.f32 %v5093, %v5229
      %v5231 = vpop.f32.mrf.mxu0
      %v5232 = vadd.f32 %v5093, %v5231
      %5233 = vmatmul.bf16.gmra.mxu0 %v5150
      %v5234 = vpop.f32.mrf.mxu0
      %v5235 = vadd.f32 %v5093, %v5234
      %v5236 = vpop.f32.mrf.mxu0
      %v5237 = vadd.f32 %v5093, %v5236
      %5238 = vmatmul.bf16.gmra.mxu0 %v5153
      %v5239 = vpop.f32.mrf.mxu0
      %v5240 = vadd.f32 %v5093, %v5239
      %v5241 = vpop.f32.mrf.mxu0
      %v5242 = vadd.f32 %v5093, %v5241
      %5243 = vdwg.mxu0
      %vm5244 = vcmask 15360
      %5245 = vst.msk [vmem:[%s596] sm:$0xff] %vm5244, %v5165
      %5246 = vst.msk [vmem:[%s596 + $0x8] sm:$0xff] %vm5244, %v5167
      %5247 = vst.msk [vmem:[%s596 + $0x10] sm:$0xff] %vm5244, %v5170
      %5248 = vst.msk [vmem:[%s596 + $0x18] sm:$0xff] %vm5244, %v5172
      %5249 = vst.msk [vmem:[%s596 + $0x20] sm:$0xff] %vm5244, %v5175
      %5250 = vst.msk [vmem:[%s596 + $0x28] sm:$0xff] %vm5244, %v5177
      %5251 = vst.msk [vmem:[%s596 + $0x30] sm:$0xff] %vm5244, %v5180
      %5252 = vst.msk [vmem:[%s596 + $0x38] sm:$0xff] %vm5244, %v5182
      %5253 = vst.msk [vmem:[%s596 + $0x40] sm:$0xff] %vm5244, %v5185
      %5254 = vst.msk [vmem:[%s596 + $0x48] sm:$0xff] %vm5244, %v5187
      %5255 = vst.msk [vmem:[%s596 + $0x50] sm:$0xff] %vm5244, %v5190
      %5256 = vst.msk [vmem:[%s596 + $0x58] sm:$0xff] %vm5244, %v5192
      %5257 = vst.msk [vmem:[%s596 + $0x60] sm:$0xff] %vm5244, %v5195
      %5258 = vst.msk [vmem:[%s596 + $0x68] sm:$0xff] %vm5244, %v5197
      %5259 = vst.msk [vmem:[%s596 + $0x70] sm:$0xff] %vm5244, %v5200
      %5260 = vst.msk [vmem:[%s596 + $0x78] sm:$0xff] %vm5244, %v5202
      %5261 = vst.msk [vmem:[%s596 + $0x80] sm:$0xff] %vm5244, %v5205
      %5262 = vst.msk [vmem:[%s596 + $0x88] sm:$0xff] %vm5244, %v5207
      %5263 = vst.msk [vmem:[%s596 + $0x90] sm:$0xff] %vm5244, %v5210
      %5264 = vst.msk [vmem:[%s596 + $0x98] sm:$0xff] %vm5244, %v5212
      %5265 = vst.msk [vmem:[%s596 + $0xa0] sm:$0xff] %vm5244, %v5215
      %5266 = vst.msk [vmem:[%s596 + $0xa8] sm:$0xff] %vm5244, %v5217
      %5267 = vst.msk [vmem:[%s596 + $0xb0] sm:$0xff] %vm5244, %v5220
      %5268 = vst.msk [vmem:[%s596 + $0xb8] sm:$0xff] %vm5244, %v5222
      %5269 = vst.msk [vmem:[%s596 + $0xc0] sm:$0xff] %vm5244, %v5225
      %5270 = vst.msk [vmem:[%s596 + $0xc8] sm:$0xff] %vm5244, %v5227
      %5271 = vst.msk [vmem:[%s596 + $0xd0] sm:$0xff] %vm5244, %v5230
      %5272 = vst.msk [vmem:[%s596 + $0xd8] sm:$0xff] %vm5244, %v5232
      %5273 = vst.msk [vmem:[%s596 + $0xe0] sm:$0xff] %vm5244, %v5235
      %5274 = vst.msk [vmem:[%s596 + $0xe8] sm:$0xff] %vm5244, %v5237
      %5275 = vst.msk [vmem:[%s596 + $0xf0] sm:$0xff] %vm5244, %v5240
      %5276 = vst.msk [vmem:[%s596 + $0xf8] sm:$0xff] %vm5244, %v5242
      %v5277 = vld [vmem:[%s9] sm:$0xf]
      %v5278 = vld [vmem:[%s9 + $0x4] sm:$0xf]
      %v5279 = vld [vmem:[%s9 + $0x8] sm:$0xf]
      %v5280 = vld [vmem:[%s9 + $0xc] sm:$0xf]
      %v5281 = vld [vmem:[%s10] sm:$0x1]
      %v5283 = vperm.slane %v5281, 0
      %v5289 = vunpack.c.l.b16 %v5277
      %v5290 = vunpack.c.l.b16 %v5278
      %v5291 = vunpack.c.l.b16 %v5279
      %v5292 = vunpack.c.l.b16 %v5280
      %v5293 = vpack.c.b16 %v5290, %v5289
      %v5294 = vpack.c.b16 %v5292, %v5291
      %5297 = vmatpush.bf16.msra.mxu0 0
      %5298 = vmatpush.bf16.msra.mxu0 0
      %5299 = vmatpush.bf16.msra.mxu0 0
      %5300 = vmatpush.bf16.msra.mxu0 0
      %5301 = vmatpush.bf16.msra.mxu0 0
      %5302 = vmatpush.bf16.msra.mxu0 0
      %5303 = vmatpush.bf16.msra.mxu0 %v5294
      %5304 = vmatpush.bf16.msra.mxu0 %v5293
      %5305 = vmatmul.bf16.gmra.mxu0 %v5108
      %v5306 = vpop.f32.mrf.mxu0
      %v5307 = vadd.f32 %v5283, %v5306
      %v5308 = vpop.f32.mrf.mxu0
      %v5309 = vadd.f32 %v5283, %v5308
      %5310 = vmatmul.bf16.gmra.mxu0 %v5111
      %v5311 = vpop.f32.mrf.mxu0
      %v5312 = vadd.f32 %v5283, %v5311
      %v5313 = vpop.f32.mrf.mxu0
      %v5314 = vadd.f32 %v5283, %v5313
      %5315 = vmatmul.bf16.gmra.mxu0 %v5114
      %v5316 = vpop.f32.mrf.mxu0
      %v5317 = vadd.f32 %v5283, %v5316
      %v5318 = vpop.f32.mrf.mxu0
      %v5319 = vadd.f32 %v5283, %v5318
      %5320 = vmatmul.bf16.gmra.mxu0 %v5117
      %v5321 = vpop.f32.mrf.mxu0
      %v5322 = vadd.f32 %v5283, %v5321
      %v5323 = vpop.f32.mrf.mxu0
      %v5324 = vadd.f32 %v5283, %v5323
      %5325 = vmatmul.bf16.gmra.mxu0 %v5120
      %v5326 = vpop.f32.mrf.mxu0
      %v5327 = vadd.f32 %v5283, %v5326
      %v5328 = vpop.f32.mrf.mxu0
      %v5329 = vadd.f32 %v5283, %v5328
      %5330 = vmatmul.bf16.gmra.mxu0 %v5123
      %v5331 = vpop.f32.mrf.mxu0
      %v5332 = vadd.f32 %v5283, %v5331
      %v5333 = vpop.f32.mrf.mxu0
      %v5334 = vadd.f32 %v5283, %v5333
      %5335 = vmatmul.bf16.gmra.mxu0 %v5126
      %v5336 = vpop.f32.mrf.mxu0
      %v5337 = vadd.f32 %v5283, %v5336
      %v5338 = vpop.f32.mrf.mxu0
      %v5339 = vadd.f32 %v5283, %v5338
      %5340 = vmatmul.bf16.gmra.mxu0 %v5129
      %v5341 = vpop.f32.mrf.mxu0
      %v5342 = vadd.f32 %v5283, %v5341
      %v5343 = vpop.f32.mrf.mxu0
      %v5344 = vadd.f32 %v5283, %v5343
      %5345 = vmatmul.bf16.gmra.mxu0 %v5132
      %v5346 = vpop.f32.mrf.mxu0
      %v5347 = vadd.f32 %v5283, %v5346
      %v5348 = vpop.f32.mrf.mxu0
      %v5349 = vadd.f32 %v5283, %v5348
      %5350 = vmatmul.bf16.gmra.mxu0 %v5135
      %v5351 = vpop.f32.mrf.mxu0
      %v5352 = vadd.f32 %v5283, %v5351
      %v5353 = vpop.f32.mrf.mxu0
      %v5354 = vadd.f32 %v5283, %v5353
      %5355 = vmatmul.bf16.gmra.mxu0 %v5138
      %v5356 = vpop.f32.mrf.mxu0
      %v5357 = vadd.f32 %v5283, %v5356
      %v5358 = vpop.f32.mrf.mxu0
      %v5359 = vadd.f32 %v5283, %v5358
      %5360 = vmatmul.bf16.gmra.mxu0 %v5141
      %v5361 = vpop.f32.mrf.mxu0
      %v5362 = vadd.f32 %v5283, %v5361
      %v5363 = vpop.f32.mrf.mxu0
      %v5364 = vadd.f32 %v5283, %v5363
      %5365 = vmatmul.bf16.gmra.mxu0 %v5144
      %v5366 = vpop.f32.mrf.mxu0
      %v5367 = vadd.f32 %v5283, %v5366
      %v5368 = vpop.f32.mrf.mxu0
      %v5369 = vadd.f32 %v5283, %v5368
      %5370 = vmatmul.bf16.gmra.mxu0 %v5147
      %v5371 = vpop.f32.mrf.mxu0
      %v5372 = vadd.f32 %v5283, %v5371
      %v5373 = vpop.f32.mrf.mxu0
      %v5374 = vadd.f32 %v5283, %v5373
      %5375 = vmatmul.bf16.gmra.mxu0 %v5150
      %v5376 = vpop.f32.mrf.mxu0
      %v5377 = vadd.f32 %v5283, %v5376
      %v5378 = vpop.f32.mrf.mxu0
      %v5379 = vadd.f32 %v5283, %v5378
      %5380 = vmatmul.bf16.gmra.mxu0 %v5153
      %v5381 = vpop.f32.mrf.mxu0
      %v5382 = vadd.f32 %v5283, %v5381
      %v5383 = vpop.f32.mrf.mxu0
      %v5384 = vadd.f32 %v5283, %v5383
      %5385 = vdwg.mxu0
      %v5386 = vmax.f32 %v5307, 0.0
      %v5387 = vmax.f32 %v5309, 0.0
      %v5388 = vmax.f32 %v5312, 0.0
      %v5389 = vmax.f32 %v5314, 0.0
      %v5390 = vmax.f32 %v5317, 0.0
      %v5391 = vmax.f32 %v5319, 0.0
      %v5392 = vmax.f32 %v5322, 0.0
      %v5393 = vmax.f32 %v5324, 0.0
      %v5394 = vmax.f32 %v5327, 0.0
      %v5395 = vmax.f32 %v5329, 0.0
      %v5396 = vmax.f32 %v5332, 0.0
      %v5397 = vmax.f32 %v5334, 0.0
      %v5398 = vmax.f32 %v5337, 0.0
      %v5399 = vmax.f32 %v5339, 0.0
      %v5400 = vmax.f32 %v5342, 0.0
      %v5401 = vmax.f32 %v5344, 0.0
      %v5402 = vmax.f32 %v5347, 0.0
      %v5403 = vmax.f32 %v5349, 0.0
      %v5404 = vmax.f32 %v5352, 0.0
      %v5405 = vmax.f32 %v5354, 0.0
      %v5406 = vmax.f32 %v5357, 0.0
      %v5407 = vmax.f32 %v5359, 0.0
      %v5408 = vmax.f32 %v5362, 0.0
      %v5409 = vmax.f32 %v5364, 0.0
      %v5410 = vmax.f32 %v5367, 0.0
      %v5411 = vmax.f32 %v5369, 0.0
      %v5412 = vmax.f32 %v5372, 0.0
      %v5413 = vmax.f32 %v5374, 0.0
      %v5414 = vmax.f32 %v5377, 0.0
      %v5415 = vmax.f32 %v5379, 0.0
      %v5416 = vmax.f32 %v5382, 0.0
      %v5417 = vmax.f32 %v5384, 0.0
      %v5418 = vpack.c.bf16 %v5387, %v5386
      %v5419 = vpack.c.bf16 %v5389, %v5388
      %v5420 = vpack.c.bf16 %v5391, %v5390
      %v5421 = vpack.c.bf16 %v5393, %v5392
      %v5422 = vpack.c.bf16 %v5395, %v5394
      %v5423 = vpack.c.bf16 %v5397, %v5396
      %v5424 = vpack.c.bf16 %v5399, %v5398
      %v5425 = vpack.c.bf16 %v5401, %v5400
      %v5426 = vpack.c.bf16 %v5403, %v5402
      %v5427 = vpack.c.bf16 %v5405, %v5404
      %v5428 = vpack.c.bf16 %v5407, %v5406
      %v5429 = vpack.c.bf16 %v5409, %v5408
      %v5430 = vpack.c.bf16 %v5411, %v5410
      %v5431 = vpack.c.bf16 %v5413, %v5412
      %v5432 = vpack.c.bf16 %v5415, %v5414
      %v5433 = vpack.c.bf16 %v5417, %v5416
      %v5434 = vld [vmem:[%s11] sm:$0xf]
      %v5435 = vld [vmem:[%s11 + $0x4] sm:$0xf]
      %v5436 = vld [vmem:[%s11 + $0x8] sm:$0xf]
      %v5437 = vld [vmem:[%s11 + $0xc] sm:$0xf]
      %v5438 = vld [vmem:[%s12] sm:$0x1]
      %v5440 = vperm.slane %v5438, 0
      %v5446 = vunpack.c.l.b16 %v5434
      %v5447 = vunpack.c.l.b16 %v5435
      %v5448 = vunpack.c.l.b16 %v5436
      %v5449 = vunpack.c.l.b16 %v5437
      %v5450 = vpack.c.b16 %v5447, %v5446
      %v5451 = vpack.c.b16 %v5449, %v5448
      %v5455 = vsel %vm4485, %v5418, 0
      %v5458 = vsel %vm4485, %v5419, 0
      %v5461 = vsel %vm4485, %v5420, 0
      %v5464 = vsel %vm4485, %v5421, 0
      %v5467 = vsel %vm4485, %v5422, 0
      %v5470 = vsel %vm4485, %v5423, 0
      %v5473 = vsel %vm4485, %v5424, 0
      %v5476 = vsel %vm4485, %v5425, 0
      %v5479 = vsel %vm4485, %v5426, 0
      %v5482 = vsel %vm4485, %v5427, 0
      %v5485 = vsel %vm4485, %v5428, 0
      %v5488 = vsel %vm4485, %v5429, 0
      %v5491 = vsel %vm4485, %v5430, 0
      %v5494 = vsel %vm4485, %v5431, 0
      %v5497 = vsel %vm4485, %v5432, 0
      %v5500 = vsel %vm4485, %v5433, 0
      %5502 = vmatpush.bf16.msra.mxu0 0
      %5503 = vmatpush.bf16.msra.mxu0 0
      %5504 = vmatpush.bf16.msra.mxu0 0
      %5505 = vmatpush.bf16.msra.mxu0 0
      %5506 = vmatpush.bf16.msra.mxu0 0
      %5507 = vmatpush.bf16.msra.mxu0 0
      %5508 = vmatpush.bf16.msra.mxu0 %v5451
      %5509 = vmatpush.bf16.msra.mxu0 %v5450
      %5510 = vmatmul.bf16.gmra.mxu0 %v5455
      %v5511 = vpop.f32.mrf.mxu0
      %v5512 = vadd.f32 %v5440, %v5511
      %v5513 = vpop.f32.mrf.mxu0
      %v5514 = vadd.f32 %v5440, %v5513
      %5515 = vmatmul.bf16.gmra.mxu0 %v5458
      %v5516 = vpop.f32.mrf.mxu0
      %v5517 = vadd.f32 %v5440, %v5516
      %v5518 = vpop.f32.mrf.mxu0
      %v5519 = vadd.f32 %v5440, %v5518
      %5520 = vmatmul.bf16.gmra.mxu0 %v5461
      %v5521 = vpop.f32.mrf.mxu0
      %v5522 = vadd.f32 %v5440, %v5521
      %v5523 = vpop.f32.mrf.mxu0
      %v5524 = vadd.f32 %v5440, %v5523
      %5525 = vmatmul.bf16.gmra.mxu0 %v5464
      %v5526 = vpop.f32.mrf.mxu0
      %v5527 = vadd.f32 %v5440, %v5526
      %v5528 = vpop.f32.mrf.mxu0
      %v5529 = vadd.f32 %v5440, %v5528
      %5530 = vmatmul.bf16.gmra.mxu0 %v5467
      %v5531 = vpop.f32.mrf.mxu0
      %v5532 = vadd.f32 %v5440, %v5531
      %v5533 = vpop.f32.mrf.mxu0
      %v5534 = vadd.f32 %v5440, %v5533
      %5535 = vmatmul.bf16.gmra.mxu0 %v5470
      %v5536 = vpop.f32.mrf.mxu0
      %v5537 = vadd.f32 %v5440, %v5536
      %v5538 = vpop.f32.mrf.mxu0
      %v5539 = vadd.f32 %v5440, %v5538
      %5540 = vmatmul.bf16.gmra.mxu0 %v5473
      %v5541 = vpop.f32.mrf.mxu0
      %v5542 = vadd.f32 %v5440, %v5541
      %v5543 = vpop.f32.mrf.mxu0
      %v5544 = vadd.f32 %v5440, %v5543
      %5545 = vmatmul.bf16.gmra.mxu0 %v5476
      %v5546 = vpop.f32.mrf.mxu0
      %v5547 = vadd.f32 %v5440, %v5546
      %v5548 = vpop.f32.mrf.mxu0
      %v5549 = vadd.f32 %v5440, %v5548
      %5550 = vmatmul.bf16.gmra.mxu0 %v5479
      %v5551 = vpop.f32.mrf.mxu0
      %v5552 = vadd.f32 %v5440, %v5551
      %v5553 = vpop.f32.mrf.mxu0
      %v5554 = vadd.f32 %v5440, %v5553
      %5555 = vmatmul.bf16.gmra.mxu0 %v5482
      %v5556 = vpop.f32.mrf.mxu0
      %v5557 = vadd.f32 %v5440, %v5556
      %v5558 = vpop.f32.mrf.mxu0
      %v5559 = vadd.f32 %v5440, %v5558
      %5560 = vmatmul.bf16.gmra.mxu0 %v5485
      %v5561 = vpop.f32.mrf.mxu0
      %v5562 = vadd.f32 %v5440, %v5561
      %v5563 = vpop.f32.mrf.mxu0
      %v5564 = vadd.f32 %v5440, %v5563
      %5565 = vmatmul.bf16.gmra.mxu0 %v5488
      %v5566 = vpop.f32.mrf.mxu0
      %v5567 = vadd.f32 %v5440, %v5566
      %v5568 = vpop.f32.mrf.mxu0
      %v5569 = vadd.f32 %v5440, %v5568
      %5570 = vmatmul.bf16.gmra.mxu0 %v5491
      %v5571 = vpop.f32.mrf.mxu0
      %v5572 = vadd.f32 %v5440, %v5571
      %v5573 = vpop.f32.mrf.mxu0
      %v5574 = vadd.f32 %v5440, %v5573
      %5575 = vmatmul.bf16.gmra.mxu0 %v5494
      %v5576 = vpop.f32.mrf.mxu0
      %v5577 = vadd.f32 %v5440, %v5576
      %v5578 = vpop.f32.mrf.mxu0
      %v5579 = vadd.f32 %v5440, %v5578
      %5580 = vmatmul.bf16.gmra.mxu0 %v5497
      %v5581 = vpop.f32.mrf.mxu0
      %v5582 = vadd.f32 %v5440, %v5581
      %v5583 = vpop.f32.mrf.mxu0
      %v5584 = vadd.f32 %v5440, %v5583
      %5585 = vmatmul.bf16.gmra.mxu0 %v5500
      %v5586 = vpop.f32.mrf.mxu0
      %v5587 = vadd.f32 %v5440, %v5586
      %v5588 = vpop.f32.mrf.mxu0
      %v5589 = vadd.f32 %v5440, %v5588
      %5590 = vdwg.mxu0
      %v5591 = vmax.f32 %v5512, 0.0
      %v5592 = vmax.f32 %v5514, 0.0
      %v5593 = vmax.f32 %v5517, 0.0
      %v5594 = vmax.f32 %v5519, 0.0
      %v5595 = vmax.f32 %v5522, 0.0
      %v5596 = vmax.f32 %v5524, 0.0
      %v5597 = vmax.f32 %v5527, 0.0
      %v5598 = vmax.f32 %v5529, 0.0
      %v5599 = vmax.f32 %v5532, 0.0
      %v5600 = vmax.f32 %v5534, 0.0
      %v5601 = vmax.f32 %v5537, 0.0
      %v5602 = vmax.f32 %v5539, 0.0
      %v5603 = vmax.f32 %v5542, 0.0
      %v5604 = vmax.f32 %v5544, 0.0
      %v5605 = vmax.f32 %v5547, 0.0
      %v5606 = vmax.f32 %v5549, 0.0
      %v5607 = vmax.f32 %v5552, 0.0
      %v5608 = vmax.f32 %v5554, 0.0
      %v5609 = vmax.f32 %v5557, 0.0
      %v5610 = vmax.f32 %v5559, 0.0
      %v5611 = vmax.f32 %v5562, 0.0
      %v5612 = vmax.f32 %v5564, 0.0
      %v5613 = vmax.f32 %v5567, 0.0
      %v5614 = vmax.f32 %v5569, 0.0
      %v5615 = vmax.f32 %v5572, 0.0
      %v5616 = vmax.f32 %v5574, 0.0
      %v5617 = vmax.f32 %v5577, 0.0
      %v5618 = vmax.f32 %v5579, 0.0
      %v5619 = vmax.f32 %v5582, 0.0
      %v5620 = vmax.f32 %v5584, 0.0
      %v5621 = vmax.f32 %v5587, 0.0
      %v5622 = vmax.f32 %v5589, 0.0
      %v5623 = vpack.c.bf16 %v5592, %v5591
      %v5624 = vpack.c.bf16 %v5594, %v5593
      %v5625 = vpack.c.bf16 %v5596, %v5595
      %v5626 = vpack.c.bf16 %v5598, %v5597
      %v5627 = vpack.c.bf16 %v5600, %v5599
      %v5628 = vpack.c.bf16 %v5602, %v5601
      %v5629 = vpack.c.bf16 %v5604, %v5603
      %v5630 = vpack.c.bf16 %v5606, %v5605
      %v5631 = vpack.c.bf16 %v5608, %v5607
      %v5632 = vpack.c.bf16 %v5610, %v5609
      %v5633 = vpack.c.bf16 %v5612, %v5611
      %v5634 = vpack.c.bf16 %v5614, %v5613
      %v5635 = vpack.c.bf16 %v5616, %v5615
      %v5636 = vpack.c.bf16 %v5618, %v5617
      %v5637 = vpack.c.bf16 %v5620, %v5619
      %v5638 = vpack.c.bf16 %v5622, %v5621
      %v5639 = vld [vmem:[%s13] sm:$0xff]
      %v5640 = vld [vmem:[%s13 + $0x8] sm:$0xf]
      %v5641 = vld [vmem:[%s13 + $0xc] sm:$0xff]
      %v5642 = vld [vmem:[%s13 + $0x14] sm:$0xf]
      %v5643 = vld [vmem:[%s13 + $0x18] sm:$0xff]
      %v5644 = vld [vmem:[%s13 + $0x20] sm:$0xf]
      %v5645 = vld [vmem:[%s13 + $0x24] sm:$0xff]
      %v5646 = vld [vmem:[%s13 + $0x2c] sm:$0xf]
      %v5647 = vld [vmem:[%s13 + $0x30] sm:$0xff]
      %v5648 = vld [vmem:[%s13 + $0x38] sm:$0xf]
      %v5649 = vld [vmem:[%s13 + $0x3c] sm:$0xff]
      %v5650 = vld [vmem:[%s13 + $0x44] sm:$0xf]
      %v5651 = vld [vmem:[%s13 + $0x48] sm:$0xff]
      %v5652 = vld [vmem:[%s13 + $0x50] sm:$0xf]
      %v5653 = vld [vmem:[%s13 + $0x54] sm:$0xff]
      %v5654 = vld [vmem:[%s13 + $0x5c] sm:$0xf]
      %v5655 = vld [vmem:[%s13 + $0x60] sm:$0xff]
      %v5656 = vld [vmem:[%s13 + $0x68] sm:$0xf]
      %v5657 = vld [vmem:[%s13 + $0x6c] sm:$0xff]
      %v5658 = vld [vmem:[%s13 + $0x74] sm:$0xf]
      %v5659 = vld [vmem:[%s13 + $0x78] sm:$0xff]
      %v5660 = vld [vmem:[%s13 + $0x80] sm:$0xf]
      %v5661 = vld [vmem:[%s13 + $0x84] sm:$0xff]
      %v5662 = vld [vmem:[%s13 + $0x8c] sm:$0xf]
      %v5663 = vld [vmem:[%s14] sm:$0x7]
      %v5665 = vperm.slane %v5663, 0
      %v5666 = vperm.slane %v5663, 1
      %v5667 = vperm.slane %v5663, 2
      %v5695 = vunpack.c.l.b16 %v5639
      %v5696 = vunpack.c.h.b16 %v5639
      %v5697 = vunpack.c.l.b16 %v5640
      %v5698 = vunpack.c.l.b16 %v5641
      %v5699 = vunpack.c.h.b16 %v5641
      %v5700 = vunpack.c.l.b16 %v5642
      %v5701 = vunpack.c.l.b16 %v5643
      %v5702 = vunpack.c.h.b16 %v5643
      %v5703 = vunpack.c.l.b16 %v5644
      %v5704 = vunpack.c.l.b16 %v5645
      %v5705 = vunpack.c.h.b16 %v5645
      %v5706 = vunpack.c.l.b16 %v5646
      %v5707 = vunpack.c.l.b16 %v5647
      %v5708 = vunpack.c.h.b16 %v5647
      %v5709 = vunpack.c.l.b16 %v5648
      %v5710 = vunpack.c.l.b16 %v5649
      %v5711 = vunpack.c.h.b16 %v5649
      %v5712 = vunpack.c.l.b16 %v5650
      %v5713 = vunpack.c.l.b16 %v5651
      %v5714 = vunpack.c.h.b16 %v5651
      %v5715 = vunpack.c.l.b16 %v5652
      %v5716 = vunpack.c.l.b16 %v5653
      %v5717 = vunpack.c.h.b16 %v5653
      %v5718 = vunpack.c.l.b16 %v5654
      %v5719 = vunpack.c.l.b16 %v5655
      %v5720 = vunpack.c.h.b16 %v5655
      %v5721 = vunpack.c.l.b16 %v5656
      %v5722 = vunpack.c.l.b16 %v5657
      %v5723 = vunpack.c.h.b16 %v5657
      %v5724 = vunpack.c.l.b16 %v5658
      %v5725 = vunpack.c.l.b16 %v5659
      %v5726 = vunpack.c.h.b16 %v5659
      %v5727 = vunpack.c.l.b16 %v5660
      %v5728 = vunpack.c.l.b16 %v5661
      %v5729 = vunpack.c.h.b16 %v5661
      %v5730 = vunpack.c.l.b16 %v5662
      %v5731 = vpack.c.b16 %v5698, %v5695
      %v5732 = vpack.c.b16 %v5699, %v5696
      %v5733 = vpack.c.b16 %v5700, %v5697
      %v5734 = vpack.c.b16 %v5704, %v5701
      %v5735 = vpack.c.b16 %v5705, %v5702
      %v5736 = vpack.c.b16 %v5706, %v5703
      %v5737 = vpack.c.b16 %v5710, %v5707
      %v5738 = vpack.c.b16 %v5711, %v5708
      %v5739 = vpack.c.b16 %v5712, %v5709
      %v5740 = vpack.c.b16 %v5716, %v5713
      %v5741 = vpack.c.b16 %v5717, %v5714
      %v5742 = vpack.c.b16 %v5718, %v5715
      %v5743 = vpack.c.b16 %v5722, %v5719
      %v5744 = vpack.c.b16 %v5723, %v5720
      %v5745 = vpack.c.b16 %v5724, %v5721
      %v5746 = vpack.c.b16 %v5728, %v5725
      %v5747 = vpack.c.b16 %v5729, %v5726
      %v5748 = vpack.c.b16 %v5730, %v5727
      %v5768 = vsel %vm4901, %v5623, 0
      %v5771 = vsel %vm4901, %v5624, 0
      %v5774 = vsel %vm4901, %v5625, 0
      %v5777 = vsel %vm4901, %v5626, 0
      %v5780 = vsel %vm4901, %v5627, 0
      %v5783 = vsel %vm4901, %v5628, 0
      %v5786 = vsel %vm4901, %v5629, 0
      %v5789 = vsel %vm4901, %v5630, 0
      %v5792 = vsel %vm4901, %v5631, 0
      %v5795 = vsel %vm4901, %v5632, 0
      %v5798 = vsel %vm4901, %v5633, 0
      %v5801 = vsel %vm4901, %v5634, 0
      %v5804 = vsel %vm4901, %v5635, 0
      %v5807 = vsel %vm4901, %v5636, 0
      %v5810 = vsel %vm4901, %v5637, 0
      %v5813 = vsel %vm4901, %v5638, 0
      %5815 = vmatpush.bf16.msra.mxu0 0
      %5816 = vmatpush.bf16.msra.mxu0 0
      %5817 = vmatpush.bf16.msra.mxu0 %v5746
      %5818 = vmatpush.bf16.msra.mxu0 %v5743
      %5819 = vmatpush.bf16.msra.mxu0 %v5740
      %5820 = vmatpush.bf16.msra.mxu0 %v5737
      %5821 = vmatpush.bf16.msra.mxu0 %v5734
      %5822 = vmatpush.bf16.msra.mxu0 %v5731
      %5823 = vmatmul.bf16.gmra.mxu0 %v5768
      %v5824 = vpop.f32.mrf.mxu0
      %v5825 = vadd.f32 %v5665, %v5824
      %v5826 = vpop.f32.mrf.mxu0
      %v5827 = vadd.f32 %v5665, %v5826
      %5828 = vmatmul.bf16.gmra.mxu0 %v5771
      %v5829 = vpop.f32.mrf.mxu0
      %v5830 = vadd.f32 %v5665, %v5829
      %v5831 = vpop.f32.mrf.mxu0
      %v5832 = vadd.f32 %v5665, %v5831
      %5833 = vmatmul.bf16.gmra.mxu0 %v5774
      %v5834 = vpop.f32.mrf.mxu0
      %v5835 = vadd.f32 %v5665, %v5834
      %v5836 = vpop.f32.mrf.mxu0
      %v5837 = vadd.f32 %v5665, %v5836
      %5838 = vmatmul.bf16.gmra.mxu0 %v5777
      %v5839 = vpop.f32.mrf.mxu0
      %v5840 = vadd.f32 %v5665, %v5839
      %v5841 = vpop.f32.mrf.mxu0
      %v5842 = vadd.f32 %v5665, %v5841
      %5843 = vmatmul.bf16.gmra.mxu0 %v5780
      %v5844 = vpop.f32.mrf.mxu0
      %v5845 = vadd.f32 %v5665, %v5844
      %v5846 = vpop.f32.mrf.mxu0
      %v5847 = vadd.f32 %v5665, %v5846
      %5848 = vmatmul.bf16.gmra.mxu0 %v5783
      %v5849 = vpop.f32.mrf.mxu0
      %v5850 = vadd.f32 %v5665, %v5849
      %v5851 = vpop.f32.mrf.mxu0
      %v5852 = vadd.f32 %v5665, %v5851
      %5853 = vmatmul.bf16.gmra.mxu0 %v5786
      %v5854 = vpop.f32.mrf.mxu0
      %v5855 = vadd.f32 %v5665, %v5854
      %v5856 = vpop.f32.mrf.mxu0
      %v5857 = vadd.f32 %v5665, %v5856
      %5858 = vmatmul.bf16.gmra.mxu0 %v5789
      %v5859 = vpop.f32.mrf.mxu0
      %v5860 = vadd.f32 %v5665, %v5859
      %v5861 = vpop.f32.mrf.mxu0
      %v5862 = vadd.f32 %v5665, %v5861
      %5863 = vmatmul.bf16.gmra.mxu0 %v5792
      %v5864 = vpop.f32.mrf.mxu0
      %v5865 = vadd.f32 %v5665, %v5864
      %v5866 = vpop.f32.mrf.mxu0
      %v5867 = vadd.f32 %v5665, %v5866
      %5868 = vmatmul.bf16.gmra.mxu0 %v5795
      %v5869 = vpop.f32.mrf.mxu0
      %v5870 = vadd.f32 %v5665, %v5869
      %v5871 = vpop.f32.mrf.mxu0
      %v5872 = vadd.f32 %v5665, %v5871
      %5873 = vmatmul.bf16.gmra.mxu0 %v5798
      %v5874 = vpop.f32.mrf.mxu0
      %v5875 = vadd.f32 %v5665, %v5874
      %v5876 = vpop.f32.mrf.mxu0
      %v5877 = vadd.f32 %v5665, %v5876
      %5878 = vmatmul.bf16.gmra.mxu0 %v5801
      %v5879 = vpop.f32.mrf.mxu0
      %v5880 = vadd.f32 %v5665, %v5879
      %v5881 = vpop.f32.mrf.mxu0
      %v5882 = vadd.f32 %v5665, %v5881
      %5883 = vmatmul.bf16.gmra.mxu0 %v5804
      %v5884 = vpop.f32.mrf.mxu0
      %v5885 = vadd.f32 %v5665, %v5884
      %v5886 = vpop.f32.mrf.mxu0
      %v5887 = vadd.f32 %v5665, %v5886
      %5888 = vmatmul.bf16.gmra.mxu0 %v5807
      %v5889 = vpop.f32.mrf.mxu0
      %v5890 = vadd.f32 %v5665, %v5889
      %v5891 = vpop.f32.mrf.mxu0
      %v5892 = vadd.f32 %v5665, %v5891
      %5893 = vmatmul.bf16.gmra.mxu0 %v5810
      %v5894 = vpop.f32.mrf.mxu0
      %v5895 = vadd.f32 %v5665, %v5894
      %v5896 = vpop.f32.mrf.mxu0
      %v5897 = vadd.f32 %v5665, %v5896
      %5898 = vmatmul.bf16.gmra.mxu0 %v5813
      %v5899 = vpop.f32.mrf.mxu0
      %v5900 = vadd.f32 %v5665, %v5899
      %v5901 = vpop.f32.mrf.mxu0
      %v5902 = vadd.f32 %v5665, %v5901
      %5903 = vdwg.mxu0
      %5904 = vmatpush.bf16.msra.mxu0 0
      %5905 = vmatpush.bf16.msra.mxu0 0
      %5906 = vmatpush.bf16.msra.mxu0 %v5747
      %5907 = vmatpush.bf16.msra.mxu0 %v5744
      %5908 = vmatpush.bf16.msra.mxu0 %v5741
      %5909 = vmatpush.bf16.msra.mxu0 %v5738
      %5910 = vmatpush.bf16.msra.mxu0 %v5735
      %5911 = vmatpush.bf16.msra.mxu0 %v5732
      %5912 = vmatmul.bf16.gmra.mxu0 %v5768
      %v5913 = vpop.f32.mrf.mxu0
      %v5914 = vadd.f32 %v5666, %v5913
      %v5915 = vpop.f32.mrf.mxu0
      %v5916 = vadd.f32 %v5666, %v5915
      %5917 = vmatmul.bf16.gmra.mxu0 %v5771
      %v5918 = vpop.f32.mrf.mxu0
      %v5919 = vadd.f32 %v5666, %v5918
      %v5920 = vpop.f32.mrf.mxu0
      %v5921 = vadd.f32 %v5666, %v5920
      %5922 = vmatmul.bf16.gmra.mxu0 %v5774
      %v5923 = vpop.f32.mrf.mxu0
      %v5924 = vadd.f32 %v5666, %v5923
      %v5925 = vpop.f32.mrf.mxu0
      %v5926 = vadd.f32 %v5666, %v5925
      %5927 = vmatmul.bf16.gmra.mxu0 %v5777
      %v5928 = vpop.f32.mrf.mxu0
      %v5929 = vadd.f32 %v5666, %v5928
      %v5930 = vpop.f32.mrf.mxu0
      %v5931 = vadd.f32 %v5666, %v5930
      %5932 = vmatmul.bf16.gmra.mxu0 %v5780
      %v5933 = vpop.f32.mrf.mxu0
      %v5934 = vadd.f32 %v5666, %v5933
      %v5935 = vpop.f32.mrf.mxu0
      %v5936 = vadd.f32 %v5666, %v5935
      %5937 = vmatmul.bf16.gmra.mxu0 %v5783
      %v5938 = vpop.f32.mrf.mxu0
      %v5939 = vadd.f32 %v5666, %v5938
      %v5940 = vpop.f32.mrf.mxu0
      %v5941 = vadd.f32 %v5666, %v5940
      %5942 = vmatmul.bf16.gmra.mxu0 %v5786
      %v5943 = vpop.f32.mrf.mxu0
      %v5944 = vadd.f32 %v5666, %v5943
      %v5945 = vpop.f32.mrf.mxu0
      %v5946 = vadd.f32 %v5666, %v5945
      %5947 = vmatmul.bf16.gmra.mxu0 %v5789
      %v5948 = vpop.f32.mrf.mxu0
      %v5949 = vadd.f32 %v5666, %v5948
      %v5950 = vpop.f32.mrf.mxu0
      %v5951 = vadd.f32 %v5666, %v5950
      %5952 = vmatmul.bf16.gmra.mxu0 %v5792
      %v5953 = vpop.f32.mrf.mxu0
      %v5954 = vadd.f32 %v5666, %v5953
      %v5955 = vpop.f32.mrf.mxu0
      %v5956 = vadd.f32 %v5666, %v5955
      %5957 = vmatmul.bf16.gmra.mxu0 %v5795
      %v5958 = vpop.f32.mrf.mxu0
      %v5959 = vadd.f32 %v5666, %v5958
      %v5960 = vpop.f32.mrf.mxu0
      %v5961 = vadd.f32 %v5666, %v5960
      %5962 = vmatmul.bf16.gmra.mxu0 %v5798
      %v5963 = vpop.f32.mrf.mxu0
      %v5964 = vadd.f32 %v5666, %v5963
      %v5965 = vpop.f32.mrf.mxu0
      %v5966 = vadd.f32 %v5666, %v5965
      %5967 = vmatmul.bf16.gmra.mxu0 %v5801
      %v5968 = vpop.f32.mrf.mxu0
      %v5969 = vadd.f32 %v5666, %v5968
      %v5970 = vpop.f32.mrf.mxu0
      %v5971 = vadd.f32 %v5666, %v5970
      %5972 = vmatmul.bf16.gmra.mxu0 %v5804
      %v5973 = vpop.f32.mrf.mxu0
      %v5974 = vadd.f32 %v5666, %v5973
      %v5975 = vpop.f32.mrf.mxu0
      %v5976 = vadd.f32 %v5666, %v5975
      %5977 = vmatmul.bf16.gmra.mxu0 %v5807
      %v5978 = vpop.f32.mrf.mxu0
      %v5979 = vadd.f32 %v5666, %v5978
      %v5980 = vpop.f32.mrf.mxu0
      %v5981 = vadd.f32 %v5666, %v5980
      %5982 = vmatmul.bf16.gmra.mxu0 %v5810
      %v5983 = vpop.f32.mrf.mxu0
      %v5984 = vadd.f32 %v5666, %v5983
      %v5985 = vpop.f32.mrf.mxu0
      %v5986 = vadd.f32 %v5666, %v5985
      %5987 = vmatmul.bf16.gmra.mxu0 %v5813
      %v5988 = vpop.f32.mrf.mxu0
      %v5989 = vadd.f32 %v5666, %v5988
      %v5990 = vpop.f32.mrf.mxu0
      %v5991 = vadd.f32 %v5666, %v5990
      %5992 = vdwg.mxu0
      %5993 = vmatpush.bf16.msra.mxu0 0
      %5994 = vmatpush.bf16.msra.mxu0 0
      %5995 = vmatpush.bf16.msra.mxu0 %v5748
      %5996 = vmatpush.bf16.msra.mxu0 %v5745
      %5997 = vmatpush.bf16.msra.mxu0 %v5742
      %5998 = vmatpush.bf16.msra.mxu0 %v5739
      %5999 = vmatpush.bf16.msra.mxu0 %v5736
      %6000 = vmatpush.bf16.msra.mxu0 %v5733
      %6001 = vmatmul.bf16.gmra.mxu0 %v5768
      %v6002 = vpop.f32.mrf.mxu0
      %v6003 = vadd.f32 %v5667, %v6002
      %v6004 = vpop.f32.mrf.mxu0
      %v6005 = vadd.f32 %v5667, %v6004
      %6006 = vmatmul.bf16.gmra.mxu0 %v5771
      %v6007 = vpop.f32.mrf.mxu0
      %v6008 = vadd.f32 %v5667, %v6007
      %v6009 = vpop.f32.mrf.mxu0
      %v6010 = vadd.f32 %v5667, %v6009
      %6011 = vmatmul.bf16.gmra.mxu0 %v5774
      %v6012 = vpop.f32.mrf.mxu0
      %v6013 = vadd.f32 %v5667, %v6012
      %v6014 = vpop.f32.mrf.mxu0
      %v6015 = vadd.f32 %v5667, %v6014
      %6016 = vmatmul.bf16.gmra.mxu0 %v5777
      %v6017 = vpop.f32.mrf.mxu0
      %v6018 = vadd.f32 %v5667, %v6017
      %v6019 = vpop.f32.mrf.mxu0
      %v6020 = vadd.f32 %v5667, %v6019
      %6021 = vmatmul.bf16.gmra.mxu0 %v5780
      %v6022 = vpop.f32.mrf.mxu0
      %v6023 = vadd.f32 %v5667, %v6022
      %v6024 = vpop.f32.mrf.mxu0
      %v6025 = vadd.f32 %v5667, %v6024
      %6026 = vmatmul.bf16.gmra.mxu0 %v5783
      %v6027 = vpop.f32.mrf.mxu0
      %v6028 = vadd.f32 %v5667, %v6027
      %v6029 = vpop.f32.mrf.mxu0
      %v6030 = vadd.f32 %v5667, %v6029
      %6031 = vmatmul.bf16.gmra.mxu0 %v5786
      %v6032 = vpop.f32.mrf.mxu0
      %v6033 = vadd.f32 %v5667, %v6032
      %v6034 = vpop.f32.mrf.mxu0
      %v6035 = vadd.f32 %v5667, %v6034
      %6036 = vmatmul.bf16.gmra.mxu0 %v5789
      %v6037 = vpop.f32.mrf.mxu0
      %v6038 = vadd.f32 %v5667, %v6037
      %v6039 = vpop.f32.mrf.mxu0
      %v6040 = vadd.f32 %v5667, %v6039
      %6041 = vmatmul.bf16.gmra.mxu0 %v5792
      %v6042 = vpop.f32.mrf.mxu0
      %v6043 = vadd.f32 %v5667, %v6042
      %v6044 = vpop.f32.mrf.mxu0
      %v6045 = vadd.f32 %v5667, %v6044
      %6046 = vmatmul.bf16.gmra.mxu0 %v5795
      %v6047 = vpop.f32.mrf.mxu0
      %v6048 = vadd.f32 %v5667, %v6047
      %v6049 = vpop.f32.mrf.mxu0
      %v6050 = vadd.f32 %v5667, %v6049
      %6051 = vmatmul.bf16.gmra.mxu0 %v5798
      %v6052 = vpop.f32.mrf.mxu0
      %v6053 = vadd.f32 %v5667, %v6052
      %v6054 = vpop.f32.mrf.mxu0
      %v6055 = vadd.f32 %v5667, %v6054
      %6056 = vmatmul.bf16.gmra.mxu0 %v5801
      %v6057 = vpop.f32.mrf.mxu0
      %v6058 = vadd.f32 %v5667, %v6057
      %v6059 = vpop.f32.mrf.mxu0
      %v6060 = vadd.f32 %v5667, %v6059
      %6061 = vmatmul.bf16.gmra.mxu0 %v5804
      %v6062 = vpop.f32.mrf.mxu0
      %v6063 = vadd.f32 %v5667, %v6062
      %v6064 = vpop.f32.mrf.mxu0
      %v6065 = vadd.f32 %v5667, %v6064
      %6066 = vmatmul.bf16.gmra.mxu0 %v5807
      %v6067 = vpop.f32.mrf.mxu0
      %v6068 = vadd.f32 %v5667, %v6067
      %v6069 = vpop.f32.mrf.mxu0
      %v6070 = vadd.f32 %v5667, %v6069
      %6071 = vmatmul.bf16.gmra.mxu0 %v5810
      %v6072 = vpop.f32.mrf.mxu0
      %v6073 = vadd.f32 %v5667, %v6072
      %v6074 = vpop.f32.mrf.mxu0
      %v6075 = vadd.f32 %v5667, %v6074
      %6076 = vmatmul.bf16.gmra.mxu0 %v5813
      %v6077 = vpop.f32.mrf.mxu0
      %v6078 = vadd.f32 %v5667, %v6077
      %v6079 = vpop.f32.mrf.mxu0
      %v6080 = vadd.f32 %v5667, %v6079
      %6081 = vdwg.mxu0
      %v6082 = vmax.f32 %v5825, 0.0
      %v6083 = vmax.f32 %v5914, 0.0
      %v6084 = vmax.f32 %v6003, 0.0
      %v6085 = vmax.f32 %v5827, 0.0
      %v6086 = vmax.f32 %v5916, 0.0
      %v6087 = vmax.f32 %v6005, 0.0
      %v6088 = vmax.f32 %v5830, 0.0
      %v6089 = vmax.f32 %v5919, 0.0
      %v6090 = vmax.f32 %v6008, 0.0
      %v6091 = vmax.f32 %v5832, 0.0
      %v6092 = vmax.f32 %v5921, 0.0
      %v6093 = vmax.f32 %v6010, 0.0
      %v6094 = vmax.f32 %v5835, 0.0
      %v6095 = vmax.f32 %v5924, 0.0
      %v6096 = vmax.f32 %v6013, 0.0
      %v6097 = vmax.f32 %v5837, 0.0
      %v6098 = vmax.f32 %v5926, 0.0
      %v6099 = vmax.f32 %v6015, 0.0
      %v6100 = vmax.f32 %v5840, 0.0
      %v6101 = vmax.f32 %v5929, 0.0
      %v6102 = vmax.f32 %v6018, 0.0
      %v6103 = vmax.f32 %v5842, 0.0
      %v6104 = vmax.f32 %v5931, 0.0
      %v6105 = vmax.f32 %v6020, 0.0
      %v6106 = vmax.f32 %v5845, 0.0
      %v6107 = vmax.f32 %v5934, 0.0
      %v6108 = vmax.f32 %v6023, 0.0
      %v6109 = vmax.f32 %v5847, 0.0
      %v6110 = vmax.f32 %v5936, 0.0
      %v6111 = vmax.f32 %v6025, 0.0
      %v6112 = vmax.f32 %v5850, 0.0
      %v6113 = vmax.f32 %v5939, 0.0
      %v6114 = vmax.f32 %v6028, 0.0
      %v6115 = vmax.f32 %v5852, 0.0
      %v6116 = vmax.f32 %v5941, 0.0
      %v6117 = vmax.f32 %v6030, 0.0
      %v6118 = vmax.f32 %v5855, 0.0
      %v6119 = vmax.f32 %v5944, 0.0
      %v6120 = vmax.f32 %v6033, 0.0
      %v6121 = vmax.f32 %v5857, 0.0
      %v6122 = vmax.f32 %v5946, 0.0
      %v6123 = vmax.f32 %v6035, 0.0
      %v6124 = vmax.f32 %v5860, 0.0
      %v6125 = vmax.f32 %v5949, 0.0
      %v6126 = vmax.f32 %v6038, 0.0
      %v6127 = vmax.f32 %v5862, 0.0
      %v6128 = vmax.f32 %v5951, 0.0
      %v6129 = vmax.f32 %v6040, 0.0
      %v6130 = vmax.f32 %v5865, 0.0
      %v6131 = vmax.f32 %v5954, 0.0
      %v6132 = vmax.f32 %v6043, 0.0
      %v6133 = vmax.f32 %v5867, 0.0
      %v6134 = vmax.f32 %v5956, 0.0
      %v6135 = vmax.f32 %v6045, 0.0
      %v6136 = vmax.f32 %v5870, 0.0
      %v6137 = vmax.f32 %v5959, 0.0
      %v6138 = vmax.f32 %v6048, 0.0
      %v6139 = vmax.f32 %v5872, 0.0
      %v6140 = vmax.f32 %v5961, 0.0
      %v6141 = vmax.f32 %v6050, 0.0
      %v6142 = vmax.f32 %v5875, 0.0
      %v6143 = vmax.f32 %v5964, 0.0
      %v6144 = vmax.f32 %v6053, 0.0
      %v6145 = vmax.f32 %v5877, 0.0
      %v6146 = vmax.f32 %v5966, 0.0
      %v6147 = vmax.f32 %v6055, 0.0
      %v6148 = vmax.f32 %v5880, 0.0
      %v6149 = vmax.f32 %v5969, 0.0
      %v6150 = vmax.f32 %v6058, 0.0
      %v6151 = vmax.f32 %v5882, 0.0
      %v6152 = vmax.f32 %v5971, 0.0
      %v6153 = vmax.f32 %v6060, 0.0
      %v6154 = vmax.f32 %v5885, 0.0
      %v6155 = vmax.f32 %v5974, 0.0
      %v6156 = vmax.f32 %v6063, 0.0
      %v6157 = vmax.f32 %v5887, 0.0
      %v6158 = vmax.f32 %v5976, 0.0
      %v6159 = vmax.f32 %v6065, 0.0
      %v6160 = vmax.f32 %v5890, 0.0
      %v6161 = vmax.f32 %v5979, 0.0
      %v6162 = vmax.f32 %v6068, 0.0
      %v6163 = vmax.f32 %v5892, 0.0
      %v6164 = vmax.f32 %v5981, 0.0
      %v6165 = vmax.f32 %v6070, 0.0
      %v6166 = vmax.f32 %v5895, 0.0
      %v6167 = vmax.f32 %v5984, 0.0
      %v6168 = vmax.f32 %v6073, 0.0
      %v6169 = vmax.f32 %v5897, 0.0
      %v6170 = vmax.f32 %v5986, 0.0
      %v6171 = vmax.f32 %v6075, 0.0
      %v6172 = vmax.f32 %v5900, 0.0
      %v6173 = vmax.f32 %v5989, 0.0
      %v6174 = vmax.f32 %v6078, 0.0
      %v6175 = vmax.f32 %v5902, 0.0
      %v6176 = vmax.f32 %v5991, 0.0
      %v6177 = vmax.f32 %v6080, 0.0
      %v6178 = vpack.c.bf16 %v6085, %v6082
      %v6179 = vpack.c.bf16 %v6086, %v6083
      %v6180 = vpack.c.bf16 %v6087, %v6084
      %v6181 = vpack.c.bf16 %v6091, %v6088
      %v6182 = vpack.c.bf16 %v6092, %v6089
      %v6183 = vpack.c.bf16 %v6093, %v6090
      %v6184 = vpack.c.bf16 %v6097, %v6094
      %v6185 = vpack.c.bf16 %v6098, %v6095
      %v6186 = vpack.c.bf16 %v6099, %v6096
      %v6187 = vpack.c.bf16 %v6103, %v6100
      %v6188 = vpack.c.bf16 %v6104, %v6101
      %v6189 = vpack.c.bf16 %v6105, %v6102
      %v6190 = vpack.c.bf16 %v6109, %v6106
      %v6191 = vpack.c.bf16 %v6110, %v6107
      %v6192 = vpack.c.bf16 %v6111, %v6108
      %v6193 = vpack.c.bf16 %v6115, %v6112
      %v6194 = vpack.c.bf16 %v6116, %v6113
      %v6195 = vpack.c.bf16 %v6117, %v6114
      %v6196 = vpack.c.bf16 %v6121, %v6118
      %v6197 = vpack.c.bf16 %v6122, %v6119
      %v6198 = vpack.c.bf16 %v6123, %v6120
      %v6199 = vpack.c.bf16 %v6127, %v6124
      %v6200 = vpack.c.bf16 %v6128, %v6125
      %v6201 = vpack.c.bf16 %v6129, %v6126
      %v6202 = vpack.c.bf16 %v6133, %v6130
      %v6203 = vpack.c.bf16 %v6134, %v6131
      %v6204 = vpack.c.bf16 %v6135, %v6132
      %v6205 = vpack.c.bf16 %v6139, %v6136
      %v6206 = vpack.c.bf16 %v6140, %v6137
      %v6207 = vpack.c.bf16 %v6141, %v6138
      %v6208 = vpack.c.bf16 %v6145, %v6142
      %v6209 = vpack.c.bf16 %v6146, %v6143
      %v6210 = vpack.c.bf16 %v6147, %v6144
      %v6211 = vpack.c.bf16 %v6151, %v6148
      %v6212 = vpack.c.bf16 %v6152, %v6149
      %v6213 = vpack.c.bf16 %v6153, %v6150
      %v6214 = vpack.c.bf16 %v6157, %v6154
      %v6215 = vpack.c.bf16 %v6158, %v6155
      %v6216 = vpack.c.bf16 %v6159, %v6156
      %v6217 = vpack.c.bf16 %v6163, %v6160
      %v6218 = vpack.c.bf16 %v6164, %v6161
      %v6219 = vpack.c.bf16 %v6165, %v6162
      %v6220 = vpack.c.bf16 %v6169, %v6166
      %v6221 = vpack.c.bf16 %v6170, %v6167
      %v6222 = vpack.c.bf16 %v6171, %v6168
      %v6223 = vpack.c.bf16 %v6175, %v6172
      %v6224 = vpack.c.bf16 %v6176, %v6173
      %v6225 = vpack.c.bf16 %v6177, %v6174
      %v6226 = vld [vmem:[%s15] sm:$0xff]
      %v6227 = vld [vmem:[%s15 + $0x8] sm:$0xff]
      %v6228 = vld [vmem:[%s15 + $0x10] sm:$0xff]
      %v6229 = vld [vmem:[%s15 + $0x18] sm:$0xf]
      %v6230 = vld [vmem:[%s15 + $0x1c] sm:$0xff]
      %v6231 = vld [vmem:[%s15 + $0x24] sm:$0xff]
      %v6232 = vld [vmem:[%s15 + $0x2c] sm:$0xff]
      %v6233 = vld [vmem:[%s15 + $0x34] sm:$0xf]
      %v6234 = vld [vmem:[%s15 + $0x38] sm:$0xff]
      %v6235 = vld [vmem:[%s15 + $0x40] sm:$0xff]
      %v6236 = vld [vmem:[%s15 + $0x48] sm:$0xff]
      %v6237 = vld [vmem:[%s15 + $0x50] sm:$0xf]
      %v6238 = vld [vmem:[%s15 + $0x54] sm:$0xff]
      %v6239 = vld [vmem:[%s15 + $0x5c] sm:$0xff]
      %v6240 = vld [vmem:[%s15 + $0x64] sm:$0xff]
      %v6241 = vld [vmem:[%s15 + $0x6c] sm:$0xf]
      %v6242 = vld [vmem:[%s15 + $0x70] sm:$0xff]
      %v6243 = vld [vmem:[%s15 + $0x78] sm:$0xff]
      %v6244 = vld [vmem:[%s15 + $0x80] sm:$0xff]
      %v6245 = vld [vmem:[%s15 + $0x88] sm:$0xf]
      %v6246 = vld [vmem:[%s15 + $0x8c] sm:$0xff]
      %v6247 = vld [vmem:[%s15 + $0x94] sm:$0xff]
      %v6248 = vld [vmem:[%s15 + $0x9c] sm:$0xff]
      %v6249 = vld [vmem:[%s15 + $0xa4] sm:$0xf]
      %v6250 = vld [vmem:[%s15 + $0xa8] sm:$0xff]
      %v6251 = vld [vmem:[%s15 + $0xb0] sm:$0xff]
      %v6252 = vld [vmem:[%s15 + $0xb8] sm:$0xff]
      %v6253 = vld [vmem:[%s15 + $0xc0] sm:$0xf]
      %v6254 = vld [vmem:[%s15 + $0xc4] sm:$0xff]
      %v6255 = vld [vmem:[%s15 + $0xcc] sm:$0xff]
      %v6256 = vld [vmem:[%s15 + $0xd4] sm:$0xff]
      %v6257 = vld [vmem:[%s15 + $0xdc] sm:$0xf]
      %v6258 = vld [vmem:[%s15 + $0xe0] sm:$0xff]
      %v6259 = vld [vmem:[%s15 + $0xe8] sm:$0xff]
      %v6260 = vld [vmem:[%s15 + $0xf0] sm:$0xff]
      %v6261 = vld [vmem:[%s15 + $0xf8] sm:$0xf]
      %v6262 = vld [vmem:[%s15 + $0xfc] sm:$0xff]
      %v6263 = vld [vmem:[%s15 + $0x104] sm:$0xff]
      %v6264 = vld [vmem:[%s15 + $0x10c] sm:$0xff]
      %v6265 = vld [vmem:[%s15 + $0x114] sm:$0xf]
      %v6266 = vld [vmem:[%s15 + $0x118] sm:$0xff]
      %v6267 = vld [vmem:[%s15 + $0x120] sm:$0xff]
      %v6268 = vld [vmem:[%s15 + $0x128] sm:$0xff]
      %v6269 = vld [vmem:[%s15 + $0x130] sm:$0xf]
      %v6270 = vld [vmem:[%s15 + $0x134] sm:$0xff]
      %v6271 = vld [vmem:[%s15 + $0x13c] sm:$0xff]
      %v6272 = vld [vmem:[%s15 + $0x144] sm:$0xff]
      %v6273 = vld [vmem:[%s15 + $0x14c] sm:$0xf]
      %v6274 = vld [vmem:[%s15 + $0x150] sm:$0xff]
      %v6275 = vld [vmem:[%s15 + $0x158] sm:$0xff]
      %v6276 = vld [vmem:[%s15 + $0x160] sm:$0xff]
      %v6277 = vld [vmem:[%s15 + $0x168] sm:$0xf]
      %v6278 = vld [vmem:[%s15 + $0x16c] sm:$0xff]
      %v6279 = vld [vmem:[%s15 + $0x174] sm:$0xff]
      %v6280 = vld [vmem:[%s15 + $0x17c] sm:$0xff]
      %v6281 = vld [vmem:[%s15 + $0x184] sm:$0xf]
      %v6282 = vld [vmem:[%s15 + $0x188] sm:$0xff]
      %v6283 = vld [vmem:[%s15 + $0x190] sm:$0xff]
      %v6284 = vld [vmem:[%s15 + $0x198] sm:$0xff]
      %v6285 = vld [vmem:[%s15 + $0x1a0] sm:$0xf]
      %v6286 = vld [vmem:[%s15 + $0x1a4] sm:$0xff]
      %v6287 = vld [vmem:[%s15 + $0x1ac] sm:$0xff]
      %v6288 = vld [vmem:[%s15 + $0x1b4] sm:$0xff]
      %v6289 = vld [vmem:[%s15 + $0x1bc] sm:$0xf]
      %v6290 = vld [vmem:[%s15 + $0x1c0] sm:$0xff]
      %v6291 = vld [vmem:[%s15 + $0x1c8] sm:$0xff]
      %v6292 = vld [vmem:[%s15 + $0x1d0] sm:$0xff]
      %v6293 = vld [vmem:[%s15 + $0x1d8] sm:$0xf]
      %v6294 = vld [vmem:[%s15 + $0x1dc] sm:$0xff]
      %v6295 = vld [vmem:[%s15 + $0x1e4] sm:$0xff]
      %v6296 = vld [vmem:[%s15 + $0x1ec] sm:$0xff]
      %v6297 = vld [vmem:[%s15 + $0x1f4] sm:$0xf]
      %v6298 = vld [vmem:[%s15 + $0x1f8] sm:$0xff]
      %v6299 = vld [vmem:[%s15 + $0x200] sm:$0xff]
      %v6300 = vld [vmem:[%s15 + $0x208] sm:$0xff]
      %v6301 = vld [vmem:[%s15 + $0x210] sm:$0xf]
      %v6302 = vld [vmem:[%s15 + $0x214] sm:$0xff]
      %v6303 = vld [vmem:[%s15 + $0x21c] sm:$0xff]
      %v6304 = vld [vmem:[%s15 + $0x224] sm:$0xff]
      %v6305 = vld [vmem:[%s15 + $0x22c] sm:$0xf]
      %v6306 = vld [vmem:[%s15 + $0x230] sm:$0xff]
      %v6307 = vld [vmem:[%s15 + $0x238] sm:$0xff]
      %v6308 = vld [vmem:[%s15 + $0x240] sm:$0xff]
      %v6309 = vld [vmem:[%s15 + $0x248] sm:$0xf]
      %v6310 = vld [vmem:[%s15 + $0x24c] sm:$0xff]
      %v6311 = vld [vmem:[%s15 + $0x254] sm:$0xff]
      %v6312 = vld [vmem:[%s15 + $0x25c] sm:$0xff]
      %v6313 = vld [vmem:[%s15 + $0x264] sm:$0xf]
      %v6314 = vld [vmem:[%s15 + $0x268] sm:$0xff]
      %v6315 = vld [vmem:[%s15 + $0x270] sm:$0xff]
      %v6316 = vld [vmem:[%s15 + $0x278] sm:$0xff]
      %v6317 = vld [vmem:[%s15 + $0x280] sm:$0xf]
      %v6318 = vld [vmem:[%s15 + $0x284] sm:$0xff]
      %v6319 = vld [vmem:[%s15 + $0x28c] sm:$0xff]
      %v6320 = vld [vmem:[%s15 + $0x294] sm:$0xff]
      %v6321 = vld [vmem:[%s15 + $0x29c] sm:$0xf]
      %v6322 = vld [vmem:[%s15 + $0x2a0] sm:$0xff]
      %v6323 = vld [vmem:[%s15 + $0x2a8] sm:$0xff]
      %v6324 = vld [vmem:[%s15 + $0x2b0] sm:$0xff]
      %v6325 = vld [vmem:[%s15 + $0x2b8] sm:$0xf]
      %v6326 = vld [vmem:[%s15 + $0x2bc] sm:$0xff]
      %v6327 = vld [vmem:[%s15 + $0x2c4] sm:$0xff]
      %v6328 = vld [vmem:[%s15 + $0x2cc] sm:$0xff]
      %v6329 = vld [vmem:[%s15 + $0x2d4] sm:$0xf]
      %v6330 = vld [vmem:[%s15 + $0x2d8] sm:$0xff]
      %v6331 = vld [vmem:[%s15 + $0x2e0] sm:$0xff]
      %v6332 = vld [vmem:[%s15 + $0x2e8] sm:$0xff]
      %v6333 = vld [vmem:[%s15 + $0x2f0] sm:$0xf]
      %v6334 = vld [vmem:[%s15 + $0x2f4] sm:$0xff]
      %v6335 = vld [vmem:[%s15 + $0x2fc] sm:$0xff]
      %v6336 = vld [vmem:[%s15 + $0x304] sm:$0xff]
      %v6337 = vld [vmem:[%s15 + $0x30c] sm:$0xf]
      %v6338 = vld [vmem:[%s15 + $0x310] sm:$0xff]
      %v6339 = vld [vmem:[%s15 + $0x318] sm:$0xff]
      %v6340 = vld [vmem:[%s15 + $0x320] sm:$0xff]
      %v6341 = vld [vmem:[%s15 + $0x328] sm:$0xf]
      %v6342 = vld [vmem:[%s15 + $0x32c] sm:$0xff]
      %v6343 = vld [vmem:[%s15 + $0x334] sm:$0xff]
      %v6344 = vld [vmem:[%s15 + $0x33c] sm:$0xff]
      %v6345 = vld [vmem:[%s15 + $0x344] sm:$0xf]
      %v6346 = vld [vmem:[%s15 + $0x348] sm:$0xff]
      %v6347 = vld [vmem:[%s15 + $0x350] sm:$0xff]
      %v6348 = vld [vmem:[%s15 + $0x358] sm:$0xff]
      %v6349 = vld [vmem:[%s15 + $0x360] sm:$0xf]
      %v6350 = vld [vmem:[%s15 + $0x364] sm:$0xff]
      %v6351 = vld [vmem:[%s15 + $0x36c] sm:$0xff]
      %v6352 = vld [vmem:[%s15 + $0x374] sm:$0xff]
      %v6353 = vld [vmem:[%s15 + $0x37c] sm:$0xf]
      %v6354 = vld [vmem:[%s15 + $0x380] sm:$0xff]
      %v6355 = vld [vmem:[%s15 + $0x388] sm:$0xff]
      %v6356 = vld [vmem:[%s15 + $0x390] sm:$0xff]
      %v6357 = vld [vmem:[%s15 + $0x398] sm:$0xf]
      %v6358 = vld [vmem:[%s15 + $0x39c] sm:$0xff]
      %v6359 = vld [vmem:[%s15 + $0x3a4] sm:$0xff]
      %v6360 = vld [vmem:[%s15 + $0x3ac] sm:$0xff]
      %v6361 = vld [vmem:[%s15 + $0x3b4] sm:$0xf]
      %v6362 = vld [vmem:[%s15 + $0x3b8] sm:$0xff]
      %v6363 = vld [vmem:[%s15 + $0x3c0] sm:$0xff]
      %v6364 = vld [vmem:[%s15 + $0x3c8] sm:$0xff]
      %v6365 = vld [vmem:[%s15 + $0x3d0] sm:$0xf]
      %v6366 = vld [vmem:[%s15 + $0x3d4] sm:$0xff]
      %v6367 = vld [vmem:[%s15 + $0x3dc] sm:$0xff]
      %v6368 = vld [vmem:[%s15 + $0x3e4] sm:$0xff]
      %v6369 = vld [vmem:[%s15 + $0x3ec] sm:$0xf]
      %v6370 = vld [vmem:[%s16] sm:$0x7f]
      %v6372 = vperm.slane %v6370, 0
      %v6373 = vperm.slane %v6370, 1
      %v6374 = vperm.slane %v6370, 2
      %v6375 = vperm.slane %v6370, 3
      %v6376 = vperm.slane %v6370, 4
      %v6377 = vperm.slane %v6370, 5
      %v6378 = vperm.slane %v6370, 6
      %v6530 = vunpack.c.l.b16 %v6226
      %v6531 = vunpack.c.h.b16 %v6226
      %v6532 = vunpack.c.l.b16 %v6227
      %v6533 = vunpack.c.h.b16 %v6227
      %v6534 = vunpack.c.l.b16 %v6228
      %v6535 = vunpack.c.h.b16 %v6228
      %v6536 = vunpack.c.l.b16 %v6229
      %v6537 = vunpack.c.l.b16 %v6230
      %v6538 = vunpack.c.h.b16 %v6230
      %v6539 = vunpack.c.l.b16 %v6231
      %v6540 = vunpack.c.h.b16 %v6231
      %v6541 = vunpack.c.l.b16 %v6232
      %v6542 = vunpack.c.h.b16 %v6232
      %v6543 = vunpack.c.l.b16 %v6233
      %v6544 = vunpack.c.l.b16 %v6234
      %v6545 = vunpack.c.h.b16 %v6234
      %v6546 = vunpack.c.l.b16 %v6235
      %v6547 = vunpack.c.h.b16 %v6235
      %v6548 = vunpack.c.l.b16 %v6236
      %v6549 = vunpack.c.h.b16 %v6236
      %v6550 = vunpack.c.l.b16 %v6237
      %v6551 = vunpack.c.l.b16 %v6238
      %v6552 = vunpack.c.h.b16 %v6238
      %v6553 = vunpack.c.l.b16 %v6239
      %v6554 = vunpack.c.h.b16 %v6239
      %v6555 = vunpack.c.l.b16 %v6240
      %v6556 = vunpack.c.h.b16 %v6240
      %v6557 = vunpack.c.l.b16 %v6241
      %v6558 = vunpack.c.l.b16 %v6242
      %v6559 = vunpack.c.h.b16 %v6242
      %v6560 = vunpack.c.l.b16 %v6243
      %v6561 = vunpack.c.h.b16 %v6243
      %v6562 = vunpack.c.l.b16 %v6244
      %v6563 = vunpack.c.h.b16 %v6244
      %v6564 = vunpack.c.l.b16 %v6245
      %v6565 = vunpack.c.l.b16 %v6246
      %v6566 = vunpack.c.h.b16 %v6246
      %v6567 = vunpack.c.l.b16 %v6247
      %v6568 = vunpack.c.h.b16 %v6247
      %v6569 = vunpack.c.l.b16 %v6248
      %v6570 = vunpack.c.h.b16 %v6248
      %v6571 = vunpack.c.l.b16 %v6249
      %v6572 = vunpack.c.l.b16 %v6250
      %v6573 = vunpack.c.h.b16 %v6250
      %v6574 = vunpack.c.l.b16 %v6251
      %v6575 = vunpack.c.h.b16 %v6251
      %v6576 = vunpack.c.l.b16 %v6252
      %v6577 = vunpack.c.h.b16 %v6252
      %v6578 = vunpack.c.l.b16 %v6253
      %v6579 = vunpack.c.l.b16 %v6254
      %v6580 = vunpack.c.h.b16 %v6254
      %v6581 = vunpack.c.l.b16 %v6255
      %v6582 = vunpack.c.h.b16 %v6255
      %v6583 = vunpack.c.l.b16 %v6256
      %v6584 = vunpack.c.h.b16 %v6256
      %v6585 = vunpack.c.l.b16 %v6257
      %v6586 = vunpack.c.l.b16 %v6258
      %v6587 = vunpack.c.h.b16 %v6258
      %v6588 = vunpack.c.l.b16 %v6259
      %v6589 = vunpack.c.h.b16 %v6259
      %v6590 = vunpack.c.l.b16 %v6260
      %v6591 = vunpack.c.h.b16 %v6260
      %v6592 = vunpack.c.l.b16 %v6261
      %v6593 = vunpack.c.l.b16 %v6262
      %v6594 = vunpack.c.h.b16 %v6262
      %v6595 = vunpack.c.l.b16 %v6263
      %v6596 = vunpack.c.h.b16 %v6263
      %v6597 = vunpack.c.l.b16 %v6264
      %v6598 = vunpack.c.h.b16 %v6264
      %v6599 = vunpack.c.l.b16 %v6265
      %v6600 = vunpack.c.l.b16 %v6266
      %v6601 = vunpack.c.h.b16 %v6266
      %v6602 = vunpack.c.l.b16 %v6267
      %v6603 = vunpack.c.h.b16 %v6267
      %v6604 = vunpack.c.l.b16 %v6268
      %v6605 = vunpack.c.h.b16 %v6268
      %v6606 = vunpack.c.l.b16 %v6269
      %v6607 = vunpack.c.l.b16 %v6270
      %v6608 = vunpack.c.h.b16 %v6270
      %v6609 = vunpack.c.l.b16 %v6271
      %v6610 = vunpack.c.h.b16 %v6271
      %v6611 = vunpack.c.l.b16 %v6272
      %v6612 = vunpack.c.h.b16 %v6272
      %v6613 = vunpack.c.l.b16 %v6273
      %v6614 = vunpack.c.l.b16 %v6274
      %v6615 = vunpack.c.h.b16 %v6274
      %v6616 = vunpack.c.l.b16 %v6275
      %v6617 = vunpack.c.h.b16 %v6275
      %v6618 = vunpack.c.l.b16 %v6276
      %v6619 = vunpack.c.h.b16 %v6276
      %v6620 = vunpack.c.l.b16 %v6277
      %v6621 = vunpack.c.l.b16 %v6278
      %v6622 = vunpack.c.h.b16 %v6278
      %v6623 = vunpack.c.l.b16 %v6279
      %v6624 = vunpack.c.h.b16 %v6279
      %v6625 = vunpack.c.l.b16 %v6280
      %v6626 = vunpack.c.h.b16 %v6280
      %v6627 = vunpack.c.l.b16 %v6281
      %v6628 = vunpack.c.l.b16 %v6282
      %v6629 = vunpack.c.h.b16 %v6282
      %v6630 = vunpack.c.l.b16 %v6283
      %v6631 = vunpack.c.h.b16 %v6283
      %v6632 = vunpack.c.l.b16 %v6284
      %v6633 = vunpack.c.h.b16 %v6284
      %v6634 = vunpack.c.l.b16 %v6285
      %v6635 = vunpack.c.l.b16 %v6286
      %v6636 = vunpack.c.h.b16 %v6286
      %v6637 = vunpack.c.l.b16 %v6287
      %v6638 = vunpack.c.h.b16 %v6287
      %v6639 = vunpack.c.l.b16 %v6288
      %v6640 = vunpack.c.h.b16 %v6288
      %v6641 = vunpack.c.l.b16 %v6289
      %v6642 = vunpack.c.l.b16 %v6290
      %v6643 = vunpack.c.h.b16 %v6290
      %v6644 = vunpack.c.l.b16 %v6291
      %v6645 = vunpack.c.h.b16 %v6291
      %v6646 = vunpack.c.l.b16 %v6292
      %v6647 = vunpack.c.h.b16 %v6292
      %v6648 = vunpack.c.l.b16 %v6293
      %v6649 = vunpack.c.l.b16 %v6294
      %v6650 = vunpack.c.h.b16 %v6294
      %v6651 = vunpack.c.l.b16 %v6295
      %v6652 = vunpack.c.h.b16 %v6295
      %v6653 = vunpack.c.l.b16 %v6296
      %v6654 = vunpack.c.h.b16 %v6296
      %v6655 = vunpack.c.l.b16 %v6297
      %v6656 = vunpack.c.l.b16 %v6298
      %v6657 = vunpack.c.h.b16 %v6298
      %v6658 = vunpack.c.l.b16 %v6299
      %v6659 = vunpack.c.h.b16 %v6299
      %v6660 = vunpack.c.l.b16 %v6300
      %v6661 = vunpack.c.h.b16 %v6300
      %v6662 = vunpack.c.l.b16 %v6301
      %v6663 = vunpack.c.l.b16 %v6302
      %v6664 = vunpack.c.h.b16 %v6302
      %v6665 = vunpack.c.l.b16 %v6303
      %v6666 = vunpack.c.h.b16 %v6303
      %v6667 = vunpack.c.l.b16 %v6304
      %v6668 = vunpack.c.h.b16 %v6304
      %v6669 = vunpack.c.l.b16 %v6305
      %v6670 = vunpack.c.l.b16 %v6306
      %v6671 = vunpack.c.h.b16 %v6306
      %v6672 = vunpack.c.l.b16 %v6307
      %v6673 = vunpack.c.h.b16 %v6307
      %v6674 = vunpack.c.l.b16 %v6308
      %v6675 = vunpack.c.h.b16 %v6308
      %v6676 = vunpack.c.l.b16 %v6309
      %v6677 = vunpack.c.l.b16 %v6310
      %v6678 = vunpack.c.h.b16 %v6310
      %v6679 = vunpack.c.l.b16 %v6311
      %v6680 = vunpack.c.h.b16 %v6311
      %v6681 = vunpack.c.l.b16 %v6312
      %v6682 = vunpack.c.h.b16 %v6312
      %v6683 = vunpack.c.l.b16 %v6313
      %v6684 = vunpack.c.l.b16 %v6314
      %v6685 = vunpack.c.h.b16 %v6314
      %v6686 = vunpack.c.l.b16 %v6315
      %v6687 = vunpack.c.h.b16 %v6315
      %v6688 = vunpack.c.l.b16 %v6316
      %v6689 = vunpack.c.h.b16 %v6316
      %v6690 = vunpack.c.l.b16 %v6317
      %v6691 = vunpack.c.l.b16 %v6318
      %v6692 = vunpack.c.h.b16 %v6318
      %v6693 = vunpack.c.l.b16 %v6319
      %v6694 = vunpack.c.h.b16 %v6319
      %v6695 = vunpack.c.l.b16 %v6320
      %v6696 = vunpack.c.h.b16 %v6320
      %v6697 = vunpack.c.l.b16 %v6321
      %v6698 = vunpack.c.l.b16 %v6322
      %v6699 = vunpack.c.h.b16 %v6322
      %v6700 = vunpack.c.l.b16 %v6323
      %v6701 = vunpack.c.h.b16 %v6323
      %v6702 = vunpack.c.l.b16 %v6324
      %v6703 = vunpack.c.h.b16 %v6324
      %v6704 = vunpack.c.l.b16 %v6325
      %v6705 = vunpack.c.l.b16 %v6326
      %v6706 = vunpack.c.h.b16 %v6326
      %v6707 = vunpack.c.l.b16 %v6327
      %v6708 = vunpack.c.h.b16 %v6327
      %v6709 = vunpack.c.l.b16 %v6328
      %v6710 = vunpack.c.h.b16 %v6328
      %v6711 = vunpack.c.l.b16 %v6329
      %v6712 = vunpack.c.l.b16 %v6330
      %v6713 = vunpack.c.h.b16 %v6330
      %v6714 = vunpack.c.l.b16 %v6331
      %v6715 = vunpack.c.h.b16 %v6331
      %v6716 = vunpack.c.l.b16 %v6332
      %v6717 = vunpack.c.h.b16 %v6332
      %v6718 = vunpack.c.l.b16 %v6333
      %v6719 = vunpack.c.l.b16 %v6334
      %v6720 = vunpack.c.h.b16 %v6334
      %v6721 = vunpack.c.l.b16 %v6335
      %v6722 = vunpack.c.h.b16 %v6335
      %v6723 = vunpack.c.l.b16 %v6336
      %v6724 = vunpack.c.h.b16 %v6336
      %v6725 = vunpack.c.l.b16 %v6337
      %v6726 = vunpack.c.l.b16 %v6338
      %v6727 = vunpack.c.h.b16 %v6338
      %v6728 = vunpack.c.l.b16 %v6339
      %v6729 = vunpack.c.h.b16 %v6339
      %v6730 = vunpack.c.l.b16 %v6340
      %v6731 = vunpack.c.h.b16 %v6340
      %v6732 = vunpack.c.l.b16 %v6341
      %v6733 = vunpack.c.l.b16 %v6342
      %v6734 = vunpack.c.h.b16 %v6342
      %v6735 = vunpack.c.l.b16 %v6343
      %v6736 = vunpack.c.h.b16 %v6343
      %v6737 = vunpack.c.l.b16 %v6344
      %v6738 = vunpack.c.h.b16 %v6344
      %v6739 = vunpack.c.l.b16 %v6345
      %v6740 = vunpack.c.l.b16 %v6346
      %v6741 = vunpack.c.h.b16 %v6346
      %v6742 = vunpack.c.l.b16 %v6347
      %v6743 = vunpack.c.h.b16 %v6347
      %v6744 = vunpack.c.l.b16 %v6348
      %v6745 = vunpack.c.h.b16 %v6348
      %v6746 = vunpack.c.l.b16 %v6349
      %v6747 = vunpack.c.l.b16 %v6350
      %v6748 = vunpack.c.h.b16 %v6350
      %v6749 = vunpack.c.l.b16 %v6351
      %v6750 = vunpack.c.h.b16 %v6351
      %v6751 = vunpack.c.l.b16 %v6352
      %v6752 = vunpack.c.h.b16 %v6352
      %v6753 = vunpack.c.l.b16 %v6353
      %v6754 = vunpack.c.l.b16 %v6354
      %v6755 = vunpack.c.h.b16 %v6354
      %v6756 = vunpack.c.l.b16 %v6355
      %v6757 = vunpack.c.h.b16 %v6355
      %v6758 = vunpack.c.l.b16 %v6356
      %v6759 = vunpack.c.h.b16 %v6356
      %v6760 = vunpack.c.l.b16 %v6357
      %v6761 = vunpack.c.l.b16 %v6358
      %v6762 = vunpack.c.h.b16 %v6358
      %v6763 = vunpack.c.l.b16 %v6359
      %v6764 = vunpack.c.h.b16 %v6359
      %v6765 = vunpack.c.l.b16 %v6360
      %v6766 = vunpack.c.h.b16 %v6360
      %v6767 = vunpack.c.l.b16 %v6361
      %v6768 = vunpack.c.l.b16 %v6362
      %v6769 = vunpack.c.h.b16 %v6362
      %v6770 = vunpack.c.l.b16 %v6363
      %v6771 = vunpack.c.h.b16 %v6363
      %v6772 = vunpack.c.l.b16 %v6364
      %v6773 = vunpack.c.h.b16 %v6364
      %v6774 = vunpack.c.l.b16 %v6365
      %v6775 = vunpack.c.l.b16 %v6366
      %v6776 = vunpack.c.h.b16 %v6366
      %v6777 = vunpack.c.l.b16 %v6367
      %v6778 = vunpack.c.h.b16 %v6367
      %v6779 = vunpack.c.l.b16 %v6368
      %v6780 = vunpack.c.h.b16 %v6368
      %v6781 = vunpack.c.l.b16 %v6369
      %v6782 = vpack.c.b16 %v6537, %v6530
      %v6783 = vpack.c.b16 %v6538, %v6531
      %v6784 = vpack.c.b16 %v6539, %v6532
      %v6785 = vpack.c.b16 %v6540, %v6533
      %v6786 = vpack.c.b16 %v6541, %v6534
      %v6787 = vpack.c.b16 %v6542, %v6535
      %v6788 = vpack.c.b16 %v6543, %v6536
      %v6789 = vpack.c.b16 %v6551, %v6544
      %v6790 = vpack.c.b16 %v6552, %v6545
      %v6791 = vpack.c.b16 %v6553, %v6546
      %v6792 = vpack.c.b16 %v6554, %v6547
      %v6793 = vpack.c.b16 %v6555, %v6548
      %v6794 = vpack.c.b16 %v6556, %v6549
      %v6795 = vpack.c.b16 %v6557, %v6550
      %v6796 = vpack.c.b16 %v6565, %v6558
      %v6797 = vpack.c.b16 %v6566, %v6559
      %v6798 = vpack.c.b16 %v6567, %v6560
      %v6799 = vpack.c.b16 %v6568, %v6561
      %v6800 = vpack.c.b16 %v6569, %v6562
      %v6801 = vpack.c.b16 %v6570, %v6563
      %v6802 = vpack.c.b16 %v6571, %v6564
      %v6803 = vpack.c.b16 %v6579, %v6572
      %v6804 = vpack.c.b16 %v6580, %v6573
      %v6805 = vpack.c.b16 %v6581, %v6574
      %v6806 = vpack.c.b16 %v6582, %v6575
      %v6807 = vpack.c.b16 %v6583, %v6576
      %v6808 = vpack.c.b16 %v6584, %v6577
      %v6809 = vpack.c.b16 %v6585, %v6578
      %v6810 = vpack.c.b16 %v6593, %v6586
      %v6811 = vpack.c.b16 %v6594, %v6587
      %v6812 = vpack.c.b16 %v6595, %v6588
      %v6813 = vpack.c.b16 %v6596, %v6589
      %v6814 = vpack.c.b16 %v6597, %v6590
      %v6815 = vpack.c.b16 %v6598, %v6591
      %v6816 = vpack.c.b16 %v6599, %v6592
      %v6817 = vpack.c.b16 %v6607, %v6600
      %v6818 = vpack.c.b16 %v6608, %v6601
      %v6819 = vpack.c.b16 %v6609, %v6602
      %v6820 = vpack.c.b16 %v6610, %v6603
      %v6821 = vpack.c.b16 %v6611, %v6604
      %v6822 = vpack.c.b16 %v6612, %v6605
      %v6823 = vpack.c.b16 %v6613, %v6606
      %v6824 = vpack.c.b16 %v6621, %v6614
      %v6825 = vpack.c.b16 %v6622, %v6615
      %v6826 = vpack.c.b16 %v6623, %v6616
      %v6827 = vpack.c.b16 %v6624, %v6617
      %v6828 = vpack.c.b16 %v6625, %v6618
      %v6829 = vpack.c.b16 %v6626, %v6619
      %v6830 = vpack.c.b16 %v6627, %v6620
      %v6831 = vpack.c.b16 %v6635, %v6628
      %v6832 = vpack.c.b16 %v6636, %v6629
      %v6833 = vpack.c.b16 %v6637, %v6630
      %v6834 = vpack.c.b16 %v6638, %v6631
      %v6835 = vpack.c.b16 %v6639, %v6632
      %v6836 = vpack.c.b16 %v6640, %v6633
      %v6837 = vpack.c.b16 %v6641, %v6634
      %v6838 = vpack.c.b16 %v6649, %v6642
      %v6839 = vpack.c.b16 %v6650, %v6643
      %v6840 = vpack.c.b16 %v6651, %v6644
      %v6841 = vpack.c.b16 %v6652, %v6645
      %v6842 = vpack.c.b16 %v6653, %v6646
      %v6843 = vpack.c.b16 %v6654, %v6647
      %v6844 = vpack.c.b16 %v6655, %v6648
      %v6845 = vpack.c.b16 %v6663, %v6656
      %v6846 = vpack.c.b16 %v6664, %v6657
      %v6847 = vpack.c.b16 %v6665, %v6658
      %v6848 = vpack.c.b16 %v6666, %v6659
      %v6849 = vpack.c.b16 %v6667, %v6660
      %v6850 = vpack.c.b16 %v6668, %v6661
      %v6851 = vpack.c.b16 %v6669, %v6662
      %v6852 = vpack.c.b16 %v6677, %v6670
      %v6853 = vpack.c.b16 %v6678, %v6671
      %v6854 = vpack.c.b16 %v6679, %v6672
      %v6855 = vpack.c.b16 %v6680, %v6673
      %v6856 = vpack.c.b16 %v6681, %v6674
      %v6857 = vpack.c.b16 %v6682, %v6675
      %v6858 = vpack.c.b16 %v6683, %v6676
      %v6859 = vpack.c.b16 %v6691, %v6684
      %v6860 = vpack.c.b16 %v6692, %v6685
      %v6861 = vpack.c.b16 %v6693, %v6686
      %v6862 = vpack.c.b16 %v6694, %v6687
      %v6863 = vpack.c.b16 %v6695, %v6688
      %v6864 = vpack.c.b16 %v6696, %v6689
      %v6865 = vpack.c.b16 %v6697, %v6690
      %v6866 = vpack.c.b16 %v6705, %v6698
      %v6867 = vpack.c.b16 %v6706, %v6699
      %v6868 = vpack.c.b16 %v6707, %v6700
      %v6869 = vpack.c.b16 %v6708, %v6701
      %v6870 = vpack.c.b16 %v6709, %v6702
      %v6871 = vpack.c.b16 %v6710, %v6703
      %v6872 = vpack.c.b16 %v6711, %v6704
      %v6873 = vpack.c.b16 %v6719, %v6712
      %v6874 = vpack.c.b16 %v6720, %v6713
      %v6875 = vpack.c.b16 %v6721, %v6714
      %v6876 = vpack.c.b16 %v6722, %v6715
      %v6877 = vpack.c.b16 %v6723, %v6716
      %v6878 = vpack.c.b16 %v6724, %v6717
      %v6879 = vpack.c.b16 %v6725, %v6718
      %v6880 = vpack.c.b16 %v6733, %v6726
      %v6881 = vpack.c.b16 %v6734, %v6727
      %v6882 = vpack.c.b16 %v6735, %v6728
      %v6883 = vpack.c.b16 %v6736, %v6729
      %v6884 = vpack.c.b16 %v6737, %v6730
      %v6885 = vpack.c.b16 %v6738, %v6731
      %v6886 = vpack.c.b16 %v6739, %v6732
      %v6887 = vpack.c.b16 %v6747, %v6740
      %v6888 = vpack.c.b16 %v6748, %v6741
      %v6889 = vpack.c.b16 %v6749, %v6742
      %v6890 = vpack.c.b16 %v6750, %v6743
      %v6891 = vpack.c.b16 %v6751, %v6744
      %v6892 = vpack.c.b16 %v6752, %v6745
      %v6893 = vpack.c.b16 %v6753, %v6746
      %v6894 = vpack.c.b16 %v6761, %v6754
      %v6895 = vpack.c.b16 %v6762, %v6755
      %v6896 = vpack.c.b16 %v6763, %v6756
      %v6897 = vpack.c.b16 %v6764, %v6757
      %v6898 = vpack.c.b16 %v6765, %v6758
      %v6899 = vpack.c.b16 %v6766, %v6759
      %v6900 = vpack.c.b16 %v6767, %v6760
      %v6901 = vpack.c.b16 %v6775, %v6768
      %v6902 = vpack.c.b16 %v6776, %v6769
      %v6903 = vpack.c.b16 %v6777, %v6770
      %v6904 = vpack.c.b16 %v6778, %v6771
      %v6905 = vpack.c.b16 %v6779, %v6772
      %v6906 = vpack.c.b16 %v6780, %v6773
      %v6907 = vpack.c.b16 %v6781, %v6774
      %v7035 = vsel %vm4485, %v6180, 0
      %v7038 = vsel %vm4485, %v6183, 0
      %v7041 = vsel %vm4485, %v6186, 0
      %v7044 = vsel %vm4485, %v6189, 0
      %v7047 = vsel %vm4485, %v6192, 0
      %v7050 = vsel %vm4485, %v6195, 0
      %v7053 = vsel %vm4485, %v6198, 0
      %v7056 = vsel %vm4485, %v6201, 0
      %v7059 = vsel %vm4485, %v6204, 0
      %v7062 = vsel %vm4485, %v6207, 0
      %v7065 = vsel %vm4485, %v6210, 0
      %v7068 = vsel %vm4485, %v6213, 0
      %v7071 = vsel %vm4485, %v6216, 0
      %v7074 = vsel %vm4485, %v6219, 0
      %v7077 = vsel %vm4485, %v6222, 0
      %v7080 = vsel %vm4485, %v6225, 0
      %7082 = vmatpush.bf16.msra.mxu0 %v6831
      %7083 = vmatpush.bf16.msra.mxu0 %v6824
      %7084 = vmatpush.bf16.msra.mxu0 %v6817
      %7085 = vmatpush.bf16.msra.mxu0 %v6810
      %7086 = vmatpush.bf16.msra.mxu0 %v6803
      %7087 = vmatpush.bf16.msra.mxu0 %v6796
      %7088 = vmatpush.bf16.msra.mxu0 %v6789
      %7089 = vmatpush.bf16.msra.mxu0 %v6782
      %7090 = vmatmul.bf16.gmra.mxu0 %v6178
      %v7091 = vpop.f32.mrf.mxu0
      %v7092 = vadd.f32 %v6372, %v7091
      %v7093 = vpop.f32.mrf.mxu0
      %v7094 = vadd.f32 %v6372, %v7093
      %7095 = vmatmul.bf16.gmra.mxu0 %v6181
      %v7096 = vpop.f32.mrf.mxu0
      %v7097 = vadd.f32 %v6372, %v7096
      %v7098 = vpop.f32.mrf.mxu0
      %v7099 = vadd.f32 %v6372, %v7098
      %7100 = vmatmul.bf16.gmra.mxu0 %v6184
      %v7101 = vpop.f32.mrf.mxu0
      %v7102 = vadd.f32 %v6372, %v7101
      %v7103 = vpop.f32.mrf.mxu0
      %v7104 = vadd.f32 %v6372, %v7103
      %7105 = vmatmul.bf16.gmra.mxu0 %v6187
      %v7106 = vpop.f32.mrf.mxu0
      %v7107 = vadd.f32 %v6372, %v7106
      %v7108 = vpop.f32.mrf.mxu0
      %v7109 = vadd.f32 %v6372, %v7108
      %7110 = vmatmul.bf16.gmra.mxu0 %v6190
      %v7111 = vpop.f32.mrf.mxu0
      %v7112 = vadd.f32 %v6372, %v7111
      %v7113 = vpop.f32.mrf.mxu0
      %v7114 = vadd.f32 %v6372, %v7113
      %7115 = vmatmul.bf16.gmra.mxu0 %v6193
      %v7116 = vpop.f32.mrf.mxu0
      %v7117 = vadd.f32 %v6372, %v7116
      %v7118 = vpop.f32.mrf.mxu0
      %v7119 = vadd.f32 %v6372, %v7118
      %7120 = vmatmul.bf16.gmra.mxu0 %v6196
      %v7121 = vpop.f32.mrf.mxu0
      %v7122 = vadd.f32 %v6372, %v7121
      %v7123 = vpop.f32.mrf.mxu0
      %v7124 = vadd.f32 %v6372, %v7123
      %7125 = vmatmul.bf16.gmra.mxu0 %v6199
      %v7126 = vpop.f32.mrf.mxu0
      %v7127 = vadd.f32 %v6372, %v7126
      %v7128 = vpop.f32.mrf.mxu0
      %v7129 = vadd.f32 %v6372, %v7128
      %7130 = vmatmul.bf16.gmra.mxu0 %v6202
      %v7131 = vpop.f32.mrf.mxu0
      %v7132 = vadd.f32 %v6372, %v7131
      %v7133 = vpop.f32.mrf.mxu0
      %v7134 = vadd.f32 %v6372, %v7133
      %7135 = vmatmul.bf16.gmra.mxu0 %v6205
      %v7136 = vpop.f32.mrf.mxu0
      %v7137 = vadd.f32 %v6372, %v7136
      %v7138 = vpop.f32.mrf.mxu0
      %v7139 = vadd.f32 %v6372, %v7138
      %7140 = vmatmul.bf16.gmra.mxu0 %v6208
      %v7141 = vpop.f32.mrf.mxu0
      %v7142 = vadd.f32 %v6372, %v7141
      %v7143 = vpop.f32.mrf.mxu0
      %v7144 = vadd.f32 %v6372, %v7143
      %7145 = vmatmul.bf16.gmra.mxu0 %v6211
      %v7146 = vpop.f32.mrf.mxu0
      %v7147 = vadd.f32 %v6372, %v7146
      %v7148 = vpop.f32.mrf.mxu0
      %v7149 = vadd.f32 %v6372, %v7148
      %7150 = vmatmul.bf16.gmra.mxu0 %v6214
      %v7151 = vpop.f32.mrf.mxu0
      %v7152 = vadd.f32 %v6372, %v7151
      %v7153 = vpop.f32.mrf.mxu0
      %v7154 = vadd.f32 %v6372, %v7153
      %7155 = vmatmul.bf16.gmra.mxu0 %v6217
      %v7156 = vpop.f32.mrf.mxu0
      %v7157 = vadd.f32 %v6372, %v7156
      %v7158 = vpop.f32.mrf.mxu0
      %v7159 = vadd.f32 %v6372, %v7158
      %7160 = vmatmul.bf16.gmra.mxu0 %v6220
      %v7161 = vpop.f32.mrf.mxu0
      %v7162 = vadd.f32 %v6372, %v7161
      %v7163 = vpop.f32.mrf.mxu0
      %v7164 = vadd.f32 %v6372, %v7163
      %7165 = vmatmul.bf16.gmra.mxu0 %v6223
      %v7166 = vpop.f32.mrf.mxu0
      %v7167 = vadd.f32 %v6372, %v7166
      %v7168 = vpop.f32.mrf.mxu0
      %v7169 = vadd.f32 %v6372, %v7168
      %7170 = vdwg.mxu0
      %7171 = vmatpush.bf16.msra.mxu0 %v6887
      %7172 = vmatpush.bf16.msra.mxu0 %v6880
      %7173 = vmatpush.bf16.msra.mxu0 %v6873
      %7174 = vmatpush.bf16.msra.mxu0 %v6866
      %7175 = vmatpush.bf16.msra.mxu0 %v6859
      %7176 = vmatpush.bf16.msra.mxu0 %v6852
      %7177 = vmatpush.bf16.msra.mxu0 %v6845
      %7178 = vmatpush.bf16.msra.mxu0 %v6838
      %7179 = vmatmul.bf16.gmra.mxu0 %v6179
      %v7180 = vpop.f32.mrf.mxu0
      %v7181 = vadd.f32 %v7092, %v7180
      %v7182 = vpop.f32.mrf.mxu0
      %v7183 = vadd.f32 %v7094, %v7182
      %7184 = vmatmul.bf16.gmra.mxu0 %v6182
      %v7185 = vpop.f32.mrf.mxu0
      %v7186 = vadd.f32 %v7097, %v7185
      %v7187 = vpop.f32.mrf.mxu0
      %v7188 = vadd.f32 %v7099, %v7187
      %7189 = vmatmul.bf16.gmra.mxu0 %v6185
      %v7190 = vpop.f32.mrf.mxu0
      %v7191 = vadd.f32 %v7102, %v7190
      %v7192 = vpop.f32.mrf.mxu0
      %v7193 = vadd.f32 %v7104, %v7192
      %7194 = vmatmul.bf16.gmra.mxu0 %v6188
      %v7195 = vpop.f32.mrf.mxu0
      %v7196 = vadd.f32 %v7107, %v7195
      %v7197 = vpop.f32.mrf.mxu0
      %v7198 = vadd.f32 %v7109, %v7197
      %7199 = vmatmul.bf16.gmra.mxu0 %v6191
      %v7200 = vpop.f32.mrf.mxu0
      %v7201 = vadd.f32 %v7112, %v7200
      %v7202 = vpop.f32.mrf.mxu0
      %v7203 = vadd.f32 %v7114, %v7202
      %7204 = vmatmul.bf16.gmra.mxu0 %v6194
      %v7205 = vpop.f32.mrf.mxu0
      %v7206 = vadd.f32 %v7117, %v7205
      %v7207 = vpop.f32.mrf.mxu0
      %v7208 = vadd.f32 %v7119, %v7207
      %7209 = vmatmul.bf16.gmra.mxu0 %v6197
      %v7210 = vpop.f32.mrf.mxu0
      %v7211 = vadd.f32 %v7122, %v7210
      %v7212 = vpop.f32.mrf.mxu0
      %v7213 = vadd.f32 %v7124, %v7212
      %7214 = vmatmul.bf16.gmra.mxu0 %v6200
      %v7215 = vpop.f32.mrf.mxu0
      %v7216 = vadd.f32 %v7127, %v7215
      %v7217 = vpop.f32.mrf.mxu0
      %v7218 = vadd.f32 %v7129, %v7217
      %7219 = vmatmul.bf16.gmra.mxu0 %v6203
      %v7220 = vpop.f32.mrf.mxu0
      %v7221 = vadd.f32 %v7132, %v7220
      %v7222 = vpop.f32.mrf.mxu0
      %v7223 = vadd.f32 %v7134, %v7222
      %7224 = vmatmul.bf16.gmra.mxu0 %v6206
      %v7225 = vpop.f32.mrf.mxu0
      %v7226 = vadd.f32 %v7137, %v7225
      %v7227 = vpop.f32.mrf.mxu0
      %v7228 = vadd.f32 %v7139, %v7227
      %7229 = vmatmul.bf16.gmra.mxu0 %v6209
      %v7230 = vpop.f32.mrf.mxu0
      %v7231 = vadd.f32 %v7142, %v7230
      %v7232 = vpop.f32.mrf.mxu0
      %v7233 = vadd.f32 %v7144, %v7232
      %7234 = vmatmul.bf16.gmra.mxu0 %v6212
      %v7235 = vpop.f32.mrf.mxu0
      %v7236 = vadd.f32 %v7147, %v7235
      %v7237 = vpop.f32.mrf.mxu0
      %v7238 = vadd.f32 %v7149, %v7237
      %7239 = vmatmul.bf16.gmra.mxu0 %v6215
      %v7240 = vpop.f32.mrf.mxu0
      %v7241 = vadd.f32 %v7152, %v7240
      %v7242 = vpop.f32.mrf.mxu0
      %v7243 = vadd.f32 %v7154, %v7242
      %7244 = vmatmul.bf16.gmra.mxu0 %v6218
      %v7245 = vpop.f32.mrf.mxu0
      %v7246 = vadd.f32 %v7157, %v7245
      %v7247 = vpop.f32.mrf.mxu0
      %v7248 = vadd.f32 %v7159, %v7247
      %7249 = vmatmul.bf16.gmra.mxu0 %v6221
      %v7250 = vpop.f32.mrf.mxu0
      %v7251 = vadd.f32 %v7162, %v7250
      %v7252 = vpop.f32.mrf.mxu0
      %v7253 = vadd.f32 %v7164, %v7252
      %7254 = vmatmul.bf16.gmra.mxu0 %v6224
      %v7255 = vpop.f32.mrf.mxu0
      %v7256 = vadd.f32 %v7167, %v7255
      %v7257 = vpop.f32.mrf.mxu0
      %v7258 = vadd.f32 %v7169, %v7257
      %7259 = vdwg.mxu0
      %7260 = vmatpush.bf16.msra.mxu0 0
      %7261 = vmatpush.bf16.msra.mxu0 0
      %7262 = vmatpush.bf16.msra.mxu0 0
      %7263 = vmatpush.bf16.msra.mxu0 0
      %7264 = vmatpush.bf16.msra.mxu0 0
      %7265 = vmatpush.bf16.msra.mxu0 0
      %7266 = vmatpush.bf16.msra.mxu0 %v6901
      %7267 = vmatpush.bf16.msra.mxu0 %v6894
      %7268 = vmatmul.bf16.gmra.mxu0 %v7035
      %v7269 = vpop.f32.mrf.mxu0
      %v7270 = vadd.f32 %v7181, %v7269
      %v7271 = vpop.f32.mrf.mxu0
      %v7272 = vadd.f32 %v7183, %v7271
      %7273 = vmatmul.bf16.gmra.mxu0 %v7038
      %v7274 = vpop.f32.mrf.mxu0
      %v7275 = vadd.f32 %v7186, %v7274
      %v7276 = vpop.f32.mrf.mxu0
      %v7277 = vadd.f32 %v7188, %v7276
      %7278 = vmatmul.bf16.gmra.mxu0 %v7041
      %v7279 = vpop.f32.mrf.mxu0
      %v7280 = vadd.f32 %v7191, %v7279
      %v7281 = vpop.f32.mrf.mxu0
      %v7282 = vadd.f32 %v7193, %v7281
      %7283 = vmatmul.bf16.gmra.mxu0 %v7044
      %v7284 = vpop.f32.mrf.mxu0
      %v7285 = vadd.f32 %v7196, %v7284
      %v7286 = vpop.f32.mrf.mxu0
      %v7287 = vadd.f32 %v7198, %v7286
      %7288 = vmatmul.bf16.gmra.mxu0 %v7047
      %v7289 = vpop.f32.mrf.mxu0
      %v7290 = vadd.f32 %v7201, %v7289
      %v7291 = vpop.f32.mrf.mxu0
      %v7292 = vadd.f32 %v7203, %v7291
      %7293 = vmatmul.bf16.gmra.mxu0 %v7050
      %v7294 = vpop.f32.mrf.mxu0
      %v7295 = vadd.f32 %v7206, %v7294
      %v7296 = vpop.f32.mrf.mxu0
      %v7297 = vadd.f32 %v7208, %v7296
      %7298 = vmatmul.bf16.gmra.mxu0 %v7053
      %v7299 = vpop.f32.mrf.mxu0
      %v7300 = vadd.f32 %v7211, %v7299
      %v7301 = vpop.f32.mrf.mxu0
      %v7302 = vadd.f32 %v7213, %v7301
      %7303 = vmatmul.bf16.gmra.mxu0 %v7056
      %v7304 = vpop.f32.mrf.mxu0
      %v7305 = vadd.f32 %v7216, %v7304
      %v7306 = vpop.f32.mrf.mxu0
      %v7307 = vadd.f32 %v7218, %v7306
      %7308 = vmatmul.bf16.gmra.mxu0 %v7059
      %v7309 = vpop.f32.mrf.mxu0
      %v7310 = vadd.f32 %v7221, %v7309
      %v7311 = vpop.f32.mrf.mxu0
      %v7312 = vadd.f32 %v7223, %v7311
      %7313 = vmatmul.bf16.gmra.mxu0 %v7062
      %v7314 = vpop.f32.mrf.mxu0
      %v7315 = vadd.f32 %v7226, %v7314
      %v7316 = vpop.f32.mrf.mxu0
      %v7317 = vadd.f32 %v7228, %v7316
      %7318 = vmatmul.bf16.gmra.mxu0 %v7065
      %v7319 = vpop.f32.mrf.mxu0
      %v7320 = vadd.f32 %v7231, %v7319
      %v7321 = vpop.f32.mrf.mxu0
      %v7322 = vadd.f32 %v7233, %v7321
      %7323 = vmatmul.bf16.gmra.mxu0 %v7068
      %v7324 = vpop.f32.mrf.mxu0
      %v7325 = vadd.f32 %v7236, %v7324
      %v7326 = vpop.f32.mrf.mxu0
      %v7327 = vadd.f32 %v7238, %v7326
      %7328 = vmatmul.bf16.gmra.mxu0 %v7071
      %v7329 = vpop.f32.mrf.mxu0
      %v7330 = vadd.f32 %v7241, %v7329
      %v7331 = vpop.f32.mrf.mxu0
      %v7332 = vadd.f32 %v7243, %v7331
      %7333 = vmatmul.bf16.gmra.mxu0 %v7074
      %v7334 = vpop.f32.mrf.mxu0
      %v7335 = vadd.f32 %v7246, %v7334
      %v7336 = vpop.f32.mrf.mxu0
      %v7337 = vadd.f32 %v7248, %v7336
      %7338 = vmatmul.bf16.gmra.mxu0 %v7077
      %v7339 = vpop.f32.mrf.mxu0
      %v7340 = vadd.f32 %v7251, %v7339
      %v7341 = vpop.f32.mrf.mxu0
      %v7342 = vadd.f32 %v7253, %v7341
      %7343 = vmatmul.bf16.gmra.mxu0 %v7080
      %v7344 = vpop.f32.mrf.mxu0
      %v7345 = vadd.f32 %v7256, %v7344
      %v7346 = vpop.f32.mrf.mxu0
      %v7347 = vadd.f32 %v7258, %v7346
      %7348 = vdwg.mxu0
      %7349 = vmatpush.bf16.msra.mxu0 %v6832
      %7350 = vmatpush.bf16.msra.mxu0 %v6825
      %7351 = vmatpush.bf16.msra.mxu0 %v6818
      %7352 = vmatpush.bf16.msra.mxu0 %v6811
      %7353 = vmatpush.bf16.msra.mxu0 %v6804
      %7354 = vmatpush.bf16.msra.mxu0 %v6797
      %7355 = vmatpush.bf16.msra.mxu0 %v6790
      %7356 = vmatpush.bf16.msra.mxu0 %v6783
      %7357 = vmatmul.bf16.gmra.mxu0 %v6178
      %v7358 = vpop.f32.mrf.mxu0
      %v7359 = vadd.f32 %v6373, %v7358
      %v7360 = vpop.f32.mrf.mxu0
      %v7361 = vadd.f32 %v6373, %v7360
      %7362 = vmatmul.bf16.gmra.mxu0 %v6181
      %v7363 = vpop.f32.mrf.mxu0
      %v7364 = vadd.f32 %v6373, %v7363
      %v7365 = vpop.f32.mrf.mxu0
      %v7366 = vadd.f32 %v6373, %v7365
      %7367 = vmatmul.bf16.gmra.mxu0 %v6184
      %v7368 = vpop.f32.mrf.mxu0
      %v7369 = vadd.f32 %v6373, %v7368
      %v7370 = vpop.f32.mrf.mxu0
      %v7371 = vadd.f32 %v6373, %v7370
      %7372 = vmatmul.bf16.gmra.mxu0 %v6187
      %v7373 = vpop.f32.mrf.mxu0
      %v7374 = vadd.f32 %v6373, %v7373
      %v7375 = vpop.f32.mrf.mxu0
      %v7376 = vadd.f32 %v6373, %v7375
      %7377 = vmatmul.bf16.gmra.mxu0 %v6190
      %v7378 = vpop.f32.mrf.mxu0
      %v7379 = vadd.f32 %v6373, %v7378
      %v7380 = vpop.f32.mrf.mxu0
      %v7381 = vadd.f32 %v6373, %v7380
      %7382 = vmatmul.bf16.gmra.mxu0 %v6193
      %v7383 = vpop.f32.mrf.mxu0
      %v7384 = vadd.f32 %v6373, %v7383
      %v7385 = vpop.f32.mrf.mxu0
      %v7386 = vadd.f32 %v6373, %v7385
      %7387 = vmatmul.bf16.gmra.mxu0 %v6196
      %v7388 = vpop.f32.mrf.mxu0
      %v7389 = vadd.f32 %v6373, %v7388
      %v7390 = vpop.f32.mrf.mxu0
      %v7391 = vadd.f32 %v6373, %v7390
      %7392 = vmatmul.bf16.gmra.mxu0 %v6199
      %v7393 = vpop.f32.mrf.mxu0
      %v7394 = vadd.f32 %v6373, %v7393
      %v7395 = vpop.f32.mrf.mxu0
      %v7396 = vadd.f32 %v6373, %v7395
      %7397 = vmatmul.bf16.gmra.mxu0 %v6202
      %v7398 = vpop.f32.mrf.mxu0
      %v7399 = vadd.f32 %v6373, %v7398
      %v7400 = vpop.f32.mrf.mxu0
      %v7401 = vadd.f32 %v6373, %v7400
      %7402 = vmatmul.bf16.gmra.mxu0 %v6205
      %v7403 = vpop.f32.mrf.mxu0
      %v7404 = vadd.f32 %v6373, %v7403
      %v7405 = vpop.f32.mrf.mxu0
      %v7406 = vadd.f32 %v6373, %v7405
      %7407 = vmatmul.bf16.gmra.mxu0 %v6208
      %v7408 = vpop.f32.mrf.mxu0
      %v7409 = vadd.f32 %v6373, %v7408
      %v7410 = vpop.f32.mrf.mxu0
      %v7411 = vadd.f32 %v6373, %v7410
      %7412 = vmatmul.bf16.gmra.mxu0 %v6211
      %v7413 = vpop.f32.mrf.mxu0
      %v7414 = vadd.f32 %v6373, %v7413
      %v7415 = vpop.f32.mrf.mxu0
      %v7416 = vadd.f32 %v6373, %v7415
      %7417 = vmatmul.bf16.gmra.mxu0 %v6214
      %v7418 = vpop.f32.mrf.mxu0
      %v7419 = vadd.f32 %v6373, %v7418
      %v7420 = vpop.f32.mrf.mxu0
      %v7421 = vadd.f32 %v6373, %v7420
      %7422 = vmatmul.bf16.gmra.mxu0 %v6217
      %v7423 = vpop.f32.mrf.mxu0
      %v7424 = vadd.f32 %v6373, %v7423
      %v7425 = vpop.f32.mrf.mxu0
      %v7426 = vadd.f32 %v6373, %v7425
      %7427 = vmatmul.bf16.gmra.mxu0 %v6220
      %v7428 = vpop.f32.mrf.mxu0
      %v7429 = vadd.f32 %v6373, %v7428
      %v7430 = vpop.f32.mrf.mxu0
      %v7431 = vadd.f32 %v6373, %v7430
      %7432 = vmatmul.bf16.gmra.mxu0 %v6223
      %v7433 = vpop.f32.mrf.mxu0
      %v7434 = vadd.f32 %v6373, %v7433
      %v7435 = vpop.f32.mrf.mxu0
      %v7436 = vadd.f32 %v6373, %v7435
      %7437 = vdwg.mxu0
      %7438 = vmatpush.bf16.msra.mxu0 %v6888
      %7439 = vmatpush.bf16.msra.mxu0 %v6881
      %7440 = vmatpush.bf16.msra.mxu0 %v6874
      %7441 = vmatpush.bf16.msra.mxu0 %v6867
      %7442 = vmatpush.bf16.msra.mxu0 %v6860
      %7443 = vmatpush.bf16.msra.mxu0 %v6853
      %7444 = vmatpush.bf16.msra.mxu0 %v6846
      %7445 = vmatpush.bf16.msra.mxu0 %v6839
      %7446 = vmatmul.bf16.gmra.mxu0 %v6179
      %v7447 = vpop.f32.mrf.mxu0
      %v7448 = vadd.f32 %v7359, %v7447
      %v7449 = vpop.f32.mrf.mxu0
      %v7450 = vadd.f32 %v7361, %v7449
      %7451 = vmatmul.bf16.gmra.mxu0 %v6182
      %v7452 = vpop.f32.mrf.mxu0
      %v7453 = vadd.f32 %v7364, %v7452
      %v7454 = vpop.f32.mrf.mxu0
      %v7455 = vadd.f32 %v7366, %v7454
      %7456 = vmatmul.bf16.gmra.mxu0 %v6185
      %v7457 = vpop.f32.mrf.mxu0
      %v7458 = vadd.f32 %v7369, %v7457
      %v7459 = vpop.f32.mrf.mxu0
      %v7460 = vadd.f32 %v7371, %v7459
      %7461 = vmatmul.bf16.gmra.mxu0 %v6188
      %v7462 = vpop.f32.mrf.mxu0
      %v7463 = vadd.f32 %v7374, %v7462
      %v7464 = vpop.f32.mrf.mxu0
      %v7465 = vadd.f32 %v7376, %v7464
      %7466 = vmatmul.bf16.gmra.mxu0 %v6191
      %v7467 = vpop.f32.mrf.mxu0
      %v7468 = vadd.f32 %v7379, %v7467
      %v7469 = vpop.f32.mrf.mxu0
      %v7470 = vadd.f32 %v7381, %v7469
      %7471 = vmatmul.bf16.gmra.mxu0 %v6194
      %v7472 = vpop.f32.mrf.mxu0
      %v7473 = vadd.f32 %v7384, %v7472
      %v7474 = vpop.f32.mrf.mxu0
      %v7475 = vadd.f32 %v7386, %v7474
      %7476 = vmatmul.bf16.gmra.mxu0 %v6197
      %v7477 = vpop.f32.mrf.mxu0
      %v7478 = vadd.f32 %v7389, %v7477
      %v7479 = vpop.f32.mrf.mxu0
      %v7480 = vadd.f32 %v7391, %v7479
      %7481 = vmatmul.bf16.gmra.mxu0 %v6200
      %v7482 = vpop.f32.mrf.mxu0
      %v7483 = vadd.f32 %v7394, %v7482
      %v7484 = vpop.f32.mrf.mxu0
      %v7485 = vadd.f32 %v7396, %v7484
      %7486 = vmatmul.bf16.gmra.mxu0 %v6203
      %v7487 = vpop.f32.mrf.mxu0
      %v7488 = vadd.f32 %v7399, %v7487
      %v7489 = vpop.f32.mrf.mxu0
      %v7490 = vadd.f32 %v7401, %v7489
      %7491 = vmatmul.bf16.gmra.mxu0 %v6206
      %v7492 = vpop.f32.mrf.mxu0
      %v7493 = vadd.f32 %v7404, %v7492
      %v7494 = vpop.f32.mrf.mxu0
      %v7495 = vadd.f32 %v7406, %v7494
      %7496 = vmatmul.bf16.gmra.mxu0 %v6209
      %v7497 = vpop.f32.mrf.mxu0
      %v7498 = vadd.f32 %v7409, %v7497
      %v7499 = vpop.f32.mrf.mxu0
      %v7500 = vadd.f32 %v7411, %v7499
      %7501 = vmatmul.bf16.gmra.mxu0 %v6212
      %v7502 = vpop.f32.mrf.mxu0
      %v7503 = vadd.f32 %v7414, %v7502
      %v7504 = vpop.f32.mrf.mxu0
      %v7505 = vadd.f32 %v7416, %v7504
      %7506 = vmatmul.bf16.gmra.mxu0 %v6215
      %v7507 = vpop.f32.mrf.mxu0
      %v7508 = vadd.f32 %v7419, %v7507
      %v7509 = vpop.f32.mrf.mxu0
      %v7510 = vadd.f32 %v7421, %v7509
      %7511 = vmatmul.bf16.gmra.mxu0 %v6218
      %v7512 = vpop.f32.mrf.mxu0
      %v7513 = vadd.f32 %v7424, %v7512
      %v7514 = vpop.f32.mrf.mxu0
      %v7515 = vadd.f32 %v7426, %v7514
      %7516 = vmatmul.bf16.gmra.mxu0 %v6221
      %v7517 = vpop.f32.mrf.mxu0
      %v7518 = vadd.f32 %v7429, %v7517
      %v7519 = vpop.f32.mrf.mxu0
      %v7520 = vadd.f32 %v7431, %v7519
      %7521 = vmatmul.bf16.gmra.mxu0 %v6224
      %v7522 = vpop.f32.mrf.mxu0
      %v7523 = vadd.f32 %v7434, %v7522
      %v7524 = vpop.f32.mrf.mxu0
      %v7525 = vadd.f32 %v7436, %v7524
      %7526 = vdwg.mxu0
      %7527 = vmatpush.bf16.msra.mxu0 0
      %7528 = vmatpush.bf16.msra.mxu0 0
      %7529 = vmatpush.bf16.msra.mxu0 0
      %7530 = vmatpush.bf16.msra.mxu0 0
      %7531 = vmatpush.bf16.msra.mxu0 0
      %7532 = vmatpush.bf16.msra.mxu0 0
      %7533 = vmatpush.bf16.msra.mxu0 %v6902
      %7534 = vmatpush.bf16.msra.mxu0 %v6895
      %7535 = vmatmul.bf16.gmra.mxu0 %v7035
      %v7536 = vpop.f32.mrf.mxu0
      %v7537 = vadd.f32 %v7448, %v7536
      %v7538 = vpop.f32.mrf.mxu0
      %v7539 = vadd.f32 %v7450, %v7538
      %7540 = vmatmul.bf16.gmra.mxu0 %v7038
      %v7541 = vpop.f32.mrf.mxu0
      %v7542 = vadd.f32 %v7453, %v7541
      %v7543 = vpop.f32.mrf.mxu0
      %v7544 = vadd.f32 %v7455, %v7543
      %7545 = vmatmul.bf16.gmra.mxu0 %v7041
      %v7546 = vpop.f32.mrf.mxu0
      %v7547 = vadd.f32 %v7458, %v7546
      %v7548 = vpop.f32.mrf.mxu0
      %v7549 = vadd.f32 %v7460, %v7548
      %7550 = vmatmul.bf16.gmra.mxu0 %v7044
      %v7551 = vpop.f32.mrf.mxu0
      %v7552 = vadd.f32 %v7463, %v7551
      %v7553 = vpop.f32.mrf.mxu0
      %v7554 = vadd.f32 %v7465, %v7553
      %7555 = vmatmul.bf16.gmra.mxu0 %v7047
      %v7556 = vpop.f32.mrf.mxu0
      %v7557 = vadd.f32 %v7468, %v7556
      %v7558 = vpop.f32.mrf.mxu0
      %v7559 = vadd.f32 %v7470, %v7558
      %7560 = vmatmul.bf16.gmra.mxu0 %v7050
      %v7561 = vpop.f32.mrf.mxu0
      %v7562 = vadd.f32 %v7473, %v7561
      %v7563 = vpop.f32.mrf.mxu0
      %v7564 = vadd.f32 %v7475, %v7563
      %7565 = vmatmul.bf16.gmra.mxu0 %v7053
      %v7566 = vpop.f32.mrf.mxu0
      %v7567 = vadd.f32 %v7478, %v7566
      %v7568 = vpop.f32.mrf.mxu0
      %v7569 = vadd.f32 %v7480, %v7568
      %7570 = vmatmul.bf16.gmra.mxu0 %v7056
      %v7571 = vpop.f32.mrf.mxu0
      %v7572 = vadd.f32 %v7483, %v7571
      %v7573 = vpop.f32.mrf.mxu0
      %v7574 = vadd.f32 %v7485, %v7573
      %7575 = vmatmul.bf16.gmra.mxu0 %v7059
      %v7576 = vpop.f32.mrf.mxu0
      %v7577 = vadd.f32 %v7488, %v7576
      %v7578 = vpop.f32.mrf.mxu0
      %v7579 = vadd.f32 %v7490, %v7578
      %7580 = vmatmul.bf16.gmra.mxu0 %v7062
      %v7581 = vpop.f32.mrf.mxu0
      %v7582 = vadd.f32 %v7493, %v7581
      %v7583 = vpop.f32.mrf.mxu0
      %v7584 = vadd.f32 %v7495, %v7583
      %7585 = vmatmul.bf16.gmra.mxu0 %v7065
      %v7586 = vpop.f32.mrf.mxu0
      %v7587 = vadd.f32 %v7498, %v7586
      %v7588 = vpop.f32.mrf.mxu0
      %v7589 = vadd.f32 %v7500, %v7588
      %7590 = vmatmul.bf16.gmra.mxu0 %v7068
      %v7591 = vpop.f32.mrf.mxu0
      %v7592 = vadd.f32 %v7503, %v7591
      %v7593 = vpop.f32.mrf.mxu0
      %v7594 = vadd.f32 %v7505, %v7593
      %7595 = vmatmul.bf16.gmra.mxu0 %v7071
      %v7596 = vpop.f32.mrf.mxu0
      %v7597 = vadd.f32 %v7508, %v7596
      %v7598 = vpop.f32.mrf.mxu0
      %v7599 = vadd.f32 %v7510, %v7598
      %7600 = vmatmul.bf16.gmra.mxu0 %v7074
      %v7601 = vpop.f32.mrf.mxu0
      %v7602 = vadd.f32 %v7513, %v7601
      %v7603 = vpop.f32.mrf.mxu0
      %v7604 = vadd.f32 %v7515, %v7603
      %7605 = vmatmul.bf16.gmra.mxu0 %v7077
      %v7606 = vpop.f32.mrf.mxu0
      %v7607 = vadd.f32 %v7518, %v7606
      %v7608 = vpop.f32.mrf.mxu0
      %v7609 = vadd.f32 %v7520, %v7608
      %7610 = vmatmul.bf16.gmra.mxu0 %v7080
      %v7611 = vpop.f32.mrf.mxu0
      %v7612 = vadd.f32 %v7523, %v7611
      %v7613 = vpop.f32.mrf.mxu0
      %v7614 = vadd.f32 %v7525, %v7613
      %7615 = vdwg.mxu0
      %7616 = vmatpush.bf16.msra.mxu0 %v6833
      %7617 = vmatpush.bf16.msra.mxu0 %v6826
      %7618 = vmatpush.bf16.msra.mxu0 %v6819
      %7619 = vmatpush.bf16.msra.mxu0 %v6812
      %7620 = vmatpush.bf16.msra.mxu0 %v6805
      %7621 = vmatpush.bf16.msra.mxu0 %v6798
      %7622 = vmatpush.bf16.msra.mxu0 %v6791
      %7623 = vmatpush.bf16.msra.mxu0 %v6784
      %7624 = vmatmul.bf16.gmra.mxu0 %v6178
      %v7625 = vpop.f32.mrf.mxu0
      %v7626 = vadd.f32 %v6374, %v7625
      %v7627 = vpop.f32.mrf.mxu0
      %v7628 = vadd.f32 %v6374, %v7627
      %7629 = vmatmul.bf16.gmra.mxu0 %v6181
      %v7630 = vpop.f32.mrf.mxu0
      %v7631 = vadd.f32 %v6374, %v7630
      %v7632 = vpop.f32.mrf.mxu0
      %v7633 = vadd.f32 %v6374, %v7632
      %7634 = vmatmul.bf16.gmra.mxu0 %v6184
      %v7635 = vpop.f32.mrf.mxu0
      %v7636 = vadd.f32 %v6374, %v7635
      %v7637 = vpop.f32.mrf.mxu0
      %v7638 = vadd.f32 %v6374, %v7637
      %7639 = vmatmul.bf16.gmra.mxu0 %v6187
      %v7640 = vpop.f32.mrf.mxu0
      %v7641 = vadd.f32 %v6374, %v7640
      %v7642 = vpop.f32.mrf.mxu0
      %v7643 = vadd.f32 %v6374, %v7642
      %7644 = vmatmul.bf16.gmra.mxu0 %v6190
      %v7645 = vpop.f32.mrf.mxu0
      %v7646 = vadd.f32 %v6374, %v7645
      %v7647 = vpop.f32.mrf.mxu0
      %v7648 = vadd.f32 %v6374, %v7647
      %7649 = vmatmul.bf16.gmra.mxu0 %v6193
      %v7650 = vpop.f32.mrf.mxu0
      %v7651 = vadd.f32 %v6374, %v7650
      %v7652 = vpop.f32.mrf.mxu0
      %v7653 = vadd.f32 %v6374, %v7652
      %7654 = vmatmul.bf16.gmra.mxu0 %v6196
      %v7655 = vpop.f32.mrf.mxu0
      %v7656 = vadd.f32 %v6374, %v7655
      %v7657 = vpop.f32.mrf.mxu0
      %v7658 = vadd.f32 %v6374, %v7657
      %7659 = vmatmul.bf16.gmra.mxu0 %v6199
      %v7660 = vpop.f32.mrf.mxu0
      %v7661 = vadd.f32 %v6374, %v7660
      %v7662 = vpop.f32.mrf.mxu0
      %v7663 = vadd.f32 %v6374, %v7662
      %7664 = vmatmul.bf16.gmra.mxu0 %v6202
      %v7665 = vpop.f32.mrf.mxu0
      %v7666 = vadd.f32 %v6374, %v7665
      %v7667 = vpop.f32.mrf.mxu0
      %v7668 = vadd.f32 %v6374, %v7667
      %7669 = vmatmul.bf16.gmra.mxu0 %v6205
      %v7670 = vpop.f32.mrf.mxu0
      %v7671 = vadd.f32 %v6374, %v7670
      %v7672 = vpop.f32.mrf.mxu0
      %v7673 = vadd.f32 %v6374, %v7672
      %7674 = vmatmul.bf16.gmra.mxu0 %v6208
      %v7675 = vpop.f32.mrf.mxu0
      %v7676 = vadd.f32 %v6374, %v7675
      %v7677 = vpop.f32.mrf.mxu0
      %v7678 = vadd.f32 %v6374, %v7677
      %7679 = vmatmul.bf16.gmra.mxu0 %v6211
      %v7680 = vpop.f32.mrf.mxu0
      %v7681 = vadd.f32 %v6374, %v7680
      %v7682 = vpop.f32.mrf.mxu0
      %v7683 = vadd.f32 %v6374, %v7682
      %7684 = vmatmul.bf16.gmra.mxu0 %v6214
      %v7685 = vpop.f32.mrf.mxu0
      %v7686 = vadd.f32 %v6374, %v7685
      %v7687 = vpop.f32.mrf.mxu0
      %v7688 = vadd.f32 %v6374, %v7687
      %7689 = vmatmul.bf16.gmra.mxu0 %v6217
      %v7690 = vpop.f32.mrf.mxu0
      %v7691 = vadd.f32 %v6374, %v7690
      %v7692 = vpop.f32.mrf.mxu0
      %v7693 = vadd.f32 %v6374, %v7692
      %7694 = vmatmul.bf16.gmra.mxu0 %v6220
      %v7695 = vpop.f32.mrf.mxu0
      %v7696 = vadd.f32 %v6374, %v7695
      %v7697 = vpop.f32.mrf.mxu0
      %v7698 = vadd.f32 %v6374, %v7697
      %7699 = vmatmul.bf16.gmra.mxu0 %v6223
      %v7700 = vpop.f32.mrf.mxu0
      %v7701 = vadd.f32 %v6374, %v7700
      %v7702 = vpop.f32.mrf.mxu0
      %v7703 = vadd.f32 %v6374, %v7702
      %7704 = vdwg.mxu0
      %7705 = vmatpush.bf16.msra.mxu0 %v6889
      %7706 = vmatpush.bf16.msra.mxu0 %v6882
      %7707 = vmatpush.bf16.msra.mxu0 %v6875
      %7708 = vmatpush.bf16.msra.mxu0 %v6868
      %7709 = vmatpush.bf16.msra.mxu0 %v6861
      %7710 = vmatpush.bf16.msra.mxu0 %v6854
      %7711 = vmatpush.bf16.msra.mxu0 %v6847
      %7712 = vmatpush.bf16.msra.mxu0 %v6840
      %7713 = vmatmul.bf16.gmra.mxu0 %v6179
      %v7714 = vpop.f32.mrf.mxu0
      %v7715 = vadd.f32 %v7626, %v7714
      %v7716 = vpop.f32.mrf.mxu0
      %v7717 = vadd.f32 %v7628, %v7716
      %7718 = vmatmul.bf16.gmra.mxu0 %v6182
      %v7719 = vpop.f32.mrf.mxu0
      %v7720 = vadd.f32 %v7631, %v7719
      %v7721 = vpop.f32.mrf.mxu0
      %v7722 = vadd.f32 %v7633, %v7721
      %7723 = vmatmul.bf16.gmra.mxu0 %v6185
      %v7724 = vpop.f32.mrf.mxu0
      %v7725 = vadd.f32 %v7636, %v7724
      %v7726 = vpop.f32.mrf.mxu0
      %v7727 = vadd.f32 %v7638, %v7726
      %7728 = vmatmul.bf16.gmra.mxu0 %v6188
      %v7729 = vpop.f32.mrf.mxu0
      %v7730 = vadd.f32 %v7641, %v7729
      %v7731 = vpop.f32.mrf.mxu0
      %v7732 = vadd.f32 %v7643, %v7731
      %7733 = vmatmul.bf16.gmra.mxu0 %v6191
      %v7734 = vpop.f32.mrf.mxu0
      %v7735 = vadd.f32 %v7646, %v7734
      %v7736 = vpop.f32.mrf.mxu0
      %v7737 = vadd.f32 %v7648, %v7736
      %7738 = vmatmul.bf16.gmra.mxu0 %v6194
      %v7739 = vpop.f32.mrf.mxu0
      %v7740 = vadd.f32 %v7651, %v7739
      %v7741 = vpop.f32.mrf.mxu0
      %v7742 = vadd.f32 %v7653, %v7741
      %7743 = vmatmul.bf16.gmra.mxu0 %v6197
      %v7744 = vpop.f32.mrf.mxu0
      %v7745 = vadd.f32 %v7656, %v7744
      %v7746 = vpop.f32.mrf.mxu0
      %v7747 = vadd.f32 %v7658, %v7746
      %7748 = vmatmul.bf16.gmra.mxu0 %v6200
      %v7749 = vpop.f32.mrf.mxu0
      %v7750 = vadd.f32 %v7661, %v7749
      %v7751 = vpop.f32.mrf.mxu0
      %v7752 = vadd.f32 %v7663, %v7751
      %7753 = vmatmul.bf16.gmra.mxu0 %v6203
      %v7754 = vpop.f32.mrf.mxu0
      %v7755 = vadd.f32 %v7666, %v7754
      %v7756 = vpop.f32.mrf.mxu0
      %v7757 = vadd.f32 %v7668, %v7756
      %7758 = vmatmul.bf16.gmra.mxu0 %v6206
      %v7759 = vpop.f32.mrf.mxu0
      %v7760 = vadd.f32 %v7671, %v7759
      %v7761 = vpop.f32.mrf.mxu0
      %v7762 = vadd.f32 %v7673, %v7761
      %7763 = vmatmul.bf16.gmra.mxu0 %v6209
      %v7764 = vpop.f32.mrf.mxu0
      %v7765 = vadd.f32 %v7676, %v7764
      %v7766 = vpop.f32.mrf.mxu0
      %v7767 = vadd.f32 %v7678, %v7766
      %7768 = vmatmul.bf16.gmra.mxu0 %v6212
      %v7769 = vpop.f32.mrf.mxu0
      %v7770 = vadd.f32 %v7681, %v7769
      %v7771 = vpop.f32.mrf.mxu0
      %v7772 = vadd.f32 %v7683, %v7771
      %7773 = vmatmul.bf16.gmra.mxu0 %v6215
      %v7774 = vpop.f32.mrf.mxu0
      %v7775 = vadd.f32 %v7686, %v7774
      %v7776 = vpop.f32.mrf.mxu0
      %v7777 = vadd.f32 %v7688, %v7776
      %7778 = vmatmul.bf16.gmra.mxu0 %v6218
      %v7779 = vpop.f32.mrf.mxu0
      %v7780 = vadd.f32 %v7691, %v7779
      %v7781 = vpop.f32.mrf.mxu0
      %v7782 = vadd.f32 %v7693, %v7781
      %7783 = vmatmul.bf16.gmra.mxu0 %v6221
      %v7784 = vpop.f32.mrf.mxu0
      %v7785 = vadd.f32 %v7696, %v7784
      %v7786 = vpop.f32.mrf.mxu0
      %v7787 = vadd.f32 %v7698, %v7786
      %7788 = vmatmul.bf16.gmra.mxu0 %v6224
      %v7789 = vpop.f32.mrf.mxu0
      %v7790 = vadd.f32 %v7701, %v7789
      %v7791 = vpop.f32.mrf.mxu0
      %v7792 = vadd.f32 %v7703, %v7791
      %7793 = vdwg.mxu0
      %7794 = vmatpush.bf16.msra.mxu0 0
      %7795 = vmatpush.bf16.msra.mxu0 0
      %7796 = vmatpush.bf16.msra.mxu0 0
      %7797 = vmatpush.bf16.msra.mxu0 0
      %7798 = vmatpush.bf16.msra.mxu0 0
      %7799 = vmatpush.bf16.msra.mxu0 0
      %7800 = vmatpush.bf16.msra.mxu0 %v6903
      %7801 = vmatpush.bf16.msra.mxu0 %v6896
      %7802 = vmatmul.bf16.gmra.mxu0 %v7035
      %v7803 = vpop.f32.mrf.mxu0
      %v7804 = vadd.f32 %v7715, %v7803
      %v7805 = vpop.f32.mrf.mxu0
      %v7806 = vadd.f32 %v7717, %v7805
      %7807 = vmatmul.bf16.gmra.mxu0 %v7038
      %v7808 = vpop.f32.mrf.mxu0
      %v7809 = vadd.f32 %v7720, %v7808
      %v7810 = vpop.f32.mrf.mxu0
      %v7811 = vadd.f32 %v7722, %v7810
      %7812 = vmatmul.bf16.gmra.mxu0 %v7041
      %v7813 = vpop.f32.mrf.mxu0
      %v7814 = vadd.f32 %v7725, %v7813
      %v7815 = vpop.f32.mrf.mxu0
      %v7816 = vadd.f32 %v7727, %v7815
      %7817 = vmatmul.bf16.gmra.mxu0 %v7044
      %v7818 = vpop.f32.mrf.mxu0
      %v7819 = vadd.f32 %v7730, %v7818
      %v7820 = vpop.f32.mrf.mxu0
      %v7821 = vadd.f32 %v7732, %v7820
      %7822 = vmatmul.bf16.gmra.mxu0 %v7047
      %v7823 = vpop.f32.mrf.mxu0
      %v7824 = vadd.f32 %v7735, %v7823
      %v7825 = vpop.f32.mrf.mxu0
      %v7826 = vadd.f32 %v7737, %v7825
      %7827 = vmatmul.bf16.gmra.mxu0 %v7050
      %v7828 = vpop.f32.mrf.mxu0
      %v7829 = vadd.f32 %v7740, %v7828
      %v7830 = vpop.f32.mrf.mxu0
      %v7831 = vadd.f32 %v7742, %v7830
      %7832 = vmatmul.bf16.gmra.mxu0 %v7053
      %v7833 = vpop.f32.mrf.mxu0
      %v7834 = vadd.f32 %v7745, %v7833
      %v7835 = vpop.f32.mrf.mxu0
      %v7836 = vadd.f32 %v7747, %v7835
      %7837 = vmatmul.bf16.gmra.mxu0 %v7056
      %v7838 = vpop.f32.mrf.mxu0
      %v7839 = vadd.f32 %v7750, %v7838
      %v7840 = vpop.f32.mrf.mxu0
      %v7841 = vadd.f32 %v7752, %v7840
      %7842 = vmatmul.bf16.gmra.mxu0 %v7059
      %v7843 = vpop.f32.mrf.mxu0
      %v7844 = vadd.f32 %v7755, %v7843
      %v7845 = vpop.f32.mrf.mxu0
      %v7846 = vadd.f32 %v7757, %v7845
      %7847 = vmatmul.bf16.gmra.mxu0 %v7062
      %v7848 = vpop.f32.mrf.mxu0
      %v7849 = vadd.f32 %v7760, %v7848
      %v7850 = vpop.f32.mrf.mxu0
      %v7851 = vadd.f32 %v7762, %v7850
      %7852 = vmatmul.bf16.gmra.mxu0 %v7065
      %v7853 = vpop.f32.mrf.mxu0
      %v7854 = vadd.f32 %v7765, %v7853
      %v7855 = vpop.f32.mrf.mxu0
      %v7856 = vadd.f32 %v7767, %v7855
      %7857 = vmatmul.bf16.gmra.mxu0 %v7068
      %v7858 = vpop.f32.mrf.mxu0
      %v7859 = vadd.f32 %v7770, %v7858
      %v7860 = vpop.f32.mrf.mxu0
      %v7861 = vadd.f32 %v7772, %v7860
      %7862 = vmatmul.bf16.gmra.mxu0 %v7071
      %v7863 = vpop.f32.mrf.mxu0
      %v7864 = vadd.f32 %v7775, %v7863
      %v7865 = vpop.f32.mrf.mxu0
      %v7866 = vadd.f32 %v7777, %v7865
      %7867 = vmatmul.bf16.gmra.mxu0 %v7074
      %v7868 = vpop.f32.mrf.mxu0
      %v7869 = vadd.f32 %v7780, %v7868
      %v7870 = vpop.f32.mrf.mxu0
      %v7871 = vadd.f32 %v7782, %v7870
      %7872 = vmatmul.bf16.gmra.mxu0 %v7077
      %v7873 = vpop.f32.mrf.mxu0
      %v7874 = vadd.f32 %v7785, %v7873
      %v7875 = vpop.f32.mrf.mxu0
      %v7876 = vadd.f32 %v7787, %v7875
      %7877 = vmatmul.bf16.gmra.mxu0 %v7080
      %v7878 = vpop.f32.mrf.mxu0
      %v7879 = vadd.f32 %v7790, %v7878
      %v7880 = vpop.f32.mrf.mxu0
      %v7881 = vadd.f32 %v7792, %v7880
      %7882 = vdwg.mxu0
      %7883 = vmatpush.bf16.msra.mxu0 %v6834
      %7884 = vmatpush.bf16.msra.mxu0 %v6827
      %7885 = vmatpush.bf16.msra.mxu0 %v6820
      %7886 = vmatpush.bf16.msra.mxu0 %v6813
      %7887 = vmatpush.bf16.msra.mxu0 %v6806
      %7888 = vmatpush.bf16.msra.mxu0 %v6799
      %7889 = vmatpush.bf16.msra.mxu0 %v6792
      %7890 = vmatpush.bf16.msra.mxu0 %v6785
      %7891 = vmatmul.bf16.gmra.mxu0 %v6178
      %v7892 = vpop.f32.mrf.mxu0
      %v7893 = vadd.f32 %v6375, %v7892
      %v7894 = vpop.f32.mrf.mxu0
      %v7895 = vadd.f32 %v6375, %v7894
      %7896 = vmatmul.bf16.gmra.mxu0 %v6181
      %v7897 = vpop.f32.mrf.mxu0
      %v7898 = vadd.f32 %v6375, %v7897
      %v7899 = vpop.f32.mrf.mxu0
      %v7900 = vadd.f32 %v6375, %v7899
      %7901 = vmatmul.bf16.gmra.mxu0 %v6184
      %v7902 = vpop.f32.mrf.mxu0
      %v7903 = vadd.f32 %v6375, %v7902
      %v7904 = vpop.f32.mrf.mxu0
      %v7905 = vadd.f32 %v6375, %v7904
      %7906 = vmatmul.bf16.gmra.mxu0 %v6187
      %v7907 = vpop.f32.mrf.mxu0
      %v7908 = vadd.f32 %v6375, %v7907
      %v7909 = vpop.f32.mrf.mxu0
      %v7910 = vadd.f32 %v6375, %v7909
      %7911 = vmatmul.bf16.gmra.mxu0 %v6190
      %v7912 = vpop.f32.mrf.mxu0
      %v7913 = vadd.f32 %v6375, %v7912
      %v7914 = vpop.f32.mrf.mxu0
      %v7915 = vadd.f32 %v6375, %v7914
      %7916 = vmatmul.bf16.gmra.mxu0 %v6193
      %v7917 = vpop.f32.mrf.mxu0
      %v7918 = vadd.f32 %v6375, %v7917
      %v7919 = vpop.f32.mrf.mxu0
      %v7920 = vadd.f32 %v6375, %v7919
      %7921 = vmatmul.bf16.gmra.mxu0 %v6196
      %v7922 = vpop.f32.mrf.mxu0
      %v7923 = vadd.f32 %v6375, %v7922
      %v7924 = vpop.f32.mrf.mxu0
      %v7925 = vadd.f32 %v6375, %v7924
      %7926 = vmatmul.bf16.gmra.mxu0 %v6199
      %v7927 = vpop.f32.mrf.mxu0
      %v7928 = vadd.f32 %v6375, %v7927
      %v7929 = vpop.f32.mrf.mxu0
      %v7930 = vadd.f32 %v6375, %v7929
      %7931 = vmatmul.bf16.gmra.mxu0 %v6202
      %v7932 = vpop.f32.mrf.mxu0
      %v7933 = vadd.f32 %v6375, %v7932
      %v7934 = vpop.f32.mrf.mxu0
      %v7935 = vadd.f32 %v6375, %v7934
      %7936 = vmatmul.bf16.gmra.mxu0 %v6205
      %v7937 = vpop.f32.mrf.mxu0
      %v7938 = vadd.f32 %v6375, %v7937
      %v7939 = vpop.f32.mrf.mxu0
      %v7940 = vadd.f32 %v6375, %v7939
      %7941 = vmatmul.bf16.gmra.mxu0 %v6208
      %v7942 = vpop.f32.mrf.mxu0
      %v7943 = vadd.f32 %v6375, %v7942
      %v7944 = vpop.f32.mrf.mxu0
      %v7945 = vadd.f32 %v6375, %v7944
      %7946 = vmatmul.bf16.gmra.mxu0 %v6211
      %v7947 = vpop.f32.mrf.mxu0
      %v7948 = vadd.f32 %v6375, %v7947
      %v7949 = vpop.f32.mrf.mxu0
      %v7950 = vadd.f32 %v6375, %v7949
      %7951 = vmatmul.bf16.gmra.mxu0 %v6214
      %v7952 = vpop.f32.mrf.mxu0
      %v7953 = vadd.f32 %v6375, %v7952
      %v7954 = vpop.f32.mrf.mxu0
      %v7955 = vadd.f32 %v6375, %v7954
      %7956 = vmatmul.bf16.gmra.mxu0 %v6217
      %v7957 = vpop.f32.mrf.mxu0
      %v7958 = vadd.f32 %v6375, %v7957
      %v7959 = vpop.f32.mrf.mxu0
      %v7960 = vadd.f32 %v6375, %v7959
      %7961 = vmatmul.bf16.gmra.mxu0 %v6220
      %v7962 = vpop.f32.mrf.mxu0
      %v7963 = vadd.f32 %v6375, %v7962
      %v7964 = vpop.f32.mrf.mxu0
      %v7965 = vadd.f32 %v6375, %v7964
      %7966 = vmatmul.bf16.gmra.mxu0 %v6223
      %v7967 = vpop.f32.mrf.mxu0
      %v7968 = vadd.f32 %v6375, %v7967
      %v7969 = vpop.f32.mrf.mxu0
      %v7970 = vadd.f32 %v6375, %v7969
      %7971 = vdwg.mxu0
      %7972 = vmatpush.bf16.msra.mxu0 %v6890
      %7973 = vmatpush.bf16.msra.mxu0 %v6883
      %7974 = vmatpush.bf16.msra.mxu0 %v6876
      %7975 = vmatpush.bf16.msra.mxu0 %v6869
      %7976 = vmatpush.bf16.msra.mxu0 %v6862
      %7977 = vmatpush.bf16.msra.mxu0 %v6855
      %7978 = vmatpush.bf16.msra.mxu0 %v6848
      %7979 = vmatpush.bf16.msra.mxu0 %v6841
      %7980 = vmatmul.bf16.gmra.mxu0 %v6179
      %v7981 = vpop.f32.mrf.mxu0
      %v7982 = vadd.f32 %v7893, %v7981
      %v7983 = vpop.f32.mrf.mxu0
      %v7984 = vadd.f32 %v7895, %v7983
      %7985 = vmatmul.bf16.gmra.mxu0 %v6182
      %v7986 = vpop.f32.mrf.mxu0
      %v7987 = vadd.f32 %v7898, %v7986
      %v7988 = vpop.f32.mrf.mxu0
      %v7989 = vadd.f32 %v7900, %v7988
      %7990 = vmatmul.bf16.gmra.mxu0 %v6185
      %v7991 = vpop.f32.mrf.mxu0
      %v7992 = vadd.f32 %v7903, %v7991
      %v7993 = vpop.f32.mrf.mxu0
      %v7994 = vadd.f32 %v7905, %v7993
      %7995 = vmatmul.bf16.gmra.mxu0 %v6188
      %v7996 = vpop.f32.mrf.mxu0
      %v7997 = vadd.f32 %v7908, %v7996
      %v7998 = vpop.f32.mrf.mxu0
      %v7999 = vadd.f32 %v7910, %v7998
      %8000 = vmatmul.bf16.gmra.mxu0 %v6191
      %v8001 = vpop.f32.mrf.mxu0
      %v8002 = vadd.f32 %v7913, %v8001
      %v8003 = vpop.f32.mrf.mxu0
      %v8004 = vadd.f32 %v7915, %v8003
      %8005 = vmatmul.bf16.gmra.mxu0 %v6194
      %v8006 = vpop.f32.mrf.mxu0
      %v8007 = vadd.f32 %v7918, %v8006
      %v8008 = vpop.f32.mrf.mxu0
      %v8009 = vadd.f32 %v7920, %v8008
      %8010 = vmatmul.bf16.gmra.mxu0 %v6197
      %v8011 = vpop.f32.mrf.mxu0
      %v8012 = vadd.f32 %v7923, %v8011
      %v8013 = vpop.f32.mrf.mxu0
      %v8014 = vadd.f32 %v7925, %v8013
      %8015 = vmatmul.bf16.gmra.mxu0 %v6200
      %v8016 = vpop.f32.mrf.mxu0
      %v8017 = vadd.f32 %v7928, %v8016
      %v8018 = vpop.f32.mrf.mxu0
      %v8019 = vadd.f32 %v7930, %v8018
      %8020 = vmatmul.bf16.gmra.mxu0 %v6203
      %v8021 = vpop.f32.mrf.mxu0
      %v8022 = vadd.f32 %v7933, %v8021
      %v8023 = vpop.f32.mrf.mxu0
      %v8024 = vadd.f32 %v7935, %v8023
      %8025 = vmatmul.bf16.gmra.mxu0 %v6206
      %v8026 = vpop.f32.mrf.mxu0
      %v8027 = vadd.f32 %v7938, %v8026
      %v8028 = vpop.f32.mrf.mxu0
      %v8029 = vadd.f32 %v7940, %v8028
      %8030 = vmatmul.bf16.gmra.mxu0 %v6209
      %v8031 = vpop.f32.mrf.mxu0
      %v8032 = vadd.f32 %v7943, %v8031
      %v8033 = vpop.f32.mrf.mxu0
      %v8034 = vadd.f32 %v7945, %v8033
      %8035 = vmatmul.bf16.gmra.mxu0 %v6212
      %v8036 = vpop.f32.mrf.mxu0
      %v8037 = vadd.f32 %v7948, %v8036
      %v8038 = vpop.f32.mrf.mxu0
      %v8039 = vadd.f32 %v7950, %v8038
      %8040 = vmatmul.bf16.gmra.mxu0 %v6215
      %v8041 = vpop.f32.mrf.mxu0
      %v8042 = vadd.f32 %v7953, %v8041
      %v8043 = vpop.f32.mrf.mxu0
      %v8044 = vadd.f32 %v7955, %v8043
      %8045 = vmatmul.bf16.gmra.mxu0 %v6218
      %v8046 = vpop.f32.mrf.mxu0
      %v8047 = vadd.f32 %v7958, %v8046
      %v8048 = vpop.f32.mrf.mxu0
      %v8049 = vadd.f32 %v7960, %v8048
      %8050 = vmatmul.bf16.gmra.mxu0 %v6221
      %v8051 = vpop.f32.mrf.mxu0
      %v8052 = vadd.f32 %v7963, %v8051
      %v8053 = vpop.f32.mrf.mxu0
      %v8054 = vadd.f32 %v7965, %v8053
      %8055 = vmatmul.bf16.gmra.mxu0 %v6224
      %v8056 = vpop.f32.mrf.mxu0
      %v8057 = vadd.f32 %v7968, %v8056
      %v8058 = vpop.f32.mrf.mxu0
      %v8059 = vadd.f32 %v7970, %v8058
      %8060 = vdwg.mxu0
      %8061 = vmatpush.bf16.msra.mxu0 0
      %8062 = vmatpush.bf16.msra.mxu0 0
      %8063 = vmatpush.bf16.msra.mxu0 0
      %8064 = vmatpush.bf16.msra.mxu0 0
      %8065 = vmatpush.bf16.msra.mxu0 0
      %8066 = vmatpush.bf16.msra.mxu0 0
      %8067 = vmatpush.bf16.msra.mxu0 %v6904
      %8068 = vmatpush.bf16.msra.mxu0 %v6897
      %8069 = vmatmul.bf16.gmra.mxu0 %v7035
      %v8070 = vpop.f32.mrf.mxu0
      %v8071 = vadd.f32 %v7982, %v8070
      %v8072 = vpop.f32.mrf.mxu0
      %v8073 = vadd.f32 %v7984, %v8072
      %8074 = vmatmul.bf16.gmra.mxu0 %v7038
      %v8075 = vpop.f32.mrf.mxu0
      %v8076 = vadd.f32 %v7987, %v8075
      %v8077 = vpop.f32.mrf.mxu0
      %v8078 = vadd.f32 %v7989, %v8077
      %8079 = vmatmul.bf16.gmra.mxu0 %v7041
      %v8080 = vpop.f32.mrf.mxu0
      %v8081 = vadd.f32 %v7992, %v8080
      %v8082 = vpop.f32.mrf.mxu0
      %v8083 = vadd.f32 %v7994, %v8082
      %8084 = vmatmul.bf16.gmra.mxu0 %v7044
      %v8085 = vpop.f32.mrf.mxu0
      %v8086 = vadd.f32 %v7997, %v8085
      %v8087 = vpop.f32.mrf.mxu0
      %v8088 = vadd.f32 %v7999, %v8087
      %8089 = vmatmul.bf16.gmra.mxu0 %v7047
      %v8090 = vpop.f32.mrf.mxu0
      %v8091 = vadd.f32 %v8002, %v8090
      %v8092 = vpop.f32.mrf.mxu0
      %v8093 = vadd.f32 %v8004, %v8092
      %8094 = vmatmul.bf16.gmra.mxu0 %v7050
      %v8095 = vpop.f32.mrf.mxu0
      %v8096 = vadd.f32 %v8007, %v8095
      %v8097 = vpop.f32.mrf.mxu0
      %v8098 = vadd.f32 %v8009, %v8097
      %8099 = vmatmul.bf16.gmra.mxu0 %v7053
      %v8100 = vpop.f32.mrf.mxu0
      %v8101 = vadd.f32 %v8012, %v8100
      %v8102 = vpop.f32.mrf.mxu0
      %v8103 = vadd.f32 %v8014, %v8102
      %8104 = vmatmul.bf16.gmra.mxu0 %v7056
      %v8105 = vpop.f32.mrf.mxu0
      %v8106 = vadd.f32 %v8017, %v8105
      %v8107 = vpop.f32.mrf.mxu0
      %v8108 = vadd.f32 %v8019, %v8107
      %8109 = vmatmul.bf16.gmra.mxu0 %v7059
      %v8110 = vpop.f32.mrf.mxu0
      %v8111 = vadd.f32 %v8022, %v8110
      %v8112 = vpop.f32.mrf.mxu0
      %v8113 = vadd.f32 %v8024, %v8112
      %8114 = vmatmul.bf16.gmra.mxu0 %v7062
      %v8115 = vpop.f32.mrf.mxu0
      %v8116 = vadd.f32 %v8027, %v8115
      %v8117 = vpop.f32.mrf.mxu0
      %v8118 = vadd.f32 %v8029, %v8117
      %8119 = vmatmul.bf16.gmra.mxu0 %v7065
      %v8120 = vpop.f32.mrf.mxu0
      %v8121 = vadd.f32 %v8032, %v8120
      %v8122 = vpop.f32.mrf.mxu0
      %v8123 = vadd.f32 %v8034, %v8122
      %8124 = vmatmul.bf16.gmra.mxu0 %v7068
      %v8125 = vpop.f32.mrf.mxu0
      %v8126 = vadd.f32 %v8037, %v8125
      %v8127 = vpop.f32.mrf.mxu0
      %v8128 = vadd.f32 %v8039, %v8127
      %8129 = vmatmul.bf16.gmra.mxu0 %v7071
      %v8130 = vpop.f32.mrf.mxu0
      %v8131 = vadd.f32 %v8042, %v8130
      %v8132 = vpop.f32.mrf.mxu0
      %v8133 = vadd.f32 %v8044, %v8132
      %8134 = vmatmul.bf16.gmra.mxu0 %v7074
      %v8135 = vpop.f32.mrf.mxu0
      %v8136 = vadd.f32 %v8047, %v8135
      %v8137 = vpop.f32.mrf.mxu0
      %v8138 = vadd.f32 %v8049, %v8137
      %8139 = vmatmul.bf16.gmra.mxu0 %v7077
      %v8140 = vpop.f32.mrf.mxu0
      %v8141 = vadd.f32 %v8052, %v8140
      %v8142 = vpop.f32.mrf.mxu0
      %v8143 = vadd.f32 %v8054, %v8142
      %8144 = vmatmul.bf16.gmra.mxu0 %v7080
      %v8145 = vpop.f32.mrf.mxu0
      %v8146 = vadd.f32 %v8057, %v8145
      %v8147 = vpop.f32.mrf.mxu0
      %v8148 = vadd.f32 %v8059, %v8147
      %8149 = vdwg.mxu0
      %8150 = vmatpush.bf16.msra.mxu0 %v6835
      %8151 = vmatpush.bf16.msra.mxu0 %v6828
      %8152 = vmatpush.bf16.msra.mxu0 %v6821
      %8153 = vmatpush.bf16.msra.mxu0 %v6814
      %8154 = vmatpush.bf16.msra.mxu0 %v6807
      %8155 = vmatpush.bf16.msra.mxu0 %v6800
      %8156 = vmatpush.bf16.msra.mxu0 %v6793
      %8157 = vmatpush.bf16.msra.mxu0 %v6786
      %8158 = vmatmul.bf16.gmra.mxu0 %v6178
      %v8159 = vpop.f32.mrf.mxu0
      %v8160 = vadd.f32 %v6376, %v8159
      %v8161 = vpop.f32.mrf.mxu0
      %v8162 = vadd.f32 %v6376, %v8161
      %8163 = vmatmul.bf16.gmra.mxu0 %v6181
      %v8164 = vpop.f32.mrf.mxu0
      %v8165 = vadd.f32 %v6376, %v8164
      %v8166 = vpop.f32.mrf.mxu0
      %v8167 = vadd.f32 %v6376, %v8166
      %8168 = vmatmul.bf16.gmra.mxu0 %v6184
      %v8169 = vpop.f32.mrf.mxu0
      %v8170 = vadd.f32 %v6376, %v8169
      %v8171 = vpop.f32.mrf.mxu0
      %v8172 = vadd.f32 %v6376, %v8171
      %8173 = vmatmul.bf16.gmra.mxu0 %v6187
      %v8174 = vpop.f32.mrf.mxu0
      %v8175 = vadd.f32 %v6376, %v8174
      %v8176 = vpop.f32.mrf.mxu0
      %v8177 = vadd.f32 %v6376, %v8176
      %8178 = vmatmul.bf16.gmra.mxu0 %v6190
      %v8179 = vpop.f32.mrf.mxu0
      %v8180 = vadd.f32 %v6376, %v8179
      %v8181 = vpop.f32.mrf.mxu0
      %v8182 = vadd.f32 %v6376, %v8181
      %8183 = vmatmul.bf16.gmra.mxu0 %v6193
      %v8184 = vpop.f32.mrf.mxu0
      %v8185 = vadd.f32 %v6376, %v8184
      %v8186 = vpop.f32.mrf.mxu0
      %v8187 = vadd.f32 %v6376, %v8186
      %8188 = vmatmul.bf16.gmra.mxu0 %v6196
      %v8189 = vpop.f32.mrf.mxu0
      %v8190 = vadd.f32 %v6376, %v8189
      %v8191 = vpop.f32.mrf.mxu0
      %v8192 = vadd.f32 %v6376, %v8191
      %8193 = vmatmul.bf16.gmra.mxu0 %v6199
      %v8194 = vpop.f32.mrf.mxu0
      %v8195 = vadd.f32 %v6376, %v8194
      %v8196 = vpop.f32.mrf.mxu0
      %v8197 = vadd.f32 %v6376, %v8196
      %8198 = vmatmul.bf16.gmra.mxu0 %v6202
      %v8199 = vpop.f32.mrf.mxu0
      %v8200 = vadd.f32 %v6376, %v8199
      %v8201 = vpop.f32.mrf.mxu0
      %v8202 = vadd.f32 %v6376, %v8201
      %8203 = vmatmul.bf16.gmra.mxu0 %v6205
      %v8204 = vpop.f32.mrf.mxu0
      %v8205 = vadd.f32 %v6376, %v8204
      %v8206 = vpop.f32.mrf.mxu0
      %v8207 = vadd.f32 %v6376, %v8206
      %8208 = vmatmul.bf16.gmra.mxu0 %v6208
      %v8209 = vpop.f32.mrf.mxu0
      %v8210 = vadd.f32 %v6376, %v8209
      %v8211 = vpop.f32.mrf.mxu0
      %v8212 = vadd.f32 %v6376, %v8211
      %8213 = vmatmul.bf16.gmra.mxu0 %v6211
      %v8214 = vpop.f32.mrf.mxu0
      %v8215 = vadd.f32 %v6376, %v8214
      %v8216 = vpop.f32.mrf.mxu0
      %v8217 = vadd.f32 %v6376, %v8216
      %8218 = vmatmul.bf16.gmra.mxu0 %v6214
      %v8219 = vpop.f32.mrf.mxu0
      %v8220 = vadd.f32 %v6376, %v8219
      %v8221 = vpop.f32.mrf.mxu0
      %v8222 = vadd.f32 %v6376, %v8221
      %8223 = vmatmul.bf16.gmra.mxu0 %v6217
      %v8224 = vpop.f32.mrf.mxu0
      %v8225 = vadd.f32 %v6376, %v8224
      %v8226 = vpop.f32.mrf.mxu0
      %v8227 = vadd.f32 %v6376, %v8226
      %8228 = vmatmul.bf16.gmra.mxu0 %v6220
      %v8229 = vpop.f32.mrf.mxu0
      %v8230 = vadd.f32 %v6376, %v8229
      %v8231 = vpop.f32.mrf.mxu0
      %v8232 = vadd.f32 %v6376, %v8231
      %8233 = vmatmul.bf16.gmra.mxu0 %v6223
      %v8234 = vpop.f32.mrf.mxu0
      %v8235 = vadd.f32 %v6376, %v8234
      %v8236 = vpop.f32.mrf.mxu0
      %v8237 = vadd.f32 %v6376, %v8236
      %8238 = vdwg.mxu0
      %8239 = vmatpush.bf16.msra.mxu0 %v6891
      %8240 = vmatpush.bf16.msra.mxu0 %v6884
      %8241 = vmatpush.bf16.msra.mxu0 %v6877
      %8242 = vmatpush.bf16.msra.mxu0 %v6870
      %8243 = vmatpush.bf16.msra.mxu0 %v6863
      %8244 = vmatpush.bf16.msra.mxu0 %v6856
      %8245 = vmatpush.bf16.msra.mxu0 %v6849
      %8246 = vmatpush.bf16.msra.mxu0 %v6842
      %8247 = vmatmul.bf16.gmra.mxu0 %v6179
      %v8248 = vpop.f32.mrf.mxu0
      %v8249 = vadd.f32 %v8160, %v8248
      %v8250 = vpop.f32.mrf.mxu0
      %v8251 = vadd.f32 %v8162, %v8250
      %8252 = vmatmul.bf16.gmra.mxu0 %v6182
      %v8253 = vpop.f32.mrf.mxu0
      %v8254 = vadd.f32 %v8165, %v8253
      %v8255 = vpop.f32.mrf.mxu0
      %v8256 = vadd.f32 %v8167, %v8255
      %8257 = vmatmul.bf16.gmra.mxu0 %v6185
      %v8258 = vpop.f32.mrf.mxu0
      %v8259 = vadd.f32 %v8170, %v8258
      %v8260 = vpop.f32.mrf.mxu0
      %v8261 = vadd.f32 %v8172, %v8260
      %8262 = vmatmul.bf16.gmra.mxu0 %v6188
      %v8263 = vpop.f32.mrf.mxu0
      %v8264 = vadd.f32 %v8175, %v8263
      %v8265 = vpop.f32.mrf.mxu0
      %v8266 = vadd.f32 %v8177, %v8265
      %8267 = vmatmul.bf16.gmra.mxu0 %v6191
      %v8268 = vpop.f32.mrf.mxu0
      %v8269 = vadd.f32 %v8180, %v8268
      %v8270 = vpop.f32.mrf.mxu0
      %v8271 = vadd.f32 %v8182, %v8270
      %8272 = vmatmul.bf16.gmra.mxu0 %v6194
      %v8273 = vpop.f32.mrf.mxu0
      %v8274 = vadd.f32 %v8185, %v8273
      %v8275 = vpop.f32.mrf.mxu0
      %v8276 = vadd.f32 %v8187, %v8275
      %8277 = vmatmul.bf16.gmra.mxu0 %v6197
      %v8278 = vpop.f32.mrf.mxu0
      %v8279 = vadd.f32 %v8190, %v8278
      %v8280 = vpop.f32.mrf.mxu0
      %v8281 = vadd.f32 %v8192, %v8280
      %8282 = vmatmul.bf16.gmra.mxu0 %v6200
      %v8283 = vpop.f32.mrf.mxu0
      %v8284 = vadd.f32 %v8195, %v8283
      %v8285 = vpop.f32.mrf.mxu0
      %v8286 = vadd.f32 %v8197, %v8285
      %8287 = vmatmul.bf16.gmra.mxu0 %v6203
      %v8288 = vpop.f32.mrf.mxu0
      %v8289 = vadd.f32 %v8200, %v8288
      %v8290 = vpop.f32.mrf.mxu0
      %v8291 = vadd.f32 %v8202, %v8290
      %8292 = vmatmul.bf16.gmra.mxu0 %v6206
      %v8293 = vpop.f32.mrf.mxu0
      %v8294 = vadd.f32 %v8205, %v8293
      %v8295 = vpop.f32.mrf.mxu0
      %v8296 = vadd.f32 %v8207, %v8295
      %8297 = vmatmul.bf16.gmra.mxu0 %v6209
      %v8298 = vpop.f32.mrf.mxu0
      %v8299 = vadd.f32 %v8210, %v8298
      %v8300 = vpop.f32.mrf.mxu0
      %v8301 = vadd.f32 %v8212, %v8300
      %8302 = vmatmul.bf16.gmra.mxu0 %v6212
      %v8303 = vpop.f32.mrf.mxu0
      %v8304 = vadd.f32 %v8215, %v8303
      %v8305 = vpop.f32.mrf.mxu0
      %v8306 = vadd.f32 %v8217, %v8305
      %8307 = vmatmul.bf16.gmra.mxu0 %v6215
      %v8308 = vpop.f32.mrf.mxu0
      %v8309 = vadd.f32 %v8220, %v8308
      %v8310 = vpop.f32.mrf.mxu0
      %v8311 = vadd.f32 %v8222, %v8310
      %8312 = vmatmul.bf16.gmra.mxu0 %v6218
      %v8313 = vpop.f32.mrf.mxu0
      %v8314 = vadd.f32 %v8225, %v8313
      %v8315 = vpop.f32.mrf.mxu0
      %v8316 = vadd.f32 %v8227, %v8315
      %8317 = vmatmul.bf16.gmra.mxu0 %v6221
      %v8318 = vpop.f32.mrf.mxu0
      %v8319 = vadd.f32 %v8230, %v8318
      %v8320 = vpop.f32.mrf.mxu0
      %v8321 = vadd.f32 %v8232, %v8320
      %8322 = vmatmul.bf16.gmra.mxu0 %v6224
      %v8323 = vpop.f32.mrf.mxu0
      %v8324 = vadd.f32 %v8235, %v8323
      %v8325 = vpop.f32.mrf.mxu0
      %v8326 = vadd.f32 %v8237, %v8325
      %8327 = vdwg.mxu0
      %8328 = vmatpush.bf16.msra.mxu0 0
      %8329 = vmatpush.bf16.msra.mxu0 0
      %8330 = vmatpush.bf16.msra.mxu0 0
      %8331 = vmatpush.bf16.msra.mxu0 0
      %8332 = vmatpush.bf16.msra.mxu0 0
      %8333 = vmatpush.bf16.msra.mxu0 0
      %8334 = vmatpush.bf16.msra.mxu0 %v6905
      %8335 = vmatpush.bf16.msra.mxu0 %v6898
      %8336 = vmatmul.bf16.gmra.mxu0 %v7035
      %v8337 = vpop.f32.mrf.mxu0
      %v8338 = vadd.f32 %v8249, %v8337
      %v8339 = vpop.f32.mrf.mxu0
      %v8340 = vadd.f32 %v8251, %v8339
      %8341 = vmatmul.bf16.gmra.mxu0 %v7038
      %v8342 = vpop.f32.mrf.mxu0
      %v8343 = vadd.f32 %v8254, %v8342
      %v8344 = vpop.f32.mrf.mxu0
      %v8345 = vadd.f32 %v8256, %v8344
      %8346 = vmatmul.bf16.gmra.mxu0 %v7041
      %v8347 = vpop.f32.mrf.mxu0
      %v8348 = vadd.f32 %v8259, %v8347
      %v8349 = vpop.f32.mrf.mxu0
      %v8350 = vadd.f32 %v8261, %v8349
      %8351 = vmatmul.bf16.gmra.mxu0 %v7044
      %v8352 = vpop.f32.mrf.mxu0
      %v8353 = vadd.f32 %v8264, %v8352
      %v8354 = vpop.f32.mrf.mxu0
      %v8355 = vadd.f32 %v8266, %v8354
      %8356 = vmatmul.bf16.gmra.mxu0 %v7047
      %v8357 = vpop.f32.mrf.mxu0
      %v8358 = vadd.f32 %v8269, %v8357
      %v8359 = vpop.f32.mrf.mxu0
      %v8360 = vadd.f32 %v8271, %v8359
      %8361 = vmatmul.bf16.gmra.mxu0 %v7050
      %v8362 = vpop.f32.mrf.mxu0
      %v8363 = vadd.f32 %v8274, %v8362
      %v8364 = vpop.f32.mrf.mxu0
      %v8365 = vadd.f32 %v8276, %v8364
      %8366 = vmatmul.bf16.gmra.mxu0 %v7053
      %v8367 = vpop.f32.mrf.mxu0
      %v8368 = vadd.f32 %v8279, %v8367
      %v8369 = vpop.f32.mrf.mxu0
      %v8370 = vadd.f32 %v8281, %v8369
      %8371 = vmatmul.bf16.gmra.mxu0 %v7056
      %v8372 = vpop.f32.mrf.mxu0
      %v8373 = vadd.f32 %v8284, %v8372
      %v8374 = vpop.f32.mrf.mxu0
      %v8375 = vadd.f32 %v8286, %v8374
      %8376 = vmatmul.bf16.gmra.mxu0 %v7059
      %v8377 = vpop.f32.mrf.mxu0
      %v8378 = vadd.f32 %v8289, %v8377
      %v8379 = vpop.f32.mrf.mxu0
      %v8380 = vadd.f32 %v8291, %v8379
      %8381 = vmatmul.bf16.gmra.mxu0 %v7062
      %v8382 = vpop.f32.mrf.mxu0
      %v8383 = vadd.f32 %v8294, %v8382
      %v8384 = vpop.f32.mrf.mxu0
      %v8385 = vadd.f32 %v8296, %v8384
      %8386 = vmatmul.bf16.gmra.mxu0 %v7065
      %v8387 = vpop.f32.mrf.mxu0
      %v8388 = vadd.f32 %v8299, %v8387
      %v8389 = vpop.f32.mrf.mxu0
      %v8390 = vadd.f32 %v8301, %v8389
      %8391 = vmatmul.bf16.gmra.mxu0 %v7068
      %v8392 = vpop.f32.mrf.mxu0
      %v8393 = vadd.f32 %v8304, %v8392
      %v8394 = vpop.f32.mrf.mxu0
      %v8395 = vadd.f32 %v8306, %v8394
      %8396 = vmatmul.bf16.gmra.mxu0 %v7071
      %v8397 = vpop.f32.mrf.mxu0
      %v8398 = vadd.f32 %v8309, %v8397
      %v8399 = vpop.f32.mrf.mxu0
      %v8400 = vadd.f32 %v8311, %v8399
      %8401 = vmatmul.bf16.gmra.mxu0 %v7074
      %v8402 = vpop.f32.mrf.mxu0
      %v8403 = vadd.f32 %v8314, %v8402
      %v8404 = vpop.f32.mrf.mxu0
      %v8405 = vadd.f32 %v8316, %v8404
      %8406 = vmatmul.bf16.gmra.mxu0 %v7077
      %v8407 = vpop.f32.mrf.mxu0
      %v8408 = vadd.f32 %v8319, %v8407
      %v8409 = vpop.f32.mrf.mxu0
      %v8410 = vadd.f32 %v8321, %v8409
      %8411 = vmatmul.bf16.gmra.mxu0 %v7080
      %v8412 = vpop.f32.mrf.mxu0
      %v8413 = vadd.f32 %v8324, %v8412
      %v8414 = vpop.f32.mrf.mxu0
      %v8415 = vadd.f32 %v8326, %v8414
      %8416 = vdwg.mxu0
      %8417 = vmatpush.bf16.msra.mxu0 %v6836
      %8418 = vmatpush.bf16.msra.mxu0 %v6829
      %8419 = vmatpush.bf16.msra.mxu0 %v6822
      %8420 = vmatpush.bf16.msra.mxu0 %v6815
      %8421 = vmatpush.bf16.msra.mxu0 %v6808
      %8422 = vmatpush.bf16.msra.mxu0 %v6801
      %8423 = vmatpush.bf16.msra.mxu0 %v6794
      %8424 = vmatpush.bf16.msra.mxu0 %v6787
      %8425 = vmatmul.bf16.gmra.mxu0 %v6178
      %v8426 = vpop.f32.mrf.mxu0
      %v8427 = vadd.f32 %v6377, %v8426
      %v8428 = vpop.f32.mrf.mxu0
      %v8429 = vadd.f32 %v6377, %v8428
      %8430 = vmatmul.bf16.gmra.mxu0 %v6181
      %v8431 = vpop.f32.mrf.mxu0
      %v8432 = vadd.f32 %v6377, %v8431
      %v8433 = vpop.f32.mrf.mxu0
      %v8434 = vadd.f32 %v6377, %v8433
      %8435 = vmatmul.bf16.gmra.mxu0 %v6184
      %v8436 = vpop.f32.mrf.mxu0
      %v8437 = vadd.f32 %v6377, %v8436
      %v8438 = vpop.f32.mrf.mxu0
      %v8439 = vadd.f32 %v6377, %v8438
      %8440 = vmatmul.bf16.gmra.mxu0 %v6187
      %v8441 = vpop.f32.mrf.mxu0
      %v8442 = vadd.f32 %v6377, %v8441
      %v8443 = vpop.f32.mrf.mxu0
      %v8444 = vadd.f32 %v6377, %v8443
      %8445 = vmatmul.bf16.gmra.mxu0 %v6190
      %v8446 = vpop.f32.mrf.mxu0
      %v8447 = vadd.f32 %v6377, %v8446
      %v8448 = vpop.f32.mrf.mxu0
      %v8449 = vadd.f32 %v6377, %v8448
      %8450 = vmatmul.bf16.gmra.mxu0 %v6193
      %v8451 = vpop.f32.mrf.mxu0
      %v8452 = vadd.f32 %v6377, %v8451
      %v8453 = vpop.f32.mrf.mxu0
      %v8454 = vadd.f32 %v6377, %v8453
      %8455 = vmatmul.bf16.gmra.mxu0 %v6196
      %v8456 = vpop.f32.mrf.mxu0
      %v8457 = vadd.f32 %v6377, %v8456
      %v8458 = vpop.f32.mrf.mxu0
      %v8459 = vadd.f32 %v6377, %v8458
      %8460 = vmatmul.bf16.gmra.mxu0 %v6199
      %v8461 = vpop.f32.mrf.mxu0
      %v8462 = vadd.f32 %v6377, %v8461
      %v8463 = vpop.f32.mrf.mxu0
      %v8464 = vadd.f32 %v6377, %v8463
      %8465 = vmatmul.bf16.gmra.mxu0 %v6202
      %v8466 = vpop.f32.mrf.mxu0
      %v8467 = vadd.f32 %v6377, %v8466
      %v8468 = vpop.f32.mrf.mxu0
      %v8469 = vadd.f32 %v6377, %v8468
      %8470 = vmatmul.bf16.gmra.mxu0 %v6205
      %v8471 = vpop.f32.mrf.mxu0
      %v8472 = vadd.f32 %v6377, %v8471
      %v8473 = vpop.f32.mrf.mxu0
      %v8474 = vadd.f32 %v6377, %v8473
      %8475 = vmatmul.bf16.gmra.mxu0 %v6208
      %v8476 = vpop.f32.mrf.mxu0
      %v8477 = vadd.f32 %v6377, %v8476
      %v8478 = vpop.f32.mrf.mxu0
      %v8479 = vadd.f32 %v6377, %v8478
      %8480 = vmatmul.bf16.gmra.mxu0 %v6211
      %v8481 = vpop.f32.mrf.mxu0
      %v8482 = vadd.f32 %v6377, %v8481
      %v8483 = vpop.f32.mrf.mxu0
      %v8484 = vadd.f32 %v6377, %v8483
      %8485 = vmatmul.bf16.gmra.mxu0 %v6214
      %v8486 = vpop.f32.mrf.mxu0
      %v8487 = vadd.f32 %v6377, %v8486
      %v8488 = vpop.f32.mrf.mxu0
      %v8489 = vadd.f32 %v6377, %v8488
      %8490 = vmatmul.bf16.gmra.mxu0 %v6217
      %v8491 = vpop.f32.mrf.mxu0
      %v8492 = vadd.f32 %v6377, %v8491
      %v8493 = vpop.f32.mrf.mxu0
      %v8494 = vadd.f32 %v6377, %v8493
      %8495 = vmatmul.bf16.gmra.mxu0 %v6220
      %v8496 = vpop.f32.mrf.mxu0
      %v8497 = vadd.f32 %v6377, %v8496
      %v8498 = vpop.f32.mrf.mxu0
      %v8499 = vadd.f32 %v6377, %v8498
      %8500 = vmatmul.bf16.gmra.mxu0 %v6223
      %v8501 = vpop.f32.mrf.mxu0
      %v8502 = vadd.f32 %v6377, %v8501
      %v8503 = vpop.f32.mrf.mxu0
      %v8504 = vadd.f32 %v6377, %v8503
      %8505 = vdwg.mxu0
      %8506 = vmatpush.bf16.msra.mxu0 %v6892
      %8507 = vmatpush.bf16.msra.mxu0 %v6885
      %8508 = vmatpush.bf16.msra.mxu0 %v6878
      %8509 = vmatpush.bf16.msra.mxu0 %v6871
      %8510 = vmatpush.bf16.msra.mxu0 %v6864
      %8511 = vmatpush.bf16.msra.mxu0 %v6857
      %8512 = vmatpush.bf16.msra.mxu0 %v6850
      %8513 = vmatpush.bf16.msra.mxu0 %v6843
      %8514 = vmatmul.bf16.gmra.mxu0 %v6179
      %v8515 = vpop.f32.mrf.mxu0
      %v8516 = vadd.f32 %v8427, %v8515
      %v8517 = vpop.f32.mrf.mxu0
      %v8518 = vadd.f32 %v8429, %v8517
      %8519 = vmatmul.bf16.gmra.mxu0 %v6182
      %v8520 = vpop.f32.mrf.mxu0
      %v8521 = vadd.f32 %v8432, %v8520
      %v8522 = vpop.f32.mrf.mxu0
      %v8523 = vadd.f32 %v8434, %v8522
      %8524 = vmatmul.bf16.gmra.mxu0 %v6185
      %v8525 = vpop.f32.mrf.mxu0
      %v8526 = vadd.f32 %v8437, %v8525
      %v8527 = vpop.f32.mrf.mxu0
      %v8528 = vadd.f32 %v8439, %v8527
      %8529 = vmatmul.bf16.gmra.mxu0 %v6188
      %v8530 = vpop.f32.mrf.mxu0
      %v8531 = vadd.f32 %v8442, %v8530
      %v8532 = vpop.f32.mrf.mxu0
      %v8533 = vadd.f32 %v8444, %v8532
      %8534 = vmatmul.bf16.gmra.mxu0 %v6191
      %v8535 = vpop.f32.mrf.mxu0
      %v8536 = vadd.f32 %v8447, %v8535
      %v8537 = vpop.f32.mrf.mxu0
      %v8538 = vadd.f32 %v8449, %v8537
      %8539 = vmatmul.bf16.gmra.mxu0 %v6194
      %v8540 = vpop.f32.mrf.mxu0
      %v8541 = vadd.f32 %v8452, %v8540
      %v8542 = vpop.f32.mrf.mxu0
      %v8543 = vadd.f32 %v8454, %v8542
      %8544 = vmatmul.bf16.gmra.mxu0 %v6197
      %v8545 = vpop.f32.mrf.mxu0
      %v8546 = vadd.f32 %v8457, %v8545
      %v8547 = vpop.f32.mrf.mxu0
      %v8548 = vadd.f32 %v8459, %v8547
      %8549 = vmatmul.bf16.gmra.mxu0 %v6200
      %v8550 = vpop.f32.mrf.mxu0
      %v8551 = vadd.f32 %v8462, %v8550
      %v8552 = vpop.f32.mrf.mxu0
      %v8553 = vadd.f32 %v8464, %v8552
      %8554 = vmatmul.bf16.gmra.mxu0 %v6203
      %v8555 = vpop.f32.mrf.mxu0
      %v8556 = vadd.f32 %v8467, %v8555
      %v8557 = vpop.f32.mrf.mxu0
      %v8558 = vadd.f32 %v8469, %v8557
      %8559 = vmatmul.bf16.gmra.mxu0 %v6206
      %v8560 = vpop.f32.mrf.mxu0
      %v8561 = vadd.f32 %v8472, %v8560
      %v8562 = vpop.f32.mrf.mxu0
      %v8563 = vadd.f32 %v8474, %v8562
      %8564 = vmatmul.bf16.gmra.mxu0 %v6209
      %v8565 = vpop.f32.mrf.mxu0
      %v8566 = vadd.f32 %v8477, %v8565
      %v8567 = vpop.f32.mrf.mxu0
      %v8568 = vadd.f32 %v8479, %v8567
      %8569 = vmatmul.bf16.gmra.mxu0 %v6212
      %v8570 = vpop.f32.mrf.mxu0
      %v8571 = vadd.f32 %v8482, %v8570
      %v8572 = vpop.f32.mrf.mxu0
      %v8573 = vadd.f32 %v8484, %v8572
      %8574 = vmatmul.bf16.gmra.mxu0 %v6215
      %v8575 = vpop.f32.mrf.mxu0
      %v8576 = vadd.f32 %v8487, %v8575
      %v8577 = vpop.f32.mrf.mxu0
      %v8578 = vadd.f32 %v8489, %v8577
      %8579 = vmatmul.bf16.gmra.mxu0 %v6218
      %v8580 = vpop.f32.mrf.mxu0
      %v8581 = vadd.f32 %v8492, %v8580
      %v8582 = vpop.f32.mrf.mxu0
      %v8583 = vadd.f32 %v8494, %v8582
      %8584 = vmatmul.bf16.gmra.mxu0 %v6221
      %v8585 = vpop.f32.mrf.mxu0
      %v8586 = vadd.f32 %v8497, %v8585
      %v8587 = vpop.f32.mrf.mxu0
      %v8588 = vadd.f32 %v8499, %v8587
      %8589 = vmatmul.bf16.gmra.mxu0 %v6224
      %v8590 = vpop.f32.mrf.mxu0
      %v8591 = vadd.f32 %v8502, %v8590
      %v8592 = vpop.f32.mrf.mxu0
      %v8593 = vadd.f32 %v8504, %v8592
      %8594 = vdwg.mxu0
      %8595 = vmatpush.bf16.msra.mxu0 0
      %8596 = vmatpush.bf16.msra.mxu0 0
      %8597 = vmatpush.bf16.msra.mxu0 0
      %8598 = vmatpush.bf16.msra.mxu0 0
      %8599 = vmatpush.bf16.msra.mxu0 0
      %8600 = vmatpush.bf16.msra.mxu0 0
      %8601 = vmatpush.bf16.msra.mxu0 %v6906
      %8602 = vmatpush.bf16.msra.mxu0 %v6899
      %8603 = vmatmul.bf16.gmra.mxu0 %v7035
      %v8604 = vpop.f32.mrf.mxu0
      %v8605 = vadd.f32 %v8516, %v8604
      %v8606 = vpop.f32.mrf.mxu0
      %v8607 = vadd.f32 %v8518, %v8606
      %8608 = vmatmul.bf16.gmra.mxu0 %v7038
      %v8609 = vpop.f32.mrf.mxu0
      %v8610 = vadd.f32 %v8521, %v8609
      %v8611 = vpop.f32.mrf.mxu0
      %v8612 = vadd.f32 %v8523, %v8611
      %8613 = vmatmul.bf16.gmra.mxu0 %v7041
      %v8614 = vpop.f32.mrf.mxu0
      %v8615 = vadd.f32 %v8526, %v8614
      %v8616 = vpop.f32.mrf.mxu0
      %v8617 = vadd.f32 %v8528, %v8616
      %8618 = vmatmul.bf16.gmra.mxu0 %v7044
      %v8619 = vpop.f32.mrf.mxu0
      %v8620 = vadd.f32 %v8531, %v8619
      %v8621 = vpop.f32.mrf.mxu0
      %v8622 = vadd.f32 %v8533, %v8621
      %8623 = vmatmul.bf16.gmra.mxu0 %v7047
      %v8624 = vpop.f32.mrf.mxu0
      %v8625 = vadd.f32 %v8536, %v8624
      %v8626 = vpop.f32.mrf.mxu0
      %v8627 = vadd.f32 %v8538, %v8626
      %8628 = vmatmul.bf16.gmra.mxu0 %v7050
      %v8629 = vpop.f32.mrf.mxu0
      %v8630 = vadd.f32 %v8541, %v8629
      %v8631 = vpop.f32.mrf.mxu0
      %v8632 = vadd.f32 %v8543, %v8631
      %8633 = vmatmul.bf16.gmra.mxu0 %v7053
      %v8634 = vpop.f32.mrf.mxu0
      %v8635 = vadd.f32 %v8546, %v8634
      %v8636 = vpop.f32.mrf.mxu0
      %v8637 = vadd.f32 %v8548, %v8636
      %8638 = vmatmul.bf16.gmra.mxu0 %v7056
      %v8639 = vpop.f32.mrf.mxu0
      %v8640 = vadd.f32 %v8551, %v8639
      %v8641 = vpop.f32.mrf.mxu0
      %v8642 = vadd.f32 %v8553, %v8641
      %8643 = vmatmul.bf16.gmra.mxu0 %v7059
      %v8644 = vpop.f32.mrf.mxu0
      %v8645 = vadd.f32 %v8556, %v8644
      %v8646 = vpop.f32.mrf.mxu0
      %v8647 = vadd.f32 %v8558, %v8646
      %8648 = vmatmul.bf16.gmra.mxu0 %v7062
      %v8649 = vpop.f32.mrf.mxu0
      %v8650 = vadd.f32 %v8561, %v8649
      %v8651 = vpop.f32.mrf.mxu0
      %v8652 = vadd.f32 %v8563, %v8651
      %8653 = vmatmul.bf16.gmra.mxu0 %v7065
      %v8654 = vpop.f32.mrf.mxu0
      %v8655 = vadd.f32 %v8566, %v8654
      %v8656 = vpop.f32.mrf.mxu0
      %v8657 = vadd.f32 %v8568, %v8656
      %8658 = vmatmul.bf16.gmra.mxu0 %v7068
      %v8659 = vpop.f32.mrf.mxu0
      %v8660 = vadd.f32 %v8571, %v8659
      %v8661 = vpop.f32.mrf.mxu0
      %v8662 = vadd.f32 %v8573, %v8661
      %8663 = vmatmul.bf16.gmra.mxu0 %v7071
      %v8664 = vpop.f32.mrf.mxu0
      %v8665 = vadd.f32 %v8576, %v8664
      %v8666 = vpop.f32.mrf.mxu0
      %v8667 = vadd.f32 %v8578, %v8666
      %8668 = vmatmul.bf16.gmra.mxu0 %v7074
      %v8669 = vpop.f32.mrf.mxu0
      %v8670 = vadd.f32 %v8581, %v8669
      %v8671 = vpop.f32.mrf.mxu0
      %v8672 = vadd.f32 %v8583, %v8671
      %8673 = vmatmul.bf16.gmra.mxu0 %v7077
      %v8674 = vpop.f32.mrf.mxu0
      %v8675 = vadd.f32 %v8586, %v8674
      %v8676 = vpop.f32.mrf.mxu0
      %v8677 = vadd.f32 %v8588, %v8676
      %8678 = vmatmul.bf16.gmra.mxu0 %v7080
      %v8679 = vpop.f32.mrf.mxu0
      %v8680 = vadd.f32 %v8591, %v8679
      %v8681 = vpop.f32.mrf.mxu0
      %v8682 = vadd.f32 %v8593, %v8681
      %8683 = vdwg.mxu0
      %8684 = vmatpush.bf16.msra.mxu0 %v6837
      %8685 = vmatpush.bf16.msra.mxu0 %v6830
      %8686 = vmatpush.bf16.msra.mxu0 %v6823
      %8687 = vmatpush.bf16.msra.mxu0 %v6816
      %8688 = vmatpush.bf16.msra.mxu0 %v6809
      %8689 = vmatpush.bf16.msra.mxu0 %v6802
      %8690 = vmatpush.bf16.msra.mxu0 %v6795
      %8691 = vmatpush.bf16.msra.mxu0 %v6788
      %8692 = vmatmul.bf16.gmra.mxu0 %v6178
      %v8693 = vpop.f32.mrf.mxu0
      %v8694 = vadd.f32 %v6378, %v8693
      %v8695 = vpop.f32.mrf.mxu0
      %v8696 = vadd.f32 %v6378, %v8695
      %8697 = vmatmul.bf16.gmra.mxu0 %v6181
      %v8698 = vpop.f32.mrf.mxu0
      %v8699 = vadd.f32 %v6378, %v8698
      %v8700 = vpop.f32.mrf.mxu0
      %v8701 = vadd.f32 %v6378, %v8700
      %8702 = vmatmul.bf16.gmra.mxu0 %v6184
      %v8703 = vpop.f32.mrf.mxu0
      %v8704 = vadd.f32 %v6378, %v8703
      %v8705 = vpop.f32.mrf.mxu0
      %v8706 = vadd.f32 %v6378, %v8705
      %8707 = vmatmul.bf16.gmra.mxu0 %v6187
      %v8708 = vpop.f32.mrf.mxu0
      %v8709 = vadd.f32 %v6378, %v8708
      %v8710 = vpop.f32.mrf.mxu0
      %v8711 = vadd.f32 %v6378, %v8710
      %8712 = vmatmul.bf16.gmra.mxu0 %v6190
      %v8713 = vpop.f32.mrf.mxu0
      %v8714 = vadd.f32 %v6378, %v8713
      %v8715 = vpop.f32.mrf.mxu0
      %v8716 = vadd.f32 %v6378, %v8715
      %8717 = vmatmul.bf16.gmra.mxu0 %v6193
      %v8718 = vpop.f32.mrf.mxu0
      %v8719 = vadd.f32 %v6378, %v8718
      %v8720 = vpop.f32.mrf.mxu0
      %v8721 = vadd.f32 %v6378, %v8720
      %8722 = vmatmul.bf16.gmra.mxu0 %v6196
      %v8723 = vpop.f32.mrf.mxu0
      %v8724 = vadd.f32 %v6378, %v8723
      %v8725 = vpop.f32.mrf.mxu0
      %v8726 = vadd.f32 %v6378, %v8725
      %8727 = vmatmul.bf16.gmra.mxu0 %v6199
      %v8728 = vpop.f32.mrf.mxu0
      %v8729 = vadd.f32 %v6378, %v8728
      %v8730 = vpop.f32.mrf.mxu0
      %v8731 = vadd.f32 %v6378, %v8730
      %8732 = vmatmul.bf16.gmra.mxu0 %v6202
      %v8733 = vpop.f32.mrf.mxu0
      %v8734 = vadd.f32 %v6378, %v8733
      %v8735 = vpop.f32.mrf.mxu0
      %v8736 = vadd.f32 %v6378, %v8735
      %8737 = vmatmul.bf16.gmra.mxu0 %v6205
      %v8738 = vpop.f32.mrf.mxu0
      %v8739 = vadd.f32 %v6378, %v8738
      %v8740 = vpop.f32.mrf.mxu0
      %v8741 = vadd.f32 %v6378, %v8740
      %8742 = vmatmul.bf16.gmra.mxu0 %v6208
      %v8743 = vpop.f32.mrf.mxu0
      %v8744 = vadd.f32 %v6378, %v8743
      %v8745 = vpop.f32.mrf.mxu0
      %v8746 = vadd.f32 %v6378, %v8745
      %8747 = vmatmul.bf16.gmra.mxu0 %v6211
      %v8748 = vpop.f32.mrf.mxu0
      %v8749 = vadd.f32 %v6378, %v8748
      %v8750 = vpop.f32.mrf.mxu0
      %v8751 = vadd.f32 %v6378, %v8750
      %8752 = vmatmul.bf16.gmra.mxu0 %v6214
      %v8753 = vpop.f32.mrf.mxu0
      %v8754 = vadd.f32 %v6378, %v8753
      %v8755 = vpop.f32.mrf.mxu0
      %v8756 = vadd.f32 %v6378, %v8755
      %8757 = vmatmul.bf16.gmra.mxu0 %v6217
      %v8758 = vpop.f32.mrf.mxu0
      %v8759 = vadd.f32 %v6378, %v8758
      %v8760 = vpop.f32.mrf.mxu0
      %v8761 = vadd.f32 %v6378, %v8760
      %8762 = vmatmul.bf16.gmra.mxu0 %v6220
      %v8763 = vpop.f32.mrf.mxu0
      %v8764 = vadd.f32 %v6378, %v8763
      %v8765 = vpop.f32.mrf.mxu0
      %v8766 = vadd.f32 %v6378, %v8765
      %8767 = vmatmul.bf16.gmra.mxu0 %v6223
      %v8768 = vpop.f32.mrf.mxu0
      %v8769 = vadd.f32 %v6378, %v8768
      %v8770 = vpop.f32.mrf.mxu0
      %v8771 = vadd.f32 %v6378, %v8770
      %8772 = vdwg.mxu0
      %8773 = vmatpush.bf16.msra.mxu0 %v6893
      %8774 = vmatpush.bf16.msra.mxu0 %v6886
      %8775 = vmatpush.bf16.msra.mxu0 %v6879
      %8776 = vmatpush.bf16.msra.mxu0 %v6872
      %8777 = vmatpush.bf16.msra.mxu0 %v6865
      %8778 = vmatpush.bf16.msra.mxu0 %v6858
      %8779 = vmatpush.bf16.msra.mxu0 %v6851
      %8780 = vmatpush.bf16.msra.mxu0 %v6844
      %8781 = vmatmul.bf16.gmra.mxu0 %v6179
      %v8782 = vpop.f32.mrf.mxu0
      %v8783 = vadd.f32 %v8694, %v8782
      %v8784 = vpop.f32.mrf.mxu0
      %v8785 = vadd.f32 %v8696, %v8784
      %8786 = vmatmul.bf16.gmra.mxu0 %v6182
      %v8787 = vpop.f32.mrf.mxu0
      %v8788 = vadd.f32 %v8699, %v8787
      %v8789 = vpop.f32.mrf.mxu0
      %v8790 = vadd.f32 %v8701, %v8789
      %8791 = vmatmul.bf16.gmra.mxu0 %v6185
      %v8792 = vpop.f32.mrf.mxu0
      %v8793 = vadd.f32 %v8704, %v8792
      %v8794 = vpop.f32.mrf.mxu0
      %v8795 = vadd.f32 %v8706, %v8794
      %8796 = vmatmul.bf16.gmra.mxu0 %v6188
      %v8797 = vpop.f32.mrf.mxu0
      %v8798 = vadd.f32 %v8709, %v8797
      %v8799 = vpop.f32.mrf.mxu0
      %v8800 = vadd.f32 %v8711, %v8799
      %8801 = vmatmul.bf16.gmra.mxu0 %v6191
      %v8802 = vpop.f32.mrf.mxu0
      %v8803 = vadd.f32 %v8714, %v8802
      %v8804 = vpop.f32.mrf.mxu0
      %v8805 = vadd.f32 %v8716, %v8804
      %8806 = vmatmul.bf16.gmra.mxu0 %v6194
      %v8807 = vpop.f32.mrf.mxu0
      %v8808 = vadd.f32 %v8719, %v8807
      %v8809 = vpop.f32.mrf.mxu0
      %v8810 = vadd.f32 %v8721, %v8809
      %8811 = vmatmul.bf16.gmra.mxu0 %v6197
      %v8812 = vpop.f32.mrf.mxu0
      %v8813 = vadd.f32 %v8724, %v8812
      %v8814 = vpop.f32.mrf.mxu0
      %v8815 = vadd.f32 %v8726, %v8814
      %8816 = vmatmul.bf16.gmra.mxu0 %v6200
      %v8817 = vpop.f32.mrf.mxu0
      %v8818 = vadd.f32 %v8729, %v8817
      %v8819 = vpop.f32.mrf.mxu0
      %v8820 = vadd.f32 %v8731, %v8819
      %8821 = vmatmul.bf16.gmra.mxu0 %v6203
      %v8822 = vpop.f32.mrf.mxu0
      %v8823 = vadd.f32 %v8734, %v8822
      %v8824 = vpop.f32.mrf.mxu0
      %v8825 = vadd.f32 %v8736, %v8824
      %8826 = vmatmul.bf16.gmra.mxu0 %v6206
      %v8827 = vpop.f32.mrf.mxu0
      %v8828 = vadd.f32 %v8739, %v8827
      %v8829 = vpop.f32.mrf.mxu0
      %v8830 = vadd.f32 %v8741, %v8829
      %8831 = vmatmul.bf16.gmra.mxu0 %v6209
      %v8832 = vpop.f32.mrf.mxu0
      %v8833 = vadd.f32 %v8744, %v8832
      %v8834 = vpop.f32.mrf.mxu0
      %v8835 = vadd.f32 %v8746, %v8834
      %8836 = vmatmul.bf16.gmra.mxu0 %v6212
      %v8837 = vpop.f32.mrf.mxu0
      %v8838 = vadd.f32 %v8749, %v8837
      %v8839 = vpop.f32.mrf.mxu0
      %v8840 = vadd.f32 %v8751, %v8839
      %8841 = vmatmul.bf16.gmra.mxu0 %v6215
      %v8842 = vpop.f32.mrf.mxu0
      %v8843 = vadd.f32 %v8754, %v8842
      %v8844 = vpop.f32.mrf.mxu0
      %v8845 = vadd.f32 %v8756, %v8844
      %8846 = vmatmul.bf16.gmra.mxu0 %v6218
      %v8847 = vpop.f32.mrf.mxu0
      %v8848 = vadd.f32 %v8759, %v8847
      %v8849 = vpop.f32.mrf.mxu0
      %v8850 = vadd.f32 %v8761, %v8849
      %8851 = vmatmul.bf16.gmra.mxu0 %v6221
      %v8852 = vpop.f32.mrf.mxu0
      %v8853 = vadd.f32 %v8764, %v8852
      %v8854 = vpop.f32.mrf.mxu0
      %v8855 = vadd.f32 %v8766, %v8854
      %8856 = vmatmul.bf16.gmra.mxu0 %v6224
      %v8857 = vpop.f32.mrf.mxu0
      %v8858 = vadd.f32 %v8769, %v8857
      %v8859 = vpop.f32.mrf.mxu0
      %v8860 = vadd.f32 %v8771, %v8859
      %8861 = vdwg.mxu0
      %8862 = vmatpush.bf16.msra.mxu0 0
      %8863 = vmatpush.bf16.msra.mxu0 0
      %8864 = vmatpush.bf16.msra.mxu0 0
      %8865 = vmatpush.bf16.msra.mxu0 0
      %8866 = vmatpush.bf16.msra.mxu0 0
      %8867 = vmatpush.bf16.msra.mxu0 0
      %8868 = vmatpush.bf16.msra.mxu0 %v6907
      %8869 = vmatpush.bf16.msra.mxu0 %v6900
      %8870 = vmatmul.bf16.gmra.mxu0 %v7035
      %v8871 = vpop.f32.mrf.mxu0
      %v8872 = vadd.f32 %v8783, %v8871
      %v8873 = vpop.f32.mrf.mxu0
      %v8874 = vadd.f32 %v8785, %v8873
      %8875 = vmatmul.bf16.gmra.mxu0 %v7038
      %v8876 = vpop.f32.mrf.mxu0
      %v8877 = vadd.f32 %v8788, %v8876
      %v8878 = vpop.f32.mrf.mxu0
      %v8879 = vadd.f32 %v8790, %v8878
      %8880 = vmatmul.bf16.gmra.mxu0 %v7041
      %v8881 = vpop.f32.mrf.mxu0
      %v8882 = vadd.f32 %v8793, %v8881
      %v8883 = vpop.f32.mrf.mxu0
      %v8884 = vadd.f32 %v8795, %v8883
      %8885 = vmatmul.bf16.gmra.mxu0 %v7044
      %v8886 = vpop.f32.mrf.mxu0
      %v8887 = vadd.f32 %v8798, %v8886
      %v8888 = vpop.f32.mrf.mxu0
      %v8889 = vadd.f32 %v8800, %v8888
      %8890 = vmatmul.bf16.gmra.mxu0 %v7047
      %v8891 = vpop.f32.mrf.mxu0
      %v8892 = vadd.f32 %v8803, %v8891
      %v8893 = vpop.f32.mrf.mxu0
      %v8894 = vadd.f32 %v8805, %v8893
      %8895 = vmatmul.bf16.gmra.mxu0 %v7050
      %v8896 = vpop.f32.mrf.mxu0
      %v8897 = vadd.f32 %v8808, %v8896
      %v8898 = vpop.f32.mrf.mxu0
      %v8899 = vadd.f32 %v8810, %v8898
      %8900 = vmatmul.bf16.gmra.mxu0 %v7053
      %v8901 = vpop.f32.mrf.mxu0
      %v8902 = vadd.f32 %v8813, %v8901
      %v8903 = vpop.f32.mrf.mxu0
      %v8904 = vadd.f32 %v8815, %v8903
      %8905 = vmatmul.bf16.gmra.mxu0 %v7056
      %v8906 = vpop.f32.mrf.mxu0
      %v8907 = vadd.f32 %v8818, %v8906
      %v8908 = vpop.f32.mrf.mxu0
      %v8909 = vadd.f32 %v8820, %v8908
      %8910 = vmatmul.bf16.gmra.mxu0 %v7059
      %v8911 = vpop.f32.mrf.mxu0
      %v8912 = vadd.f32 %v8823, %v8911
      %v8913 = vpop.f32.mrf.mxu0
      %v8914 = vadd.f32 %v8825, %v8913
      %8915 = vmatmul.bf16.gmra.mxu0 %v7062
      %v8916 = vpop.f32.mrf.mxu0
      %v8917 = vadd.f32 %v8828, %v8916
      %v8918 = vpop.f32.mrf.mxu0
      %v8919 = vadd.f32 %v8830, %v8918
      %8920 = vmatmul.bf16.gmra.mxu0 %v7065
      %v8921 = vpop.f32.mrf.mxu0
      %v8922 = vadd.f32 %v8833, %v8921
      %v8923 = vpop.f32.mrf.mxu0
      %v8924 = vadd.f32 %v8835, %v8923
      %8925 = vmatmul.bf16.gmra.mxu0 %v7068
      %v8926 = vpop.f32.mrf.mxu0
      %v8927 = vadd.f32 %v8838, %v8926
      %v8928 = vpop.f32.mrf.mxu0
      %v8929 = vadd.f32 %v8840, %v8928
      %8930 = vmatmul.bf16.gmra.mxu0 %v7071
      %v8931 = vpop.f32.mrf.mxu0
      %v8932 = vadd.f32 %v8843, %v8931
      %v8933 = vpop.f32.mrf.mxu0
      %v8934 = vadd.f32 %v8845, %v8933
      %8935 = vmatmul.bf16.gmra.mxu0 %v7074
      %v8936 = vpop.f32.mrf.mxu0
      %v8937 = vadd.f32 %v8848, %v8936
      %v8938 = vpop.f32.mrf.mxu0
      %v8939 = vadd.f32 %v8850, %v8938
      %8940 = vmatmul.bf16.gmra.mxu0 %v7077
      %v8941 = vpop.f32.mrf.mxu0
      %v8942 = vadd.f32 %v8853, %v8941
      %v8943 = vpop.f32.mrf.mxu0
      %v8944 = vadd.f32 %v8855, %v8943
      %8945 = vmatmul.bf16.gmra.mxu0 %v7080
      %v8946 = vpop.f32.mrf.mxu0
      %v8947 = vadd.f32 %v8858, %v8946
      %v8948 = vpop.f32.mrf.mxu0
      %v8949 = vadd.f32 %v8860, %v8948
      %8950 = vdwg.mxu0
      %8951 = vst [vmem:[%s590] sm:$0xff] %v7270
      %8952 = vst [vmem:[%s590 + $0x8] sm:$0xff] %v7537
      %8953 = vst [vmem:[%s590 + $0x10] sm:$0xff] %v7804
      %8954 = vst [vmem:[%s590 + $0x18] sm:$0xff] %v8071
      %8955 = vst [vmem:[%s590 + $0x20] sm:$0xff] %v8338
      %8956 = vst [vmem:[%s590 + $0x28] sm:$0xff] %v8605
      %8957 = vst.msk [vmem:[%s590 + $0x30] sm:$0xff] %vm2275, %v8872
      %8958 = vst [vmem:[%s590 + $0x38] sm:$0xff] %v7272
      %8959 = vst [vmem:[%s590 + $0x40] sm:$0xff] %v7539
      %8960 = vst [vmem:[%s590 + $0x48] sm:$0xff] %v7806
      %8961 = vst [vmem:[%s590 + $0x50] sm:$0xff] %v8073
      %8962 = vst [vmem:[%s590 + $0x58] sm:$0xff] %v8340
      %8963 = vst [vmem:[%s590 + $0x60] sm:$0xff] %v8607
      %8964 = vst.msk [vmem:[%s590 + $0x68] sm:$0xff] %vm2275, %v8874
      %8965 = vst [vmem:[%s590 + $0x70] sm:$0xff] %v7275
      %8966 = vst [vmem:[%s590 + $0x78] sm:$0xff] %v7542
      %8967 = vst [vmem:[%s590 + $0x80] sm:$0xff] %v7809
      %8968 = vst [vmem:[%s590 + $0x88] sm:$0xff] %v8076
      %8969 = vst [vmem:[%s590 + $0x90] sm:$0xff] %v8343
      %8970 = vst [vmem:[%s590 + $0x98] sm:$0xff] %v8610
      %8971 = vst.msk [vmem:[%s590 + $0xa0] sm:$0xff] %vm2275, %v8877
      %8972 = vst [vmem:[%s590 + $0xa8] sm:$0xff] %v7277
      %8973 = vst [vmem:[%s590 + $0xb0] sm:$0xff] %v7544
      %8974 = vst [vmem:[%s590 + $0xb8] sm:$0xff] %v7811
      %8975 = vst [vmem:[%s590 + $0xc0] sm:$0xff] %v8078
      %8976 = vst [vmem:[%s590 + $0xc8] sm:$0xff] %v8345
      %8977 = vst [vmem:[%s590 + $0xd0] sm:$0xff] %v8612
      %8978 = vst.msk [vmem:[%s590 + $0xd8] sm:$0xff] %vm2275, %v8879
      %8979 = vst [vmem:[%s590 + $0xe0] sm:$0xff] %v7280
      %8980 = vst [vmem:[%s590 + $0xe8] sm:$0xff] %v7547
      %8981 = vst [vmem:[%s590 + $0xf0] sm:$0xff] %v7814
      %8982 = vst [vmem:[%s590 + $0xf8] sm:$0xff] %v8081
      %8983 = vst [vmem:[%s590 + $0x100] sm:$0xff] %v8348
      %8984 = vst [vmem:[%s590 + $0x108] sm:$0xff] %v8615
      %8985 = vst.msk [vmem:[%s590 + $0x110] sm:$0xff] %vm2275, %v8882
      %8986 = vst [vmem:[%s590 + $0x118] sm:$0xff] %v7282
      %8987 = vst [vmem:[%s590 + $0x120] sm:$0xff] %v7549
      %8988 = vst [vmem:[%s590 + $0x128] sm:$0xff] %v7816
      %8989 = vst [vmem:[%s590 + $0x130] sm:$0xff] %v8083
      %8990 = vst [vmem:[%s590 + $0x138] sm:$0xff] %v8350
      %8991 = vst [vmem:[%s590 + $0x140] sm:$0xff] %v8617
      %8992 = vst.msk [vmem:[%s590 + $0x148] sm:$0xff] %vm2275, %v8884
      %8993 = vst [vmem:[%s590 + $0x150] sm:$0xff] %v7285
      %8994 = vst [vmem:[%s590 + $0x158] sm:$0xff] %v7552
      %8995 = vst [vmem:[%s590 + $0x160] sm:$0xff] %v7819
      %8996 = vst [vmem:[%s590 + $0x168] sm:$0xff] %v8086
      %8997 = vst [vmem:[%s590 + $0x170] sm:$0xff] %v8353
      %8998 = vst [vmem:[%s590 + $0x178] sm:$0xff] %v8620
      %8999 = vst.msk [vmem:[%s590 + $0x180] sm:$0xff] %vm2275, %v8887
      %9000 = vst [vmem:[%s590 + $0x188] sm:$0xff] %v7287
      %9001 = vst [vmem:[%s590 + $0x190] sm:$0xff] %v7554
      %9002 = vst [vmem:[%s590 + $0x198] sm:$0xff] %v7821
      %9003 = vst [vmem:[%s590 + $0x1a0] sm:$0xff] %v8088
      %9004 = vst [vmem:[%s590 + $0x1a8] sm:$0xff] %v8355
      %9005 = vst [vmem:[%s590 + $0x1b0] sm:$0xff] %v8622
      %9006 = vst.msk [vmem:[%s590 + $0x1b8] sm:$0xff] %vm2275, %v8889
      %9007 = vst [vmem:[%s590 + $0x1c0] sm:$0xff] %v7290
      %9008 = vst [vmem:[%s590 + $0x1c8] sm:$0xff] %v7557
      %9009 = vst [vmem:[%s590 + $0x1d0] sm:$0xff] %v7824
      %9010 = vst [vmem:[%s590 + $0x1d8] sm:$0xff] %v8091
      %9011 = vst [vmem:[%s590 + $0x1e0] sm:$0xff] %v8358
      %9012 = vst [vmem:[%s590 + $0x1e8] sm:$0xff] %v8625
      %9013 = vst.msk [vmem:[%s590 + $0x1f0] sm:$0xff] %vm2275, %v8892
      %9014 = vst [vmem:[%s590 + $0x1f8] sm:$0xff] %v7292
      %9015 = vst [vmem:[%s590 + $0x200] sm:$0xff] %v7559
      %9016 = vst [vmem:[%s590 + $0x208] sm:$0xff] %v7826
      %9017 = vst [vmem:[%s590 + $0x210] sm:$0xff] %v8093
      %9018 = vst [vmem:[%s590 + $0x218] sm:$0xff] %v8360
      %9019 = vst [vmem:[%s590 + $0x220] sm:$0xff] %v8627
      %9020 = vst.msk [vmem:[%s590 + $0x228] sm:$0xff] %vm2275, %v8894
      %9021 = vst [vmem:[%s590 + $0x230] sm:$0xff] %v7295
      %9022 = vst [vmem:[%s590 + $0x238] sm:$0xff] %v7562
      %9023 = vst [vmem:[%s590 + $0x240] sm:$0xff] %v7829
      %9024 = vst [vmem:[%s590 + $0x248] sm:$0xff] %v8096
      %9025 = vst [vmem:[%s590 + $0x250] sm:$0xff] %v8363
      %9026 = vst [vmem:[%s590 + $0x258] sm:$0xff] %v8630
      %9027 = vst.msk [vmem:[%s590 + $0x260] sm:$0xff] %vm2275, %v8897
      %9028 = vst [vmem:[%s590 + $0x268] sm:$0xff] %v7297
      %9029 = vst [vmem:[%s590 + $0x270] sm:$0xff] %v7564
      %9030 = vst [vmem:[%s590 + $0x278] sm:$0xff] %v7831
      %9031 = vst [vmem:[%s590 + $0x280] sm:$0xff] %v8098
      %9032 = vst [vmem:[%s590 + $0x288] sm:$0xff] %v8365
      %9033 = vst [vmem:[%s590 + $0x290] sm:$0xff] %v8632
      %9034 = vst.msk [vmem:[%s590 + $0x298] sm:$0xff] %vm2275, %v8899
      %9035 = vst [vmem:[%s590 + $0x2a0] sm:$0xff] %v7300
      %9036 = vst [vmem:[%s590 + $0x2a8] sm:$0xff] %v7567
      %9037 = vst [vmem:[%s590 + $0x2b0] sm:$0xff] %v7834
      %9038 = vst [vmem:[%s590 + $0x2b8] sm:$0xff] %v8101
      %9039 = vst [vmem:[%s590 + $0x2c0] sm:$0xff] %v8368
      %9040 = vst [vmem:[%s590 + $0x2c8] sm:$0xff] %v8635
      %9041 = vst.msk [vmem:[%s590 + $0x2d0] sm:$0xff] %vm2275, %v8902
      %9042 = vst [vmem:[%s590 + $0x2d8] sm:$0xff] %v7302
      %9043 = vst [vmem:[%s590 + $0x2e0] sm:$0xff] %v7569
      %9044 = vst [vmem:[%s590 + $0x2e8] sm:$0xff] %v7836
      %9045 = vst [vmem:[%s590 + $0x2f0] sm:$0xff] %v8103
      %9046 = vst [vmem:[%s590 + $0x2f8] sm:$0xff] %v8370
      %9047 = vst [vmem:[%s590 + $0x300] sm:$0xff] %v8637
      %9048 = vst.msk [vmem:[%s590 + $0x308] sm:$0xff] %vm2275, %v8904
      %9049 = vst [vmem:[%s590 + $0x310] sm:$0xff] %v7305
      %9050 = vst [vmem:[%s590 + $0x318] sm:$0xff] %v7572
      %9051 = vst [vmem:[%s590 + $0x320] sm:$0xff] %v7839
      %9052 = vst [vmem:[%s590 + $0x328] sm:$0xff] %v8106
      %9053 = vst [vmem:[%s590 + $0x330] sm:$0xff] %v8373
      %9054 = vst [vmem:[%s590 + $0x338] sm:$0xff] %v8640
      %9055 = vst.msk [vmem:[%s590 + $0x340] sm:$0xff] %vm2275, %v8907
      %9056 = vst [vmem:[%s590 + $0x348] sm:$0xff] %v7307
      %9057 = vst [vmem:[%s590 + $0x350] sm:$0xff] %v7574
      %9058 = vst [vmem:[%s590 + $0x358] sm:$0xff] %v7841
      %9059 = vst [vmem:[%s590 + $0x360] sm:$0xff] %v8108
      %9060 = vst [vmem:[%s590 + $0x368] sm:$0xff] %v8375
      %9061 = vst [vmem:[%s590 + $0x370] sm:$0xff] %v8642
      %9062 = vst.msk [vmem:[%s590 + $0x378] sm:$0xff] %vm2275, %v8909
      %9063 = vst [vmem:[%s590 + $0x380] sm:$0xff] %v7310
      %9064 = vst [vmem:[%s590 + $0x388] sm:$0xff] %v7577
      %9065 = vst [vmem:[%s590 + $0x390] sm:$0xff] %v7844
      %9066 = vst [vmem:[%s590 + $0x398] sm:$0xff] %v8111
      %9067 = vst [vmem:[%s590 + $0x3a0] sm:$0xff] %v8378
      %9068 = vst [vmem:[%s590 + $0x3a8] sm:$0xff] %v8645
      %9069 = vst.msk [vmem:[%s590 + $0x3b0] sm:$0xff] %vm2275, %v8912
      %9070 = vst [vmem:[%s590 + $0x3b8] sm:$0xff] %v7312
      %9071 = vst [vmem:[%s590 + $0x3c0] sm:$0xff] %v7579
      %9072 = vst [vmem:[%s590 + $0x3c8] sm:$0xff] %v7846
      %9073 = vst [vmem:[%s590 + $0x3d0] sm:$0xff] %v8113
      %9074 = vst [vmem:[%s590 + $0x3d8] sm:$0xff] %v8380
      %9075 = vst [vmem:[%s590 + $0x3e0] sm:$0xff] %v8647
      %9076 = vst.msk [vmem:[%s590 + $0x3e8] sm:$0xff] %vm2275, %v8914
      %9077 = vst [vmem:[%s590 + $0x3f0] sm:$0xff] %v7315
      %9078 = vst [vmem:[%s590 + $0x3f8] sm:$0xff] %v7582
      %9079 = vst [vmem:[%s590 + $0x400] sm:$0xff] %v7849
      %9080 = vst [vmem:[%s590 + $0x408] sm:$0xff] %v8116
      %9081 = vst [vmem:[%s590 + $0x410] sm:$0xff] %v8383
      %9082 = vst [vmem:[%s590 + $0x418] sm:$0xff] %v8650
      %9083 = vst.msk [vmem:[%s590 + $0x420] sm:$0xff] %vm2275, %v8917
      %9084 = vst [vmem:[%s590 + $0x428] sm:$0xff] %v7317
      %9085 = vst [vmem:[%s590 + $0x430] sm:$0xff] %v7584
      %9086 = vst [vmem:[%s590 + $0x438] sm:$0xff] %v7851
      %9087 = vst [vmem:[%s590 + $0x440] sm:$0xff] %v8118
      %9088 = vst [vmem:[%s590 + $0x448] sm:$0xff] %v8385
      %9089 = vst [vmem:[%s590 + $0x450] sm:$0xff] %v8652
      %9090 = vst.msk [vmem:[%s590 + $0x458] sm:$0xff] %vm2275, %v8919
      %9091 = vst [vmem:[%s590 + $0x460] sm:$0xff] %v7320
      %9092 = vst [vmem:[%s590 + $0x468] sm:$0xff] %v7587
      %9093 = vst [vmem:[%s590 + $0x470] sm:$0xff] %v7854
      %9094 = vst [vmem:[%s590 + $0x478] sm:$0xff] %v8121
      %9095 = vst [vmem:[%s590 + $0x480] sm:$0xff] %v8388
      %9096 = vst [vmem:[%s590 + $0x488] sm:$0xff] %v8655
      %9097 = vst.msk [vmem:[%s590 + $0x490] sm:$0xff] %vm2275, %v8922
      %9098 = vst [vmem:[%s590 + $0x498] sm:$0xff] %v7322
      %9099 = vst [vmem:[%s590 + $0x4a0] sm:$0xff] %v7589
      %9100 = vst [vmem:[%s590 + $0x4a8] sm:$0xff] %v7856
      %9101 = vst [vmem:[%s590 + $0x4b0] sm:$0xff] %v8123
      %9102 = vst [vmem:[%s590 + $0x4b8] sm:$0xff] %v8390
      %9103 = vst [vmem:[%s590 + $0x4c0] sm:$0xff] %v8657
      %9104 = vst.msk [vmem:[%s590 + $0x4c8] sm:$0xff] %vm2275, %v8924
      %9105 = vst [vmem:[%s590 + $0x4d0] sm:$0xff] %v7325
      %9106 = vst [vmem:[%s590 + $0x4d8] sm:$0xff] %v7592
      %9107 = vst [vmem:[%s590 + $0x4e0] sm:$0xff] %v7859
      %9108 = vst [vmem:[%s590 + $0x4e8] sm:$0xff] %v8126
      %9109 = vst [vmem:[%s590 + $0x4f0] sm:$0xff] %v8393
      %9110 = vst [vmem:[%s590 + $0x4f8] sm:$0xff] %v8660
      %9111 = vst.msk [vmem:[%s590 + $0x500] sm:$0xff] %vm2275, %v8927
      %9112 = vst [vmem:[%s590 + $0x508] sm:$0xff] %v7327
      %9113 = vst [vmem:[%s590 + $0x510] sm:$0xff] %v7594
      %9114 = vst [vmem:[%s590 + $0x518] sm:$0xff] %v7861
      %9115 = vst [vmem:[%s590 + $0x520] sm:$0xff] %v8128
      %9116 = vst [vmem:[%s590 + $0x528] sm:$0xff] %v8395
      %9117 = vst [vmem:[%s590 + $0x530] sm:$0xff] %v8662
      %9118 = vst.msk [vmem:[%s590 + $0x538] sm:$0xff] %vm2275, %v8929
      %9119 = vst [vmem:[%s590 + $0x540] sm:$0xff] %v7330
      %9120 = vst [vmem:[%s590 + $0x548] sm:$0xff] %v7597
      %9121 = vst [vmem:[%s590 + $0x550] sm:$0xff] %v7864
      %9122 = vst [vmem:[%s590 + $0x558] sm:$0xff] %v8131
      %9123 = vst [vmem:[%s590 + $0x560] sm:$0xff] %v8398
      %9124 = vst [vmem:[%s590 + $0x568] sm:$0xff] %v8665
      %9125 = vst.msk [vmem:[%s590 + $0x570] sm:$0xff] %vm2275, %v8932
      %9126 = vst [vmem:[%s590 + $0x578] sm:$0xff] %v7332
      %9127 = vst [vmem:[%s590 + $0x580] sm:$0xff] %v7599
      %9128 = vst [vmem:[%s590 + $0x588] sm:$0xff] %v7866
      %9129 = vst [vmem:[%s590 + $0x590] sm:$0xff] %v8133
      %9130 = vst [vmem:[%s590 + $0x598] sm:$0xff] %v8400
      %9131 = vst [vmem:[%s590 + $0x5a0] sm:$0xff] %v8667
      %9132 = vst.msk [vmem:[%s590 + $0x5a8] sm:$0xff] %vm2275, %v8934
      %9133 = vst [vmem:[%s590 + $0x5b0] sm:$0xff] %v7335
      %9134 = vst [vmem:[%s590 + $0x5b8] sm:$0xff] %v7602
      %9135 = vst [vmem:[%s590 + $0x5c0] sm:$0xff] %v7869
      %9136 = vst [vmem:[%s590 + $0x5c8] sm:$0xff] %v8136
      %9137 = vst [vmem:[%s590 + $0x5d0] sm:$0xff] %v8403
      %9138 = vst [vmem:[%s590 + $0x5d8] sm:$0xff] %v8670
      %9139 = vst.msk [vmem:[%s590 + $0x5e0] sm:$0xff] %vm2275, %v8937
      %9140 = vst [vmem:[%s590 + $0x5e8] sm:$0xff] %v7337
      %9141 = vst [vmem:[%s590 + $0x5f0] sm:$0xff] %v7604
      %9142 = vst [vmem:[%s590 + $0x5f8] sm:$0xff] %v7871
      %9143 = vst [vmem:[%s590 + $0x600] sm:$0xff] %v8138
      %9144 = vst [vmem:[%s590 + $0x608] sm:$0xff] %v8405
      %9145 = vst [vmem:[%s590 + $0x610] sm:$0xff] %v8672
      %9146 = vst.msk [vmem:[%s590 + $0x618] sm:$0xff] %vm2275, %v8939
      %9147 = vst [vmem:[%s590 + $0x620] sm:$0xff] %v7340
      %9148 = vst [vmem:[%s590 + $0x628] sm:$0xff] %v7607
      %9149 = vst [vmem:[%s590 + $0x630] sm:$0xff] %v7874
      %9150 = vst [vmem:[%s590 + $0x638] sm:$0xff] %v8141
      %9151 = vst [vmem:[%s590 + $0x640] sm:$0xff] %v8408
      %9152 = vst [vmem:[%s590 + $0x648] sm:$0xff] %v8675
      %9153 = vst.msk [vmem:[%s590 + $0x650] sm:$0xff] %vm2275, %v8942
      %9154 = vst [vmem:[%s590 + $0x658] sm:$0xff] %v7342
      %9155 = vst [vmem:[%s590 + $0x660] sm:$0xff] %v7609
      %9156 = vst [vmem:[%s590 + $0x668] sm:$0xff] %v7876
      %9157 = vst [vmem:[%s590 + $0x670] sm:$0xff] %v8143
      %9158 = vst [vmem:[%s590 + $0x678] sm:$0xff] %v8410
      %9159 = vst [vmem:[%s590 + $0x680] sm:$0xff] %v8677
      %9160 = vst.msk [vmem:[%s590 + $0x688] sm:$0xff] %vm2275, %v8944
      %9161 = vst [vmem:[%s590 + $0x690] sm:$0xff] %v7345
      %9162 = vst [vmem:[%s590 + $0x698] sm:$0xff] %v7612
      %9163 = vst [vmem:[%s590 + $0x6a0] sm:$0xff] %v7879
      %9164 = vst [vmem:[%s590 + $0x6a8] sm:$0xff] %v8146
      %9165 = vst [vmem:[%s590 + $0x6b0] sm:$0xff] %v8413
      %9166 = vst [vmem:[%s590 + $0x6b8] sm:$0xff] %v8680
      %9167 = vst.msk [vmem:[%s590 + $0x6c0] sm:$0xff] %vm2275, %v8947
      %9168 = vst [vmem:[%s590 + $0x6c8] sm:$0xff] %v7347
      %9169 = vst [vmem:[%s590 + $0x6d0] sm:$0xff] %v7614
      %9170 = vst [vmem:[%s590 + $0x6d8] sm:$0xff] %v7881
      %9171 = vst [vmem:[%s590 + $0x6e0] sm:$0xff] %v8148
      %9172 = vst [vmem:[%s590 + $0x6e8] sm:$0xff] %v8415
      %9173 = vst [vmem:[%s590 + $0x6f0] sm:$0xff] %v8682
      %9174 = vst.msk [vmem:[%s590 + $0x6f8] sm:$0xff] %vm2275, %v8949
      %s9175 = smul.u32 32, %s30
      %p9176 = scmp.lt.s32.totalorder %s9175, 63
      %s9177 = scalar_select %p9176, %s9175, 63
      %s9178 = smul.addr %s9177, 7
      %s9179 = smul.addr %s9178, 8
      %s9180 = scalar_lea.vmem %s17, %s9179
      %s9181 = smul.u32 32, %s30
      %p9182 = scmp.lt.s32.totalorder %s9181, 63
      %s9183 = scalar_select %p9182, %s9181, 63
      %s9184 = smul.addr %s9183, 8
      %s9185 = scalar_lea.vmem %s18, %s9184
      // Predicated region
      $region89: #{autoencoder_forward.1} parent=87 // pred_check
        %p9186 = pneg %p410
      $region90: #{autoencoder_forward.1} parent=87 // pred_check_branch
        %9188 = sbr.rel (%p9186) target = $region92
      $region91: #{autoencoder_forward.1} parent=87 // pred_region
        %s9189 = smul.u32 32, %s30
      $region92: #{autoencoder_forward.1} parent=87 // pred_fallthru
        _
      // Predicated region
      $region93: #{autoencoder_forward.1} parent=87 // pred_check
        %p9190 = pneg %p436
      $region94: #{autoencoder_forward.1} parent=87 // pred_check_branch
        %9192 = sbr.rel (%p9190) target = $region96
      $region95: #{autoencoder_forward.1} parent=87 // pred_region
        %s9193 = smul.u32 32, %s30
      $region96: #{autoencoder_forward.1} parent=87 // pred_fallthru
        _
    $region88: #{autoencoder_forward.1} parent=5 // pred_fallthru
      _
    %p9194 = scmp.le.s32.totalorder 2, %s25
    // Predicated region
    $region97: #{autoencoder_forward.1} parent=5 // pred_check
      %p9195 = pneg %p9194
    $region98: #{autoencoder_forward.1} parent=5 // pred_check_branch
      %9197 = sbr.rel (%p9195) target = $region100
    $region99: #{autoencoder_forward.1} parent=5 // pred_region
      %s9198 = ssub.s32 %s25, 2
      // Predicated region
      $region101: #{autoencoder_forward.1} parent=99 // pred_check
        %p9199 = pneg %p416
      $region102: #{autoencoder_forward.1} parent=99 // pred_check_branch
        %9201 = sbr.rel (%p9199) target = $region104
      $region103: #{autoencoder_forward.1} parent=99 // pred_region
        %s9202 = smul.u32 32, %s31
        %p9203 = scmp.lt.s32.totalorder %s9202, 63
        %s9204 = scalar_select %p9203, %s9202, 63
        %s9205 = smul.addr %s9204, 7
        %s9206 = smul.addr %s9205, 8
        %s9207 = scalar_lea.vmem %s17, %s9206
      $region104: #{autoencoder_forward.1} parent=99 // pred_fallthru
        _
      // Predicated region
      $region105: #{autoencoder_forward.1} parent=99 // pred_check
        %p9208 = pneg %p442
      $region106: #{autoencoder_forward.1} parent=99 // pred_check_branch
        %9210 = sbr.rel (%p9208) target = $region108
      $region107: #{autoencoder_forward.1} parent=99 // pred_region
        %s9211 = smul.u32 32, %s31
        %p9212 = scmp.lt.s32.totalorder %s9211, 63
        %s9213 = scalar_select %p9212, %s9211, 63
        %s9214 = smul.addr %s9213, 8
        %s9215 = scalar_lea.vmem %s18, %s9214
      $region108: #{autoencoder_forward.1} parent=99 // pred_fallthru
        _
    $region100: #{autoencoder_forward.1} parent=5 // pred_fallthru
      _
  $region6: #{autoencoder_forward.1} parent=0 // loop_footer
    %s29 = sadd.s32 1, %s25
  $region7: #{autoencoder_forward.1} parent=0 // loop_footer_branch
    %24 = sbr.rel target = $region3
  $region8: #{autoencoder_forward.1} parent=0 // loop_exit
    _

</llo_original>
